<compile_context>
chip_gen: v5e
topology: v5e:2x2
jax: 0.10.0
libtpu: 0.0.40
codegen_flags: <defaults>
</compile_context>

<pallas_src>
import functools

import numpy as np
import jax
import jax.numpy as jnp
from jax.experimental import pallas as pl
from jax.experimental.pallas import tpu as pltpu

# Shapes fixed by the module's reshapes (1,112,56,18)/(1,56,2,56,18):
M, N, CIN, COUT, K, J = 56, 56, 24, 96, 2, 18
SP = M * N           # 3136 flattened output spatial positions (lane axis)
SPP = 3200           # 25 * 128: lane-padded width used inside the roll kernel
ROW = 56             # one spatial row == roll granularity along the flat axis
PAD = SPP - SP       # 64 = 8 dead lanes + 56 wrap columns

# The torch module picks shift_direction = +/-1 with a coin flip at init time;
# it is exposed here as a static argument (both directions verified in __main__).
SHIFT = 1


# ----------------------------------------------------------------------------
# Kernels
# ----------------------------------------------------------------------------
def _fused_roll_kernel(x_ref, a_ns_ref, a_sh_ref, o_ref, *, roll_amt):
    """o = A_ns @ X + A_sh @ roll(X).  X is lane-padded to SPP; the wrap columns
    live in the pad so the rotate wraps exactly at a vreg boundary."""
    x = x_ref[...]                                       # [CIN, SPP]  f32
    x_sh = pltpu.roll(x, roll_amt, axis=1)               # XLU lane rotation (free slot)
    acc = (jnp.dot(a_ns_ref[...], x, preferred_element_type=jnp.float32)
           + jnp.dot(a_sh_ref[...], x_sh, preferred_element_type=jnp.float32))
    o_ref[...] = acc[:, :SP]                             # drop the 64 pad columns


def _fused_noroll_kernel(x_ref, x_sh_ref, a_ns_ref, a_sh_ref, o_ref):
    """Fallback: the rolled copy of X is prepared by the wrapper (extra HBM traffic)."""
    o_ref[...] = (jnp.dot(a_ns_ref[...], x_ref[...], preferred_element_type=jnp.float32)
                  + jnp.dot(a_sh_ref[...], x_sh_ref[...],
                            preferred_element_type=jnp.float32))


# ----------------------------------------------------------------------------
# Wrapper
# ----------------------------------------------------------------------------
@functools.partial(jax.jit, static_argnames=("shift", "impl", "roll_conv", "nblk"))
def _forward_impl(x, w1, w2, *, shift, impl, roll_conv, nblk):
    """x: [1,24,56,56]; w1: [96,2,18]; w2: [2,24,18] -> [1,96,56,56]."""
    assert shift in (1, -1)
    hp = jax.lax.Precision.HIGHEST

    # Fold W1/W2 into two [96, 24] matrices (tiny, fused by XLA).
    a0 = jnp.einsum('id,cd->ic', w1[:, 1, :], w2[0], precision=hp)   # pairs with X   (s=+1)
    a1 = jnp.einsum('id,cd->ic', w1[:, 0, :], w2[1], precision=hp)   # pairs with roll(X)
    a_ns, a_sh = (a0, a1) if shift == 1 else (a1, a0)

    # Spatial transpose: X[c, a*56 + b] = x[0, c, b, a]   (301 KB, single XLA copy).
    x_flat = jnp.transpose(x[0], (0, 2, 1)).reshape(CIN, SP)          # [24, 3136]

    cb = COUT // nblk
    sem = ("parallel",) if nblk > 1 else ("arbitrary",)

    if impl == "roll":
        # Lane-pad to 3200 and place the cyclic-wrap row inside the pad so the
        # in-kernel rotate needs no special wrap handling:
        #   s=+1: rolled cols [0,56)     <- last spatial row  (placed at 3144:3200)
        #   s=-1: rolled cols [3080,3136) <- first spatial row (placed at 3136:3192)
        zpad = jnp.zeros((CIN, PAD - ROW), x_flat.dtype)              # 8 dead lanes
        if shift == 1:
            xp = jnp.concatenate([x_flat, zpad, x_flat[:, SP - ROW:]], axis=1)
            logical = ROW                    # roll(X, +56)
        else:
            xp = jnp.concatenate([x_flat, x_flat[:, :ROW], zpad], axis=1)
            logical = SPP - ROW              # roll(X, -56) expressed non-negatively
        # roll_conv = +1 means pltpu.roll follows jnp.roll; -1 means it rotates
        # the opposite way (detected once at runtime).
        roll_amt = logical if roll_conv == 1 else SPP - logical

        y_flat = pl.pallas_call(
            functools.partial(_fused_roll_kernel, roll_amt=roll_amt),
            out_shape=jax.ShapeDtypeStruct((COUT, SP), jnp.float32),
            grid=(nblk,),
            in_specs=[
                pl.BlockSpec((CIN, SPP), lambda g: (0, 0)),   # padded X (shared)
                pl.BlockSpec((cb, CIN), lambda g: (g, 0)),    # A_ns block
                pl.BlockSpec((cb, CIN), lambda g: (g, 0)),    # A_sh block
            ],
            out_specs=pl.BlockSpec((cb, SP), lambda g: (g, 0)),
            compiler_params=pltpu.CompilerParams(dimension_semantics=sem),
            cost_estimate=pl.CostEstimate(
                flops=2 * 2 * COUT * CIN * SPP,
                transcendentals=0,
                bytes_accessed=4 * (CIN * SPP + 2 * COUT * CIN + COUT * SP)),
        )(xp, a_ns, a_sh)
    else:
        # Fallback: roll in the wrapper (well-defined jnp.roll semantics) and feed
        # both copies of X to a plain two-dot kernel.
        x_sh = jnp.roll(x_flat, ROW if shift == 1 else -ROW, axis=1)
        y_flat = pl.pallas_call(
            _fused_noroll_kernel,
            out_shape=jax.ShapeDtypeStruct((COUT, SP), jnp.float32),
            grid=(nblk,),
            in_specs=[
                pl.BlockSpec((CIN, SP), lambda g: (0, 0)),
                pl.BlockSpec((CIN, SP), lambda g: (0, 0)),
                pl.BlockSpec((cb, CIN), lambda g: (g, 0)),
                pl.BlockSpec((cb, CIN), lambda g: (g, 0)),
            ],
            out_specs=pl.BlockSpec((cb, SP), lambda g: (g, 0)),
            compiler_params=pltpu.CompilerParams(dimension_semantics=sem),
            cost_estimate=pl.CostEstimate(
                flops=2 * 2 * COUT * CIN * SP,
                transcendentals=0,
                bytes_accessed=4 * (2 * CIN * SP + 2 * COUT * CIN + COUT * SP)),
        )(x_flat, x_sh, a_ns, a_sh)

    # y_flat[i, a*56 + b] == y_torch[0, i, a, b]  -> free reshape, no output transpose.
    return y_flat.reshape(1, COUT, M, N)


def reference(x, w1, w2, shift):
    """Pure-JAX transcription of the torch forward (verification only)."""
    hp = jax.lax.Precision.HIGHEST
    t3 = jnp.einsum('limn,kij->lnkmj', x, w2, precision=hp)
    t4 = t3.reshape(1, 112, 56, 18)
    t4 = jnp.roll(t4, shift, axis=1)
    t4 = t4.reshape(1, 56, 2, 56, 18)
    return jnp.einsum('lmjnk,ijk->limn', t4, w1, precision=hp)


@functools.cache
def _num_cout_blocks():
    # 2-way "parallel" output-channel split only on 2-TensorCore chips (v7x);
    # on single-TC v5e/v6e a multi-step grid is pure per-step overhead.
    try:
        kind = jax.devices()[0].device_kind.lower()
    except Exception:
        return 1
    return 2 if ("v7" in kind or "7x" in kind) else 1


@functools.cache
def _select_impl():
    """Use the single-x-read in-kernel-roll path when this TPU/Mosaic build
    supports it (verified once, both shift directions and both possible rotate
    sign conventions); otherwise fall back to the wrapper-side roll."""
    nblk = _num_cout_blocks()
    key = jax.random.PRNGKey(123)
    kx, k1, k2 = jax.random.split(key, 3)
    tx = jax.random.normal(kx, (1, CIN, M, N), jnp.float32)
    t1 = jax.random.normal(k1, (COUT, K, J), jnp.float32)
    t2 = jax.random.normal(k2, (K, CIN, J), jnp.float32)
    want = {s: np.asarray(reference(tx, t1, t2, s)) for s in (1, -1)}
    for conv in (1, -1):
        try:
            ok = True
            for s in (1, -1):
                got = np.asarray(_forward_impl(tx, t1, t2, shift=s, impl="roll",
                                               roll_conv=conv, nblk=nblk))
                if not np.allclose(got, want[s], rtol=2e-3, atol=2e-2):
                    ok = False
                    break
            if ok:
                return ("roll", conv)
        except Exception:
            pass
    return ("noroll", 1)


def forward(x, w1, w2, shift=SHIFT):
    impl, conv = _select_impl()
    return _forward_impl(x, w1, w2, shift=shift, impl=impl,
                         roll_conv=conv, nblk=_num_cout_blocks())


if __name__ == "__main__":
    # NOTE: the module's reshapes hard-code the shapes, so smaller test shapes
    # would not be a valid instance of this forward pass.
    key = jax.random.PRNGKey(0)
    kx, k1, k2 = jax.random.split(key, 3)
    x = jax.random.normal(kx, (1, CIN, M, N), dtype=jnp.float32)   # [1, 24, 56, 56]
    w1 = jax.random.normal(k1, (COUT, K, J), dtype=jnp.float32)    # weights[0]: [96, 2, 18]
    w2 = jax.random.normal(k2, (K, CIN, J), dtype=jnp.float32)     # weights[1]: [2, 24, 18]

    # Verify both possible init-time shift directions; run the fixed SHIFT last.
    for shift in (-1, SHIFT):
        y = forward(x, w1, w2, shift)
        jax.block_until_ready(y)
        assert y.shape == (1, COUT, M, N), y.shape
        y_ref = reference(x, w1, w2, shift)
        # Loose enough for MXU pass-precision differences, ~100x tighter than any
        # structural (roll / indexing) error would produce.
        np.testing.assert_allclose(np.asarray(y), np.asarray(y_ref),
                                   rtol=1e-2, atol=1e-1)

    print("KERNEL_OK")
</pallas_src>

<mosaic_0001>
module attributes {stable_mosaic.version = 11 : i64} {
  func.func @_fused_roll_kernel(%arg0: i32, %arg1: memref<24x3200xf32, #tpu.memory_space<vmem>>, %arg2: memref<96x24xf32, #tpu.memory_space<vmem>>, %arg3: memref<96x24xf32, #tpu.memory_space<vmem>>, %arg4: memref<96x3136xf32, #tpu.memory_space<vmem>>) attributes {dimension_semantics = [#tpu.dimension_semantics<arbitrary>], iteration_bounds = array<i64: 1>, scalar_prefetch = 0 : i64, scratch_operands = 0 : i64, tpu.core_type = #tpu.core_type<tc>, window_params = [{pipeline_mode = #tpu.pipeline_mode<synchronous>, transform_indices = @transform_0, window_bounds = array<i64: 24, 3200>}, {transform_indices = @transform_1, window_bounds = array<i64: 96, 24>}, {transform_indices = @transform_2, window_bounds = array<i64: 96, 24>}, {transform_indices = @transform_3, window_bounds = array<i64: 96, 3136>}]} {
    %c0 = arith.constant 0 : index
    %c0_0 = arith.constant 0 : index
    %0 = vector.load %arg1[%c0, %c0_0] : memref<24x3200xf32, #tpu.memory_space<vmem>>, vector<24x3200xf32>
    %c56_i32 = arith.constant 56 : i32
    %1 = tpu.dynamic_rotate %0 by %c56_i32 dim 1 : vector<24x3200xf32>, i32 -> vector<24x3200xf32>
    %c0_1 = arith.constant 0 : index
    %c0_2 = arith.constant 0 : index
    %2 = vector.load %arg2[%c0_1, %c0_2] : memref<96x24xf32, #tpu.memory_space<vmem>>, vector<96x24xf32>
    %cst = arith.constant dense<0.000000e+00> : vector<96x3200xf32>
    %3 = tpu.matmul %2, %0, %cst {dimension_numbers = #tpu.dot_dimension_numbers<[1], [0], [0], [1], [0, 0, 1, 1], [], []>} : vector<96x24xf32>, vector<24x3200xf32>, vector<96x3200xf32> -> vector<96x3200xf32>
    %c0_3 = arith.constant 0 : index
    %c0_4 = arith.constant 0 : index
    %4 = vector.load %arg3[%c0_3, %c0_4] : memref<96x24xf32, #tpu.memory_space<vmem>>, vector<96x24xf32>
    %cst_5 = arith.constant dense<0.000000e+00> : vector<96x3200xf32>
    %5 = tpu.matmul %4, %1, %cst_5 {dimension_numbers = #tpu.dot_dimension_numbers<[1], [0], [0], [1], [0, 0, 1, 1], [], []>} : vector<96x24xf32>, vector<24x3200xf32>, vector<96x3200xf32> -> vector<96x3200xf32>
    %6 = arith.addf %3, %5 : vector<96x3200xf32>
    %7 = vector.extract_strided_slice %6 {offsets = [0, 0], sizes = [96, 3136], strides = [1, 1]} : vector<96x3200xf32> to vector<96x3136xf32>
    %c0_6 = arith.constant 0 : index
    %c0_7 = arith.constant 0 : index
    %8 = vector.load %arg4[%c0_6, %c0_7] : memref<96x3136xf32, #tpu.memory_space<vmem>>, vector<96x3136xf32>
    tpu.vector_store %arg4[%c0_6, %c0_7], %7 {strides = array<i32>} : memref<96x3136xf32, #tpu.memory_space<vmem>>, vector<96x3136xf32>,
    return
  }
  func.func @transform_0(%arg0: i32) -> (i32, i32) {
    %c0_i32 = arith.constant 0 : i32
    %c0_i32_0 = arith.constant 0 : i32
    %c0_i32_1 = arith.constant 0 : i32
    return %c0_i32, %c0_i32_0 : i32, i32
  }
  func.func @transform_1(%arg0: i32) -> (i32, i32) {
    %c0_i32 = arith.constant 0 : i32
    %c0_i32_0 = arith.constant 0 : i32
    return %arg0, %c0_i32 : i32, i32
  }
  func.func @transform_2(%arg0: i32) -> (i32, i32) {
    %c0_i32 = arith.constant 0 : i32
    %c0_i32_0 = arith.constant 0 : i32
    return %arg0, %c0_i32 : i32, i32
  }
  func.func @transform_3(%arg0: i32) -> (i32, i32) {
    %c0_i32 = arith.constant 0 : i32
    %c0_i32_0 = arith.constant 0 : i32
    return %arg0, %c0_i32 : i32, i32
  }
}

module attributes {stable_mosaic.version = 11 : i64} {
  func.func @_fused_roll_kernel(%arg0: i32, %arg1: memref<24x3200xf32, #tpu.memory_space<vmem>>, %arg2: memref<96x24xf32, #tpu.memory_space<vmem>>, %arg3: memref<96x24xf32, #tpu.memory_space<vmem>>, %arg4: memref<96x3136xf32, #tpu.memory_space<vmem>>) attributes {dimension_semantics = [#tpu.dimension_semantics<arbitrary>], iteration_bounds = array<i64: 1>, scalar_prefetch = 0 : i64, scratch_operands = 0 : i64, tpu.core_type = #tpu.core_type<tc>, window_params = [{pipeline_mode = #tpu.pipeline_mode<synchronous>, transform_indices = @transform_0, window_bounds = array<i64: 24, 3200>}, {transform_indices = @transform_1, window_bounds = array<i64: 96, 24>}, {transform_indices = @transform_2, window_bounds = array<i64: 96, 24>}, {transform_indices = @transform_3, window_bounds = array<i64: 96, 3136>}]} {
    %c0 = arith.constant 0 : index
    %c0_0 = arith.constant 0 : index
    %0 = vector.load %arg1[%c0, %c0_0] : memref<24x3200xf32, #tpu.memory_space<vmem>>, vector<24x3200xf32>
    %c3144_i32 = arith.constant 3144 : i32
    %1 = tpu.dynamic_rotate %0 by %c3144_i32 dim 1 : vector<24x3200xf32>, i32 -> vector<24x3200xf32>
    %c0_1 = arith.constant 0 : index
    %c0_2 = arith.constant 0 : index
    %2 = vector.load %arg2[%c0_1, %c0_2] : memref<96x24xf32, #tpu.memory_space<vmem>>, vector<96x24xf32>
    %cst = arith.constant dense<0.000000e+00> : vector<96x3200xf32>
    %3 = tpu.matmul %2, %0, %cst {dimension_numbers = #tpu.dot_dimension_numbers<[1], [0], [0], [1], [0, 0, 1, 1], [], []>} : vector<96x24xf32>, vector<24x3200xf32>, vector<96x3200xf32> -> vector<96x3200xf32>
    %c0_3 = arith.constant 0 : index
    %c0_4 = arith.constant 0 : index
    %4 = vector.load %arg3[%c0_3, %c0_4] : memref<96x24xf32, #tpu.memory_space<vmem>>, vector<96x24xf32>
    %cst_5 = arith.constant dense<0.000000e+00> : vector<96x3200xf32>
    %5 = tpu.matmul %4, %1, %cst_5 {dimension_numbers = #tpu.dot_dimension_numbers<[1], [0], [0], [1], [0, 0, 1, 1], [], []>} : vector<96x24xf32>, vector<24x3200xf32>, vector<96x3200xf32> -> vector<96x3200xf32>
    %6 = arith.addf %3, %5 : vector<96x3200xf32>
    %7 = vector.extract_strided_slice %6 {offsets = [0, 0], sizes = [96, 3136], strides = [1, 1]} : vector<96x3200xf32> to vector<96x3136xf32>
    %c0_6 = arith.constant 0 : index
    %c0_7 = arith.constant 0 : index
    %8 = vector.load %arg4[%c0_6, %c0_7] : memref<96x3136xf32, #tpu.memory_space<vmem>>, vector<96x3136xf32>
    tpu.vector_store %arg4[%c0_6, %c0_7], %7 {strides = array<i32>} : memref<96x3136xf32, #tpu.memory_space<vmem>>, vector<96x3136xf32>,
    return
  }
  func.func @transform_0(%arg0: i32) -> (i32, i32) {
    %c0_i32 = arith.constant 0 : i32
    %c0_i32_0 = arith.constant 0 : i32
    %c0_i32_1 = arith.constant 0 : i32
    return %c0_i32, %c0_i32_0 : i32, i32
  }
  func.func @transform_1(%arg0: i32) -> (i32, i32) {
    %c0_i32 = arith.constant 0 : i32
    %c0_i32_0 = arith.constant 0 : i32
    return %arg0, %c0_i32 : i32, i32
  }
  func.func @transform_2(%arg0: i32) -> (i32, i32) {
    %c0_i32 = arith.constant 0 : i32
    %c0_i32_0 = arith.constant 0 : i32
    return %arg0, %c0_i32 : i32, i32
  }
  func.func @transform_3(%arg0: i32) -> (i32, i32) {
    %c0_i32 = arith.constant 0 : i32
    %c0_i32_0 = arith.constant 0 : i32
    return %arg0, %c0_i32 : i32, i32
  }
}

module attributes {stable_mosaic.version = 11 : i64} {
  func.func @_fused_noroll_kernel(%arg0: i32, %arg1: memref<24x3136xf32, #tpu.memory_space<vmem>>, %arg2: memref<24x3136xf32, #tpu.memory_space<vmem>>, %arg3: memref<96x24xf32, #tpu.memory_space<vmem>>, %arg4: memref<96x24xf32, #tpu.memory_space<vmem>>, %arg5: memref<96x3136xf32, #tpu.memory_space<vmem>>) attributes {dimension_semantics = [#tpu.dimension_semantics<arbitrary>], iteration_bounds = array<i64: 1>, scalar_prefetch = 0 : i64, scratch_operands = 0 : i64, tpu.core_type = #tpu.core_type<tc>, window_params = [{pipeline_mode = #tpu.pipeline_mode<synchronous>, transform_indices = @transform_0, window_bounds = array<i64: 24, 3136>}, {pipeline_mode = #tpu.pipeline_mode<synchronous>, transform_indices = @transform_1, window_bounds = array<i64: 24, 3136>}, {transform_indices = @transform_2, window_bounds = array<i64: 96, 24>}, {transform_indices = @transform_3, window_bounds = array<i64: 96, 24>}, {transform_indices = @transform_4, window_bounds = array<i64: 96, 3136>}]} {
    %c0 = arith.constant 0 : index
    %c0_0 = arith.constant 0 : index
    %0 = vector.load %arg3[%c0, %c0_0] : memref<96x24xf32, #tpu.memory_space<vmem>>, vector<96x24xf32>
    %c0_1 = arith.constant 0 : index
    %c0_2 = arith.constant 0 : index
    %1 = vector.load %arg1[%c0_1, %c0_2] : memref<24x3136xf32, #tpu.memory_space<vmem>>, vector<24x3136xf32>
    %cst = arith.constant dense<0.000000e+00> : vector<96x3136xf32>
    %2 = tpu.matmul %0, %1, %cst {dimension_numbers = #tpu.dot_dimension_numbers<[1], [0], [0], [1], [0, 0, 1, 1], [], []>} : vector<96x24xf32>, vector<24x3136xf32>, vector<96x3136xf32> -> vector<96x3136xf32>
    %c0_3 = arith.constant 0 : index
    %c0_4 = arith.constant 0 : index
    %3 = vector.load %arg4[%c0_3, %c0_4] : memref<96x24xf32, #tpu.memory_space<vmem>>, vector<96x24xf32>
    %c0_5 = arith.constant 0 : index
    %c0_6 = arith.constant 0 : index
    %4 = vector.load %arg2[%c0_5, %c0_6] : memref<24x3136xf32, #tpu.memory_space<vmem>>, vector<24x3136xf32>
    %cst_7 = arith.constant dense<0.000000e+00> : vector<96x3136xf32>
    %5 = tpu.matmul %3, %4, %cst_7 {dimension_numbers = #tpu.dot_dimension_numbers<[1], [0], [0], [1], [0, 0, 1, 1], [], []>} : vector<96x24xf32>, vector<24x3136xf32>, vector<96x3136xf32> -> vector<96x3136xf32>
    %6 = arith.addf %2, %5 : vector<96x3136xf32>
    %c0_8 = arith.constant 0 : index
    %c0_9 = arith.constant 0 : index
    %7 = vector.load %arg5[%c0_8, %c0_9] : memref<96x3136xf32, #tpu.memory_space<vmem>>, vector<96x3136xf32>
    tpu.vector_store %arg5[%c0_8, %c0_9], %6 {strides = array<i32>} : memref<96x3136xf32, #tpu.memory_space<vmem>>, vector<96x3136xf32>,
    return
  }
  func.func @transform_0(%arg0: i32) -> (i32, i32) {
    %c0_i32 = arith.constant 0 : i32
    %c0_i32_0 = arith.constant 0 : i32
    %c0_i32_1 = arith.constant 0 : i32
    return %c0_i32, %c0_i32_0 : i32, i32
  }
  func.func @transform_1(%arg0: i32) -> (i32, i32) {
    %c0_i32 = arith.constant 0 : i32
    %c0_i32_0 = arith.constant 0 : i32
    %c0_i32_1 = arith.constant 0 : i32
    return %c0_i32, %c0_i32_0 : i32, i32
  }
  func.func @transform_2(%arg0: i32) -> (i32, i32) {
    %c0_i32 = arith.constant 0 : i32
    %c0_i32_0 = arith.constant 0 : i32
    return %arg0, %c0_i32 : i32, i32
  }
  func.func @transform_3(%arg0: i32) -> (i32, i32) {
    %c0_i32 = arith.constant 0 : i32
    %c0_i32_0 = arith.constant 0 : i32
    return %arg0, %c0_i32 : i32, i32
  }
  func.func @transform_4(%arg0: i32) -> (i32, i32) {
    %c0_i32 = arith.constant 0 : i32
    %c0_i32_0 = arith.constant 0 : i32
    return %arg0, %c0_i32 : i32, i32
  }
}

</mosaic_0001>

<llo_original>
// kernel: _forward_impl.1
$region0: #{_forward_impl.1}
  #allocation0 [shape = 'u32[]', space=smem, size = 0x4, offset = 0x4, fixed_abs, tag = 'smem constant byte address 0x4 - core index']
  #allocation1 [shape = 'u32[72,128]{1,0:T(1,128)}', space=vmem, size = 0x9000, scoped, tag = 'internal scratch']
  %s0 = inlined_call_operand.vmem [shape: f32[24,3200], index: 0, kind: input, shape index: {}]
  %s1 = inlined_call_operand.vmem [shape: f32[96,24], index: 1, kind: input, shape index: {}]
  %s2 = inlined_call_operand.vmem [shape: f32[96,24], index: 2, kind: input, shape index: {}]
  %s3 = inlined_call_operand.vmem [shape: f32[96,3136], index: 3, kind: output, shape index: {}]
  %s4 = sld [smem:[#allocation0]]
  $region22: #{_forward_impl.1} parent=0
    _
  %s6 = ssub.s32 1, %s4
  %s7 = scalar_select 0, %s6, %s4
  // Predicated region
  $region2: #{_forward_impl.1} parent=0 // pred_check
    _
  $region3: #{_forward_impl.1} parent=0 // pred_check_branch
    %9 = sbr.rel (0) target = $region5
  $region4: #{_forward_impl.1} parent=0 // pred_region
    _
  $region5: #{_forward_impl.1} parent=0 // pred_fallthru
    _
  // Predicated region
  $region6: #{_forward_impl.1} parent=0 // pred_check
    _
  $region7: #{_forward_impl.1} parent=0 // pred_check_branch
    %11 = sbr.rel (0) target = $region9
  $region8: #{_forward_impl.1} parent=0 // pred_region
    _
  $region9: #{_forward_impl.1} parent=0 // pred_fallthru
    _
  // Predicated region
  $region10: #{_forward_impl.1} parent=0 // pred_check
    _
  $region11: #{_forward_impl.1} parent=0 // pred_check_branch
    %13 = sbr.rel (0) target = $region13
  $region12: #{_forward_impl.1} parent=0 // pred_region
    _
  $region13: #{_forward_impl.1} parent=0 // pred_fallthru
    _
  %v14 = vld [vmem:[%s0] sm:$0xff]
  %v15 = vld [vmem:[%s0 + $0x8] sm:$0xff]
  %v16 = vld [vmem:[%s0 + $0x10] sm:$0xff]
  %v17 = vld [vmem:[%s0 + $0x18] sm:$0xff]
  %v18 = vld [vmem:[%s0 + $0x20] sm:$0xff]
  %v19 = vld [vmem:[%s0 + $0x28] sm:$0xff]
  %v20 = vld [vmem:[%s0 + $0x30] sm:$0xff]
  %v21 = vld [vmem:[%s0 + $0x38] sm:$0xff]
  %v22 = vld [vmem:[%s0 + $0x40] sm:$0xff]
  %v23 = vld [vmem:[%s0 + $0x48] sm:$0xff]
  %v24 = vld [vmem:[%s0 + $0x50] sm:$0xff]
  %v25 = vld [vmem:[%s0 + $0x58] sm:$0xff]
  %v26 = vld [vmem:[%s0 + $0x60] sm:$0xff]
  %v27 = vld [vmem:[%s0 + $0x68] sm:$0xff]
  %v28 = vld [vmem:[%s0 + $0x70] sm:$0xff]
  %v29 = vld [vmem:[%s0 + $0x78] sm:$0xff]
  %v30 = vld [vmem:[%s0 + $0x80] sm:$0xff]
  %v31 = vld [vmem:[%s0 + $0x88] sm:$0xff]
  %v32 = vld [vmem:[%s0 + $0x90] sm:$0xff]
  %v33 = vld [vmem:[%s0 + $0x98] sm:$0xff]
  %v34 = vld [vmem:[%s0 + $0xa0] sm:$0xff]
  %v35 = vld [vmem:[%s0 + $0xa8] sm:$0xff]
  %v36 = vld [vmem:[%s0 + $0xb0] sm:$0xff]
  %v37 = vld [vmem:[%s0 + $0xb8] sm:$0xff]
  %v38 = vld [vmem:[%s0 + $0xc0] sm:$0xff]
  %v39 = vld [vmem:[%s0 + $0xc8] sm:$0xff]
  %v40 = vld [vmem:[%s0 + $0xd0] sm:$0xff]
  %v41 = vld [vmem:[%s0 + $0xd8] sm:$0xff]
  %v42 = vld [vmem:[%s0 + $0xe0] sm:$0xff]
  %v43 = vld [vmem:[%s0 + $0xe8] sm:$0xff]
  %v44 = vld [vmem:[%s0 + $0xf0] sm:$0xff]
  %v45 = vld [vmem:[%s0 + $0xf8] sm:$0xff]
  %v46 = vld [vmem:[%s0 + $0x100] sm:$0xff]
  %v47 = vld [vmem:[%s0 + $0x108] sm:$0xff]
  %v48 = vld [vmem:[%s0 + $0x110] sm:$0xff]
  %v49 = vld [vmem:[%s0 + $0x118] sm:$0xff]
  %v50 = vld [vmem:[%s0 + $0x120] sm:$0xff]
  %v51 = vld [vmem:[%s0 + $0x128] sm:$0xff]
  %v52 = vld [vmem:[%s0 + $0x130] sm:$0xff]
  %v53 = vld [vmem:[%s0 + $0x138] sm:$0xff]
  %v54 = vld [vmem:[%s0 + $0x140] sm:$0xff]
  %v55 = vld [vmem:[%s0 + $0x148] sm:$0xff]
  %v56 = vld [vmem:[%s0 + $0x150] sm:$0xff]
  %v57 = vld [vmem:[%s0 + $0x158] sm:$0xff]
  %v58 = vld [vmem:[%s0 + $0x160] sm:$0xff]
  %v59 = vld [vmem:[%s0 + $0x168] sm:$0xff]
  %v60 = vld [vmem:[%s0 + $0x170] sm:$0xff]
  %v61 = vld [vmem:[%s0 + $0x178] sm:$0xff]
  %v62 = vld [vmem:[%s0 + $0x180] sm:$0xff]
  %v63 = vld [vmem:[%s0 + $0x188] sm:$0xff]
  %v64 = vld [vmem:[%s0 + $0x190] sm:$0xff]
  %v65 = vld [vmem:[%s0 + $0x198] sm:$0xff]
  %v66 = vld [vmem:[%s0 + $0x1a0] sm:$0xff]
  %v67 = vld [vmem:[%s0 + $0x1a8] sm:$0xff]
  %v68 = vld [vmem:[%s0 + $0x1b0] sm:$0xff]
  %v69 = vld [vmem:[%s0 + $0x1b8] sm:$0xff]
  %v70 = vld [vmem:[%s0 + $0x1c0] sm:$0xff]
  %v71 = vld [vmem:[%s0 + $0x1c8] sm:$0xff]
  %v72 = vld [vmem:[%s0 + $0x1d0] sm:$0xff]
  %v73 = vld [vmem:[%s0 + $0x1d8] sm:$0xff]
  %v74 = vld [vmem:[%s0 + $0x1e0] sm:$0xff]
  %v75 = vld [vmem:[%s0 + $0x1e8] sm:$0xff]
  %v76 = vld [vmem:[%s0 + $0x1f0] sm:$0xff]
  %v77 = vld [vmem:[%s0 + $0x1f8] sm:$0xff]
  %v78 = vld [vmem:[%s0 + $0x200] sm:$0xff]
  %v79 = vld [vmem:[%s0 + $0x208] sm:$0xff]
  %v80 = vld [vmem:[%s0 + $0x210] sm:$0xff]
  %v81 = vld [vmem:[%s0 + $0x218] sm:$0xff]
  %v82 = vld [vmem:[%s0 + $0x220] sm:$0xff]
  %v83 = vld [vmem:[%s0 + $0x228] sm:$0xff]
  %v84 = vld [vmem:[%s0 + $0x230] sm:$0xff]
  %v85 = vld [vmem:[%s0 + $0x238] sm:$0xff]
  %v86 = vld [vmem:[%s0 + $0x240] sm:$0xff]
  %v87 = vld [vmem:[%s0 + $0x248] sm:$0xff]
  %v88 = vld [vmem:[%s0 + $0x250] sm:$0xff]
  %89 = vrot.lane.b32.xlu0 %v14, 56
  %v90 = vpop.permute.xlu0 %89
  %91 = vrot.lane.b32.xlu0 %v39, 56
  %v92 = vpop.permute.xlu0 %91
  %93 = vrot.lane.b32.xlu0 %v64, 56
  %v94 = vpop.permute.xlu0 %93
  %95 = vrot.lane.b32.xlu0 %v15, 56
  %v96 = vpop.permute.xlu0 %95
  %97 = vrot.lane.b32.xlu0 %v40, 56
  %v98 = vpop.permute.xlu0 %97
  %99 = vrot.lane.b32.xlu0 %v65, 56
  %v100 = vpop.permute.xlu0 %99
  %101 = vrot.lane.b32.xlu0 %v16, 56
  %v102 = vpop.permute.xlu0 %101
  %103 = vrot.lane.b32.xlu0 %v41, 56
  %v104 = vpop.permute.xlu0 %103
  %105 = vrot.lane.b32.xlu0 %v66, 56
  %v106 = vpop.permute.xlu0 %105
  %107 = vrot.lane.b32.xlu0 %v17, 56
  %v108 = vpop.permute.xlu0 %107
  %109 = vrot.lane.b32.xlu0 %v42, 56
  %v110 = vpop.permute.xlu0 %109
  %111 = vrot.lane.b32.xlu0 %v67, 56
  %v112 = vpop.permute.xlu0 %111
  %113 = vrot.lane.b32.xlu0 %v18, 56
  %v114 = vpop.permute.xlu0 %113
  %115 = vrot.lane.b32.xlu0 %v43, 56
  %v116 = vpop.permute.xlu0 %115
  %117 = vrot.lane.b32.xlu0 %v68, 56
  %v118 = vpop.permute.xlu0 %117
  %119 = vrot.lane.b32.xlu0 %v19, 56
  %v120 = vpop.permute.xlu0 %119
  %121 = vrot.lane.b32.xlu0 %v44, 56
  %v122 = vpop.permute.xlu0 %121
  %123 = vrot.lane.b32.xlu0 %v69, 56
  %v124 = vpop.permute.xlu0 %123
  %125 = vrot.lane.b32.xlu0 %v20, 56
  %v126 = vpop.permute.xlu0 %125
  %127 = vrot.lane.b32.xlu0 %v45, 56
  %v128 = vpop.permute.xlu0 %127
  %129 = vrot.lane.b32.xlu0 %v70, 56
  %v130 = vpop.permute.xlu0 %129
  %131 = vrot.lane.b32.xlu0 %v21, 56
  %v132 = vpop.permute.xlu0 %131
  %133 = vrot.lane.b32.xlu0 %v46, 56
  %v134 = vpop.permute.xlu0 %133
  %135 = vrot.lane.b32.xlu0 %v71, 56
  %v136 = vpop.permute.xlu0 %135
  %137 = vrot.lane.b32.xlu0 %v22, 56
  %v138 = vpop.permute.xlu0 %137
  %139 = vrot.lane.b32.xlu0 %v47, 56
  %v140 = vpop.permute.xlu0 %139
  %141 = vrot.lane.b32.xlu0 %v72, 56
  %v142 = vpop.permute.xlu0 %141
  %143 = vrot.lane.b32.xlu0 %v23, 56
  %v144 = vpop.permute.xlu0 %143
  %145 = vrot.lane.b32.xlu0 %v48, 56
  %v146 = vpop.permute.xlu0 %145
  %147 = vrot.lane.b32.xlu0 %v73, 56
  %v148 = vpop.permute.xlu0 %147
  %149 = vrot.lane.b32.xlu0 %v24, 56
  %v150 = vpop.permute.xlu0 %149
  %151 = vrot.lane.b32.xlu0 %v49, 56
  %v152 = vpop.permute.xlu0 %151
  %153 = vrot.lane.b32.xlu0 %v74, 56
  %v154 = vpop.permute.xlu0 %153
  %155 = vrot.lane.b32.xlu0 %v25, 56
  %v156 = vpop.permute.xlu0 %155
  %157 = vrot.lane.b32.xlu0 %v50, 56
  %v158 = vpop.permute.xlu0 %157
  %159 = vrot.lane.b32.xlu0 %v75, 56
  %v160 = vpop.permute.xlu0 %159
  %161 = vrot.lane.b32.xlu0 %v26, 56
  %v162 = vpop.permute.xlu0 %161
  %163 = vrot.lane.b32.xlu0 %v51, 56
  %v164 = vpop.permute.xlu0 %163
  %165 = vrot.lane.b32.xlu0 %v76, 56
  %v166 = vpop.permute.xlu0 %165
  %167 = vrot.lane.b32.xlu0 %v27, 56
  %v168 = vpop.permute.xlu0 %167
  %169 = vrot.lane.b32.xlu0 %v52, 56
  %v170 = vpop.permute.xlu0 %169
  %171 = vrot.lane.b32.xlu0 %v77, 56
  %v172 = vpop.permute.xlu0 %171
  %173 = vrot.lane.b32.xlu0 %v28, 56
  %v174 = vpop.permute.xlu0 %173
  %175 = vrot.lane.b32.xlu0 %v53, 56
  %v176 = vpop.permute.xlu0 %175
  %177 = vrot.lane.b32.xlu0 %v78, 56
  %v178 = vpop.permute.xlu0 %177
  %179 = vrot.lane.b32.xlu0 %v29, 56
  %v180 = vpop.permute.xlu0 %179
  %181 = vrot.lane.b32.xlu0 %v54, 56
  %v182 = vpop.permute.xlu0 %181
  %183 = vrot.lane.b32.xlu0 %v79, 56
  %v184 = vpop.permute.xlu0 %183
  %185 = vrot.lane.b32.xlu0 %v30, 56
  %v186 = vpop.permute.xlu0 %185
  %187 = vrot.lane.b32.xlu0 %v55, 56
  %v188 = vpop.permute.xlu0 %187
  %189 = vrot.lane.b32.xlu0 %v80, 56
  %v190 = vpop.permute.xlu0 %189
  %191 = vrot.lane.b32.xlu0 %v31, 56
  %v192 = vpop.permute.xlu0 %191
  %193 = vrot.lane.b32.xlu0 %v56, 56
  %v194 = vpop.permute.xlu0 %193
  %195 = vrot.lane.b32.xlu0 %v81, 56
  %v196 = vpop.permute.xlu0 %195
  %197 = vrot.lane.b32.xlu0 %v32, 56
  %v198 = vpop.permute.xlu0 %197
  %199 = vrot.lane.b32.xlu0 %v57, 56
  %v200 = vpop.permute.xlu0 %199
  %201 = vrot.lane.b32.xlu0 %v82, 56
  %v202 = vpop.permute.xlu0 %201
  %203 = vrot.lane.b32.xlu0 %v33, 56
  %v204 = vpop.permute.xlu0 %203
  %205 = vrot.lane.b32.xlu0 %v58, 56
  %v206 = vpop.permute.xlu0 %205
  %207 = vrot.lane.b32.xlu0 %v83, 56
  %v208 = vpop.permute.xlu0 %207
  %209 = vrot.lane.b32.xlu0 %v34, 56
  %v210 = vpop.permute.xlu0 %209
  %211 = vrot.lane.b32.xlu0 %v59, 56
  %v212 = vpop.permute.xlu0 %211
  %213 = vrot.lane.b32.xlu0 %v84, 56
  %v214 = vpop.permute.xlu0 %213
  %215 = vrot.lane.b32.xlu0 %v35, 56
  %v216 = vpop.permute.xlu0 %215
  %217 = vrot.lane.b32.xlu0 %v60, 56
  %v218 = vpop.permute.xlu0 %217
  %219 = vrot.lane.b32.xlu0 %v85, 56
  %v220 = vpop.permute.xlu0 %219
  %221 = vrot.lane.b32.xlu0 %v36, 56
  %v222 = vpop.permute.xlu0 %221
  %223 = vrot.lane.b32.xlu0 %v61, 56
  %v224 = vpop.permute.xlu0 %223
  %225 = vrot.lane.b32.xlu0 %v86, 56
  %v226 = vpop.permute.xlu0 %225
  %227 = vrot.lane.b32.xlu0 %v37, 56
  %v228 = vpop.permute.xlu0 %227
  %229 = vrot.lane.b32.xlu0 %v62, 56
  %v230 = vpop.permute.xlu0 %229
  %231 = vrot.lane.b32.xlu0 %v87, 56
  %v232 = vpop.permute.xlu0 %231
  %233 = vrot.lane.b32.xlu0 %v38, 56
  %v234 = vpop.permute.xlu0 %233
  %235 = vrot.lane.b32.xlu0 %v63, 56
  %v236 = vpop.permute.xlu0 %235
  %237 = vrot.lane.b32.xlu0 %v88, 56
  %v238 = vpop.permute.xlu0 %237
  %v239 = vlaneseq
  %v240 = vand.u32 %v239, 127
  %vm241 = vcmp.lt.s32.totalorder %v240, 56
  %v242 = vsel %vm241, %v228, %v234
  %v243 = vsel %vm241, %v230, %v236
  %v244 = vsel %vm241, %v232, %v238
  %v245 = vsel %vm241, %v222, %v228
  %v246 = vsel %vm241, %v224, %v230
  %v247 = vsel %vm241, %v226, %v232
  %v248 = vsel %vm241, %v216, %v222
  %v249 = vsel %vm241, %v218, %v224
  %v250 = vsel %vm241, %v220, %v226
  %v251 = vsel %vm241, %v210, %v216
  %v252 = vsel %vm241, %v212, %v218
  %v253 = vsel %vm241, %v214, %v220
  %v254 = vsel %vm241, %v204, %v210
  %v255 = vsel %vm241, %v206, %v212
  %v256 = vsel %vm241, %v208, %v214
  %v257 = vsel %vm241, %v198, %v204
  %v258 = vsel %vm241, %v200, %v206
  %v259 = vsel %vm241, %v202, %v208
  %v260 = vsel %vm241, %v192, %v198
  %v261 = vsel %vm241, %v194, %v200
  %v262 = vsel %vm241, %v196, %v202
  %v263 = vsel %vm241, %v186, %v192
  %v264 = vsel %vm241, %v188, %v194
  %v265 = vsel %vm241, %v190, %v196
  %v266 = vsel %vm241, %v180, %v186
  %v267 = vsel %vm241, %v182, %v188
  %v268 = vsel %vm241, %v184, %v190
  %v269 = vsel %vm241, %v174, %v180
  %v270 = vsel %vm241, %v176, %v182
  %v271 = vsel %vm241, %v178, %v184
  %v272 = vsel %vm241, %v168, %v174
  %v273 = vsel %vm241, %v170, %v176
  %v274 = vsel %vm241, %v172, %v178
  %v275 = vsel %vm241, %v162, %v168
  %v276 = vsel %vm241, %v164, %v170
  %v277 = vsel %vm241, %v166, %v172
  %v278 = vsel %vm241, %v156, %v162
  %v279 = vsel %vm241, %v158, %v164
  %v280 = vsel %vm241, %v160, %v166
  %v281 = vsel %vm241, %v150, %v156
  %v282 = vsel %vm241, %v152, %v158
  %v283 = vsel %vm241, %v154, %v160
  %v284 = vsel %vm241, %v144, %v150
  %v285 = vsel %vm241, %v146, %v152
  %v286 = vsel %vm241, %v148, %v154
  %v287 = vsel %vm241, %v138, %v144
  %v288 = vsel %vm241, %v140, %v146
  %v289 = vsel %vm241, %v142, %v148
  %v290 = vsel %vm241, %v132, %v138
  %v291 = vsel %vm241, %v134, %v140
  %v292 = vsel %vm241, %v136, %v142
  %v293 = vsel %vm241, %v126, %v132
  %v294 = vsel %vm241, %v128, %v134
  %v295 = vsel %vm241, %v130, %v136
  %v296 = vsel %vm241, %v120, %v126
  %v297 = vsel %vm241, %v122, %v128
  %v298 = vsel %vm241, %v124, %v130
  %v299 = vsel %vm241, %v114, %v120
  %v300 = vsel %vm241, %v116, %v122
  %v301 = vsel %vm241, %v118, %v124
  %v302 = vsel %vm241, %v108, %v114
  %v303 = vsel %vm241, %v110, %v116
  %v304 = vsel %vm241, %v112, %v118
  %v305 = vsel %vm241, %v102, %v108
  %v306 = vsel %vm241, %v104, %v110
  %v307 = vsel %vm241, %v106, %v112
  %v308 = vsel %vm241, %v96, %v102
  %v309 = vsel %vm241, %v98, %v104
  %v310 = vsel %vm241, %v100, %v106
  %v311 = vsel %vm241, %v90, %v96
  %v312 = vsel %vm241, %v92, %v98
  %v313 = vsel %vm241, %v94, %v100
  %v314 = vsel %vm241, %v234, %v90
  %v315 = vsel %vm241, %v236, %v92
  %v316 = vsel %vm241, %v238, %v94
  %v317 = vld [vmem:[%s1] sm:$0xff]
  %v318 = vld [vmem:[%s1 + $0x8] sm:$0xff]
  %v319 = vld [vmem:[%s1 + $0x10] sm:$0xff]
  %v320 = vld [vmem:[%s1 + $0x18] sm:$0xff]
  %v321 = vld [vmem:[%s1 + $0x20] sm:$0xff]
  %v322 = vld [vmem:[%s1 + $0x28] sm:$0xff]
  %v323 = vld [vmem:[%s1 + $0x30] sm:$0xff]
  %v324 = vld [vmem:[%s1 + $0x38] sm:$0xff]
  %v325 = vld [vmem:[%s1 + $0x40] sm:$0xff]
  %v326 = vld [vmem:[%s1 + $0x48] sm:$0xff]
  %v327 = vld [vmem:[%s1 + $0x50] sm:$0xff]
  %v328 = vld [vmem:[%s1 + $0x58] sm:$0xff]
  %v329 = vld [vmem:[%s2] sm:$0xff]
  %v330 = vld [vmem:[%s2 + $0x8] sm:$0xff]
  %v331 = vld [vmem:[%s2 + $0x10] sm:$0xff]
  %v332 = vld [vmem:[%s2 + $0x18] sm:$0xff]
  %v333 = vld [vmem:[%s2 + $0x20] sm:$0xff]
  %v334 = vld [vmem:[%s2 + $0x28] sm:$0xff]
  %v335 = vld [vmem:[%s2 + $0x30] sm:$0xff]
  %v336 = vld [vmem:[%s2 + $0x38] sm:$0xff]
  %v337 = vld [vmem:[%s2 + $0x40] sm:$0xff]
  %v338 = vld [vmem:[%s2 + $0x48] sm:$0xff]
  %v339 = vld [vmem:[%s2 + $0x50] sm:$0xff]
  %v340 = vld [vmem:[%s2 + $0x58] sm:$0xff]
  %vm341 = vcmask 195584
  %v343 = vsel %vm341, %v329, 0
  %v346 = vsel %vm341, %v330, 0
  %v349 = vsel %vm341, %v331, 0
  %v352 = vsel %vm341, %v332, 0
  %v355 = vsel %vm341, %v333, 0
  %v358 = vsel %vm341, %v334, 0
  %v361 = vsel %vm341, %v335, 0
  %v364 = vsel %vm341, %v336, 0
  %v367 = vsel %vm341, %v337, 0
  %v370 = vsel %vm341, %v338, 0
  %v373 = vsel %vm341, %v339, 0
  %v376 = vsel %vm341, %v340, 0
  %378 = vmatpush.msra.mxu0 0.0
  %379 = vmatpush.msra.mxu0 0.0
  %380 = vmatpush.msra.mxu0 0.0
  %381 = vmatpush.msra.mxu0 0.0
  %382 = vmatpush.msra.mxu0 0.0
  %383 = vmatpush.msra.mxu0 0.0
  %384 = vmatpush.msra.mxu0 0.0
  %385 = vmatpush.msra.mxu0 0.0
  %386 = vmatpush.msra.mxu0 0.0
  %387 = vmatpush.msra.mxu0 0.0
  %388 = vmatpush.msra.mxu0 0.0
  %389 = vmatpush.msra.mxu0 0.0
  %390 = vmatpush.msra.mxu0 0.0
  %391 = vmatpush.msra.mxu0 %v316
  %392 = vmatpush.msra.mxu0 %v315
  %393 = vmatpush.msra.mxu0 %v314
  %394 = vmatmul.f32.gmra.mxu0 %v343
  %v395 = vpop.f32.mrf.mxu0
  %v396 = vadd.f32 0.0, %v395
  %397 = vmatmul.f32.gmra.mxu0 %v346
  %v398 = vpop.f32.mrf.mxu0
  %v399 = vadd.f32 0.0, %v398
  %400 = vmatmul.f32.gmra.mxu0 %v349
  %v401 = vpop.f32.mrf.mxu0
  %v402 = vadd.f32 0.0, %v401
  %403 = vmatmul.f32.gmra.mxu0 %v352
  %v404 = vpop.f32.mrf.mxu0
  %v405 = vadd.f32 0.0, %v404
  %406 = vmatmul.f32.gmra.mxu0 %v355
  %v407 = vpop.f32.mrf.mxu0
  %v408 = vadd.f32 0.0, %v407
  %409 = vmatmul.f32.gmra.mxu0 %v358
  %v410 = vpop.f32.mrf.mxu0
  %v411 = vadd.f32 0.0, %v410
  %412 = vmatmul.f32.gmra.mxu0 %v361
  %v413 = vpop.f32.mrf.mxu0
  %v414 = vadd.f32 0.0, %v413
  %415 = vmatmul.f32.gmra.mxu0 %v364
  %v416 = vpop.f32.mrf.mxu0
  %v417 = vadd.f32 0.0, %v416
  %418 = vmatmul.f32.gmra.mxu0 %v367
  %v419 = vpop.f32.mrf.mxu0
  %v420 = vadd.f32 0.0, %v419
  %421 = vmatmul.f32.gmra.mxu0 %v370
  %v422 = vpop.f32.mrf.mxu0
  %v423 = vadd.f32 0.0, %v422
  %424 = vmatmul.f32.gmra.mxu0 %v373
  %v425 = vpop.f32.mrf.mxu0
  %v426 = vadd.f32 0.0, %v425
  %427 = vmatmul.f32.gmra.mxu0 %v376
  %v428 = vpop.f32.mrf.mxu0
  %v429 = vadd.f32 0.0, %v428
  %430 = vdwg.mxu0
  %431 = vmatpush.msra.mxu0 0.0
  %432 = vmatpush.msra.mxu0 0.0
  %433 = vmatpush.msra.mxu0 0.0
  %434 = vmatpush.msra.mxu0 0.0
  %435 = vmatpush.msra.mxu0 0.0
  %436 = vmatpush.msra.mxu0 0.0
  %437 = vmatpush.msra.mxu0 0.0
  %438 = vmatpush.msra.mxu0 0.0
  %439 = vmatpush.msra.mxu0 0.0
  %440 = vmatpush.msra.mxu0 0.0
  %441 = vmatpush.msra.mxu0 0.0
  %442 = vmatpush.msra.mxu0 0.0
  %443 = vmatpush.msra.mxu0 0.0
  %444 = vmatpush.msra.mxu0 %v313
  %445 = vmatpush.msra.mxu0 %v312
  %446 = vmatpush.msra.mxu0 %v311
  %447 = vmatmul.f32.gmra.mxu0 %v343
  %v448 = vpop.f32.mrf.mxu0
  %v449 = vadd.f32 0.0, %v448
  %450 = vmatmul.f32.gmra.mxu0 %v346
  %v451 = vpop.f32.mrf.mxu0
  %v452 = vadd.f32 0.0, %v451
  %453 = vmatmul.f32.gmra.mxu0 %v349
  %v454 = vpop.f32.mrf.mxu0
  %v455 = vadd.f32 0.0, %v454
  %456 = vmatmul.f32.gmra.mxu0 %v352
  %v457 = vpop.f32.mrf.mxu0
  %v458 = vadd.f32 0.0, %v457
  %459 = vmatmul.f32.gmra.mxu0 %v355
  %v460 = vpop.f32.mrf.mxu0
  %v461 = vadd.f32 0.0, %v460
  %462 = vmatmul.f32.gmra.mxu0 %v358
  %v463 = vpop.f32.mrf.mxu0
  %v464 = vadd.f32 0.0, %v463
  %465 = vmatmul.f32.gmra.mxu0 %v361
  %v466 = vpop.f32.mrf.mxu0
  %v467 = vadd.f32 0.0, %v466
  %468 = vmatmul.f32.gmra.mxu0 %v364
  %v469 = vpop.f32.mrf.mxu0
  %v470 = vadd.f32 0.0, %v469
  %471 = vmatmul.f32.gmra.mxu0 %v367
  %v472 = vpop.f32.mrf.mxu0
  %v473 = vadd.f32 0.0, %v472
  %474 = vmatmul.f32.gmra.mxu0 %v370
  %v475 = vpop.f32.mrf.mxu0
  %v476 = vadd.f32 0.0, %v475
  %477 = vmatmul.f32.gmra.mxu0 %v373
  %v478 = vpop.f32.mrf.mxu0
  %v479 = vadd.f32 0.0, %v478
  %480 = vmatmul.f32.gmra.mxu0 %v376
  %v481 = vpop.f32.mrf.mxu0
  %v482 = vadd.f32 0.0, %v481
  %483 = vdwg.mxu0
  %484 = vmatpush.msra.mxu0 0.0
  %485 = vmatpush.msra.mxu0 0.0
  %486 = vmatpush.msra.mxu0 0.0
  %487 = vmatpush.msra.mxu0 0.0
  %488 = vmatpush.msra.mxu0 0.0
  %489 = vmatpush.msra.mxu0 0.0
  %490 = vmatpush.msra.mxu0 0.0
  %491 = vmatpush.msra.mxu0 0.0
  %492 = vmatpush.msra.mxu0 0.0
  %493 = vmatpush.msra.mxu0 0.0
  %494 = vmatpush.msra.mxu0 0.0
  %495 = vmatpush.msra.mxu0 0.0
  %496 = vmatpush.msra.mxu0 0.0
  %497 = vmatpush.msra.mxu0 %v310
  %498 = vmatpush.msra.mxu0 %v309
  %499 = vmatpush.msra.mxu0 %v308
  %500 = vmatmul.f32.gmra.mxu0 %v343
  %v501 = vpop.f32.mrf.mxu0
  %v502 = vadd.f32 0.0, %v501
  %503 = vmatmul.f32.gmra.mxu0 %v346
  %v504 = vpop.f32.mrf.mxu0
  %v505 = vadd.f32 0.0, %v504
  %506 = vmatmul.f32.gmra.mxu0 %v349
  %v507 = vpop.f32.mrf.mxu0
  %v508 = vadd.f32 0.0, %v507
  %509 = vmatmul.f32.gmra.mxu0 %v352
  %v510 = vpop.f32.mrf.mxu0
  %v511 = vadd.f32 0.0, %v510
  %512 = vmatmul.f32.gmra.mxu0 %v355
  %v513 = vpop.f32.mrf.mxu0
  %v514 = vadd.f32 0.0, %v513
  %515 = vmatmul.f32.gmra.mxu0 %v358
  %v516 = vpop.f32.mrf.mxu0
  %v517 = vadd.f32 0.0, %v516
  %518 = vmatmul.f32.gmra.mxu0 %v361
  %v519 = vpop.f32.mrf.mxu0
  %v520 = vadd.f32 0.0, %v519
  %521 = vmatmul.f32.gmra.mxu0 %v364
  %v522 = vpop.f32.mrf.mxu0
  %v523 = vadd.f32 0.0, %v522
  %524 = vmatmul.f32.gmra.mxu0 %v367
  %v525 = vpop.f32.mrf.mxu0
  %v526 = vadd.f32 0.0, %v525
  %527 = vmatmul.f32.gmra.mxu0 %v370
  %v528 = vpop.f32.mrf.mxu0
  %v529 = vadd.f32 0.0, %v528
  %530 = vmatmul.f32.gmra.mxu0 %v373
  %v531 = vpop.f32.mrf.mxu0
  %v532 = vadd.f32 0.0, %v531
  %533 = vmatmul.f32.gmra.mxu0 %v376
  %v534 = vpop.f32.mrf.mxu0
  %v535 = vadd.f32 0.0, %v534
  %536 = vdwg.mxu0
  %537 = vmatpush.msra.mxu0 0.0
  %538 = vmatpush.msra.mxu0 0.0
  %539 = vmatpush.msra.mxu0 0.0
  %540 = vmatpush.msra.mxu0 0.0
  %541 = vmatpush.msra.mxu0 0.0
  %542 = vmatpush.msra.mxu0 0.0
  %543 = vmatpush.msra.mxu0 0.0
  %544 = vmatpush.msra.mxu0 0.0
  %545 = vmatpush.msra.mxu0 0.0
  %546 = vmatpush.msra.mxu0 0.0
  %547 = vmatpush.msra.mxu0 0.0
  %548 = vmatpush.msra.mxu0 0.0
  %549 = vmatpush.msra.mxu0 0.0
  %550 = vmatpush.msra.mxu0 %v307
  %551 = vmatpush.msra.mxu0 %v306
  %552 = vmatpush.msra.mxu0 %v305
  %553 = vmatmul.f32.gmra.mxu0 %v343
  %v554 = vpop.f32.mrf.mxu0
  %v555 = vadd.f32 0.0, %v554
  %556 = vmatmul.f32.gmra.mxu0 %v346
  %v557 = vpop.f32.mrf.mxu0
  %v558 = vadd.f32 0.0, %v557
  %559 = vmatmul.f32.gmra.mxu0 %v349
  %v560 = vpop.f32.mrf.mxu0
  %v561 = vadd.f32 0.0, %v560
  %562 = vmatmul.f32.gmra.mxu0 %v352
  %v563 = vpop.f32.mrf.mxu0
  %v564 = vadd.f32 0.0, %v563
  %565 = vmatmul.f32.gmra.mxu0 %v355
  %v566 = vpop.f32.mrf.mxu0
  %v567 = vadd.f32 0.0, %v566
  %568 = vmatmul.f32.gmra.mxu0 %v358
  %v569 = vpop.f32.mrf.mxu0
  %v570 = vadd.f32 0.0, %v569
  %571 = vmatmul.f32.gmra.mxu0 %v361
  %v572 = vpop.f32.mrf.mxu0
  %v573 = vadd.f32 0.0, %v572
  %574 = vmatmul.f32.gmra.mxu0 %v364
  %v575 = vpop.f32.mrf.mxu0
  %v576 = vadd.f32 0.0, %v575
  %577 = vmatmul.f32.gmra.mxu0 %v367
  %v578 = vpop.f32.mrf.mxu0
  %v579 = vadd.f32 0.0, %v578
  %580 = vmatmul.f32.gmra.mxu0 %v370
  %v581 = vpop.f32.mrf.mxu0
  %v582 = vadd.f32 0.0, %v581
  %583 = vmatmul.f32.gmra.mxu0 %v373
  %v584 = vpop.f32.mrf.mxu0
  %v585 = vadd.f32 0.0, %v584
  %586 = vmatmul.f32.gmra.mxu0 %v376
  %v587 = vpop.f32.mrf.mxu0
  %v588 = vadd.f32 0.0, %v587
  %589 = vdwg.mxu0
  %590 = vmatpush.msra.mxu0 0.0
  %591 = vmatpush.msra.mxu0 0.0
  %592 = vmatpush.msra.mxu0 0.0
  %593 = vmatpush.msra.mxu0 0.0
  %594 = vmatpush.msra.mxu0 0.0
  %595 = vmatpush.msra.mxu0 0.0
  %596 = vmatpush.msra.mxu0 0.0
  %597 = vmatpush.msra.mxu0 0.0
  %598 = vmatpush.msra.mxu0 0.0
  %599 = vmatpush.msra.mxu0 0.0
  %600 = vmatpush.msra.mxu0 0.0
  %601 = vmatpush.msra.mxu0 0.0
  %602 = vmatpush.msra.mxu0 0.0
  %603 = vmatpush.msra.mxu0 %v304
  %604 = vmatpush.msra.mxu0 %v303
  %605 = vmatpush.msra.mxu0 %v302
  %606 = vmatmul.f32.gmra.mxu0 %v343
  %v607 = vpop.f32.mrf.mxu0
  %v608 = vadd.f32 0.0, %v607
  %609 = vmatmul.f32.gmra.mxu0 %v346
  %v610 = vpop.f32.mrf.mxu0
  %v611 = vadd.f32 0.0, %v610
  %612 = vmatmul.f32.gmra.mxu0 %v349
  %v613 = vpop.f32.mrf.mxu0
  %v614 = vadd.f32 0.0, %v613
  %615 = vmatmul.f32.gmra.mxu0 %v352
  %v616 = vpop.f32.mrf.mxu0
  %v617 = vadd.f32 0.0, %v616
  %618 = vmatmul.f32.gmra.mxu0 %v355
  %v619 = vpop.f32.mrf.mxu0
  %v620 = vadd.f32 0.0, %v619
  %621 = vmatmul.f32.gmra.mxu0 %v358
  %v622 = vpop.f32.mrf.mxu0
  %v623 = vadd.f32 0.0, %v622
  %624 = vmatmul.f32.gmra.mxu0 %v361
  %v625 = vpop.f32.mrf.mxu0
  %v626 = vadd.f32 0.0, %v625
  %627 = vmatmul.f32.gmra.mxu0 %v364
  %v628 = vpop.f32.mrf.mxu0
  %v629 = vadd.f32 0.0, %v628
  %630 = vmatmul.f32.gmra.mxu0 %v367
  %v631 = vpop.f32.mrf.mxu0
  %v632 = vadd.f32 0.0, %v631
  %633 = vmatmul.f32.gmra.mxu0 %v370
  %v634 = vpop.f32.mrf.mxu0
  %v635 = vadd.f32 0.0, %v634
  %636 = vmatmul.f32.gmra.mxu0 %v373
  %v637 = vpop.f32.mrf.mxu0
  %v638 = vadd.f32 0.0, %v637
  %639 = vmatmul.f32.gmra.mxu0 %v376
  %v640 = vpop.f32.mrf.mxu0
  %v641 = vadd.f32 0.0, %v640
  %642 = vdwg.mxu0
  %643 = vmatpush.msra.mxu0 0.0
  %644 = vmatpush.msra.mxu0 0.0
  %645 = vmatpush.msra.mxu0 0.0
  %646 = vmatpush.msra.mxu0 0.0
  %647 = vmatpush.msra.mxu0 0.0
  %648 = vmatpush.msra.mxu0 0.0
  %649 = vmatpush.msra.mxu0 0.0
  %650 = vmatpush.msra.mxu0 0.0
  %651 = vmatpush.msra.mxu0 0.0
  %652 = vmatpush.msra.mxu0 0.0
  %653 = vmatpush.msra.mxu0 0.0
  %654 = vmatpush.msra.mxu0 0.0
  %655 = vmatpush.msra.mxu0 0.0
  %656 = vmatpush.msra.mxu0 %v301
  %657 = vmatpush.msra.mxu0 %v300
  %658 = vmatpush.msra.mxu0 %v299
  %659 = vmatmul.f32.gmra.mxu0 %v343
  %v660 = vpop.f32.mrf.mxu0
  %v661 = vadd.f32 0.0, %v660
  %662 = vmatmul.f32.gmra.mxu0 %v346
  %v663 = vpop.f32.mrf.mxu0
  %v664 = vadd.f32 0.0, %v663
  %665 = vmatmul.f32.gmra.mxu0 %v349
  %v666 = vpop.f32.mrf.mxu0
  %v667 = vadd.f32 0.0, %v666
  %668 = vmatmul.f32.gmra.mxu0 %v352
  %v669 = vpop.f32.mrf.mxu0
  %v670 = vadd.f32 0.0, %v669
  %671 = vmatmul.f32.gmra.mxu0 %v355
  %v672 = vpop.f32.mrf.mxu0
  %v673 = vadd.f32 0.0, %v672
  %674 = vmatmul.f32.gmra.mxu0 %v358
  %v675 = vpop.f32.mrf.mxu0
  %v676 = vadd.f32 0.0, %v675
  %677 = vmatmul.f32.gmra.mxu0 %v361
  %v678 = vpop.f32.mrf.mxu0
  %v679 = vadd.f32 0.0, %v678
  %680 = vmatmul.f32.gmra.mxu0 %v364
  %v681 = vpop.f32.mrf.mxu0
  %v682 = vadd.f32 0.0, %v681
  %683 = vmatmul.f32.gmra.mxu0 %v367
  %v684 = vpop.f32.mrf.mxu0
  %v685 = vadd.f32 0.0, %v684
  %686 = vmatmul.f32.gmra.mxu0 %v370
  %v687 = vpop.f32.mrf.mxu0
  %v688 = vadd.f32 0.0, %v687
  %689 = vmatmul.f32.gmra.mxu0 %v373
  %v690 = vpop.f32.mrf.mxu0
  %v691 = vadd.f32 0.0, %v690
  %692 = vmatmul.f32.gmra.mxu0 %v376
  %v693 = vpop.f32.mrf.mxu0
  %v694 = vadd.f32 0.0, %v693
  %695 = vdwg.mxu0
  %696 = vmatpush.msra.mxu0 0.0
  %697 = vmatpush.msra.mxu0 0.0
  %698 = vmatpush.msra.mxu0 0.0
  %699 = vmatpush.msra.mxu0 0.0
  %700 = vmatpush.msra.mxu0 0.0
  %701 = vmatpush.msra.mxu0 0.0
  %702 = vmatpush.msra.mxu0 0.0
  %703 = vmatpush.msra.mxu0 0.0
  %704 = vmatpush.msra.mxu0 0.0
  %705 = vmatpush.msra.mxu0 0.0
  %706 = vmatpush.msra.mxu0 0.0
  %707 = vmatpush.msra.mxu0 0.0
  %708 = vmatpush.msra.mxu0 0.0
  %709 = vmatpush.msra.mxu0 %v298
  %710 = vmatpush.msra.mxu0 %v297
  %711 = vmatpush.msra.mxu0 %v296
  %712 = vmatmul.f32.gmra.mxu0 %v343
  %v713 = vpop.f32.mrf.mxu0
  %v714 = vadd.f32 0.0, %v713
  %715 = vmatmul.f32.gmra.mxu0 %v346
  %v716 = vpop.f32.mrf.mxu0
  %v717 = vadd.f32 0.0, %v716
  %718 = vmatmul.f32.gmra.mxu0 %v349
  %v719 = vpop.f32.mrf.mxu0
  %v720 = vadd.f32 0.0, %v719
  %721 = vmatmul.f32.gmra.mxu0 %v352
  %v722 = vpop.f32.mrf.mxu0
  %v723 = vadd.f32 0.0, %v722
  %724 = vmatmul.f32.gmra.mxu0 %v355
  %v725 = vpop.f32.mrf.mxu0
  %v726 = vadd.f32 0.0, %v725
  %727 = vmatmul.f32.gmra.mxu0 %v358
  %v728 = vpop.f32.mrf.mxu0
  %v729 = vadd.f32 0.0, %v728
  %730 = vmatmul.f32.gmra.mxu0 %v361
  %v731 = vpop.f32.mrf.mxu0
  %v732 = vadd.f32 0.0, %v731
  %733 = vmatmul.f32.gmra.mxu0 %v364
  %v734 = vpop.f32.mrf.mxu0
  %v735 = vadd.f32 0.0, %v734
  %736 = vmatmul.f32.gmra.mxu0 %v367
  %v737 = vpop.f32.mrf.mxu0
  %v738 = vadd.f32 0.0, %v737
  %739 = vmatmul.f32.gmra.mxu0 %v370
  %v740 = vpop.f32.mrf.mxu0
  %v741 = vadd.f32 0.0, %v740
  %742 = vmatmul.f32.gmra.mxu0 %v373
  %v743 = vpop.f32.mrf.mxu0
  %v744 = vadd.f32 0.0, %v743
  %745 = vmatmul.f32.gmra.mxu0 %v376
  %v746 = vpop.f32.mrf.mxu0
  %v747 = vadd.f32 0.0, %v746
  %748 = vdwg.mxu0
  %749 = vmatpush.msra.mxu0 0.0
  %750 = vmatpush.msra.mxu0 0.0
  %751 = vmatpush.msra.mxu0 0.0
  %752 = vmatpush.msra.mxu0 0.0
  %753 = vmatpush.msra.mxu0 0.0
  %754 = vmatpush.msra.mxu0 0.0
  %755 = vmatpush.msra.mxu0 0.0
  %756 = vmatpush.msra.mxu0 0.0
  %757 = vmatpush.msra.mxu0 0.0
  %758 = vmatpush.msra.mxu0 0.0
  %759 = vmatpush.msra.mxu0 0.0
  %760 = vmatpush.msra.mxu0 0.0
  %761 = vmatpush.msra.mxu0 0.0
  %762 = vmatpush.msra.mxu0 %v295
  %763 = vmatpush.msra.mxu0 %v294
  %764 = vmatpush.msra.mxu0 %v293
  %765 = vmatmul.f32.gmra.mxu0 %v343
  %v766 = vpop.f32.mrf.mxu0
  %v767 = vadd.f32 0.0, %v766
  %768 = vmatmul.f32.gmra.mxu0 %v346
  %v769 = vpop.f32.mrf.mxu0
  %v770 = vadd.f32 0.0, %v769
  %771 = vmatmul.f32.gmra.mxu0 %v349
  %v772 = vpop.f32.mrf.mxu0
  %v773 = vadd.f32 0.0, %v772
  %774 = vmatmul.f32.gmra.mxu0 %v352
  %v775 = vpop.f32.mrf.mxu0
  %v776 = vadd.f32 0.0, %v775
  %777 = vmatmul.f32.gmra.mxu0 %v355
  %v778 = vpop.f32.mrf.mxu0
  %v779 = vadd.f32 0.0, %v778
  %780 = vmatmul.f32.gmra.mxu0 %v358
  %v781 = vpop.f32.mrf.mxu0
  %v782 = vadd.f32 0.0, %v781
  %783 = vmatmul.f32.gmra.mxu0 %v361
  %v784 = vpop.f32.mrf.mxu0
  %v785 = vadd.f32 0.0, %v784
  %786 = vmatmul.f32.gmra.mxu0 %v364
  %v787 = vpop.f32.mrf.mxu0
  %v788 = vadd.f32 0.0, %v787
  %789 = vmatmul.f32.gmra.mxu0 %v367
  %v790 = vpop.f32.mrf.mxu0
  %v791 = vadd.f32 0.0, %v790
  %792 = vmatmul.f32.gmra.mxu0 %v370
  %v793 = vpop.f32.mrf.mxu0
  %v794 = vadd.f32 0.0, %v793
  %795 = vmatmul.f32.gmra.mxu0 %v373
  %v796 = vpop.f32.mrf.mxu0
  %v797 = vadd.f32 0.0, %v796
  %798 = vmatmul.f32.gmra.mxu0 %v376
  %v799 = vpop.f32.mrf.mxu0
  %v800 = vadd.f32 0.0, %v799
  %801 = vdwg.mxu0
  %802 = vmatpush.msra.mxu0 0.0
  %803 = vmatpush.msra.mxu0 0.0
  %804 = vmatpush.msra.mxu0 0.0
  %805 = vmatpush.msra.mxu0 0.0
  %806 = vmatpush.msra.mxu0 0.0
  %807 = vmatpush.msra.mxu0 0.0
  %808 = vmatpush.msra.mxu0 0.0
  %809 = vmatpush.msra.mxu0 0.0
  %810 = vmatpush.msra.mxu0 0.0
  %811 = vmatpush.msra.mxu0 0.0
  %812 = vmatpush.msra.mxu0 0.0
  %813 = vmatpush.msra.mxu0 0.0
  %814 = vmatpush.msra.mxu0 0.0
  %815 = vmatpush.msra.mxu0 %v292
  %816 = vmatpush.msra.mxu0 %v291
  %817 = vmatpush.msra.mxu0 %v290
  %818 = vmatmul.f32.gmra.mxu0 %v343
  %v819 = vpop.f32.mrf.mxu0
  %v820 = vadd.f32 0.0, %v819
  %821 = vmatmul.f32.gmra.mxu0 %v346
  %v822 = vpop.f32.mrf.mxu0
  %v823 = vadd.f32 0.0, %v822
  %824 = vmatmul.f32.gmra.mxu0 %v349
  %v825 = vpop.f32.mrf.mxu0
  %v826 = vadd.f32 0.0, %v825
  %827 = vmatmul.f32.gmra.mxu0 %v352
  %v828 = vpop.f32.mrf.mxu0
  %v829 = vadd.f32 0.0, %v828
  %830 = vmatmul.f32.gmra.mxu0 %v355
  %v831 = vpop.f32.mrf.mxu0
  %v832 = vadd.f32 0.0, %v831
  %833 = vmatmul.f32.gmra.mxu0 %v358
  %v834 = vpop.f32.mrf.mxu0
  %v835 = vadd.f32 0.0, %v834
  %836 = vmatmul.f32.gmra.mxu0 %v361
  %v837 = vpop.f32.mrf.mxu0
  %v838 = vadd.f32 0.0, %v837
  %839 = vmatmul.f32.gmra.mxu0 %v364
  %v840 = vpop.f32.mrf.mxu0
  %v841 = vadd.f32 0.0, %v840
  %842 = vmatmul.f32.gmra.mxu0 %v367
  %v843 = vpop.f32.mrf.mxu0
  %v844 = vadd.f32 0.0, %v843
  %845 = vmatmul.f32.gmra.mxu0 %v370
  %v846 = vpop.f32.mrf.mxu0
  %v847 = vadd.f32 0.0, %v846
  %848 = vmatmul.f32.gmra.mxu0 %v373
  %v849 = vpop.f32.mrf.mxu0
  %v850 = vadd.f32 0.0, %v849
  %851 = vmatmul.f32.gmra.mxu0 %v376
  %v852 = vpop.f32.mrf.mxu0
  %v853 = vadd.f32 0.0, %v852
  %854 = vdwg.mxu0
  %855 = vmatpush.msra.mxu0 0.0
  %856 = vmatpush.msra.mxu0 0.0
  %857 = vmatpush.msra.mxu0 0.0
  %858 = vmatpush.msra.mxu0 0.0
  %859 = vmatpush.msra.mxu0 0.0
  %860 = vmatpush.msra.mxu0 0.0
  %861 = vmatpush.msra.mxu0 0.0
  %862 = vmatpush.msra.mxu0 0.0
  %863 = vmatpush.msra.mxu0 0.0
  %864 = vmatpush.msra.mxu0 0.0
  %865 = vmatpush.msra.mxu0 0.0
  %866 = vmatpush.msra.mxu0 0.0
  %867 = vmatpush.msra.mxu0 0.0
  %868 = vmatpush.msra.mxu0 %v289
  %869 = vmatpush.msra.mxu0 %v288
  %870 = vmatpush.msra.mxu0 %v287
  %871 = vmatmul.f32.gmra.mxu0 %v343
  %v872 = vpop.f32.mrf.mxu0
  %v873 = vadd.f32 0.0, %v872
  %874 = vmatmul.f32.gmra.mxu0 %v346
  %v875 = vpop.f32.mrf.mxu0
  %v876 = vadd.f32 0.0, %v875
  %877 = vmatmul.f32.gmra.mxu0 %v349
  %v878 = vpop.f32.mrf.mxu0
  %v879 = vadd.f32 0.0, %v878
  %880 = vmatmul.f32.gmra.mxu0 %v352
  %v881 = vpop.f32.mrf.mxu0
  %v882 = vadd.f32 0.0, %v881
  %883 = vmatmul.f32.gmra.mxu0 %v355
  %v884 = vpop.f32.mrf.mxu0
  %v885 = vadd.f32 0.0, %v884
  %886 = vmatmul.f32.gmra.mxu0 %v358
  %v887 = vpop.f32.mrf.mxu0
  %v888 = vadd.f32 0.0, %v887
  %889 = vmatmul.f32.gmra.mxu0 %v361
  %v890 = vpop.f32.mrf.mxu0
  %v891 = vadd.f32 0.0, %v890
  %892 = vmatmul.f32.gmra.mxu0 %v364
  %v893 = vpop.f32.mrf.mxu0
  %v894 = vadd.f32 0.0, %v893
  %895 = vmatmul.f32.gmra.mxu0 %v367
  %v896 = vpop.f32.mrf.mxu0
  %v897 = vadd.f32 0.0, %v896
  %898 = vmatmul.f32.gmra.mxu0 %v370
  %v899 = vpop.f32.mrf.mxu0
  %v900 = vadd.f32 0.0, %v899
  %901 = vmatmul.f32.gmra.mxu0 %v373
  %v902 = vpop.f32.mrf.mxu0
  %v903 = vadd.f32 0.0, %v902
  %904 = vmatmul.f32.gmra.mxu0 %v376
  %v905 = vpop.f32.mrf.mxu0
  %v906 = vadd.f32 0.0, %v905
  %907 = vdwg.mxu0
  %908 = vmatpush.msra.mxu0 0.0
  %909 = vmatpush.msra.mxu0 0.0
  %910 = vmatpush.msra.mxu0 0.0
  %911 = vmatpush.msra.mxu0 0.0
  %912 = vmatpush.msra.mxu0 0.0
  %913 = vmatpush.msra.mxu0 0.0
  %914 = vmatpush.msra.mxu0 0.0
  %915 = vmatpush.msra.mxu0 0.0
  %916 = vmatpush.msra.mxu0 0.0
  %917 = vmatpush.msra.mxu0 0.0
  %918 = vmatpush.msra.mxu0 0.0
  %919 = vmatpush.msra.mxu0 0.0
  %920 = vmatpush.msra.mxu0 0.0
  %921 = vmatpush.msra.mxu0 %v286
  %922 = vmatpush.msra.mxu0 %v285
  %923 = vmatpush.msra.mxu0 %v284
  %924 = vmatmul.f32.gmra.mxu0 %v343
  %v925 = vpop.f32.mrf.mxu0
  %v926 = vadd.f32 0.0, %v925
  %927 = vmatmul.f32.gmra.mxu0 %v346
  %v928 = vpop.f32.mrf.mxu0
  %v929 = vadd.f32 0.0, %v928
  %930 = vmatmul.f32.gmra.mxu0 %v349
  %v931 = vpop.f32.mrf.mxu0
  %v932 = vadd.f32 0.0, %v931
  %933 = vmatmul.f32.gmra.mxu0 %v352
  %v934 = vpop.f32.mrf.mxu0
  %v935 = vadd.f32 0.0, %v934
  %936 = vmatmul.f32.gmra.mxu0 %v355
  %v937 = vpop.f32.mrf.mxu0
  %v938 = vadd.f32 0.0, %v937
  %939 = vmatmul.f32.gmra.mxu0 %v358
  %v940 = vpop.f32.mrf.mxu0
  %v941 = vadd.f32 0.0, %v940
  %942 = vmatmul.f32.gmra.mxu0 %v361
  %v943 = vpop.f32.mrf.mxu0
  %v944 = vadd.f32 0.0, %v943
  %945 = vmatmul.f32.gmra.mxu0 %v364
  %v946 = vpop.f32.mrf.mxu0
  %v947 = vadd.f32 0.0, %v946
  %948 = vmatmul.f32.gmra.mxu0 %v367
  %v949 = vpop.f32.mrf.mxu0
  %v950 = vadd.f32 0.0, %v949
  %951 = vmatmul.f32.gmra.mxu0 %v370
  %v952 = vpop.f32.mrf.mxu0
  %v953 = vadd.f32 0.0, %v952
  %954 = vmatmul.f32.gmra.mxu0 %v373
  %v955 = vpop.f32.mrf.mxu0
  %v956 = vadd.f32 0.0, %v955
  %957 = vmatmul.f32.gmra.mxu0 %v376
  %v958 = vpop.f32.mrf.mxu0
  %v959 = vadd.f32 0.0, %v958
  %960 = vdwg.mxu0
  %961 = vmatpush.msra.mxu0 0.0
  %962 = vmatpush.msra.mxu0 0.0
  %963 = vmatpush.msra.mxu0 0.0
  %964 = vmatpush.msra.mxu0 0.0
  %965 = vmatpush.msra.mxu0 0.0
  %966 = vmatpush.msra.mxu0 0.0
  %967 = vmatpush.msra.mxu0 0.0
  %968 = vmatpush.msra.mxu0 0.0
  %969 = vmatpush.msra.mxu0 0.0
  %970 = vmatpush.msra.mxu0 0.0
  %971 = vmatpush.msra.mxu0 0.0
  %972 = vmatpush.msra.mxu0 0.0
  %973 = vmatpush.msra.mxu0 0.0
  %974 = vmatpush.msra.mxu0 %v283
  %975 = vmatpush.msra.mxu0 %v282
  %976 = vmatpush.msra.mxu0 %v281
  %977 = vmatmul.f32.gmra.mxu0 %v343
  %v978 = vpop.f32.mrf.mxu0
  %v979 = vadd.f32 0.0, %v978
  %980 = vmatmul.f32.gmra.mxu0 %v346
  %v981 = vpop.f32.mrf.mxu0
  %v982 = vadd.f32 0.0, %v981
  %983 = vmatmul.f32.gmra.mxu0 %v349
  %v984 = vpop.f32.mrf.mxu0
  %v985 = vadd.f32 0.0, %v984
  %986 = vmatmul.f32.gmra.mxu0 %v352
  %v987 = vpop.f32.mrf.mxu0
  %v988 = vadd.f32 0.0, %v987
  %989 = vmatmul.f32.gmra.mxu0 %v355
  %v990 = vpop.f32.mrf.mxu0
  %v991 = vadd.f32 0.0, %v990
  %992 = vmatmul.f32.gmra.mxu0 %v358
  %v993 = vpop.f32.mrf.mxu0
  %v994 = vadd.f32 0.0, %v993
  %995 = vmatmul.f32.gmra.mxu0 %v361
  %v996 = vpop.f32.mrf.mxu0
  %v997 = vadd.f32 0.0, %v996
  %998 = vmatmul.f32.gmra.mxu0 %v364
  %v999 = vpop.f32.mrf.mxu0
  %v1000 = vadd.f32 0.0, %v999
  %1001 = vmatmul.f32.gmra.mxu0 %v367
  %v1002 = vpop.f32.mrf.mxu0
  %v1003 = vadd.f32 0.0, %v1002
  %1004 = vmatmul.f32.gmra.mxu0 %v370
  %v1005 = vpop.f32.mrf.mxu0
  %v1006 = vadd.f32 0.0, %v1005
  %1007 = vmatmul.f32.gmra.mxu0 %v373
  %v1008 = vpop.f32.mrf.mxu0
  %v1009 = vadd.f32 0.0, %v1008
  %1010 = vmatmul.f32.gmra.mxu0 %v376
  %v1011 = vpop.f32.mrf.mxu0
  %v1012 = vadd.f32 0.0, %v1011
  %1013 = vdwg.mxu0
  %1014 = vmatpush.msra.mxu0 0.0
  %1015 = vmatpush.msra.mxu0 0.0
  %1016 = vmatpush.msra.mxu0 0.0
  %1017 = vmatpush.msra.mxu0 0.0
  %1018 = vmatpush.msra.mxu0 0.0
  %1019 = vmatpush.msra.mxu0 0.0
  %1020 = vmatpush.msra.mxu0 0.0
  %1021 = vmatpush.msra.mxu0 0.0
  %1022 = vmatpush.msra.mxu0 0.0
  %1023 = vmatpush.msra.mxu0 0.0
  %1024 = vmatpush.msra.mxu0 0.0
  %1025 = vmatpush.msra.mxu0 0.0
  %1026 = vmatpush.msra.mxu0 0.0
  %1027 = vmatpush.msra.mxu0 %v280
  %1028 = vmatpush.msra.mxu0 %v279
  %1029 = vmatpush.msra.mxu0 %v278
  %1030 = vmatmul.f32.gmra.mxu0 %v343
  %v1031 = vpop.f32.mrf.mxu0
  %v1032 = vadd.f32 0.0, %v1031
  %1033 = vmatmul.f32.gmra.mxu0 %v346
  %v1034 = vpop.f32.mrf.mxu0
  %v1035 = vadd.f32 0.0, %v1034
  %1036 = vmatmul.f32.gmra.mxu0 %v349
  %v1037 = vpop.f32.mrf.mxu0
  %v1038 = vadd.f32 0.0, %v1037
  %1039 = vmatmul.f32.gmra.mxu0 %v352
  %v1040 = vpop.f32.mrf.mxu0
  %v1041 = vadd.f32 0.0, %v1040
  %1042 = vmatmul.f32.gmra.mxu0 %v355
  %v1043 = vpop.f32.mrf.mxu0
  %v1044 = vadd.f32 0.0, %v1043
  %1045 = vmatmul.f32.gmra.mxu0 %v358
  %v1046 = vpop.f32.mrf.mxu0
  %v1047 = vadd.f32 0.0, %v1046
  %1048 = vmatmul.f32.gmra.mxu0 %v361
  %v1049 = vpop.f32.mrf.mxu0
  %v1050 = vadd.f32 0.0, %v1049
  %1051 = vmatmul.f32.gmra.mxu0 %v364
  %v1052 = vpop.f32.mrf.mxu0
  %v1053 = vadd.f32 0.0, %v1052
  %1054 = vmatmul.f32.gmra.mxu0 %v367
  %v1055 = vpop.f32.mrf.mxu0
  %v1056 = vadd.f32 0.0, %v1055
  %1057 = vmatmul.f32.gmra.mxu0 %v370
  %v1058 = vpop.f32.mrf.mxu0
  %v1059 = vadd.f32 0.0, %v1058
  %1060 = vmatmul.f32.gmra.mxu0 %v373
  %v1061 = vpop.f32.mrf.mxu0
  %v1062 = vadd.f32 0.0, %v1061
  %1063 = vmatmul.f32.gmra.mxu0 %v376
  %v1064 = vpop.f32.mrf.mxu0
  %v1065 = vadd.f32 0.0, %v1064
  %1066 = vdwg.mxu0
  %1067 = vmatpush.msra.mxu0 0.0
  %1068 = vmatpush.msra.mxu0 0.0
  %1069 = vmatpush.msra.mxu0 0.0
  %1070 = vmatpush.msra.mxu0 0.0
  %1071 = vmatpush.msra.mxu0 0.0
  %1072 = vmatpush.msra.mxu0 0.0
  %1073 = vmatpush.msra.mxu0 0.0
  %1074 = vmatpush.msra.mxu0 0.0
  %1075 = vmatpush.msra.mxu0 0.0
  %1076 = vmatpush.msra.mxu0 0.0
  %1077 = vmatpush.msra.mxu0 0.0
  %1078 = vmatpush.msra.mxu0 0.0
  %1079 = vmatpush.msra.mxu0 0.0
  %1080 = vmatpush.msra.mxu0 %v277
  %1081 = vmatpush.msra.mxu0 %v276
  %1082 = vmatpush.msra.mxu0 %v275
  %1083 = vmatmul.f32.gmra.mxu0 %v343
  %v1084 = vpop.f32.mrf.mxu0
  %v1085 = vadd.f32 0.0, %v1084
  %1086 = vmatmul.f32.gmra.mxu0 %v346
  %v1087 = vpop.f32.mrf.mxu0
  %v1088 = vadd.f32 0.0, %v1087
  %1089 = vmatmul.f32.gmra.mxu0 %v349
  %v1090 = vpop.f32.mrf.mxu0
  %v1091 = vadd.f32 0.0, %v1090
  %1092 = vmatmul.f32.gmra.mxu0 %v352
  %v1093 = vpop.f32.mrf.mxu0
  %v1094 = vadd.f32 0.0, %v1093
  %1095 = vmatmul.f32.gmra.mxu0 %v355
  %v1096 = vpop.f32.mrf.mxu0
  %v1097 = vadd.f32 0.0, %v1096
  %1098 = vmatmul.f32.gmra.mxu0 %v358
  %v1099 = vpop.f32.mrf.mxu0
  %v1100 = vadd.f32 0.0, %v1099
  %1101 = vmatmul.f32.gmra.mxu0 %v361
  %v1102 = vpop.f32.mrf.mxu0
  %v1103 = vadd.f32 0.0, %v1102
  %1104 = vmatmul.f32.gmra.mxu0 %v364
  %v1105 = vpop.f32.mrf.mxu0
  %v1106 = vadd.f32 0.0, %v1105
  %1107 = vmatmul.f32.gmra.mxu0 %v367
  %v1108 = vpop.f32.mrf.mxu0
  %v1109 = vadd.f32 0.0, %v1108
  %1110 = vmatmul.f32.gmra.mxu0 %v370
  %v1111 = vpop.f32.mrf.mxu0
  %v1112 = vadd.f32 0.0, %v1111
  %1113 = vmatmul.f32.gmra.mxu0 %v373
  %v1114 = vpop.f32.mrf.mxu0
  %v1115 = vadd.f32 0.0, %v1114
  %1116 = vmatmul.f32.gmra.mxu0 %v376
  %v1117 = vpop.f32.mrf.mxu0
  %v1118 = vadd.f32 0.0, %v1117
  %1119 = vdwg.mxu0
  %1120 = vmatpush.msra.mxu0 0.0
  %1121 = vmatpush.msra.mxu0 0.0
  %1122 = vmatpush.msra.mxu0 0.0
  %1123 = vmatpush.msra.mxu0 0.0
  %1124 = vmatpush.msra.mxu0 0.0
  %1125 = vmatpush.msra.mxu0 0.0
  %1126 = vmatpush.msra.mxu0 0.0
  %1127 = vmatpush.msra.mxu0 0.0
  %1128 = vmatpush.msra.mxu0 0.0
  %1129 = vmatpush.msra.mxu0 0.0
  %1130 = vmatpush.msra.mxu0 0.0
  %1131 = vmatpush.msra.mxu0 0.0
  %1132 = vmatpush.msra.mxu0 0.0
  %1133 = vmatpush.msra.mxu0 %v274
  %1134 = vmatpush.msra.mxu0 %v273
  %1135 = vmatpush.msra.mxu0 %v272
  %1136 = vmatmul.f32.gmra.mxu0 %v343
  %v1137 = vpop.f32.mrf.mxu0
  %v1138 = vadd.f32 0.0, %v1137
  %1139 = vmatmul.f32.gmra.mxu0 %v346
  %v1140 = vpop.f32.mrf.mxu0
  %v1141 = vadd.f32 0.0, %v1140
  %1142 = vmatmul.f32.gmra.mxu0 %v349
  %v1143 = vpop.f32.mrf.mxu0
  %v1144 = vadd.f32 0.0, %v1143
  %1145 = vmatmul.f32.gmra.mxu0 %v352
  %v1146 = vpop.f32.mrf.mxu0
  %v1147 = vadd.f32 0.0, %v1146
  %1148 = vmatmul.f32.gmra.mxu0 %v355
  %v1149 = vpop.f32.mrf.mxu0
  %v1150 = vadd.f32 0.0, %v1149
  %1151 = vmatmul.f32.gmra.mxu0 %v358
  %v1152 = vpop.f32.mrf.mxu0
  %v1153 = vadd.f32 0.0, %v1152
  %1154 = vmatmul.f32.gmra.mxu0 %v361
  %v1155 = vpop.f32.mrf.mxu0
  %v1156 = vadd.f32 0.0, %v1155
  %1157 = vmatmul.f32.gmra.mxu0 %v364
  %v1158 = vpop.f32.mrf.mxu0
  %v1159 = vadd.f32 0.0, %v1158
  %1160 = vmatmul.f32.gmra.mxu0 %v367
  %v1161 = vpop.f32.mrf.mxu0
  %v1162 = vadd.f32 0.0, %v1161
  %1163 = vmatmul.f32.gmra.mxu0 %v370
  %v1164 = vpop.f32.mrf.mxu0
  %v1165 = vadd.f32 0.0, %v1164
  %1166 = vmatmul.f32.gmra.mxu0 %v373
  %v1167 = vpop.f32.mrf.mxu0
  %v1168 = vadd.f32 0.0, %v1167
  %1169 = vmatmul.f32.gmra.mxu0 %v376
  %v1170 = vpop.f32.mrf.mxu0
  %v1171 = vadd.f32 0.0, %v1170
  %1172 = vdwg.mxu0
  %1173 = vmatpush.msra.mxu0 0.0
  %1174 = vmatpush.msra.mxu0 0.0
  %1175 = vmatpush.msra.mxu0 0.0
  %1176 = vmatpush.msra.mxu0 0.0
  %1177 = vmatpush.msra.mxu0 0.0
  %1178 = vmatpush.msra.mxu0 0.0
  %1179 = vmatpush.msra.mxu0 0.0
  %1180 = vmatpush.msra.mxu0 0.0
  %1181 = vmatpush.msra.mxu0 0.0
  %1182 = vmatpush.msra.mxu0 0.0
  %1183 = vmatpush.msra.mxu0 0.0
  %1184 = vmatpush.msra.mxu0 0.0
  %1185 = vmatpush.msra.mxu0 0.0
  %1186 = vmatpush.msra.mxu0 %v271
  %1187 = vmatpush.msra.mxu0 %v270
  %1188 = vmatpush.msra.mxu0 %v269
  %1189 = vmatmul.f32.gmra.mxu0 %v343
  %v1190 = vpop.f32.mrf.mxu0
  %v1191 = vadd.f32 0.0, %v1190
  %1192 = vmatmul.f32.gmra.mxu0 %v346
  %v1193 = vpop.f32.mrf.mxu0
  %v1194 = vadd.f32 0.0, %v1193
  %1195 = vmatmul.f32.gmra.mxu0 %v349
  %v1196 = vpop.f32.mrf.mxu0
  %v1197 = vadd.f32 0.0, %v1196
  %1198 = vmatmul.f32.gmra.mxu0 %v352
  %v1199 = vpop.f32.mrf.mxu0
  %v1200 = vadd.f32 0.0, %v1199
  %1201 = vmatmul.f32.gmra.mxu0 %v355
  %v1202 = vpop.f32.mrf.mxu0
  %v1203 = vadd.f32 0.0, %v1202
  %1204 = vmatmul.f32.gmra.mxu0 %v358
  %v1205 = vpop.f32.mrf.mxu0
  %v1206 = vadd.f32 0.0, %v1205
  %1207 = vmatmul.f32.gmra.mxu0 %v361
  %v1208 = vpop.f32.mrf.mxu0
  %v1209 = vadd.f32 0.0, %v1208
  %1210 = vmatmul.f32.gmra.mxu0 %v364
  %v1211 = vpop.f32.mrf.mxu0
  %v1212 = vadd.f32 0.0, %v1211
  %1213 = vmatmul.f32.gmra.mxu0 %v367
  %v1214 = vpop.f32.mrf.mxu0
  %v1215 = vadd.f32 0.0, %v1214
  %1216 = vmatmul.f32.gmra.mxu0 %v370
  %v1217 = vpop.f32.mrf.mxu0
  %v1218 = vadd.f32 0.0, %v1217
  %1219 = vmatmul.f32.gmra.mxu0 %v373
  %v1220 = vpop.f32.mrf.mxu0
  %v1221 = vadd.f32 0.0, %v1220
  %1222 = vmatmul.f32.gmra.mxu0 %v376
  %v1223 = vpop.f32.mrf.mxu0
  %v1224 = vadd.f32 0.0, %v1223
  %1225 = vdwg.mxu0
  %1226 = vmatpush.msra.mxu0 0.0
  %1227 = vmatpush.msra.mxu0 0.0
  %1228 = vmatpush.msra.mxu0 0.0
  %1229 = vmatpush.msra.mxu0 0.0
  %1230 = vmatpush.msra.mxu0 0.0
  %1231 = vmatpush.msra.mxu0 0.0
  %1232 = vmatpush.msra.mxu0 0.0
  %1233 = vmatpush.msra.mxu0 0.0
  %1234 = vmatpush.msra.mxu0 0.0
  %1235 = vmatpush.msra.mxu0 0.0
  %1236 = vmatpush.msra.mxu0 0.0
  %1237 = vmatpush.msra.mxu0 0.0
  %1238 = vmatpush.msra.mxu0 0.0
  %1239 = vmatpush.msra.mxu0 %v268
  %1240 = vmatpush.msra.mxu0 %v267
  %1241 = vmatpush.msra.mxu0 %v266
  %1242 = vmatmul.f32.gmra.mxu0 %v343
  %v1243 = vpop.f32.mrf.mxu0
  %v1244 = vadd.f32 0.0, %v1243
  %1245 = vmatmul.f32.gmra.mxu0 %v346
  %v1246 = vpop.f32.mrf.mxu0
  %v1247 = vadd.f32 0.0, %v1246
  %1248 = vmatmul.f32.gmra.mxu0 %v349
  %v1249 = vpop.f32.mrf.mxu0
  %v1250 = vadd.f32 0.0, %v1249
  %1251 = vmatmul.f32.gmra.mxu0 %v352
  %v1252 = vpop.f32.mrf.mxu0
  %v1253 = vadd.f32 0.0, %v1252
  %1254 = vmatmul.f32.gmra.mxu0 %v355
  %v1255 = vpop.f32.mrf.mxu0
  %v1256 = vadd.f32 0.0, %v1255
  %1257 = vmatmul.f32.gmra.mxu0 %v358
  %v1258 = vpop.f32.mrf.mxu0
  %v1259 = vadd.f32 0.0, %v1258
  %1260 = vmatmul.f32.gmra.mxu0 %v361
  %v1261 = vpop.f32.mrf.mxu0
  %v1262 = vadd.f32 0.0, %v1261
  %1263 = vmatmul.f32.gmra.mxu0 %v364
  %v1264 = vpop.f32.mrf.mxu0
  %v1265 = vadd.f32 0.0, %v1264
  %1266 = vmatmul.f32.gmra.mxu0 %v367
  %v1267 = vpop.f32.mrf.mxu0
  %v1268 = vadd.f32 0.0, %v1267
  %1269 = vmatmul.f32.gmra.mxu0 %v370
  %v1270 = vpop.f32.mrf.mxu0
  %v1271 = vadd.f32 0.0, %v1270
  %1272 = vmatmul.f32.gmra.mxu0 %v373
  %v1273 = vpop.f32.mrf.mxu0
  %v1274 = vadd.f32 0.0, %v1273
  %1275 = vmatmul.f32.gmra.mxu0 %v376
  %v1276 = vpop.f32.mrf.mxu0
  %v1277 = vadd.f32 0.0, %v1276
  %1278 = vdwg.mxu0
  %1279 = vmatpush.msra.mxu0 0.0
  %1280 = vmatpush.msra.mxu0 0.0
  %1281 = vmatpush.msra.mxu0 0.0
  %1282 = vmatpush.msra.mxu0 0.0
  %1283 = vmatpush.msra.mxu0 0.0
  %1284 = vmatpush.msra.mxu0 0.0
  %1285 = vmatpush.msra.mxu0 0.0
  %1286 = vmatpush.msra.mxu0 0.0
  %1287 = vmatpush.msra.mxu0 0.0
  %1288 = vmatpush.msra.mxu0 0.0
  %1289 = vmatpush.msra.mxu0 0.0
  %1290 = vmatpush.msra.mxu0 0.0
  %1291 = vmatpush.msra.mxu0 0.0
  %1292 = vmatpush.msra.mxu0 %v265
  %1293 = vmatpush.msra.mxu0 %v264
  %1294 = vmatpush.msra.mxu0 %v263
  %1295 = vmatmul.f32.gmra.mxu0 %v343
  %v1296 = vpop.f32.mrf.mxu0
  %v1297 = vadd.f32 0.0, %v1296
  %1298 = vmatmul.f32.gmra.mxu0 %v346
  %v1299 = vpop.f32.mrf.mxu0
  %v1300 = vadd.f32 0.0, %v1299
  %1301 = vmatmul.f32.gmra.mxu0 %v349
  %v1302 = vpop.f32.mrf.mxu0
  %v1303 = vadd.f32 0.0, %v1302
  %1304 = vmatmul.f32.gmra.mxu0 %v352
  %v1305 = vpop.f32.mrf.mxu0
  %v1306 = vadd.f32 0.0, %v1305
  %1307 = vmatmul.f32.gmra.mxu0 %v355
  %v1308 = vpop.f32.mrf.mxu0
  %v1309 = vadd.f32 0.0, %v1308
  %1310 = vmatmul.f32.gmra.mxu0 %v358
  %v1311 = vpop.f32.mrf.mxu0
  %v1312 = vadd.f32 0.0, %v1311
  %1313 = vmatmul.f32.gmra.mxu0 %v361
  %v1314 = vpop.f32.mrf.mxu0
  %v1315 = vadd.f32 0.0, %v1314
  %1316 = vmatmul.f32.gmra.mxu0 %v364
  %v1317 = vpop.f32.mrf.mxu0
  %v1318 = vadd.f32 0.0, %v1317
  %1319 = vmatmul.f32.gmra.mxu0 %v367
  %v1320 = vpop.f32.mrf.mxu0
  %v1321 = vadd.f32 0.0, %v1320
  %1322 = vmatmul.f32.gmra.mxu0 %v370
  %v1323 = vpop.f32.mrf.mxu0
  %v1324 = vadd.f32 0.0, %v1323
  %1325 = vmatmul.f32.gmra.mxu0 %v373
  %v1326 = vpop.f32.mrf.mxu0
  %v1327 = vadd.f32 0.0, %v1326
  %1328 = vmatmul.f32.gmra.mxu0 %v376
  %v1329 = vpop.f32.mrf.mxu0
  %v1330 = vadd.f32 0.0, %v1329
  %1331 = vdwg.mxu0
  %1332 = vmatpush.msra.mxu0 0.0
  %1333 = vmatpush.msra.mxu0 0.0
  %1334 = vmatpush.msra.mxu0 0.0
  %1335 = vmatpush.msra.mxu0 0.0
  %1336 = vmatpush.msra.mxu0 0.0
  %1337 = vmatpush.msra.mxu0 0.0
  %1338 = vmatpush.msra.mxu0 0.0
  %1339 = vmatpush.msra.mxu0 0.0
  %1340 = vmatpush.msra.mxu0 0.0
  %1341 = vmatpush.msra.mxu0 0.0
  %1342 = vmatpush.msra.mxu0 0.0
  %1343 = vmatpush.msra.mxu0 0.0
  %1344 = vmatpush.msra.mxu0 0.0
  %1345 = vmatpush.msra.mxu0 %v262
  %1346 = vmatpush.msra.mxu0 %v261
  %1347 = vmatpush.msra.mxu0 %v260
  %1348 = vmatmul.f32.gmra.mxu0 %v343
  %v1349 = vpop.f32.mrf.mxu0
  %v1350 = vadd.f32 0.0, %v1349
  %1351 = vmatmul.f32.gmra.mxu0 %v346
  %v1352 = vpop.f32.mrf.mxu0
  %v1353 = vadd.f32 0.0, %v1352
  %1354 = vmatmul.f32.gmra.mxu0 %v349
  %v1355 = vpop.f32.mrf.mxu0
  %v1356 = vadd.f32 0.0, %v1355
  %1357 = vmatmul.f32.gmra.mxu0 %v352
  %v1358 = vpop.f32.mrf.mxu0
  %v1359 = vadd.f32 0.0, %v1358
  %1360 = vmatmul.f32.gmra.mxu0 %v355
  %v1361 = vpop.f32.mrf.mxu0
  %v1362 = vadd.f32 0.0, %v1361
  %1363 = vmatmul.f32.gmra.mxu0 %v358
  %v1364 = vpop.f32.mrf.mxu0
  %v1365 = vadd.f32 0.0, %v1364
  %1366 = vmatmul.f32.gmra.mxu0 %v361
  %v1367 = vpop.f32.mrf.mxu0
  %v1368 = vadd.f32 0.0, %v1367
  %1369 = vmatmul.f32.gmra.mxu0 %v364
  %v1370 = vpop.f32.mrf.mxu0
  %v1371 = vadd.f32 0.0, %v1370
  %1372 = vmatmul.f32.gmra.mxu0 %v367
  %v1373 = vpop.f32.mrf.mxu0
  %v1374 = vadd.f32 0.0, %v1373
  %1375 = vmatmul.f32.gmra.mxu0 %v370
  %v1376 = vpop.f32.mrf.mxu0
  %v1377 = vadd.f32 0.0, %v1376
  %1378 = vmatmul.f32.gmra.mxu0 %v373
  %v1379 = vpop.f32.mrf.mxu0
  %v1380 = vadd.f32 0.0, %v1379
  %1381 = vmatmul.f32.gmra.mxu0 %v376
  %v1382 = vpop.f32.mrf.mxu0
  %v1383 = vadd.f32 0.0, %v1382
  %1384 = vdwg.mxu0
  %1385 = vmatpush.msra.mxu0 0.0
  %1386 = vmatpush.msra.mxu0 0.0
  %1387 = vmatpush.msra.mxu0 0.0
  %1388 = vmatpush.msra.mxu0 0.0
  %1389 = vmatpush.msra.mxu0 0.0
  %1390 = vmatpush.msra.mxu0 0.0
  %1391 = vmatpush.msra.mxu0 0.0
  %1392 = vmatpush.msra.mxu0 0.0
  %1393 = vmatpush.msra.mxu0 0.0
  %1394 = vmatpush.msra.mxu0 0.0
  %1395 = vmatpush.msra.mxu0 0.0
  %1396 = vmatpush.msra.mxu0 0.0
  %1397 = vmatpush.msra.mxu0 0.0
  %1398 = vmatpush.msra.mxu0 %v259
  %1399 = vmatpush.msra.mxu0 %v258
  %1400 = vmatpush.msra.mxu0 %v257
  %1401 = vmatmul.f32.gmra.mxu0 %v343
  %v1402 = vpop.f32.mrf.mxu0
  %v1403 = vadd.f32 0.0, %v1402
  %1404 = vmatmul.f32.gmra.mxu0 %v346
  %v1405 = vpop.f32.mrf.mxu0
  %v1406 = vadd.f32 0.0, %v1405
  %1407 = vmatmul.f32.gmra.mxu0 %v349
  %v1408 = vpop.f32.mrf.mxu0
  %v1409 = vadd.f32 0.0, %v1408
  %1410 = vmatmul.f32.gmra.mxu0 %v352
  %v1411 = vpop.f32.mrf.mxu0
  %v1412 = vadd.f32 0.0, %v1411
  %1413 = vmatmul.f32.gmra.mxu0 %v355
  %v1414 = vpop.f32.mrf.mxu0
  %v1415 = vadd.f32 0.0, %v1414
  %1416 = vmatmul.f32.gmra.mxu0 %v358
  %v1417 = vpop.f32.mrf.mxu0
  %v1418 = vadd.f32 0.0, %v1417
  %1419 = vmatmul.f32.gmra.mxu0 %v361
  %v1420 = vpop.f32.mrf.mxu0
  %v1421 = vadd.f32 0.0, %v1420
  %1422 = vmatmul.f32.gmra.mxu0 %v364
  %v1423 = vpop.f32.mrf.mxu0
  %v1424 = vadd.f32 0.0, %v1423
  %1425 = vmatmul.f32.gmra.mxu0 %v367
  %v1426 = vpop.f32.mrf.mxu0
  %v1427 = vadd.f32 0.0, %v1426
  %1428 = vmatmul.f32.gmra.mxu0 %v370
  %v1429 = vpop.f32.mrf.mxu0
  %v1430 = vadd.f32 0.0, %v1429
  %1431 = vmatmul.f32.gmra.mxu0 %v373
  %v1432 = vpop.f32.mrf.mxu0
  %v1433 = vadd.f32 0.0, %v1432
  %1434 = vmatmul.f32.gmra.mxu0 %v376
  %v1435 = vpop.f32.mrf.mxu0
  %v1436 = vadd.f32 0.0, %v1435
  %1437 = vdwg.mxu0
  %1438 = vmatpush.msra.mxu0 0.0
  %1439 = vmatpush.msra.mxu0 0.0
  %1440 = vmatpush.msra.mxu0 0.0
  %1441 = vmatpush.msra.mxu0 0.0
  %1442 = vmatpush.msra.mxu0 0.0
  %1443 = vmatpush.msra.mxu0 0.0
  %1444 = vmatpush.msra.mxu0 0.0
  %1445 = vmatpush.msra.mxu0 0.0
  %1446 = vmatpush.msra.mxu0 0.0
  %1447 = vmatpush.msra.mxu0 0.0
  %1448 = vmatpush.msra.mxu0 0.0
  %1449 = vmatpush.msra.mxu0 0.0
  %1450 = vmatpush.msra.mxu0 0.0
  %1451 = vmatpush.msra.mxu0 %v256
  %1452 = vmatpush.msra.mxu0 %v255
  %1453 = vmatpush.msra.mxu0 %v254
  %1454 = vmatmul.f32.gmra.mxu0 %v343
  %v1455 = vpop.f32.mrf.mxu0
  %v1456 = vadd.f32 0.0, %v1455
  %1457 = vmatmul.f32.gmra.mxu0 %v346
  %v1458 = vpop.f32.mrf.mxu0
  %v1459 = vadd.f32 0.0, %v1458
  %1460 = vmatmul.f32.gmra.mxu0 %v349
  %v1461 = vpop.f32.mrf.mxu0
  %v1462 = vadd.f32 0.0, %v1461
  %1463 = vmatmul.f32.gmra.mxu0 %v352
  %v1464 = vpop.f32.mrf.mxu0
  %v1465 = vadd.f32 0.0, %v1464
  %1466 = vmatmul.f32.gmra.mxu0 %v355
  %v1467 = vpop.f32.mrf.mxu0
  %v1468 = vadd.f32 0.0, %v1467
  %1469 = vmatmul.f32.gmra.mxu0 %v358
  %v1470 = vpop.f32.mrf.mxu0
  %v1471 = vadd.f32 0.0, %v1470
  %1472 = vmatmul.f32.gmra.mxu0 %v361
  %v1473 = vpop.f32.mrf.mxu0
  %v1474 = vadd.f32 0.0, %v1473
  %1475 = vmatmul.f32.gmra.mxu0 %v364
  %v1476 = vpop.f32.mrf.mxu0
  %v1477 = vadd.f32 0.0, %v1476
  %1478 = vmatmul.f32.gmra.mxu0 %v367
  %v1479 = vpop.f32.mrf.mxu0
  %v1480 = vadd.f32 0.0, %v1479
  %1481 = vmatmul.f32.gmra.mxu0 %v370
  %v1482 = vpop.f32.mrf.mxu0
  %v1483 = vadd.f32 0.0, %v1482
  %1484 = vmatmul.f32.gmra.mxu0 %v373
  %v1485 = vpop.f32.mrf.mxu0
  %v1486 = vadd.f32 0.0, %v1485
  %1487 = vmatmul.f32.gmra.mxu0 %v376
  %v1488 = vpop.f32.mrf.mxu0
  %v1489 = vadd.f32 0.0, %v1488
  %1490 = vdwg.mxu0
  %1491 = vmatpush.msra.mxu0 0.0
  %1492 = vmatpush.msra.mxu0 0.0
  %1493 = vmatpush.msra.mxu0 0.0
  %1494 = vmatpush.msra.mxu0 0.0
  %1495 = vmatpush.msra.mxu0 0.0
  %1496 = vmatpush.msra.mxu0 0.0
  %1497 = vmatpush.msra.mxu0 0.0
  %1498 = vmatpush.msra.mxu0 0.0
  %1499 = vmatpush.msra.mxu0 0.0
  %1500 = vmatpush.msra.mxu0 0.0
  %1501 = vmatpush.msra.mxu0 0.0
  %1502 = vmatpush.msra.mxu0 0.0
  %1503 = vmatpush.msra.mxu0 0.0
  %1504 = vmatpush.msra.mxu0 %v253
  %1505 = vmatpush.msra.mxu0 %v252
  %1506 = vmatpush.msra.mxu0 %v251
  %1507 = vmatmul.f32.gmra.mxu0 %v343
  %v1508 = vpop.f32.mrf.mxu0
  %v1509 = vadd.f32 0.0, %v1508
  %1510 = vmatmul.f32.gmra.mxu0 %v346
  %v1511 = vpop.f32.mrf.mxu0
  %v1512 = vadd.f32 0.0, %v1511
  %1513 = vmatmul.f32.gmra.mxu0 %v349
  %v1514 = vpop.f32.mrf.mxu0
  %v1515 = vadd.f32 0.0, %v1514
  %1516 = vmatmul.f32.gmra.mxu0 %v352
  %v1517 = vpop.f32.mrf.mxu0
  %v1518 = vadd.f32 0.0, %v1517
  %1519 = vmatmul.f32.gmra.mxu0 %v355
  %v1520 = vpop.f32.mrf.mxu0
  %v1521 = vadd.f32 0.0, %v1520
  %1522 = vmatmul.f32.gmra.mxu0 %v358
  %v1523 = vpop.f32.mrf.mxu0
  %v1524 = vadd.f32 0.0, %v1523
  %1525 = vmatmul.f32.gmra.mxu0 %v361
  %v1526 = vpop.f32.mrf.mxu0
  %v1527 = vadd.f32 0.0, %v1526
  %1528 = vmatmul.f32.gmra.mxu0 %v364
  %v1529 = vpop.f32.mrf.mxu0
  %v1530 = vadd.f32 0.0, %v1529
  %1531 = vmatmul.f32.gmra.mxu0 %v367
  %v1532 = vpop.f32.mrf.mxu0
  %v1533 = vadd.f32 0.0, %v1532
  %1534 = vmatmul.f32.gmra.mxu0 %v370
  %v1535 = vpop.f32.mrf.mxu0
  %v1536 = vadd.f32 0.0, %v1535
  %1537 = vmatmul.f32.gmra.mxu0 %v373
  %v1538 = vpop.f32.mrf.mxu0
  %v1539 = vadd.f32 0.0, %v1538
  %1540 = vmatmul.f32.gmra.mxu0 %v376
  %v1541 = vpop.f32.mrf.mxu0
  %v1542 = vadd.f32 0.0, %v1541
  %1543 = vdwg.mxu0
  %1544 = vmatpush.msra.mxu0 0.0
  %1545 = vmatpush.msra.mxu0 0.0
  %1546 = vmatpush.msra.mxu0 0.0
  %1547 = vmatpush.msra.mxu0 0.0
  %1548 = vmatpush.msra.mxu0 0.0
  %1549 = vmatpush.msra.mxu0 0.0
  %1550 = vmatpush.msra.mxu0 0.0
  %1551 = vmatpush.msra.mxu0 0.0
  %1552 = vmatpush.msra.mxu0 0.0
  %1553 = vmatpush.msra.mxu0 0.0
  %1554 = vmatpush.msra.mxu0 0.0
  %1555 = vmatpush.msra.mxu0 0.0
  %1556 = vmatpush.msra.mxu0 0.0
  %1557 = vmatpush.msra.mxu0 %v250
  %1558 = vmatpush.msra.mxu0 %v249
  %1559 = vmatpush.msra.mxu0 %v248
  %1560 = vmatmul.f32.gmra.mxu0 %v343
  %v1561 = vpop.f32.mrf.mxu0
  %v1562 = vadd.f32 0.0, %v1561
  %1563 = vmatmul.f32.gmra.mxu0 %v346
  %v1564 = vpop.f32.mrf.mxu0
  %v1565 = vadd.f32 0.0, %v1564
  %1566 = vmatmul.f32.gmra.mxu0 %v349
  %v1567 = vpop.f32.mrf.mxu0
  %v1568 = vadd.f32 0.0, %v1567
  %1569 = vmatmul.f32.gmra.mxu0 %v352
  %v1570 = vpop.f32.mrf.mxu0
  %v1571 = vadd.f32 0.0, %v1570
  %1572 = vmatmul.f32.gmra.mxu0 %v355
  %v1573 = vpop.f32.mrf.mxu0
  %v1574 = vadd.f32 0.0, %v1573
  %1575 = vmatmul.f32.gmra.mxu0 %v358
  %v1576 = vpop.f32.mrf.mxu0
  %v1577 = vadd.f32 0.0, %v1576
  %1578 = vmatmul.f32.gmra.mxu0 %v361
  %v1579 = vpop.f32.mrf.mxu0
  %v1580 = vadd.f32 0.0, %v1579
  %1581 = vmatmul.f32.gmra.mxu0 %v364
  %v1582 = vpop.f32.mrf.mxu0
  %v1583 = vadd.f32 0.0, %v1582
  %1584 = vmatmul.f32.gmra.mxu0 %v367
  %v1585 = vpop.f32.mrf.mxu0
  %v1586 = vadd.f32 0.0, %v1585
  %1587 = vmatmul.f32.gmra.mxu0 %v370
  %v1588 = vpop.f32.mrf.mxu0
  %v1589 = vadd.f32 0.0, %v1588
  %1590 = vmatmul.f32.gmra.mxu0 %v373
  %v1591 = vpop.f32.mrf.mxu0
  %v1592 = vadd.f32 0.0, %v1591
  %1593 = vmatmul.f32.gmra.mxu0 %v376
  %v1594 = vpop.f32.mrf.mxu0
  %v1595 = vadd.f32 0.0, %v1594
  %1596 = vdwg.mxu0
  %1597 = vmatpush.msra.mxu0 0.0
  %1598 = vmatpush.msra.mxu0 0.0
  %1599 = vmatpush.msra.mxu0 0.0
  %1600 = vmatpush.msra.mxu0 0.0
  %1601 = vmatpush.msra.mxu0 0.0
  %1602 = vmatpush.msra.mxu0 0.0
  %1603 = vmatpush.msra.mxu0 0.0
  %1604 = vmatpush.msra.mxu0 0.0
  %1605 = vmatpush.msra.mxu0 0.0
  %1606 = vmatpush.msra.mxu0 0.0
  %1607 = vmatpush.msra.mxu0 0.0
  %1608 = vmatpush.msra.mxu0 0.0
  %1609 = vmatpush.msra.mxu0 0.0
  %1610 = vmatpush.msra.mxu0 %v247
  %1611 = vmatpush.msra.mxu0 %v246
  %1612 = vmatpush.msra.mxu0 %v245
  %1613 = vmatmul.f32.gmra.mxu0 %v343
  %v1614 = vpop.f32.mrf.mxu0
  %v1615 = vadd.f32 0.0, %v1614
  %1616 = vmatmul.f32.gmra.mxu0 %v346
  %v1617 = vpop.f32.mrf.mxu0
  %v1618 = vadd.f32 0.0, %v1617
  %1619 = vmatmul.f32.gmra.mxu0 %v349
  %v1620 = vpop.f32.mrf.mxu0
  %v1621 = vadd.f32 0.0, %v1620
  %1622 = vmatmul.f32.gmra.mxu0 %v352
  %v1623 = vpop.f32.mrf.mxu0
  %v1624 = vadd.f32 0.0, %v1623
  %1625 = vmatmul.f32.gmra.mxu0 %v355
  %v1626 = vpop.f32.mrf.mxu0
  %v1627 = vadd.f32 0.0, %v1626
  %1628 = vmatmul.f32.gmra.mxu0 %v358
  %v1629 = vpop.f32.mrf.mxu0
  %v1630 = vadd.f32 0.0, %v1629
  %1631 = vmatmul.f32.gmra.mxu0 %v361
  %v1632 = vpop.f32.mrf.mxu0
  %v1633 = vadd.f32 0.0, %v1632
  %1634 = vmatmul.f32.gmra.mxu0 %v364
  %v1635 = vpop.f32.mrf.mxu0
  %v1636 = vadd.f32 0.0, %v1635
  %1637 = vmatmul.f32.gmra.mxu0 %v367
  %v1638 = vpop.f32.mrf.mxu0
  %v1639 = vadd.f32 0.0, %v1638
  %1640 = vmatmul.f32.gmra.mxu0 %v370
  %v1641 = vpop.f32.mrf.mxu0
  %v1642 = vadd.f32 0.0, %v1641
  %1643 = vmatmul.f32.gmra.mxu0 %v373
  %v1644 = vpop.f32.mrf.mxu0
  %v1645 = vadd.f32 0.0, %v1644
  %1646 = vmatmul.f32.gmra.mxu0 %v376
  %v1647 = vpop.f32.mrf.mxu0
  %v1648 = vadd.f32 0.0, %v1647
  %1649 = vdwg.mxu0
  %1650 = vmatpush.msra.mxu0 0.0
  %1651 = vmatpush.msra.mxu0 0.0
  %1652 = vmatpush.msra.mxu0 0.0
  %1653 = vmatpush.msra.mxu0 0.0
  %1654 = vmatpush.msra.mxu0 0.0
  %1655 = vmatpush.msra.mxu0 0.0
  %1656 = vmatpush.msra.mxu0 0.0
  %1657 = vmatpush.msra.mxu0 0.0
  %1658 = vmatpush.msra.mxu0 0.0
  %1659 = vmatpush.msra.mxu0 0.0
  %1660 = vmatpush.msra.mxu0 0.0
  %1661 = vmatpush.msra.mxu0 0.0
  %1662 = vmatpush.msra.mxu0 0.0
  %1663 = vmatpush.msra.mxu0 %v244
  %1664 = vmatpush.msra.mxu0 %v243
  %1665 = vmatpush.msra.mxu0 %v242
  %1666 = vmatmul.f32.gmra.mxu0 %v343
  %v1667 = vpop.f32.mrf.mxu0
  %v1668 = vadd.f32 0.0, %v1667
  %1669 = vmatmul.f32.gmra.mxu0 %v346
  %v1670 = vpop.f32.mrf.mxu0
  %v1671 = vadd.f32 0.0, %v1670
  %1672 = vmatmul.f32.gmra.mxu0 %v349
  %v1673 = vpop.f32.mrf.mxu0
  %v1674 = vadd.f32 0.0, %v1673
  %1675 = vmatmul.f32.gmra.mxu0 %v352
  %v1676 = vpop.f32.mrf.mxu0
  %v1677 = vadd.f32 0.0, %v1676
  %1678 = vmatmul.f32.gmra.mxu0 %v355
  %v1679 = vpop.f32.mrf.mxu0
  %v1680 = vadd.f32 0.0, %v1679
  %1681 = vmatmul.f32.gmra.mxu0 %v358
  %v1682 = vpop.f32.mrf.mxu0
  %v1683 = vadd.f32 0.0, %v1682
  %1684 = vmatmul.f32.gmra.mxu0 %v361
  %v1685 = vpop.f32.mrf.mxu0
  %v1686 = vadd.f32 0.0, %v1685
  %1687 = vmatmul.f32.gmra.mxu0 %v364
  %v1688 = vpop.f32.mrf.mxu0
  %v1689 = vadd.f32 0.0, %v1688
  %1690 = vmatmul.f32.gmra.mxu0 %v367
  %v1691 = vpop.f32.mrf.mxu0
  %v1692 = vadd.f32 0.0, %v1691
  %1693 = vmatmul.f32.gmra.mxu0 %v370
  %v1694 = vpop.f32.mrf.mxu0
  %v1695 = vadd.f32 0.0, %v1694
  %1696 = vmatmul.f32.gmra.mxu0 %v373
  %v1697 = vpop.f32.mrf.mxu0
  %v1698 = vadd.f32 0.0, %v1697
  %1699 = vmatmul.f32.gmra.mxu0 %v376
  %v1700 = vpop.f32.mrf.mxu0
  %v1701 = vadd.f32 0.0, %v1700
  %1702 = vdwg.mxu0
  %v1704 = vsel %vm341, %v317, 0
  %v1707 = vsel %vm341, %v318, 0
  %v1710 = vsel %vm341, %v319, 0
  %v1713 = vsel %vm341, %v320, 0
  %v1716 = vsel %vm341, %v321, 0
  %v1719 = vsel %vm341, %v322, 0
  %v1722 = vsel %vm341, %v323, 0
  %v1725 = vsel %vm341, %v324, 0
  %v1728 = vsel %vm341, %v325, 0
  %v1731 = vsel %vm341, %v326, 0
  %v1734 = vsel %vm341, %v327, 0
  %v1737 = vsel %vm341, %v328, 0
  %1739 = vmatpush.msra.mxu0 0.0
  %1740 = vmatpush.msra.mxu0 0.0
  %1741 = vmatpush.msra.mxu0 0.0
  %1742 = vmatpush.msra.mxu0 0.0
  %1743 = vmatpush.msra.mxu0 0.0
  %1744 = vmatpush.msra.mxu0 0.0
  %1745 = vmatpush.msra.mxu0 0.0
  %1746 = vmatpush.msra.mxu0 0.0
  %1747 = vmatpush.msra.mxu0 0.0
  %1748 = vmatpush.msra.mxu0 0.0
  %1749 = vmatpush.msra.mxu0 0.0
  %1750 = vmatpush.msra.mxu0 0.0
  %1751 = vmatpush.msra.mxu0 0.0
  %1752 = vmatpush.msra.mxu0 %v64
  %1753 = vmatpush.msra.mxu0 %v39
  %1754 = vmatpush.msra.mxu0 %v14
  %1755 = vmatmul.f32.gmra.mxu0 %v1704
  %v1756 = vpop.f32.mrf.mxu0
  %v1757 = vadd.f32 %v396, %v1756
  %1758 = vmatmul.f32.gmra.mxu0 %v1707
  %v1759 = vpop.f32.mrf.mxu0
  %v1760 = vadd.f32 %v399, %v1759
  %1761 = vmatmul.f32.gmra.mxu0 %v1710
  %v1762 = vpop.f32.mrf.mxu0
  %v1763 = vadd.f32 %v402, %v1762
  %1764 = vmatmul.f32.gmra.mxu0 %v1713
  %v1765 = vpop.f32.mrf.mxu0
  %v1766 = vadd.f32 %v405, %v1765
  %1767 = vmatmul.f32.gmra.mxu0 %v1716
  %v1768 = vpop.f32.mrf.mxu0
  %v1769 = vadd.f32 %v408, %v1768
  %1770 = vmatmul.f32.gmra.mxu0 %v1719
  %v1771 = vpop.f32.mrf.mxu0
  %v1772 = vadd.f32 %v411, %v1771
  %1773 = vmatmul.f32.gmra.mxu0 %v1722
  %v1774 = vpop.f32.mrf.mxu0
  %v1775 = vadd.f32 %v414, %v1774
  %1776 = vmatmul.f32.gmra.mxu0 %v1725
  %v1777 = vpop.f32.mrf.mxu0
  %v1778 = vadd.f32 %v417, %v1777
  %1779 = vmatmul.f32.gmra.mxu0 %v1728
  %v1780 = vpop.f32.mrf.mxu0
  %v1781 = vadd.f32 %v420, %v1780
  %1782 = vmatmul.f32.gmra.mxu0 %v1731
  %v1783 = vpop.f32.mrf.mxu0
  %v1784 = vadd.f32 %v423, %v1783
  %1785 = vmatmul.f32.gmra.mxu0 %v1734
  %v1786 = vpop.f32.mrf.mxu0
  %v1787 = vadd.f32 %v426, %v1786
  %1788 = vmatmul.f32.gmra.mxu0 %v1737
  %v1789 = vpop.f32.mrf.mxu0
  %v1790 = vadd.f32 %v429, %v1789
  %1791 = vdwg.mxu0
  %1792 = vmatpush.msra.mxu0 0.0
  %1793 = vmatpush.msra.mxu0 0.0
  %1794 = vmatpush.msra.mxu0 0.0
  %1795 = vmatpush.msra.mxu0 0.0
  %1796 = vmatpush.msra.mxu0 0.0
  %1797 = vmatpush.msra.mxu0 0.0
  %1798 = vmatpush.msra.mxu0 0.0
  %1799 = vmatpush.msra.mxu0 0.0
  %1800 = vmatpush.msra.mxu0 0.0
  %1801 = vmatpush.msra.mxu0 0.0
  %1802 = vmatpush.msra.mxu0 0.0
  %1803 = vmatpush.msra.mxu0 0.0
  %1804 = vmatpush.msra.mxu0 0.0
  %1805 = vmatpush.msra.mxu0 %v65
  %1806 = vmatpush.msra.mxu0 %v40
  %1807 = vmatpush.msra.mxu0 %v15
  %1808 = vmatmul.f32.gmra.mxu0 %v1704
  %v1809 = vpop.f32.mrf.mxu0
  %v1810 = vadd.f32 %v449, %v1809
  %1811 = vmatmul.f32.gmra.mxu0 %v1707
  %v1812 = vpop.f32.mrf.mxu0
  %v1813 = vadd.f32 %v452, %v1812
  %1814 = vmatmul.f32.gmra.mxu0 %v1710
  %v1815 = vpop.f32.mrf.mxu0
  %v1816 = vadd.f32 %v455, %v1815
  %1817 = vmatmul.f32.gmra.mxu0 %v1713
  %v1818 = vpop.f32.mrf.mxu0
  %v1819 = vadd.f32 %v458, %v1818
  %1820 = vmatmul.f32.gmra.mxu0 %v1716
  %v1821 = vpop.f32.mrf.mxu0
  %v1822 = vadd.f32 %v461, %v1821
  %1823 = vmatmul.f32.gmra.mxu0 %v1719
  %v1824 = vpop.f32.mrf.mxu0
  %v1825 = vadd.f32 %v464, %v1824
  %1826 = vmatmul.f32.gmra.mxu0 %v1722
  %v1827 = vpop.f32.mrf.mxu0
  %v1828 = vadd.f32 %v467, %v1827
  %1829 = vmatmul.f32.gmra.mxu0 %v1725
  %v1830 = vpop.f32.mrf.mxu0
  %v1831 = vadd.f32 %v470, %v1830
  %1832 = vmatmul.f32.gmra.mxu0 %v1728
  %v1833 = vpop.f32.mrf.mxu0
  %v1834 = vadd.f32 %v473, %v1833
  %1835 = vmatmul.f32.gmra.mxu0 %v1731
  %v1836 = vpop.f32.mrf.mxu0
  %v1837 = vadd.f32 %v476, %v1836
  %1838 = vmatmul.f32.gmra.mxu0 %v1734
  %v1839 = vpop.f32.mrf.mxu0
  %v1840 = vadd.f32 %v479, %v1839
  %1841 = vmatmul.f32.gmra.mxu0 %v1737
  %v1842 = vpop.f32.mrf.mxu0
  %v1843 = vadd.f32 %v482, %v1842
  %1844 = vdwg.mxu0
  %1845 = vmatpush.msra.mxu0 0.0
  %1846 = vmatpush.msra.mxu0 0.0
  %1847 = vmatpush.msra.mxu0 0.0
  %1848 = vmatpush.msra.mxu0 0.0
  %1849 = vmatpush.msra.mxu0 0.0
  %1850 = vmatpush.msra.mxu0 0.0
  %1851 = vmatpush.msra.mxu0 0.0
  %1852 = vmatpush.msra.mxu0 0.0
  %1853 = vmatpush.msra.mxu0 0.0
  %1854 = vmatpush.msra.mxu0 0.0
  %1855 = vmatpush.msra.mxu0 0.0
  %1856 = vmatpush.msra.mxu0 0.0
  %1857 = vmatpush.msra.mxu0 0.0
  %1858 = vmatpush.msra.mxu0 %v66
  %1859 = vmatpush.msra.mxu0 %v41
  %1860 = vmatpush.msra.mxu0 %v16
  %1861 = vmatmul.f32.gmra.mxu0 %v1704
  %v1862 = vpop.f32.mrf.mxu0
  %v1863 = vadd.f32 %v502, %v1862
  %1864 = vmatmul.f32.gmra.mxu0 %v1707
  %v1865 = vpop.f32.mrf.mxu0
  %v1866 = vadd.f32 %v505, %v1865
  %1867 = vmatmul.f32.gmra.mxu0 %v1710
  %v1868 = vpop.f32.mrf.mxu0
  %v1869 = vadd.f32 %v508, %v1868
  %1870 = vmatmul.f32.gmra.mxu0 %v1713
  %v1871 = vpop.f32.mrf.mxu0
  %v1872 = vadd.f32 %v511, %v1871
  %1873 = vmatmul.f32.gmra.mxu0 %v1716
  %v1874 = vpop.f32.mrf.mxu0
  %v1875 = vadd.f32 %v514, %v1874
  %1876 = vmatmul.f32.gmra.mxu0 %v1719
  %v1877 = vpop.f32.mrf.mxu0
  %v1878 = vadd.f32 %v517, %v1877
  %1879 = vmatmul.f32.gmra.mxu0 %v1722
  %v1880 = vpop.f32.mrf.mxu0
  %v1881 = vadd.f32 %v520, %v1880
  %1882 = vmatmul.f32.gmra.mxu0 %v1725
  %v1883 = vpop.f32.mrf.mxu0
  %v1884 = vadd.f32 %v523, %v1883
  %1885 = vmatmul.f32.gmra.mxu0 %v1728
  %v1886 = vpop.f32.mrf.mxu0
  %v1887 = vadd.f32 %v526, %v1886
  %1888 = vmatmul.f32.gmra.mxu0 %v1731
  %v1889 = vpop.f32.mrf.mxu0
  %v1890 = vadd.f32 %v529, %v1889
  %1891 = vmatmul.f32.gmra.mxu0 %v1734
  %v1892 = vpop.f32.mrf.mxu0
  %v1893 = vadd.f32 %v532, %v1892
  %1894 = vmatmul.f32.gmra.mxu0 %v1737
  %v1895 = vpop.f32.mrf.mxu0
  %v1896 = vadd.f32 %v535, %v1895
  %1897 = vdwg.mxu0
  %1898 = vmatpush.msra.mxu0 0.0
  %1899 = vmatpush.msra.mxu0 0.0
  %1900 = vmatpush.msra.mxu0 0.0
  %1901 = vmatpush.msra.mxu0 0.0
  %1902 = vmatpush.msra.mxu0 0.0
  %1903 = vmatpush.msra.mxu0 0.0
  %1904 = vmatpush.msra.mxu0 0.0
  %1905 = vmatpush.msra.mxu0 0.0
  %1906 = vmatpush.msra.mxu0 0.0
  %1907 = vmatpush.msra.mxu0 0.0
  %1908 = vmatpush.msra.mxu0 0.0
  %1909 = vmatpush.msra.mxu0 0.0
  %1910 = vmatpush.msra.mxu0 0.0
  %1911 = vmatpush.msra.mxu0 %v67
  %1912 = vmatpush.msra.mxu0 %v42
  %1913 = vmatpush.msra.mxu0 %v17
  %1914 = vmatmul.f32.gmra.mxu0 %v1704
  %v1915 = vpop.f32.mrf.mxu0
  %v1916 = vadd.f32 %v555, %v1915
  %1917 = vmatmul.f32.gmra.mxu0 %v1707
  %v1918 = vpop.f32.mrf.mxu0
  %v1919 = vadd.f32 %v558, %v1918
  %1920 = vmatmul.f32.gmra.mxu0 %v1710
  %v1921 = vpop.f32.mrf.mxu0
  %v1922 = vadd.f32 %v561, %v1921
  %1923 = vmatmul.f32.gmra.mxu0 %v1713
  %v1924 = vpop.f32.mrf.mxu0
  %v1925 = vadd.f32 %v564, %v1924
  %1926 = vmatmul.f32.gmra.mxu0 %v1716
  %v1927 = vpop.f32.mrf.mxu0
  %v1928 = vadd.f32 %v567, %v1927
  %1929 = vmatmul.f32.gmra.mxu0 %v1719
  %v1930 = vpop.f32.mrf.mxu0
  %v1931 = vadd.f32 %v570, %v1930
  %1932 = vmatmul.f32.gmra.mxu0 %v1722
  %v1933 = vpop.f32.mrf.mxu0
  %v1934 = vadd.f32 %v573, %v1933
  %1935 = vmatmul.f32.gmra.mxu0 %v1725
  %v1936 = vpop.f32.mrf.mxu0
  %v1937 = vadd.f32 %v576, %v1936
  %1938 = vmatmul.f32.gmra.mxu0 %v1728
  %v1939 = vpop.f32.mrf.mxu0
  %v1940 = vadd.f32 %v579, %v1939
  %1941 = vmatmul.f32.gmra.mxu0 %v1731
  %v1942 = vpop.f32.mrf.mxu0
  %v1943 = vadd.f32 %v582, %v1942
  %1944 = vmatmul.f32.gmra.mxu0 %v1734
  %v1945 = vpop.f32.mrf.mxu0
  %v1946 = vadd.f32 %v585, %v1945
  %1947 = vmatmul.f32.gmra.mxu0 %v1737
  %v1948 = vpop.f32.mrf.mxu0
  %v1949 = vadd.f32 %v588, %v1948
  %1950 = vdwg.mxu0
  %1951 = vmatpush.msra.mxu0 0.0
  %1952 = vmatpush.msra.mxu0 0.0
  %1953 = vmatpush.msra.mxu0 0.0
  %1954 = vmatpush.msra.mxu0 0.0
  %1955 = vmatpush.msra.mxu0 0.0
  %1956 = vmatpush.msra.mxu0 0.0
  %1957 = vmatpush.msra.mxu0 0.0
  %1958 = vmatpush.msra.mxu0 0.0
  %1959 = vmatpush.msra.mxu0 0.0
  %1960 = vmatpush.msra.mxu0 0.0
  %1961 = vmatpush.msra.mxu0 0.0
  %1962 = vmatpush.msra.mxu0 0.0
  %1963 = vmatpush.msra.mxu0 0.0
  %1964 = vmatpush.msra.mxu0 %v68
  %1965 = vmatpush.msra.mxu0 %v43
  %1966 = vmatpush.msra.mxu0 %v18
  %1967 = vmatmul.f32.gmra.mxu0 %v1704
  %v1968 = vpop.f32.mrf.mxu0
  %v1969 = vadd.f32 %v608, %v1968
  %1970 = vmatmul.f32.gmra.mxu0 %v1707
  %v1971 = vpop.f32.mrf.mxu0
  %v1972 = vadd.f32 %v611, %v1971
  %1973 = vmatmul.f32.gmra.mxu0 %v1710
  %v1974 = vpop.f32.mrf.mxu0
  %v1975 = vadd.f32 %v614, %v1974
  %1976 = vmatmul.f32.gmra.mxu0 %v1713
  %v1977 = vpop.f32.mrf.mxu0
  %v1978 = vadd.f32 %v617, %v1977
  %1979 = vmatmul.f32.gmra.mxu0 %v1716
  %v1980 = vpop.f32.mrf.mxu0
  %v1981 = vadd.f32 %v620, %v1980
  %1982 = vmatmul.f32.gmra.mxu0 %v1719
  %v1983 = vpop.f32.mrf.mxu0
  %v1984 = vadd.f32 %v623, %v1983
  %1985 = vmatmul.f32.gmra.mxu0 %v1722
  %v1986 = vpop.f32.mrf.mxu0
  %v1987 = vadd.f32 %v626, %v1986
  %1988 = vmatmul.f32.gmra.mxu0 %v1725
  %v1989 = vpop.f32.mrf.mxu0
  %v1990 = vadd.f32 %v629, %v1989
  %1991 = vmatmul.f32.gmra.mxu0 %v1728
  %v1992 = vpop.f32.mrf.mxu0
  %v1993 = vadd.f32 %v632, %v1992
  %1994 = vmatmul.f32.gmra.mxu0 %v1731
  %v1995 = vpop.f32.mrf.mxu0
  %v1996 = vadd.f32 %v635, %v1995
  %1997 = vmatmul.f32.gmra.mxu0 %v1734
  %v1998 = vpop.f32.mrf.mxu0
  %v1999 = vadd.f32 %v638, %v1998
  %2000 = vmatmul.f32.gmra.mxu0 %v1737
  %v2001 = vpop.f32.mrf.mxu0
  %v2002 = vadd.f32 %v641, %v2001
  %2003 = vdwg.mxu0
  %2004 = vmatpush.msra.mxu0 0.0
  %2005 = vmatpush.msra.mxu0 0.0
  %2006 = vmatpush.msra.mxu0 0.0
  %2007 = vmatpush.msra.mxu0 0.0
  %2008 = vmatpush.msra.mxu0 0.0
  %2009 = vmatpush.msra.mxu0 0.0
  %2010 = vmatpush.msra.mxu0 0.0
  %2011 = vmatpush.msra.mxu0 0.0
  %2012 = vmatpush.msra.mxu0 0.0
  %2013 = vmatpush.msra.mxu0 0.0
  %2014 = vmatpush.msra.mxu0 0.0
  %2015 = vmatpush.msra.mxu0 0.0
  %2016 = vmatpush.msra.mxu0 0.0
  %2017 = vmatpush.msra.mxu0 %v69
  %2018 = vmatpush.msra.mxu0 %v44
  %2019 = vmatpush.msra.mxu0 %v19
  %2020 = vmatmul.f32.gmra.mxu0 %v1704
  %v2021 = vpop.f32.mrf.mxu0
  %v2022 = vadd.f32 %v661, %v2021
  %2023 = vmatmul.f32.gmra.mxu0 %v1707
  %v2024 = vpop.f32.mrf.mxu0
  %v2025 = vadd.f32 %v664, %v2024
  %2026 = vmatmul.f32.gmra.mxu0 %v1710
  %v2027 = vpop.f32.mrf.mxu0
  %v2028 = vadd.f32 %v667, %v2027
  %2029 = vmatmul.f32.gmra.mxu0 %v1713
  %v2030 = vpop.f32.mrf.mxu0
  %v2031 = vadd.f32 %v670, %v2030
  %2032 = vmatmul.f32.gmra.mxu0 %v1716
  %v2033 = vpop.f32.mrf.mxu0
  %v2034 = vadd.f32 %v673, %v2033
  %2035 = vmatmul.f32.gmra.mxu0 %v1719
  %v2036 = vpop.f32.mrf.mxu0
  %v2037 = vadd.f32 %v676, %v2036
  %2038 = vmatmul.f32.gmra.mxu0 %v1722
  %v2039 = vpop.f32.mrf.mxu0
  %v2040 = vadd.f32 %v679, %v2039
  %2041 = vmatmul.f32.gmra.mxu0 %v1725
  %v2042 = vpop.f32.mrf.mxu0
  %v2043 = vadd.f32 %v682, %v2042
  %2044 = vmatmul.f32.gmra.mxu0 %v1728
  %v2045 = vpop.f32.mrf.mxu0
  %v2046 = vadd.f32 %v685, %v2045
  %2047 = vmatmul.f32.gmra.mxu0 %v1731
  %v2048 = vpop.f32.mrf.mxu0
  %v2049 = vadd.f32 %v688, %v2048
  %2050 = vmatmul.f32.gmra.mxu0 %v1734
  %v2051 = vpop.f32.mrf.mxu0
  %v2052 = vadd.f32 %v691, %v2051
  %2053 = vmatmul.f32.gmra.mxu0 %v1737
  %v2054 = vpop.f32.mrf.mxu0
  %v2055 = vadd.f32 %v694, %v2054
  %2056 = vdwg.mxu0
  %2057 = vmatpush.msra.mxu0 0.0
  %2058 = vmatpush.msra.mxu0 0.0
  %2059 = vmatpush.msra.mxu0 0.0
  %2060 = vmatpush.msra.mxu0 0.0
  %2061 = vmatpush.msra.mxu0 0.0
  %2062 = vmatpush.msra.mxu0 0.0
  %2063 = vmatpush.msra.mxu0 0.0
  %2064 = vmatpush.msra.mxu0 0.0
  %2065 = vmatpush.msra.mxu0 0.0
  %2066 = vmatpush.msra.mxu0 0.0
  %2067 = vmatpush.msra.mxu0 0.0
  %2068 = vmatpush.msra.mxu0 0.0
  %2069 = vmatpush.msra.mxu0 0.0
  %2070 = vmatpush.msra.mxu0 %v70
  %2071 = vmatpush.msra.mxu0 %v45
  %2072 = vmatpush.msra.mxu0 %v20
  %2073 = vmatmul.f32.gmra.mxu0 %v1704
  %v2074 = vpop.f32.mrf.mxu0
  %v2075 = vadd.f32 %v714, %v2074
  %2076 = vmatmul.f32.gmra.mxu0 %v1707
  %v2077 = vpop.f32.mrf.mxu0
  %v2078 = vadd.f32 %v717, %v2077
  %2079 = vmatmul.f32.gmra.mxu0 %v1710
  %v2080 = vpop.f32.mrf.mxu0
  %v2081 = vadd.f32 %v720, %v2080
  %2082 = vmatmul.f32.gmra.mxu0 %v1713
  %v2083 = vpop.f32.mrf.mxu0
  %v2084 = vadd.f32 %v723, %v2083
  %2085 = vmatmul.f32.gmra.mxu0 %v1716
  %v2086 = vpop.f32.mrf.mxu0
  %v2087 = vadd.f32 %v726, %v2086
  %2088 = vmatmul.f32.gmra.mxu0 %v1719
  %v2089 = vpop.f32.mrf.mxu0
  %v2090 = vadd.f32 %v729, %v2089
  %2091 = vmatmul.f32.gmra.mxu0 %v1722
  %v2092 = vpop.f32.mrf.mxu0
  %v2093 = vadd.f32 %v732, %v2092
  %2094 = vmatmul.f32.gmra.mxu0 %v1725
  %v2095 = vpop.f32.mrf.mxu0
  %v2096 = vadd.f32 %v735, %v2095
  %2097 = vmatmul.f32.gmra.mxu0 %v1728
  %v2098 = vpop.f32.mrf.mxu0
  %v2099 = vadd.f32 %v738, %v2098
  %2100 = vmatmul.f32.gmra.mxu0 %v1731
  %v2101 = vpop.f32.mrf.mxu0
  %v2102 = vadd.f32 %v741, %v2101
  %2103 = vmatmul.f32.gmra.mxu0 %v1734
  %v2104 = vpop.f32.mrf.mxu0
  %v2105 = vadd.f32 %v744, %v2104
  %2106 = vmatmul.f32.gmra.mxu0 %v1737
  %v2107 = vpop.f32.mrf.mxu0
  %v2108 = vadd.f32 %v747, %v2107
  %2109 = vdwg.mxu0
  %2110 = vmatpush.msra.mxu0 0.0
  %2111 = vmatpush.msra.mxu0 0.0
  %2112 = vmatpush.msra.mxu0 0.0
  %2113 = vmatpush.msra.mxu0 0.0
  %2114 = vmatpush.msra.mxu0 0.0
  %2115 = vmatpush.msra.mxu0 0.0
  %2116 = vmatpush.msra.mxu0 0.0
  %2117 = vmatpush.msra.mxu0 0.0
  %2118 = vmatpush.msra.mxu0 0.0
  %2119 = vmatpush.msra.mxu0 0.0
  %2120 = vmatpush.msra.mxu0 0.0
  %2121 = vmatpush.msra.mxu0 0.0
  %2122 = vmatpush.msra.mxu0 0.0
  %2123 = vmatpush.msra.mxu0 %v71
  %2124 = vmatpush.msra.mxu0 %v46
  %2125 = vmatpush.msra.mxu0 %v21
  %2126 = vmatmul.f32.gmra.mxu0 %v1704
  %v2127 = vpop.f32.mrf.mxu0
  %v2128 = vadd.f32 %v767, %v2127
  %2129 = vmatmul.f32.gmra.mxu0 %v1707
  %v2130 = vpop.f32.mrf.mxu0
  %v2131 = vadd.f32 %v770, %v2130
  %2132 = vmatmul.f32.gmra.mxu0 %v1710
  %v2133 = vpop.f32.mrf.mxu0
  %v2134 = vadd.f32 %v773, %v2133
  %2135 = vmatmul.f32.gmra.mxu0 %v1713
  %v2136 = vpop.f32.mrf.mxu0
  %v2137 = vadd.f32 %v776, %v2136
  %2138 = vmatmul.f32.gmra.mxu0 %v1716
  %v2139 = vpop.f32.mrf.mxu0
  %v2140 = vadd.f32 %v779, %v2139
  %2141 = vmatmul.f32.gmra.mxu0 %v1719
  %v2142 = vpop.f32.mrf.mxu0
  %v2143 = vadd.f32 %v782, %v2142
  %2144 = vmatmul.f32.gmra.mxu0 %v1722
  %v2145 = vpop.f32.mrf.mxu0
  %v2146 = vadd.f32 %v785, %v2145
  %2147 = vmatmul.f32.gmra.mxu0 %v1725
  %v2148 = vpop.f32.mrf.mxu0
  %v2149 = vadd.f32 %v788, %v2148
  %2150 = vmatmul.f32.gmra.mxu0 %v1728
  %v2151 = vpop.f32.mrf.mxu0
  %v2152 = vadd.f32 %v791, %v2151
  %2153 = vmatmul.f32.gmra.mxu0 %v1731
  %v2154 = vpop.f32.mrf.mxu0
  %v2155 = vadd.f32 %v794, %v2154
  %2156 = vmatmul.f32.gmra.mxu0 %v1734
  %v2157 = vpop.f32.mrf.mxu0
  %v2158 = vadd.f32 %v797, %v2157
  %2159 = vmatmul.f32.gmra.mxu0 %v1737
  %v2160 = vpop.f32.mrf.mxu0
  %v2161 = vadd.f32 %v800, %v2160
  %2162 = vdwg.mxu0
  %2163 = vmatpush.msra.mxu0 0.0
  %2164 = vmatpush.msra.mxu0 0.0
  %2165 = vmatpush.msra.mxu0 0.0
  %2166 = vmatpush.msra.mxu0 0.0
  %2167 = vmatpush.msra.mxu0 0.0
  %2168 = vmatpush.msra.mxu0 0.0
  %2169 = vmatpush.msra.mxu0 0.0
  %2170 = vmatpush.msra.mxu0 0.0
  %2171 = vmatpush.msra.mxu0 0.0
  %2172 = vmatpush.msra.mxu0 0.0
  %2173 = vmatpush.msra.mxu0 0.0
  %2174 = vmatpush.msra.mxu0 0.0
  %2175 = vmatpush.msra.mxu0 0.0
  %2176 = vmatpush.msra.mxu0 %v72
  %2177 = vmatpush.msra.mxu0 %v47
  %2178 = vmatpush.msra.mxu0 %v22
  %2179 = vmatmul.f32.gmra.mxu0 %v1704
  %v2180 = vpop.f32.mrf.mxu0
  %v2181 = vadd.f32 %v820, %v2180
  %2182 = vmatmul.f32.gmra.mxu0 %v1707
  %v2183 = vpop.f32.mrf.mxu0
  %v2184 = vadd.f32 %v823, %v2183
  %2185 = vmatmul.f32.gmra.mxu0 %v1710
  %v2186 = vpop.f32.mrf.mxu0
  %v2187 = vadd.f32 %v826, %v2186
  %2188 = vmatmul.f32.gmra.mxu0 %v1713
  %v2189 = vpop.f32.mrf.mxu0
  %v2190 = vadd.f32 %v829, %v2189
  %2191 = vmatmul.f32.gmra.mxu0 %v1716
  %v2192 = vpop.f32.mrf.mxu0
  %v2193 = vadd.f32 %v832, %v2192
  %2194 = vmatmul.f32.gmra.mxu0 %v1719
  %v2195 = vpop.f32.mrf.mxu0
  %v2196 = vadd.f32 %v835, %v2195
  %2197 = vmatmul.f32.gmra.mxu0 %v1722
  %v2198 = vpop.f32.mrf.mxu0
  %v2199 = vadd.f32 %v838, %v2198
  %2200 = vmatmul.f32.gmra.mxu0 %v1725
  %v2201 = vpop.f32.mrf.mxu0
  %v2202 = vadd.f32 %v841, %v2201
  %2203 = vmatmul.f32.gmra.mxu0 %v1728
  %v2204 = vpop.f32.mrf.mxu0
  %v2205 = vadd.f32 %v844, %v2204
  %2206 = vmatmul.f32.gmra.mxu0 %v1731
  %v2207 = vpop.f32.mrf.mxu0
  %v2208 = vadd.f32 %v847, %v2207
  %2209 = vmatmul.f32.gmra.mxu0 %v1734
  %v2210 = vpop.f32.mrf.mxu0
  %v2211 = vadd.f32 %v850, %v2210
  %2212 = vmatmul.f32.gmra.mxu0 %v1737
  %v2213 = vpop.f32.mrf.mxu0
  %v2214 = vadd.f32 %v853, %v2213
  %2215 = vdwg.mxu0
  %2216 = vmatpush.msra.mxu0 0.0
  %2217 = vmatpush.msra.mxu0 0.0
  %2218 = vmatpush.msra.mxu0 0.0
  %2219 = vmatpush.msra.mxu0 0.0
  %2220 = vmatpush.msra.mxu0 0.0
  %2221 = vmatpush.msra.mxu0 0.0
  %2222 = vmatpush.msra.mxu0 0.0
  %2223 = vmatpush.msra.mxu0 0.0
  %2224 = vmatpush.msra.mxu0 0.0
  %2225 = vmatpush.msra.mxu0 0.0
  %2226 = vmatpush.msra.mxu0 0.0
  %2227 = vmatpush.msra.mxu0 0.0
  %2228 = vmatpush.msra.mxu0 0.0
  %2229 = vmatpush.msra.mxu0 %v73
  %2230 = vmatpush.msra.mxu0 %v48
  %2231 = vmatpush.msra.mxu0 %v23
  %2232 = vmatmul.f32.gmra.mxu0 %v1704
  %v2233 = vpop.f32.mrf.mxu0
  %v2234 = vadd.f32 %v873, %v2233
  %2235 = vmatmul.f32.gmra.mxu0 %v1707
  %v2236 = vpop.f32.mrf.mxu0
  %v2237 = vadd.f32 %v876, %v2236
  %2238 = vmatmul.f32.gmra.mxu0 %v1710
  %v2239 = vpop.f32.mrf.mxu0
  %v2240 = vadd.f32 %v879, %v2239
  %2241 = vmatmul.f32.gmra.mxu0 %v1713
  %v2242 = vpop.f32.mrf.mxu0
  %v2243 = vadd.f32 %v882, %v2242
  %2244 = vmatmul.f32.gmra.mxu0 %v1716
  %v2245 = vpop.f32.mrf.mxu0
  %v2246 = vadd.f32 %v885, %v2245
  %2247 = vmatmul.f32.gmra.mxu0 %v1719
  %v2248 = vpop.f32.mrf.mxu0
  %v2249 = vadd.f32 %v888, %v2248
  %2250 = vmatmul.f32.gmra.mxu0 %v1722
  %v2251 = vpop.f32.mrf.mxu0
  %v2252 = vadd.f32 %v891, %v2251
  %2253 = vmatmul.f32.gmra.mxu0 %v1725
  %v2254 = vpop.f32.mrf.mxu0
  %v2255 = vadd.f32 %v894, %v2254
  %2256 = vmatmul.f32.gmra.mxu0 %v1728
  %v2257 = vpop.f32.mrf.mxu0
  %v2258 = vadd.f32 %v897, %v2257
  %2259 = vmatmul.f32.gmra.mxu0 %v1731
  %v2260 = vpop.f32.mrf.mxu0
  %v2261 = vadd.f32 %v900, %v2260
  %2262 = vmatmul.f32.gmra.mxu0 %v1734
  %v2263 = vpop.f32.mrf.mxu0
  %v2264 = vadd.f32 %v903, %v2263
  %2265 = vmatmul.f32.gmra.mxu0 %v1737
  %v2266 = vpop.f32.mrf.mxu0
  %v2267 = vadd.f32 %v906, %v2266
  %2268 = vdwg.mxu0
  %2269 = vmatpush.msra.mxu0 0.0
  %2270 = vmatpush.msra.mxu0 0.0
  %2271 = vmatpush.msra.mxu0 0.0
  %2272 = vmatpush.msra.mxu0 0.0
  %2273 = vmatpush.msra.mxu0 0.0
  %2274 = vmatpush.msra.mxu0 0.0
  %2275 = vmatpush.msra.mxu0 0.0
  %2276 = vmatpush.msra.mxu0 0.0
  %2277 = vmatpush.msra.mxu0 0.0
  %2278 = vmatpush.msra.mxu0 0.0
  %2279 = vmatpush.msra.mxu0 0.0
  %2280 = vmatpush.msra.mxu0 0.0
  %2281 = vmatpush.msra.mxu0 0.0
  %2282 = vmatpush.msra.mxu0 %v74
  %2283 = vmatpush.msra.mxu0 %v49
  %2284 = vmatpush.msra.mxu0 %v24
  %2285 = vmatmul.f32.gmra.mxu0 %v1704
  %v2286 = vpop.f32.mrf.mxu0
  %v2287 = vadd.f32 %v926, %v2286
  %2288 = vmatmul.f32.gmra.mxu0 %v1707
  %v2289 = vpop.f32.mrf.mxu0
  %v2290 = vadd.f32 %v929, %v2289
  %2291 = vmatmul.f32.gmra.mxu0 %v1710
  %v2292 = vpop.f32.mrf.mxu0
  %v2293 = vadd.f32 %v932, %v2292
  %2294 = vmatmul.f32.gmra.mxu0 %v1713
  %v2295 = vpop.f32.mrf.mxu0
  %v2296 = vadd.f32 %v935, %v2295
  %2297 = vmatmul.f32.gmra.mxu0 %v1716
  %v2298 = vpop.f32.mrf.mxu0
  %v2299 = vadd.f32 %v938, %v2298
  %2300 = vmatmul.f32.gmra.mxu0 %v1719
  %v2301 = vpop.f32.mrf.mxu0
  %v2302 = vadd.f32 %v941, %v2301
  %2303 = vmatmul.f32.gmra.mxu0 %v1722
  %v2304 = vpop.f32.mrf.mxu0
  %v2305 = vadd.f32 %v944, %v2304
  %2306 = vmatmul.f32.gmra.mxu0 %v1725
  %v2307 = vpop.f32.mrf.mxu0
  %v2308 = vadd.f32 %v947, %v2307
  %2309 = vmatmul.f32.gmra.mxu0 %v1728
  %v2310 = vpop.f32.mrf.mxu0
  %v2311 = vadd.f32 %v950, %v2310
  %2312 = vmatmul.f32.gmra.mxu0 %v1731
  %v2313 = vpop.f32.mrf.mxu0
  %v2314 = vadd.f32 %v953, %v2313
  %2315 = vmatmul.f32.gmra.mxu0 %v1734
  %v2316 = vpop.f32.mrf.mxu0
  %v2317 = vadd.f32 %v956, %v2316
  %2318 = vmatmul.f32.gmra.mxu0 %v1737
  %v2319 = vpop.f32.mrf.mxu0
  %v2320 = vadd.f32 %v959, %v2319
  %2321 = vdwg.mxu0
  %2322 = vmatpush.msra.mxu0 0.0
  %2323 = vmatpush.msra.mxu0 0.0
  %2324 = vmatpush.msra.mxu0 0.0
  %2325 = vmatpush.msra.mxu0 0.0
  %2326 = vmatpush.msra.mxu0 0.0
  %2327 = vmatpush.msra.mxu0 0.0
  %2328 = vmatpush.msra.mxu0 0.0
  %2329 = vmatpush.msra.mxu0 0.0
  %2330 = vmatpush.msra.mxu0 0.0
  %2331 = vmatpush.msra.mxu0 0.0
  %2332 = vmatpush.msra.mxu0 0.0
  %2333 = vmatpush.msra.mxu0 0.0
  %2334 = vmatpush.msra.mxu0 0.0
  %2335 = vmatpush.msra.mxu0 %v75
  %2336 = vmatpush.msra.mxu0 %v50
  %2337 = vmatpush.msra.mxu0 %v25
  %2338 = vmatmul.f32.gmra.mxu0 %v1704
  %v2339 = vpop.f32.mrf.mxu0
  %v2340 = vadd.f32 %v979, %v2339
  %2341 = vmatmul.f32.gmra.mxu0 %v1707
  %v2342 = vpop.f32.mrf.mxu0
  %v2343 = vadd.f32 %v982, %v2342
  %2344 = vmatmul.f32.gmra.mxu0 %v1710
  %v2345 = vpop.f32.mrf.mxu0
  %v2346 = vadd.f32 %v985, %v2345
  %2347 = vmatmul.f32.gmra.mxu0 %v1713
  %v2348 = vpop.f32.mrf.mxu0
  %v2349 = vadd.f32 %v988, %v2348
  %2350 = vmatmul.f32.gmra.mxu0 %v1716
  %v2351 = vpop.f32.mrf.mxu0
  %v2352 = vadd.f32 %v991, %v2351
  %2353 = vmatmul.f32.gmra.mxu0 %v1719
  %v2354 = vpop.f32.mrf.mxu0
  %v2355 = vadd.f32 %v994, %v2354
  %2356 = vmatmul.f32.gmra.mxu0 %v1722
  %v2357 = vpop.f32.mrf.mxu0
  %v2358 = vadd.f32 %v997, %v2357
  %2359 = vmatmul.f32.gmra.mxu0 %v1725
  %v2360 = vpop.f32.mrf.mxu0
  %v2361 = vadd.f32 %v1000, %v2360
  %2362 = vmatmul.f32.gmra.mxu0 %v1728
  %v2363 = vpop.f32.mrf.mxu0
  %v2364 = vadd.f32 %v1003, %v2363
  %2365 = vmatmul.f32.gmra.mxu0 %v1731
  %v2366 = vpop.f32.mrf.mxu0
  %v2367 = vadd.f32 %v1006, %v2366
  %2368 = vmatmul.f32.gmra.mxu0 %v1734
  %v2369 = vpop.f32.mrf.mxu0
  %v2370 = vadd.f32 %v1009, %v2369
  %2371 = vmatmul.f32.gmra.mxu0 %v1737
  %v2372 = vpop.f32.mrf.mxu0
  %v2373 = vadd.f32 %v1012, %v2372
  %2374 = vdwg.mxu0
  %2375 = vmatpush.msra.mxu0 0.0
  %2376 = vmatpush.msra.mxu0 0.0
  %2377 = vmatpush.msra.mxu0 0.0
  %2378 = vmatpush.msra.mxu0 0.0
  %2379 = vmatpush.msra.mxu0 0.0
  %2380 = vmatpush.msra.mxu0 0.0
  %2381 = vmatpush.msra.mxu0 0.0
  %2382 = vmatpush.msra.mxu0 0.0
  %2383 = vmatpush.msra.mxu0 0.0
  %2384 = vmatpush.msra.mxu0 0.0
  %2385 = vmatpush.msra.mxu0 0.0
  %2386 = vmatpush.msra.mxu0 0.0
  %2387 = vmatpush.msra.mxu0 0.0
  %2388 = vmatpush.msra.mxu0 %v76
  %2389 = vmatpush.msra.mxu0 %v51
  %2390 = vmatpush.msra.mxu0 %v26
  %2391 = vmatmul.f32.gmra.mxu0 %v1704
  %v2392 = vpop.f32.mrf.mxu0
  %v2393 = vadd.f32 %v1032, %v2392
  %2394 = vmatmul.f32.gmra.mxu0 %v1707
  %v2395 = vpop.f32.mrf.mxu0
  %v2396 = vadd.f32 %v1035, %v2395
  %2397 = vmatmul.f32.gmra.mxu0 %v1710
  %v2398 = vpop.f32.mrf.mxu0
  %v2399 = vadd.f32 %v1038, %v2398
  %2400 = vmatmul.f32.gmra.mxu0 %v1713
  %v2401 = vpop.f32.mrf.mxu0
  %v2402 = vadd.f32 %v1041, %v2401
  %2403 = vmatmul.f32.gmra.mxu0 %v1716
  %v2404 = vpop.f32.mrf.mxu0
  %v2405 = vadd.f32 %v1044, %v2404
  %2406 = vmatmul.f32.gmra.mxu0 %v1719
  %v2407 = vpop.f32.mrf.mxu0
  %v2408 = vadd.f32 %v1047, %v2407
  %2409 = vmatmul.f32.gmra.mxu0 %v1722
  %v2410 = vpop.f32.mrf.mxu0
  %v2411 = vadd.f32 %v1050, %v2410
  %2412 = vmatmul.f32.gmra.mxu0 %v1725
  %v2413 = vpop.f32.mrf.mxu0
  %v2414 = vadd.f32 %v1053, %v2413
  %2415 = vmatmul.f32.gmra.mxu0 %v1728
  %v2416 = vpop.f32.mrf.mxu0
  %v2417 = vadd.f32 %v1056, %v2416
  %2418 = vmatmul.f32.gmra.mxu0 %v1731
  %v2419 = vpop.f32.mrf.mxu0
  %v2420 = vadd.f32 %v1059, %v2419
  %2421 = vmatmul.f32.gmra.mxu0 %v1734
  %v2422 = vpop.f32.mrf.mxu0
  %v2423 = vadd.f32 %v1062, %v2422
  %2424 = vmatmul.f32.gmra.mxu0 %v1737
  %v2425 = vpop.f32.mrf.mxu0
  %v2426 = vadd.f32 %v1065, %v2425
  %2427 = vdwg.mxu0
  %2428 = vmatpush.msra.mxu0 0.0
  %2429 = vmatpush.msra.mxu0 0.0
  %2430 = vmatpush.msra.mxu0 0.0
  %2431 = vmatpush.msra.mxu0 0.0
  %2432 = vmatpush.msra.mxu0 0.0
  %2433 = vmatpush.msra.mxu0 0.0
  %2434 = vmatpush.msra.mxu0 0.0
  %2435 = vmatpush.msra.mxu0 0.0
  %2436 = vmatpush.msra.mxu0 0.0
  %2437 = vmatpush.msra.mxu0 0.0
  %2438 = vmatpush.msra.mxu0 0.0
  %2439 = vmatpush.msra.mxu0 0.0
  %2440 = vmatpush.msra.mxu0 0.0
  %2441 = vmatpush.msra.mxu0 %v77
  %2442 = vmatpush.msra.mxu0 %v52
  %2443 = vmatpush.msra.mxu0 %v27
  %2444 = vmatmul.f32.gmra.mxu0 %v1704
  %v2445 = vpop.f32.mrf.mxu0
  %v2446 = vadd.f32 %v1085, %v2445
  %2447 = vmatmul.f32.gmra.mxu0 %v1707
  %v2448 = vpop.f32.mrf.mxu0
  %v2449 = vadd.f32 %v1088, %v2448
  %2450 = vmatmul.f32.gmra.mxu0 %v1710
  %v2451 = vpop.f32.mrf.mxu0
  %v2452 = vadd.f32 %v1091, %v2451
  %2453 = vmatmul.f32.gmra.mxu0 %v1713
  %v2454 = vpop.f32.mrf.mxu0
  %v2455 = vadd.f32 %v1094, %v2454
  %2456 = vmatmul.f32.gmra.mxu0 %v1716
  %v2457 = vpop.f32.mrf.mxu0
  %v2458 = vadd.f32 %v1097, %v2457
  %2459 = vmatmul.f32.gmra.mxu0 %v1719
  %v2460 = vpop.f32.mrf.mxu0
  %v2461 = vadd.f32 %v1100, %v2460
  %2462 = vmatmul.f32.gmra.mxu0 %v1722
  %v2463 = vpop.f32.mrf.mxu0
  %v2464 = vadd.f32 %v1103, %v2463
  %2465 = vmatmul.f32.gmra.mxu0 %v1725
  %v2466 = vpop.f32.mrf.mxu0
  %v2467 = vadd.f32 %v1106, %v2466
  %2468 = vmatmul.f32.gmra.mxu0 %v1728
  %v2469 = vpop.f32.mrf.mxu0
  %v2470 = vadd.f32 %v1109, %v2469
  %2471 = vmatmul.f32.gmra.mxu0 %v1731
  %v2472 = vpop.f32.mrf.mxu0
  %v2473 = vadd.f32 %v1112, %v2472
  %2474 = vmatmul.f32.gmra.mxu0 %v1734
  %v2475 = vpop.f32.mrf.mxu0
  %v2476 = vadd.f32 %v1115, %v2475
  %2477 = vmatmul.f32.gmra.mxu0 %v1737
  %v2478 = vpop.f32.mrf.mxu0
  %v2479 = vadd.f32 %v1118, %v2478
  %2480 = vdwg.mxu0
  %2481 = vmatpush.msra.mxu0 0.0
  %2482 = vmatpush.msra.mxu0 0.0
  %2483 = vmatpush.msra.mxu0 0.0
  %2484 = vmatpush.msra.mxu0 0.0
  %2485 = vmatpush.msra.mxu0 0.0
  %2486 = vmatpush.msra.mxu0 0.0
  %2487 = vmatpush.msra.mxu0 0.0
  %2488 = vmatpush.msra.mxu0 0.0
  %2489 = vmatpush.msra.mxu0 0.0
  %2490 = vmatpush.msra.mxu0 0.0
  %2491 = vmatpush.msra.mxu0 0.0
  %2492 = vmatpush.msra.mxu0 0.0
  %2493 = vmatpush.msra.mxu0 0.0
  %2494 = vmatpush.msra.mxu0 %v78
  %2495 = vmatpush.msra.mxu0 %v53
  %2496 = vmatpush.msra.mxu0 %v28
  %2497 = vmatmul.f32.gmra.mxu0 %v1704
  %v2498 = vpop.f32.mrf.mxu0
  %v2499 = vadd.f32 %v1138, %v2498
  %2500 = vmatmul.f32.gmra.mxu0 %v1707
  %v2501 = vpop.f32.mrf.mxu0
  %v2502 = vadd.f32 %v1141, %v2501
  %2503 = vmatmul.f32.gmra.mxu0 %v1710
  %v2504 = vpop.f32.mrf.mxu0
  %v2505 = vadd.f32 %v1144, %v2504
  %2506 = vmatmul.f32.gmra.mxu0 %v1713
  %v2507 = vpop.f32.mrf.mxu0
  %v2508 = vadd.f32 %v1147, %v2507
  %2509 = vmatmul.f32.gmra.mxu0 %v1716
  %v2510 = vpop.f32.mrf.mxu0
  %v2511 = vadd.f32 %v1150, %v2510
  %2512 = vmatmul.f32.gmra.mxu0 %v1719
  %v2513 = vpop.f32.mrf.mxu0
  %v2514 = vadd.f32 %v1153, %v2513
  %2515 = vmatmul.f32.gmra.mxu0 %v1722
  %v2516 = vpop.f32.mrf.mxu0
  %v2517 = vadd.f32 %v1156, %v2516
  %2518 = vmatmul.f32.gmra.mxu0 %v1725
  %v2519 = vpop.f32.mrf.mxu0
  %v2520 = vadd.f32 %v1159, %v2519
  %2521 = vmatmul.f32.gmra.mxu0 %v1728
  %v2522 = vpop.f32.mrf.mxu0
  %v2523 = vadd.f32 %v1162, %v2522
  %2524 = vmatmul.f32.gmra.mxu0 %v1731
  %v2525 = vpop.f32.mrf.mxu0
  %v2526 = vadd.f32 %v1165, %v2525
  %2527 = vmatmul.f32.gmra.mxu0 %v1734
  %v2528 = vpop.f32.mrf.mxu0
  %v2529 = vadd.f32 %v1168, %v2528
  %2530 = vmatmul.f32.gmra.mxu0 %v1737
  %v2531 = vpop.f32.mrf.mxu0
  %v2532 = vadd.f32 %v1171, %v2531
  %2533 = vdwg.mxu0
  %2534 = vmatpush.msra.mxu0 0.0
  %2535 = vmatpush.msra.mxu0 0.0
  %2536 = vmatpush.msra.mxu0 0.0
  %2537 = vmatpush.msra.mxu0 0.0
  %2538 = vmatpush.msra.mxu0 0.0
  %2539 = vmatpush.msra.mxu0 0.0
  %2540 = vmatpush.msra.mxu0 0.0
  %2541 = vmatpush.msra.mxu0 0.0
  %2542 = vmatpush.msra.mxu0 0.0
  %2543 = vmatpush.msra.mxu0 0.0
  %2544 = vmatpush.msra.mxu0 0.0
  %2545 = vmatpush.msra.mxu0 0.0
  %2546 = vmatpush.msra.mxu0 0.0
  %2547 = vmatpush.msra.mxu0 %v79
  %2548 = vmatpush.msra.mxu0 %v54
  %2549 = vmatpush.msra.mxu0 %v29
  %2550 = vmatmul.f32.gmra.mxu0 %v1704
  %v2551 = vpop.f32.mrf.mxu0
  %v2552 = vadd.f32 %v1191, %v2551
  %2553 = vmatmul.f32.gmra.mxu0 %v1707
  %v2554 = vpop.f32.mrf.mxu0
  %v2555 = vadd.f32 %v1194, %v2554
  %2556 = vmatmul.f32.gmra.mxu0 %v1710
  %v2557 = vpop.f32.mrf.mxu0
  %v2558 = vadd.f32 %v1197, %v2557
  %2559 = vmatmul.f32.gmra.mxu0 %v1713
  %v2560 = vpop.f32.mrf.mxu0
  %v2561 = vadd.f32 %v1200, %v2560
  %2562 = vmatmul.f32.gmra.mxu0 %v1716
  %v2563 = vpop.f32.mrf.mxu0
  %v2564 = vadd.f32 %v1203, %v2563
  %2565 = vmatmul.f32.gmra.mxu0 %v1719
  %v2566 = vpop.f32.mrf.mxu0
  %v2567 = vadd.f32 %v1206, %v2566
  %2568 = vmatmul.f32.gmra.mxu0 %v1722
  %v2569 = vpop.f32.mrf.mxu0
  %v2570 = vadd.f32 %v1209, %v2569
  %2571 = vmatmul.f32.gmra.mxu0 %v1725
  %v2572 = vpop.f32.mrf.mxu0
  %v2573 = vadd.f32 %v1212, %v2572
  %2574 = vmatmul.f32.gmra.mxu0 %v1728
  %v2575 = vpop.f32.mrf.mxu0
  %v2576 = vadd.f32 %v1215, %v2575
  %2577 = vmatmul.f32.gmra.mxu0 %v1731
  %v2578 = vpop.f32.mrf.mxu0
  %v2579 = vadd.f32 %v1218, %v2578
  %2580 = vmatmul.f32.gmra.mxu0 %v1734
  %v2581 = vpop.f32.mrf.mxu0
  %v2582 = vadd.f32 %v1221, %v2581
  %2583 = vmatmul.f32.gmra.mxu0 %v1737
  %v2584 = vpop.f32.mrf.mxu0
  %v2585 = vadd.f32 %v1224, %v2584
  %2586 = vdwg.mxu0
  %2587 = vmatpush.msra.mxu0 0.0
  %2588 = vmatpush.msra.mxu0 0.0
  %2589 = vmatpush.msra.mxu0 0.0
  %2590 = vmatpush.msra.mxu0 0.0
  %2591 = vmatpush.msra.mxu0 0.0
  %2592 = vmatpush.msra.mxu0 0.0
  %2593 = vmatpush.msra.mxu0 0.0
  %2594 = vmatpush.msra.mxu0 0.0
  %2595 = vmatpush.msra.mxu0 0.0
  %2596 = vmatpush.msra.mxu0 0.0
  %2597 = vmatpush.msra.mxu0 0.0
  %2598 = vmatpush.msra.mxu0 0.0
  %2599 = vmatpush.msra.mxu0 0.0
  %2600 = vmatpush.msra.mxu0 %v80
  %2601 = vmatpush.msra.mxu0 %v55
  %2602 = vmatpush.msra.mxu0 %v30
  %2603 = vmatmul.f32.gmra.mxu0 %v1704
  %v2604 = vpop.f32.mrf.mxu0
  %v2605 = vadd.f32 %v1244, %v2604
  %2606 = vmatmul.f32.gmra.mxu0 %v1707
  %v2607 = vpop.f32.mrf.mxu0
  %v2608 = vadd.f32 %v1247, %v2607
  %2609 = vmatmul.f32.gmra.mxu0 %v1710
  %v2610 = vpop.f32.mrf.mxu0
  %v2611 = vadd.f32 %v1250, %v2610
  %2612 = vmatmul.f32.gmra.mxu0 %v1713
  %v2613 = vpop.f32.mrf.mxu0
  %v2614 = vadd.f32 %v1253, %v2613
  %2615 = vmatmul.f32.gmra.mxu0 %v1716
  %v2616 = vpop.f32.mrf.mxu0
  %v2617 = vadd.f32 %v1256, %v2616
  %2618 = vmatmul.f32.gmra.mxu0 %v1719
  %v2619 = vpop.f32.mrf.mxu0
  %v2620 = vadd.f32 %v1259, %v2619
  %2621 = vmatmul.f32.gmra.mxu0 %v1722
  %v2622 = vpop.f32.mrf.mxu0
  %v2623 = vadd.f32 %v1262, %v2622
  %2624 = vmatmul.f32.gmra.mxu0 %v1725
  %v2625 = vpop.f32.mrf.mxu0
  %v2626 = vadd.f32 %v1265, %v2625
  %2627 = vmatmul.f32.gmra.mxu0 %v1728
  %v2628 = vpop.f32.mrf.mxu0
  %v2629 = vadd.f32 %v1268, %v2628
  %2630 = vmatmul.f32.gmra.mxu0 %v1731
  %v2631 = vpop.f32.mrf.mxu0
  %v2632 = vadd.f32 %v1271, %v2631
  %2633 = vmatmul.f32.gmra.mxu0 %v1734
  %v2634 = vpop.f32.mrf.mxu0
  %v2635 = vadd.f32 %v1274, %v2634
  %2636 = vmatmul.f32.gmra.mxu0 %v1737
  %v2637 = vpop.f32.mrf.mxu0
  %v2638 = vadd.f32 %v1277, %v2637
  %2639 = vdwg.mxu0
  %2640 = vmatpush.msra.mxu0 0.0
  %2641 = vmatpush.msra.mxu0 0.0
  %2642 = vmatpush.msra.mxu0 0.0
  %2643 = vmatpush.msra.mxu0 0.0
  %2644 = vmatpush.msra.mxu0 0.0
  %2645 = vmatpush.msra.mxu0 0.0
  %2646 = vmatpush.msra.mxu0 0.0
  %2647 = vmatpush.msra.mxu0 0.0
  %2648 = vmatpush.msra.mxu0 0.0
  %2649 = vmatpush.msra.mxu0 0.0
  %2650 = vmatpush.msra.mxu0 0.0
  %2651 = vmatpush.msra.mxu0 0.0
  %2652 = vmatpush.msra.mxu0 0.0
  %2653 = vmatpush.msra.mxu0 %v81
  %2654 = vmatpush.msra.mxu0 %v56
  %2655 = vmatpush.msra.mxu0 %v31
  %2656 = vmatmul.f32.gmra.mxu0 %v1704
  %v2657 = vpop.f32.mrf.mxu0
  %v2658 = vadd.f32 %v1297, %v2657
  %2659 = vmatmul.f32.gmra.mxu0 %v1707
  %v2660 = vpop.f32.mrf.mxu0
  %v2661 = vadd.f32 %v1300, %v2660
  %2662 = vmatmul.f32.gmra.mxu0 %v1710
  %v2663 = vpop.f32.mrf.mxu0
  %v2664 = vadd.f32 %v1303, %v2663
  %2665 = vmatmul.f32.gmra.mxu0 %v1713
  %v2666 = vpop.f32.mrf.mxu0
  %v2667 = vadd.f32 %v1306, %v2666
  %2668 = vmatmul.f32.gmra.mxu0 %v1716
  %v2669 = vpop.f32.mrf.mxu0
  %v2670 = vadd.f32 %v1309, %v2669
  %2671 = vmatmul.f32.gmra.mxu0 %v1719
  %v2672 = vpop.f32.mrf.mxu0
  %v2673 = vadd.f32 %v1312, %v2672
  %2674 = vmatmul.f32.gmra.mxu0 %v1722
  %v2675 = vpop.f32.mrf.mxu0
  %v2676 = vadd.f32 %v1315, %v2675
  %2677 = vmatmul.f32.gmra.mxu0 %v1725
  %v2678 = vpop.f32.mrf.mxu0
  %v2679 = vadd.f32 %v1318, %v2678
  %2680 = vmatmul.f32.gmra.mxu0 %v1728
  %v2681 = vpop.f32.mrf.mxu0
  %v2682 = vadd.f32 %v1321, %v2681
  %2683 = vmatmul.f32.gmra.mxu0 %v1731
  %v2684 = vpop.f32.mrf.mxu0
  %v2685 = vadd.f32 %v1324, %v2684
  %2686 = vmatmul.f32.gmra.mxu0 %v1734
  %v2687 = vpop.f32.mrf.mxu0
  %v2688 = vadd.f32 %v1327, %v2687
  %2689 = vmatmul.f32.gmra.mxu0 %v1737
  %v2690 = vpop.f32.mrf.mxu0
  %v2691 = vadd.f32 %v1330, %v2690
  %2692 = vdwg.mxu0
  %2693 = vmatpush.msra.mxu0 0.0
  %2694 = vmatpush.msra.mxu0 0.0
  %2695 = vmatpush.msra.mxu0 0.0
  %2696 = vmatpush.msra.mxu0 0.0
  %2697 = vmatpush.msra.mxu0 0.0
  %2698 = vmatpush.msra.mxu0 0.0
  %2699 = vmatpush.msra.mxu0 0.0
  %2700 = vmatpush.msra.mxu0 0.0
  %2701 = vmatpush.msra.mxu0 0.0
  %2702 = vmatpush.msra.mxu0 0.0
  %2703 = vmatpush.msra.mxu0 0.0
  %2704 = vmatpush.msra.mxu0 0.0
  %2705 = vmatpush.msra.mxu0 0.0
  %2706 = vmatpush.msra.mxu0 %v82
  %2707 = vmatpush.msra.mxu0 %v57
  %2708 = vmatpush.msra.mxu0 %v32
  %2709 = vmatmul.f32.gmra.mxu0 %v1704
  %v2710 = vpop.f32.mrf.mxu0
  %v2711 = vadd.f32 %v1350, %v2710
  %2712 = vmatmul.f32.gmra.mxu0 %v1707
  %v2713 = vpop.f32.mrf.mxu0
  %v2714 = vadd.f32 %v1353, %v2713
  %2715 = vmatmul.f32.gmra.mxu0 %v1710
  %v2716 = vpop.f32.mrf.mxu0
  %v2717 = vadd.f32 %v1356, %v2716
  %2718 = vmatmul.f32.gmra.mxu0 %v1713
  %v2719 = vpop.f32.mrf.mxu0
  %v2720 = vadd.f32 %v1359, %v2719
  %2721 = vmatmul.f32.gmra.mxu0 %v1716
  %v2722 = vpop.f32.mrf.mxu0
  %v2723 = vadd.f32 %v1362, %v2722
  %2724 = vmatmul.f32.gmra.mxu0 %v1719
  %v2725 = vpop.f32.mrf.mxu0
  %v2726 = vadd.f32 %v1365, %v2725
  %2727 = vmatmul.f32.gmra.mxu0 %v1722
  %v2728 = vpop.f32.mrf.mxu0
  %v2729 = vadd.f32 %v1368, %v2728
  %2730 = vmatmul.f32.gmra.mxu0 %v1725
  %v2731 = vpop.f32.mrf.mxu0
  %v2732 = vadd.f32 %v1371, %v2731
  %2733 = vmatmul.f32.gmra.mxu0 %v1728
  %v2734 = vpop.f32.mrf.mxu0
  %v2735 = vadd.f32 %v1374, %v2734
  %2736 = vmatmul.f32.gmra.mxu0 %v1731
  %v2737 = vpop.f32.mrf.mxu0
  %v2738 = vadd.f32 %v1377, %v2737
  %2739 = vmatmul.f32.gmra.mxu0 %v1734
  %v2740 = vpop.f32.mrf.mxu0
  %v2741 = vadd.f32 %v1380, %v2740
  %2742 = vmatmul.f32.gmra.mxu0 %v1737
  %v2743 = vpop.f32.mrf.mxu0
  %v2744 = vadd.f32 %v1383, %v2743
  %2745 = vdwg.mxu0
  %2746 = vmatpush.msra.mxu0 0.0
  %2747 = vmatpush.msra.mxu0 0.0
  %2748 = vmatpush.msra.mxu0 0.0
  %2749 = vmatpush.msra.mxu0 0.0
  %2750 = vmatpush.msra.mxu0 0.0
  %2751 = vmatpush.msra.mxu0 0.0
  %2752 = vmatpush.msra.mxu0 0.0
  %2753 = vmatpush.msra.mxu0 0.0
  %2754 = vmatpush.msra.mxu0 0.0
  %2755 = vmatpush.msra.mxu0 0.0
  %2756 = vmatpush.msra.mxu0 0.0
  %2757 = vmatpush.msra.mxu0 0.0
  %2758 = vmatpush.msra.mxu0 0.0
  %2759 = vmatpush.msra.mxu0 %v83
  %2760 = vmatpush.msra.mxu0 %v58
  %2761 = vmatpush.msra.mxu0 %v33
  %2762 = vmatmul.f32.gmra.mxu0 %v1704
  %v2763 = vpop.f32.mrf.mxu0
  %v2764 = vadd.f32 %v1403, %v2763
  %2765 = vmatmul.f32.gmra.mxu0 %v1707
  %v2766 = vpop.f32.mrf.mxu0
  %v2767 = vadd.f32 %v1406, %v2766
  %2768 = vmatmul.f32.gmra.mxu0 %v1710
  %v2769 = vpop.f32.mrf.mxu0
  %v2770 = vadd.f32 %v1409, %v2769
  %2771 = vmatmul.f32.gmra.mxu0 %v1713
  %v2772 = vpop.f32.mrf.mxu0
  %v2773 = vadd.f32 %v1412, %v2772
  %2774 = vmatmul.f32.gmra.mxu0 %v1716
  %v2775 = vpop.f32.mrf.mxu0
  %v2776 = vadd.f32 %v1415, %v2775
  %2777 = vmatmul.f32.gmra.mxu0 %v1719
  %v2778 = vpop.f32.mrf.mxu0
  %v2779 = vadd.f32 %v1418, %v2778
  %2780 = vmatmul.f32.gmra.mxu0 %v1722
  %v2781 = vpop.f32.mrf.mxu0
  %v2782 = vadd.f32 %v1421, %v2781
  %2783 = vmatmul.f32.gmra.mxu0 %v1725
  %v2784 = vpop.f32.mrf.mxu0
  %v2785 = vadd.f32 %v1424, %v2784
  %2786 = vmatmul.f32.gmra.mxu0 %v1728
  %v2787 = vpop.f32.mrf.mxu0
  %v2788 = vadd.f32 %v1427, %v2787
  %2789 = vmatmul.f32.gmra.mxu0 %v1731
  %v2790 = vpop.f32.mrf.mxu0
  %v2791 = vadd.f32 %v1430, %v2790
  %2792 = vmatmul.f32.gmra.mxu0 %v1734
  %v2793 = vpop.f32.mrf.mxu0
  %v2794 = vadd.f32 %v1433, %v2793
  %2795 = vmatmul.f32.gmra.mxu0 %v1737
  %v2796 = vpop.f32.mrf.mxu0
  %v2797 = vadd.f32 %v1436, %v2796
  %2798 = vdwg.mxu0
  %2799 = vmatpush.msra.mxu0 0.0
  %2800 = vmatpush.msra.mxu0 0.0
  %2801 = vmatpush.msra.mxu0 0.0
  %2802 = vmatpush.msra.mxu0 0.0
  %2803 = vmatpush.msra.mxu0 0.0
  %2804 = vmatpush.msra.mxu0 0.0
  %2805 = vmatpush.msra.mxu0 0.0
  %2806 = vmatpush.msra.mxu0 0.0
  %2807 = vmatpush.msra.mxu0 0.0
  %2808 = vmatpush.msra.mxu0 0.0
  %2809 = vmatpush.msra.mxu0 0.0
  %2810 = vmatpush.msra.mxu0 0.0
  %2811 = vmatpush.msra.mxu0 0.0
  %2812 = vmatpush.msra.mxu0 %v84
  %2813 = vmatpush.msra.mxu0 %v59
  %2814 = vmatpush.msra.mxu0 %v34
  %2815 = vmatmul.f32.gmra.mxu0 %v1704
  %v2816 = vpop.f32.mrf.mxu0
  %v2817 = vadd.f32 %v1456, %v2816
  %2818 = vmatmul.f32.gmra.mxu0 %v1707
  %v2819 = vpop.f32.mrf.mxu0
  %v2820 = vadd.f32 %v1459, %v2819
  %2821 = vmatmul.f32.gmra.mxu0 %v1710
  %v2822 = vpop.f32.mrf.mxu0
  %v2823 = vadd.f32 %v1462, %v2822
  %2824 = vmatmul.f32.gmra.mxu0 %v1713
  %v2825 = vpop.f32.mrf.mxu0
  %v2826 = vadd.f32 %v1465, %v2825
  %2827 = vmatmul.f32.gmra.mxu0 %v1716
  %v2828 = vpop.f32.mrf.mxu0
  %v2829 = vadd.f32 %v1468, %v2828
  %2830 = vmatmul.f32.gmra.mxu0 %v1719
  %v2831 = vpop.f32.mrf.mxu0
  %v2832 = vadd.f32 %v1471, %v2831
  %2833 = vmatmul.f32.gmra.mxu0 %v1722
  %v2834 = vpop.f32.mrf.mxu0
  %v2835 = vadd.f32 %v1474, %v2834
  %2836 = vmatmul.f32.gmra.mxu0 %v1725
  %v2837 = vpop.f32.mrf.mxu0
  %v2838 = vadd.f32 %v1477, %v2837
  %2839 = vmatmul.f32.gmra.mxu0 %v1728
  %v2840 = vpop.f32.mrf.mxu0
  %v2841 = vadd.f32 %v1480, %v2840
  %2842 = vmatmul.f32.gmra.mxu0 %v1731
  %v2843 = vpop.f32.mrf.mxu0
  %v2844 = vadd.f32 %v1483, %v2843
  %2845 = vmatmul.f32.gmra.mxu0 %v1734
  %v2846 = vpop.f32.mrf.mxu0
  %v2847 = vadd.f32 %v1486, %v2846
  %2848 = vmatmul.f32.gmra.mxu0 %v1737
  %v2849 = vpop.f32.mrf.mxu0
  %v2850 = vadd.f32 %v1489, %v2849
  %2851 = vdwg.mxu0
  %2852 = vmatpush.msra.mxu0 0.0
  %2853 = vmatpush.msra.mxu0 0.0
  %2854 = vmatpush.msra.mxu0 0.0
  %2855 = vmatpush.msra.mxu0 0.0
  %2856 = vmatpush.msra.mxu0 0.0
  %2857 = vmatpush.msra.mxu0 0.0
  %2858 = vmatpush.msra.mxu0 0.0
  %2859 = vmatpush.msra.mxu0 0.0
  %2860 = vmatpush.msra.mxu0 0.0
  %2861 = vmatpush.msra.mxu0 0.0
  %2862 = vmatpush.msra.mxu0 0.0
  %2863 = vmatpush.msra.mxu0 0.0
  %2864 = vmatpush.msra.mxu0 0.0
  %2865 = vmatpush.msra.mxu0 %v85
  %2866 = vmatpush.msra.mxu0 %v60
  %2867 = vmatpush.msra.mxu0 %v35
  %2868 = vmatmul.f32.gmra.mxu0 %v1704
  %v2869 = vpop.f32.mrf.mxu0
  %v2870 = vadd.f32 %v1509, %v2869
  %2871 = vmatmul.f32.gmra.mxu0 %v1707
  %v2872 = vpop.f32.mrf.mxu0
  %v2873 = vadd.f32 %v1512, %v2872
  %2874 = vmatmul.f32.gmra.mxu0 %v1710
  %v2875 = vpop.f32.mrf.mxu0
  %v2876 = vadd.f32 %v1515, %v2875
  %2877 = vmatmul.f32.gmra.mxu0 %v1713
  %v2878 = vpop.f32.mrf.mxu0
  %v2879 = vadd.f32 %v1518, %v2878
  %2880 = vmatmul.f32.gmra.mxu0 %v1716
  %v2881 = vpop.f32.mrf.mxu0
  %v2882 = vadd.f32 %v1521, %v2881
  %2883 = vmatmul.f32.gmra.mxu0 %v1719
  %v2884 = vpop.f32.mrf.mxu0
  %v2885 = vadd.f32 %v1524, %v2884
  %2886 = vmatmul.f32.gmra.mxu0 %v1722
  %v2887 = vpop.f32.mrf.mxu0
  %v2888 = vadd.f32 %v1527, %v2887
  %2889 = vmatmul.f32.gmra.mxu0 %v1725
  %v2890 = vpop.f32.mrf.mxu0
  %v2891 = vadd.f32 %v1530, %v2890
  %2892 = vmatmul.f32.gmra.mxu0 %v1728
  %v2893 = vpop.f32.mrf.mxu0
  %v2894 = vadd.f32 %v1533, %v2893
  %2895 = vmatmul.f32.gmra.mxu0 %v1731
  %v2896 = vpop.f32.mrf.mxu0
  %v2897 = vadd.f32 %v1536, %v2896
  %2898 = vmatmul.f32.gmra.mxu0 %v1734
  %v2899 = vpop.f32.mrf.mxu0
  %v2900 = vadd.f32 %v1539, %v2899
  %2901 = vmatmul.f32.gmra.mxu0 %v1737
  %v2902 = vpop.f32.mrf.mxu0
  %v2903 = vadd.f32 %v1542, %v2902
  %2904 = vdwg.mxu0
  %2905 = vmatpush.msra.mxu0 0.0
  %2906 = vmatpush.msra.mxu0 0.0
  %2907 = vmatpush.msra.mxu0 0.0
  %2908 = vmatpush.msra.mxu0 0.0
  %2909 = vmatpush.msra.mxu0 0.0
  %2910 = vmatpush.msra.mxu0 0.0
  %2911 = vmatpush.msra.mxu0 0.0
  %2912 = vmatpush.msra.mxu0 0.0
  %2913 = vmatpush.msra.mxu0 0.0
  %2914 = vmatpush.msra.mxu0 0.0
  %2915 = vmatpush.msra.mxu0 0.0
  %2916 = vmatpush.msra.mxu0 0.0
  %2917 = vmatpush.msra.mxu0 0.0
  %2918 = vmatpush.msra.mxu0 %v86
  %2919 = vmatpush.msra.mxu0 %v61
  %2920 = vmatpush.msra.mxu0 %v36
  %2921 = vmatmul.f32.gmra.mxu0 %v1704
  %v2922 = vpop.f32.mrf.mxu0
  %v2923 = vadd.f32 %v1562, %v2922
  %2924 = vmatmul.f32.gmra.mxu0 %v1707
  %v2925 = vpop.f32.mrf.mxu0
  %v2926 = vadd.f32 %v1565, %v2925
  %2927 = vmatmul.f32.gmra.mxu0 %v1710
  %v2928 = vpop.f32.mrf.mxu0
  %v2929 = vadd.f32 %v1568, %v2928
  %2930 = vmatmul.f32.gmra.mxu0 %v1713
  %v2931 = vpop.f32.mrf.mxu0
  %v2932 = vadd.f32 %v1571, %v2931
  %2933 = vmatmul.f32.gmra.mxu0 %v1716
  %v2934 = vpop.f32.mrf.mxu0
  %v2935 = vadd.f32 %v1574, %v2934
  %2936 = vmatmul.f32.gmra.mxu0 %v1719
  %v2937 = vpop.f32.mrf.mxu0
  %v2938 = vadd.f32 %v1577, %v2937
  %2939 = vmatmul.f32.gmra.mxu0 %v1722
  %v2940 = vpop.f32.mrf.mxu0
  %v2941 = vadd.f32 %v1580, %v2940
  %2942 = vmatmul.f32.gmra.mxu0 %v1725
  %v2943 = vpop.f32.mrf.mxu0
  %v2944 = vadd.f32 %v1583, %v2943
  %2945 = vmatmul.f32.gmra.mxu0 %v1728
  %v2946 = vpop.f32.mrf.mxu0
  %v2947 = vadd.f32 %v1586, %v2946
  %2948 = vmatmul.f32.gmra.mxu0 %v1731
  %v2949 = vpop.f32.mrf.mxu0
  %v2950 = vadd.f32 %v1589, %v2949
  %2951 = vmatmul.f32.gmra.mxu0 %v1734
  %v2952 = vpop.f32.mrf.mxu0
  %v2953 = vadd.f32 %v1592, %v2952
  %2954 = vmatmul.f32.gmra.mxu0 %v1737
  %v2955 = vpop.f32.mrf.mxu0
  %v2956 = vadd.f32 %v1595, %v2955
  %2957 = vdwg.mxu0
  %2958 = vmatpush.msra.mxu0 0.0
  %2959 = vmatpush.msra.mxu0 0.0
  %2960 = vmatpush.msra.mxu0 0.0
  %2961 = vmatpush.msra.mxu0 0.0
  %2962 = vmatpush.msra.mxu0 0.0
  %2963 = vmatpush.msra.mxu0 0.0
  %2964 = vmatpush.msra.mxu0 0.0
  %2965 = vmatpush.msra.mxu0 0.0
  %2966 = vmatpush.msra.mxu0 0.0
  %2967 = vmatpush.msra.mxu0 0.0
  %2968 = vmatpush.msra.mxu0 0.0
  %2969 = vmatpush.msra.mxu0 0.0
  %2970 = vmatpush.msra.mxu0 0.0
  %2971 = vmatpush.msra.mxu0 %v87
  %2972 = vmatpush.msra.mxu0 %v62
  %2973 = vmatpush.msra.mxu0 %v37
  %2974 = vmatmul.f32.gmra.mxu0 %v1704
  %v2975 = vpop.f32.mrf.mxu0
  %v2976 = vadd.f32 %v1615, %v2975
  %2977 = vmatmul.f32.gmra.mxu0 %v1707
  %v2978 = vpop.f32.mrf.mxu0
  %v2979 = vadd.f32 %v1618, %v2978
  %2980 = vmatmul.f32.gmra.mxu0 %v1710
  %v2981 = vpop.f32.mrf.mxu0
  %v2982 = vadd.f32 %v1621, %v2981
  %2983 = vmatmul.f32.gmra.mxu0 %v1713
  %v2984 = vpop.f32.mrf.mxu0
  %v2985 = vadd.f32 %v1624, %v2984
  %2986 = vmatmul.f32.gmra.mxu0 %v1716
  %v2987 = vpop.f32.mrf.mxu0
  %v2988 = vadd.f32 %v1627, %v2987
  %2989 = vmatmul.f32.gmra.mxu0 %v1719
  %v2990 = vpop.f32.mrf.mxu0
  %v2991 = vadd.f32 %v1630, %v2990
  %2992 = vmatmul.f32.gmra.mxu0 %v1722
  %v2993 = vpop.f32.mrf.mxu0
  %v2994 = vadd.f32 %v1633, %v2993
  %2995 = vmatmul.f32.gmra.mxu0 %v1725
  %v2996 = vpop.f32.mrf.mxu0
  %v2997 = vadd.f32 %v1636, %v2996
  %2998 = vmatmul.f32.gmra.mxu0 %v1728
  %v2999 = vpop.f32.mrf.mxu0
  %v3000 = vadd.f32 %v1639, %v2999
  %3001 = vmatmul.f32.gmra.mxu0 %v1731
  %v3002 = vpop.f32.mrf.mxu0
  %v3003 = vadd.f32 %v1642, %v3002
  %3004 = vmatmul.f32.gmra.mxu0 %v1734
  %v3005 = vpop.f32.mrf.mxu0
  %v3006 = vadd.f32 %v1645, %v3005
  %3007 = vmatmul.f32.gmra.mxu0 %v1737
  %v3008 = vpop.f32.mrf.mxu0
  %v3009 = vadd.f32 %v1648, %v3008
  %3010 = vdwg.mxu0
  %3011 = vmatpush.msra.mxu0 0.0
  %3012 = vmatpush.msra.mxu0 0.0
  %3013 = vmatpush.msra.mxu0 0.0
  %3014 = vmatpush.msra.mxu0 0.0
  %3015 = vmatpush.msra.mxu0 0.0
  %3016 = vmatpush.msra.mxu0 0.0
  %3017 = vmatpush.msra.mxu0 0.0
  %3018 = vmatpush.msra.mxu0 0.0
  %3019 = vmatpush.msra.mxu0 0.0
  %3020 = vmatpush.msra.mxu0 0.0
  %3021 = vmatpush.msra.mxu0 0.0
  %3022 = vmatpush.msra.mxu0 0.0
  %3023 = vmatpush.msra.mxu0 0.0
  %3024 = vmatpush.msra.mxu0 %v88
  %3025 = vmatpush.msra.mxu0 %v63
  %3026 = vmatpush.msra.mxu0 %v38
  %3027 = vmatmul.f32.gmra.mxu0 %v1704
  %v3028 = vpop.f32.mrf.mxu0
  %v3029 = vadd.f32 %v1668, %v3028
  %3030 = vmatmul.f32.gmra.mxu0 %v1707
  %v3031 = vpop.f32.mrf.mxu0
  %v3032 = vadd.f32 %v1671, %v3031
  %3033 = vmatmul.f32.gmra.mxu0 %v1710
  %v3034 = vpop.f32.mrf.mxu0
  %v3035 = vadd.f32 %v1674, %v3034
  %3036 = vmatmul.f32.gmra.mxu0 %v1713
  %v3037 = vpop.f32.mrf.mxu0
  %v3038 = vadd.f32 %v1677, %v3037
  %3039 = vmatmul.f32.gmra.mxu0 %v1716
  %v3040 = vpop.f32.mrf.mxu0
  %v3041 = vadd.f32 %v1680, %v3040
  %3042 = vmatmul.f32.gmra.mxu0 %v1719
  %v3043 = vpop.f32.mrf.mxu0
  %v3044 = vadd.f32 %v1683, %v3043
  %3045 = vmatmul.f32.gmra.mxu0 %v1722
  %v3046 = vpop.f32.mrf.mxu0
  %v3047 = vadd.f32 %v1686, %v3046
  %3048 = vmatmul.f32.gmra.mxu0 %v1725
  %v3049 = vpop.f32.mrf.mxu0
  %v3050 = vadd.f32 %v1689, %v3049
  %3051 = vmatmul.f32.gmra.mxu0 %v1728
  %v3052 = vpop.f32.mrf.mxu0
  %v3053 = vadd.f32 %v1692, %v3052
  %3054 = vmatmul.f32.gmra.mxu0 %v1731
  %v3055 = vpop.f32.mrf.mxu0
  %v3056 = vadd.f32 %v1695, %v3055
  %3057 = vmatmul.f32.gmra.mxu0 %v1734
  %v3058 = vpop.f32.mrf.mxu0
  %v3059 = vadd.f32 %v1698, %v3058
  %3060 = vmatmul.f32.gmra.mxu0 %v1737
  %v3061 = vpop.f32.mrf.mxu0
  %v3062 = vadd.f32 %v1701, %v3061
  %3063 = vdwg.mxu0
  %3064 = vst [vmem:[%s3] sm:$0xff] %v1757
  %3065 = vst [vmem:[%s3 + $0x8] sm:$0xff] %v1810
  %3066 = vst [vmem:[%s3 + $0x10] sm:$0xff] %v1863
  %3067 = vst [vmem:[%s3 + $0x18] sm:$0xff] %v1916
  %3068 = vst [vmem:[%s3 + $0x20] sm:$0xff] %v1969
  %3069 = vst [vmem:[%s3 + $0x28] sm:$0xff] %v2022
  %3070 = vst [vmem:[%s3 + $0x30] sm:$0xff] %v2075
  %3071 = vst [vmem:[%s3 + $0x38] sm:$0xff] %v2128
  %3072 = vst [vmem:[%s3 + $0x40] sm:$0xff] %v2181
  %3073 = vst [vmem:[%s3 + $0x48] sm:$0xff] %v2234
  %3074 = vst [vmem:[%s3 + $0x50] sm:$0xff] %v2287
  %3075 = vst [vmem:[%s3 + $0x58] sm:$0xff] %v2340
  %3076 = vst [vmem:[%s3 + $0x60] sm:$0xff] %v2393
  %3077 = vst [vmem:[%s3 + $0x68] sm:$0xff] %v2446
  %3078 = vst [vmem:[%s3 + $0x70] sm:$0xff] %v2499
  %3079 = vst [vmem:[%s3 + $0x78] sm:$0xff] %v2552
  %3080 = vst [vmem:[%s3 + $0x80] sm:$0xff] %v2605
  %3081 = vst [vmem:[%s3 + $0x88] sm:$0xff] %v2658
  %3082 = vst [vmem:[%s3 + $0x90] sm:$0xff] %v2711
  %3083 = vst [vmem:[%s3 + $0x98] sm:$0xff] %v2764
  %3084 = vst [vmem:[%s3 + $0xa0] sm:$0xff] %v2817
  %3085 = vst [vmem:[%s3 + $0xa8] sm:$0xff] %v2870
  %3086 = vst [vmem:[%s3 + $0xb0] sm:$0xff] %v2923
  %3087 = vst [vmem:[%s3 + $0xb8] sm:$0xff] %v2976
  %vm3088 = vcmask 523264
  %3089 = vst.msk [vmem:[%s3 + $0xc0] sm:$0xff] %vm3088, %v3029
  %3090 = vst [vmem:[%s3 + $0xc8] sm:$0xff] %v1760
  %3091 = vst [vmem:[%s3 + $0xd0] sm:$0xff] %v1813
  %3092 = vst [vmem:[%s3 + $0xd8] sm:$0xff] %v1866
  %3093 = vst [vmem:[%s3 + $0xe0] sm:$0xff] %v1919
  %3094 = vst [vmem:[%s3 + $0xe8] sm:$0xff] %v1972
  %3095 = vst [vmem:[%s3 + $0xf0] sm:$0xff] %v2025
  %3096 = vst [vmem:[%s3 + $0xf8] sm:$0xff] %v2078
  %3097 = vst [vmem:[%s3 + $0x100] sm:$0xff] %v2131
  %3098 = vst [vmem:[%s3 + $0x108] sm:$0xff] %v2184
  %3099 = vst [vmem:[%s3 + $0x110] sm:$0xff] %v2237
  %3100 = vst [vmem:[%s3 + $0x118] sm:$0xff] %v2290
  %3101 = vst [vmem:[%s3 + $0x120] sm:$0xff] %v2343
  %3102 = vst [vmem:[%s3 + $0x128] sm:$0xff] %v2396
  %3103 = vst [vmem:[%s3 + $0x130] sm:$0xff] %v2449
  %3104 = vst [vmem:[%s3 + $0x138] sm:$0xff] %v2502
  %3105 = vst [vmem:[%s3 + $0x140] sm:$0xff] %v2555
  %3106 = vst [vmem:[%s3 + $0x148] sm:$0xff] %v2608
  %3107 = vst [vmem:[%s3 + $0x150] sm:$0xff] %v2661
  %3108 = vst [vmem:[%s3 + $0x158] sm:$0xff] %v2714
  %3109 = vst [vmem:[%s3 + $0x160] sm:$0xff] %v2767
  %3110 = vst [vmem:[%s3 + $0x168] sm:$0xff] %v2820
  %3111 = vst [vmem:[%s3 + $0x170] sm:$0xff] %v2873
  %3112 = vst [vmem:[%s3 + $0x178] sm:$0xff] %v2926
  %3113 = vst [vmem:[%s3 + $0x180] sm:$0xff] %v2979
  %3114 = vst.msk [vmem:[%s3 + $0x188] sm:$0xff] %vm3088, %v3032
  %3115 = vst [vmem:[%s3 + $0x190] sm:$0xff] %v1763
  %3116 = vst [vmem:[%s3 + $0x198] sm:$0xff] %v1816
  %3117 = vst [vmem:[%s3 + $0x1a0] sm:$0xff] %v1869
  %3118 = vst [vmem:[%s3 + $0x1a8] sm:$0xff] %v1922
  %3119 = vst [vmem:[%s3 + $0x1b0] sm:$0xff] %v1975
  %3120 = vst [vmem:[%s3 + $0x1b8] sm:$0xff] %v2028
  %3121 = vst [vmem:[%s3 + $0x1c0] sm:$0xff] %v2081
  %3122 = vst [vmem:[%s3 + $0x1c8] sm:$0xff] %v2134
  %3123 = vst [vmem:[%s3 + $0x1d0] sm:$0xff] %v2187
  %3124 = vst [vmem:[%s3 + $0x1d8] sm:$0xff] %v2240
  %3125 = vst [vmem:[%s3 + $0x1e0] sm:$0xff] %v2293
  %3126 = vst [vmem:[%s3 + $0x1e8] sm:$0xff] %v2346
  %3127 = vst [vmem:[%s3 + $0x1f0] sm:$0xff] %v2399
  %3128 = vst [vmem:[%s3 + $0x1f8] sm:$0xff] %v2452
  %3129 = vst [vmem:[%s3 + $0x200] sm:$0xff] %v2505
  %3130 = vst [vmem:[%s3 + $0x208] sm:$0xff] %v2558
  %3131 = vst [vmem:[%s3 + $0x210] sm:$0xff] %v2611
  %3132 = vst [vmem:[%s3 + $0x218] sm:$0xff] %v2664
  %3133 = vst [vmem:[%s3 + $0x220] sm:$0xff] %v2717
  %3134 = vst [vmem:[%s3 + $0x228] sm:$0xff] %v2770
  %3135 = vst [vmem:[%s3 + $0x230] sm:$0xff] %v2823
  %3136 = vst [vmem:[%s3 + $0x238] sm:$0xff] %v2876
  %3137 = vst [vmem:[%s3 + $0x240] sm:$0xff] %v2929
  %3138 = vst [vmem:[%s3 + $0x248] sm:$0xff] %v2982
  %3139 = vst.msk [vmem:[%s3 + $0x250] sm:$0xff] %vm3088, %v3035
  %3140 = vst [vmem:[%s3 + $0x258] sm:$0xff] %v1766
  %3141 = vst [vmem:[%s3 + $0x260] sm:$0xff] %v1819
  %3142 = vst [vmem:[%s3 + $0x268] sm:$0xff] %v1872
  %3143 = vst [vmem:[%s3 + $0x270] sm:$0xff] %v1925
  %3144 = vst [vmem:[%s3 + $0x278] sm:$0xff] %v1978
  %3145 = vst [vmem:[%s3 + $0x280] sm:$0xff] %v2031
  %3146 = vst [vmem:[%s3 + $0x288] sm:$0xff] %v2084
  %3147 = vst [vmem:[%s3 + $0x290] sm:$0xff] %v2137
  %3148 = vst [vmem:[%s3 + $0x298] sm:$0xff] %v2190
  %3149 = vst [vmem:[%s3 + $0x2a0] sm:$0xff] %v2243
  %3150 = vst [vmem:[%s3 + $0x2a8] sm:$0xff] %v2296
  %3151 = vst [vmem:[%s3 + $0x2b0] sm:$0xff] %v2349
  %3152 = vst [vmem:[%s3 + $0x2b8] sm:$0xff] %v2402
  %3153 = vst [vmem:[%s3 + $0x2c0] sm:$0xff] %v2455
  %3154 = vst [vmem:[%s3 + $0x2c8] sm:$0xff] %v2508
  %3155 = vst [vmem:[%s3 + $0x2d0] sm:$0xff] %v2561
  %3156 = vst [vmem:[%s3 + $0x2d8] sm:$0xff] %v2614
  %3157 = vst [vmem:[%s3 + $0x2e0] sm:$0xff] %v2667
  %3158 = vst [vmem:[%s3 + $0x2e8] sm:$0xff] %v2720
  %3159 = vst [vmem:[%s3 + $0x2f0] sm:$0xff] %v2773
  %3160 = vst [vmem:[%s3 + $0x2f8] sm:$0xff] %v2826
  %3161 = vst [vmem:[%s3 + $0x300] sm:$0xff] %v2879
  %3162 = vst [vmem:[%s3 + $0x308] sm:$0xff] %v2932
  %3163 = vst [vmem:[%s3 + $0x310] sm:$0xff] %v2985
  %3164 = vst.msk [vmem:[%s3 + $0x318] sm:$0xff] %vm3088, %v3038
  %3165 = vst [vmem:[%s3 + $0x320] sm:$0xff] %v1769
  %3166 = vst [vmem:[%s3 + $0x328] sm:$0xff] %v1822
  %3167 = vst [vmem:[%s3 + $0x330] sm:$0xff] %v1875
  %3168 = vst [vmem:[%s3 + $0x338] sm:$0xff] %v1928
  %3169 = vst [vmem:[%s3 + $0x340] sm:$0xff] %v1981
  %3170 = vst [vmem:[%s3 + $0x348] sm:$0xff] %v2034
  %3171 = vst [vmem:[%s3 + $0x350] sm:$0xff] %v2087
  %3172 = vst [vmem:[%s3 + $0x358] sm:$0xff] %v2140
  %3173 = vst [vmem:[%s3 + $0x360] sm:$0xff] %v2193
  %3174 = vst [vmem:[%s3 + $0x368] sm:$0xff] %v2246
  %3175 = vst [vmem:[%s3 + $0x370] sm:$0xff] %v2299
  %3176 = vst [vmem:[%s3 + $0x378] sm:$0xff] %v2352
  %3177 = vst [vmem:[%s3 + $0x380] sm:$0xff] %v2405
  %3178 = vst [vmem:[%s3 + $0x388] sm:$0xff] %v2458
  %3179 = vst [vmem:[%s3 + $0x390] sm:$0xff] %v2511
  %3180 = vst [vmem:[%s3 + $0x398] sm:$0xff] %v2564
  %3181 = vst [vmem:[%s3 + $0x3a0] sm:$0xff] %v2617
  %3182 = vst [vmem:[%s3 + $0x3a8] sm:$0xff] %v2670
  %3183 = vst [vmem:[%s3 + $0x3b0] sm:$0xff] %v2723
  %3184 = vst [vmem:[%s3 + $0x3b8] sm:$0xff] %v2776
  %3185 = vst [vmem:[%s3 + $0x3c0] sm:$0xff] %v2829
  %3186 = vst [vmem:[%s3 + $0x3c8] sm:$0xff] %v2882
  %3187 = vst [vmem:[%s3 + $0x3d0] sm:$0xff] %v2935
  %3188 = vst [vmem:[%s3 + $0x3d8] sm:$0xff] %v2988
  %3189 = vst.msk [vmem:[%s3 + $0x3e0] sm:$0xff] %vm3088, %v3041
  %3190 = vst [vmem:[%s3 + $0x3e8] sm:$0xff] %v1772
  %3191 = vst [vmem:[%s3 + $0x3f0] sm:$0xff] %v1825
  %3192 = vst [vmem:[%s3 + $0x3f8] sm:$0xff] %v1878
  %3193 = vst [vmem:[%s3 + $0x400] sm:$0xff] %v1931
  %3194 = vst [vmem:[%s3 + $0x408] sm:$0xff] %v1984
  %3195 = vst [vmem:[%s3 + $0x410] sm:$0xff] %v2037
  %3196 = vst [vmem:[%s3 + $0x418] sm:$0xff] %v2090
  %3197 = vst [vmem:[%s3 + $0x420] sm:$0xff] %v2143
  %3198 = vst [vmem:[%s3 + $0x428] sm:$0xff] %v2196
  %3199 = vst [vmem:[%s3 + $0x430] sm:$0xff] %v2249
  %3200 = vst [vmem:[%s3 + $0x438] sm:$0xff] %v2302
  %3201 = vst [vmem:[%s3 + $0x440] sm:$0xff] %v2355
  %3202 = vst [vmem:[%s3 + $0x448] sm:$0xff] %v2408
  %3203 = vst [vmem:[%s3 + $0x450] sm:$0xff] %v2461
  %3204 = vst [vmem:[%s3 + $0x458] sm:$0xff] %v2514
  %3205 = vst [vmem:[%s3 + $0x460] sm:$0xff] %v2567
  %3206 = vst [vmem:[%s3 + $0x468] sm:$0xff] %v2620
  %3207 = vst [vmem:[%s3 + $0x470] sm:$0xff] %v2673
  %3208 = vst [vmem:[%s3 + $0x478] sm:$0xff] %v2726
  %3209 = vst [vmem:[%s3 + $0x480] sm:$0xff] %v2779
  %3210 = vst [vmem:[%s3 + $0x488] sm:$0xff] %v2832
  %3211 = vst [vmem:[%s3 + $0x490] sm:$0xff] %v2885
  %3212 = vst [vmem:[%s3 + $0x498] sm:$0xff] %v2938
  %3213 = vst [vmem:[%s3 + $0x4a0] sm:$0xff] %v2991
  %3214 = vst.msk [vmem:[%s3 + $0x4a8] sm:$0xff] %vm3088, %v3044
  %3215 = vst [vmem:[%s3 + $0x4b0] sm:$0xff] %v1775
  %3216 = vst [vmem:[%s3 + $0x4b8] sm:$0xff] %v1828
  %3217 = vst [vmem:[%s3 + $0x4c0] sm:$0xff] %v1881
  %3218 = vst [vmem:[%s3 + $0x4c8] sm:$0xff] %v1934
  %3219 = vst [vmem:[%s3 + $0x4d0] sm:$0xff] %v1987
  %3220 = vst [vmem:[%s3 + $0x4d8] sm:$0xff] %v2040
  %3221 = vst [vmem:[%s3 + $0x4e0] sm:$0xff] %v2093
  %3222 = vst [vmem:[%s3 + $0x4e8] sm:$0xff] %v2146
  %3223 = vst [vmem:[%s3 + $0x4f0] sm:$0xff] %v2199
  %3224 = vst [vmem:[%s3 + $0x4f8] sm:$0xff] %v2252
  %3225 = vst [vmem:[%s3 + $0x500] sm:$0xff] %v2305
  %3226 = vst [vmem:[%s3 + $0x508] sm:$0xff] %v2358
  %3227 = vst [vmem:[%s3 + $0x510] sm:$0xff] %v2411
  %3228 = vst [vmem:[%s3 + $0x518] sm:$0xff] %v2464
  %3229 = vst [vmem:[%s3 + $0x520] sm:$0xff] %v2517
  %3230 = vst [vmem:[%s3 + $0x528] sm:$0xff] %v2570
  %3231 = vst [vmem:[%s3 + $0x530] sm:$0xff] %v2623
  %3232 = vst [vmem:[%s3 + $0x538] sm:$0xff] %v2676
  %3233 = vst [vmem:[%s3 + $0x540] sm:$0xff] %v2729
  %3234 = vst [vmem:[%s3 + $0x548] sm:$0xff] %v2782
  %3235 = vst [vmem:[%s3 + $0x550] sm:$0xff] %v2835
  %3236 = vst [vmem:[%s3 + $0x558] sm:$0xff] %v2888
  %3237 = vst [vmem:[%s3 + $0x560] sm:$0xff] %v2941
  %3238 = vst [vmem:[%s3 + $0x568] sm:$0xff] %v2994
  %3239 = vst.msk [vmem:[%s3 + $0x570] sm:$0xff] %vm3088, %v3047
  %3240 = vst [vmem:[%s3 + $0x578] sm:$0xff] %v1778
  %3241 = vst [vmem:[%s3 + $0x580] sm:$0xff] %v1831
  %3242 = vst [vmem:[%s3 + $0x588] sm:$0xff] %v1884
  %3243 = vst [vmem:[%s3 + $0x590] sm:$0xff] %v1937
  %3244 = vst [vmem:[%s3 + $0x598] sm:$0xff] %v1990
  %3245 = vst [vmem:[%s3 + $0x5a0] sm:$0xff] %v2043
  %3246 = vst [vmem:[%s3 + $0x5a8] sm:$0xff] %v2096
  %3247 = vst [vmem:[%s3 + $0x5b0] sm:$0xff] %v2149
  %3248 = vst [vmem:[%s3 + $0x5b8] sm:$0xff] %v2202
  %3249 = vst [vmem:[%s3 + $0x5c0] sm:$0xff] %v2255
  %3250 = vst [vmem:[%s3 + $0x5c8] sm:$0xff] %v2308
  %3251 = vst [vmem:[%s3 + $0x5d0] sm:$0xff] %v2361
  %3252 = vst [vmem:[%s3 + $0x5d8] sm:$0xff] %v2414
  %3253 = vst [vmem:[%s3 + $0x5e0] sm:$0xff] %v2467
  %3254 = vst [vmem:[%s3 + $0x5e8] sm:$0xff] %v2520
  %3255 = vst [vmem:[%s3 + $0x5f0] sm:$0xff] %v2573
  %3256 = vst [vmem:[%s3 + $0x5f8] sm:$0xff] %v2626
  %3257 = vst [vmem:[%s3 + $0x600] sm:$0xff] %v2679
  %3258 = vst [vmem:[%s3 + $0x608] sm:$0xff] %v2732
  %3259 = vst [vmem:[%s3 + $0x610] sm:$0xff] %v2785
  %3260 = vst [vmem:[%s3 + $0x618] sm:$0xff] %v2838
  %3261 = vst [vmem:[%s3 + $0x620] sm:$0xff] %v2891
  %3262 = vst [vmem:[%s3 + $0x628] sm:$0xff] %v2944
  %3263 = vst [vmem:[%s3 + $0x630] sm:$0xff] %v2997
  %3264 = vst.msk [vmem:[%s3 + $0x638] sm:$0xff] %vm3088, %v3050
  %3265 = vst [vmem:[%s3 + $0x640] sm:$0xff] %v1781
  %3266 = vst [vmem:[%s3 + $0x648] sm:$0xff] %v1834
  %3267 = vst [vmem:[%s3 + $0x650] sm:$0xff] %v1887
  %3268 = vst [vmem:[%s3 + $0x658] sm:$0xff] %v1940
  %3269 = vst [vmem:[%s3 + $0x660] sm:$0xff] %v1993
  %3270 = vst [vmem:[%s3 + $0x668] sm:$0xff] %v2046
  %3271 = vst [vmem:[%s3 + $0x670] sm:$0xff] %v2099
  %3272 = vst [vmem:[%s3 + $0x678] sm:$0xff] %v2152
  %3273 = vst [vmem:[%s3 + $0x680] sm:$0xff] %v2205
  %3274 = vst [vmem:[%s3 + $0x688] sm:$0xff] %v2258
  %3275 = vst [vmem:[%s3 + $0x690] sm:$0xff] %v2311
  %3276 = vst [vmem:[%s3 + $0x698] sm:$0xff] %v2364
  %3277 = vst [vmem:[%s3 + $0x6a0] sm:$0xff] %v2417
  %3278 = vst [vmem:[%s3 + $0x6a8] sm:$0xff] %v2470
  %3279 = vst [vmem:[%s3 + $0x6b0] sm:$0xff] %v2523
  %3280 = vst [vmem:[%s3 + $0x6b8] sm:$0xff] %v2576
  %3281 = vst [vmem:[%s3 + $0x6c0] sm:$0xff] %v2629
  %3282 = vst [vmem:[%s3 + $0x6c8] sm:$0xff] %v2682
  %3283 = vst [vmem:[%s3 + $0x6d0] sm:$0xff] %v2735
  %3284 = vst [vmem:[%s3 + $0x6d8] sm:$0xff] %v2788
  %3285 = vst [vmem:[%s3 + $0x6e0] sm:$0xff] %v2841
  %3286 = vst [vmem:[%s3 + $0x6e8] sm:$0xff] %v2894
  %3287 = vst [vmem:[%s3 + $0x6f0] sm:$0xff] %v2947
  %3288 = vst [vmem:[%s3 + $0x6f8] sm:$0xff] %v3000
  %3289 = vst.msk [vmem:[%s3 + $0x700] sm:$0xff] %vm3088, %v3053
  %3290 = vst [vmem:[%s3 + $0x708] sm:$0xff] %v1784
  %3291 = vst [vmem:[%s3 + $0x710] sm:$0xff] %v1837
  %3292 = vst [vmem:[%s3 + $0x718] sm:$0xff] %v1890
  %3293 = vst [vmem:[%s3 + $0x720] sm:$0xff] %v1943
  %3294 = vst [vmem:[%s3 + $0x728] sm:$0xff] %v1996
  %3295 = vst [vmem:[%s3 + $0x730] sm:$0xff] %v2049
  %3296 = vst [vmem:[%s3 + $0x738] sm:$0xff] %v2102
  %3297 = vst [vmem:[%s3 + $0x740] sm:$0xff] %v2155
  %3298 = vst [vmem:[%s3 + $0x748] sm:$0xff] %v2208
  %3299 = vst [vmem:[%s3 + $0x750] sm:$0xff] %v2261
  %3300 = vst [vmem:[%s3 + $0x758] sm:$0xff] %v2314
  %3301 = vst [vmem:[%s3 + $0x760] sm:$0xff] %v2367
  %3302 = vst [vmem:[%s3 + $0x768] sm:$0xff] %v2420
  %3303 = vst [vmem:[%s3 + $0x770] sm:$0xff] %v2473
  %3304 = vst [vmem:[%s3 + $0x778] sm:$0xff] %v2526
  %3305 = vst [vmem:[%s3 + $0x780] sm:$0xff] %v2579
  %3306 = vst [vmem:[%s3 + $0x788] sm:$0xff] %v2632
  %3307 = vst [vmem:[%s3 + $0x790] sm:$0xff] %v2685
  %3308 = vst [vmem:[%s3 + $0x798] sm:$0xff] %v2738
  %3309 = vst [vmem:[%s3 + $0x7a0] sm:$0xff] %v2791
  %3310 = vst [vmem:[%s3 + $0x7a8] sm:$0xff] %v2844
  %3311 = vst [vmem:[%s3 + $0x7b0] sm:$0xff] %v2897
  %3312 = vst [vmem:[%s3 + $0x7b8] sm:$0xff] %v2950
  %3313 = vst [vmem:[%s3 + $0x7c0] sm:$0xff] %v3003
  %3314 = vst.msk [vmem:[%s3 + $0x7c8] sm:$0xff] %vm3088, %v3056
  %3315 = vst [vmem:[%s3 + $0x7d0] sm:$0xff] %v1787
  %3316 = vst [vmem:[%s3 + $0x7d8] sm:$0xff] %v1840
  %3317 = vst [vmem:[%s3 + $0x7e0] sm:$0xff] %v1893
  %3318 = vst [vmem:[%s3 + $0x7e8] sm:$0xff] %v1946
  %3319 = vst [vmem:[%s3 + $0x7f0] sm:$0xff] %v1999
  %3320 = vst [vmem:[%s3 + $0x7f8] sm:$0xff] %v2052
  %3321 = vst [vmem:[%s3 + $0x800] sm:$0xff] %v2105
  %3322 = vst [vmem:[%s3 + $0x808] sm:$0xff] %v2158
  %3323 = vst [vmem:[%s3 + $0x810] sm:$0xff] %v2211
  %3324 = vst [vmem:[%s3 + $0x818] sm:$0xff] %v2264
  %3325 = vst [vmem:[%s3 + $0x820] sm:$0xff] %v2317
  %3326 = vst [vmem:[%s3 + $0x828] sm:$0xff] %v2370
  %3327 = vst [vmem:[%s3 + $0x830] sm:$0xff] %v2423
  %3328 = vst [vmem:[%s3 + $0x838] sm:$0xff] %v2476
  %3329 = vst [vmem:[%s3 + $0x840] sm:$0xff] %v2529
  %3330 = vst [vmem:[%s3 + $0x848] sm:$0xff] %v2582
  %3331 = vst [vmem:[%s3 + $0x850] sm:$0xff] %v2635
  %3332 = vst [vmem:[%s3 + $0x858] sm:$0xff] %v2688
  %3333 = vst [vmem:[%s3 + $0x860] sm:$0xff] %v2741
  %3334 = vst [vmem:[%s3 + $0x868] sm:$0xff] %v2794
  %3335 = vst [vmem:[%s3 + $0x870] sm:$0xff] %v2847
  %3336 = vst [vmem:[%s3 + $0x878] sm:$0xff] %v2900
  %3337 = vst [vmem:[%s3 + $0x880] sm:$0xff] %v2953
  %3338 = vst [vmem:[%s3 + $0x888] sm:$0xff] %v3006
  %3339 = vst.msk [vmem:[%s3 + $0x890] sm:$0xff] %vm3088, %v3059
  %3340 = vst [vmem:[%s3 + $0x898] sm:$0xff] %v1790
  %3341 = vst [vmem:[%s3 + $0x8a0] sm:$0xff] %v1843
  %3342 = vst [vmem:[%s3 + $0x8a8] sm:$0xff] %v1896
  %3343 = vst [vmem:[%s3 + $0x8b0] sm:$0xff] %v1949
  %3344 = vst [vmem:[%s3 + $0x8b8] sm:$0xff] %v2002
  %3345 = vst [vmem:[%s3 + $0x8c0] sm:$0xff] %v2055
  %3346 = vst [vmem:[%s3 + $0x8c8] sm:$0xff] %v2108
  %3347 = vst [vmem:[%s3 + $0x8d0] sm:$0xff] %v2161
  %3348 = vst [vmem:[%s3 + $0x8d8] sm:$0xff] %v2214
  %3349 = vst [vmem:[%s3 + $0x8e0] sm:$0xff] %v2267
  %3350 = vst [vmem:[%s3 + $0x8e8] sm:$0xff] %v2320
  %3351 = vst [vmem:[%s3 + $0x8f0] sm:$0xff] %v2373
  %3352 = vst [vmem:[%s3 + $0x8f8] sm:$0xff] %v2426
  %3353 = vst [vmem:[%s3 + $0x900] sm:$0xff] %v2479
  %3354 = vst [vmem:[%s3 + $0x908] sm:$0xff] %v2532
  %3355 = vst [vmem:[%s3 + $0x910] sm:$0xff] %v2585
  %3356 = vst [vmem:[%s3 + $0x918] sm:$0xff] %v2638
  %3357 = vst [vmem:[%s3 + $0x920] sm:$0xff] %v2691
  %3358 = vst [vmem:[%s3 + $0x928] sm:$0xff] %v2744
  %3359 = vst [vmem:[%s3 + $0x930] sm:$0xff] %v2797
  %3360 = vst [vmem:[%s3 + $0x938] sm:$0xff] %v2850
  %3361 = vst [vmem:[%s3 + $0x940] sm:$0xff] %v2903
  %3362 = vst [vmem:[%s3 + $0x948] sm:$0xff] %v2956
  %3363 = vst [vmem:[%s3 + $0x950] sm:$0xff] %v3009
  %3364 = vst.msk [vmem:[%s3 + $0x958] sm:$0xff] %vm3088, %v3062
  // Predicated region
  $region14: #{_forward_impl.1} parent=0 // pred_check
    _
  $region15: #{_forward_impl.1} parent=0 // pred_check_branch
    %3366 = sbr.rel (0) target = $region17
  $region16: #{_forward_impl.1} parent=0 // pred_region
    _
  $region17: #{_forward_impl.1} parent=0 // pred_fallthru
    _
  // Predicated region
  $region18: #{_forward_impl.1} parent=0 // pred_check
    _
  $region19: #{_forward_impl.1} parent=0 // pred_check_branch
    %3368 = sbr.rel (0) target = $region21
  $region20: #{_forward_impl.1} parent=0 // pred_region
    _
  $region21: #{_forward_impl.1} parent=0 // pred_fallthru
    _

// kernel: _forward_impl.1
$region0: #{_forward_impl.1}
  #allocation0 [shape = 'u32[]', space=smem, size = 0x4, offset = 0x4, fixed_abs, tag = 'smem constant byte address 0x4 - core index']
  #allocation1 [shape = 'u32[72,128]{1,0:T(1,128)}', space=vmem, size = 0x9000, scoped, tag = 'internal scratch']
  %s0 = inlined_call_operand.vmem [shape: f32[24,3200], index: 0, kind: input, shape index: {}]
  %s1 = inlined_call_operand.vmem [shape: f32[96,24], index: 1, kind: input, shape index: {}]
  %s2 = inlined_call_operand.vmem [shape: f32[96,24], index: 2, kind: input, shape index: {}]
  %s3 = inlined_call_operand.vmem [shape: f32[96,3136], index: 3, kind: output, shape index: {}]
  %s4 = sld [smem:[#allocation0]]
  $region22: #{_forward_impl.1} parent=0
    _
  %s6 = ssub.s32 1, %s4
  %s7 = scalar_select 0, %s6, %s4
  // Predicated region
  $region2: #{_forward_impl.1} parent=0 // pred_check
    _
  $region3: #{_forward_impl.1} parent=0 // pred_check_branch
    %9 = sbr.rel (0) target = $region5
  $region4: #{_forward_impl.1} parent=0 // pred_region
    _
  $region5: #{_forward_impl.1} parent=0 // pred_fallthru
    _
  // Predicated region
  $region6: #{_forward_impl.1} parent=0 // pred_check
    _
  $region7: #{_forward_impl.1} parent=0 // pred_check_branch
    %11 = sbr.rel (0) target = $region9
  $region8: #{_forward_impl.1} parent=0 // pred_region
    _
  $region9: #{_forward_impl.1} parent=0 // pred_fallthru
    _
  // Predicated region
  $region10: #{_forward_impl.1} parent=0 // pred_check
    _
  $region11: #{_forward_impl.1} parent=0 // pred_check_branch
    %13 = sbr.rel (0) target = $region13
  $region12: #{_forward_impl.1} parent=0 // pred_region
    _
  $region13: #{_forward_impl.1} parent=0 // pred_fallthru
    _
  %v14 = vld [vmem:[%s0] sm:$0xff]
  %v15 = vld [vmem:[%s0 + $0x8] sm:$0xff]
  %v16 = vld [vmem:[%s0 + $0x10] sm:$0xff]
  %v17 = vld [vmem:[%s0 + $0x18] sm:$0xff]
  %v18 = vld [vmem:[%s0 + $0x20] sm:$0xff]
  %v19 = vld [vmem:[%s0 + $0x28] sm:$0xff]
  %v20 = vld [vmem:[%s0 + $0x30] sm:$0xff]
  %v21 = vld [vmem:[%s0 + $0x38] sm:$0xff]
  %v22 = vld [vmem:[%s0 + $0x40] sm:$0xff]
  %v23 = vld [vmem:[%s0 + $0x48] sm:$0xff]
  %v24 = vld [vmem:[%s0 + $0x50] sm:$0xff]
  %v25 = vld [vmem:[%s0 + $0x58] sm:$0xff]
  %v26 = vld [vmem:[%s0 + $0x60] sm:$0xff]
  %v27 = vld [vmem:[%s0 + $0x68] sm:$0xff]
  %v28 = vld [vmem:[%s0 + $0x70] sm:$0xff]
  %v29 = vld [vmem:[%s0 + $0x78] sm:$0xff]
  %v30 = vld [vmem:[%s0 + $0x80] sm:$0xff]
  %v31 = vld [vmem:[%s0 + $0x88] sm:$0xff]
  %v32 = vld [vmem:[%s0 + $0x90] sm:$0xff]
  %v33 = vld [vmem:[%s0 + $0x98] sm:$0xff]
  %v34 = vld [vmem:[%s0 + $0xa0] sm:$0xff]
  %v35 = vld [vmem:[%s0 + $0xa8] sm:$0xff]
  %v36 = vld [vmem:[%s0 + $0xb0] sm:$0xff]
  %v37 = vld [vmem:[%s0 + $0xb8] sm:$0xff]
  %v38 = vld [vmem:[%s0 + $0xc0] sm:$0xff]
  %v39 = vld [vmem:[%s0 + $0xc8] sm:$0xff]
  %v40 = vld [vmem:[%s0 + $0xd0] sm:$0xff]
  %v41 = vld [vmem:[%s0 + $0xd8] sm:$0xff]
  %v42 = vld [vmem:[%s0 + $0xe0] sm:$0xff]
  %v43 = vld [vmem:[%s0 + $0xe8] sm:$0xff]
  %v44 = vld [vmem:[%s0 + $0xf0] sm:$0xff]
  %v45 = vld [vmem:[%s0 + $0xf8] sm:$0xff]
  %v46 = vld [vmem:[%s0 + $0x100] sm:$0xff]
  %v47 = vld [vmem:[%s0 + $0x108] sm:$0xff]
  %v48 = vld [vmem:[%s0 + $0x110] sm:$0xff]
  %v49 = vld [vmem:[%s0 + $0x118] sm:$0xff]
  %v50 = vld [vmem:[%s0 + $0x120] sm:$0xff]
  %v51 = vld [vmem:[%s0 + $0x128] sm:$0xff]
  %v52 = vld [vmem:[%s0 + $0x130] sm:$0xff]
  %v53 = vld [vmem:[%s0 + $0x138] sm:$0xff]
  %v54 = vld [vmem:[%s0 + $0x140] sm:$0xff]
  %v55 = vld [vmem:[%s0 + $0x148] sm:$0xff]
  %v56 = vld [vmem:[%s0 + $0x150] sm:$0xff]
  %v57 = vld [vmem:[%s0 + $0x158] sm:$0xff]
  %v58 = vld [vmem:[%s0 + $0x160] sm:$0xff]
  %v59 = vld [vmem:[%s0 + $0x168] sm:$0xff]
  %v60 = vld [vmem:[%s0 + $0x170] sm:$0xff]
  %v61 = vld [vmem:[%s0 + $0x178] sm:$0xff]
  %v62 = vld [vmem:[%s0 + $0x180] sm:$0xff]
  %v63 = vld [vmem:[%s0 + $0x188] sm:$0xff]
  %v64 = vld [vmem:[%s0 + $0x190] sm:$0xff]
  %v65 = vld [vmem:[%s0 + $0x198] sm:$0xff]
  %v66 = vld [vmem:[%s0 + $0x1a0] sm:$0xff]
  %v67 = vld [vmem:[%s0 + $0x1a8] sm:$0xff]
  %v68 = vld [vmem:[%s0 + $0x1b0] sm:$0xff]
  %v69 = vld [vmem:[%s0 + $0x1b8] sm:$0xff]
  %v70 = vld [vmem:[%s0 + $0x1c0] sm:$0xff]
  %v71 = vld [vmem:[%s0 + $0x1c8] sm:$0xff]
  %v72 = vld [vmem:[%s0 + $0x1d0] sm:$0xff]
  %v73 = vld [vmem:[%s0 + $0x1d8] sm:$0xff]
  %v74 = vld [vmem:[%s0 + $0x1e0] sm:$0xff]
  %v75 = vld [vmem:[%s0 + $0x1e8] sm:$0xff]
  %v76 = vld [vmem:[%s0 + $0x1f0] sm:$0xff]
  %v77 = vld [vmem:[%s0 + $0x1f8] sm:$0xff]
  %v78 = vld [vmem:[%s0 + $0x200] sm:$0xff]
  %v79 = vld [vmem:[%s0 + $0x208] sm:$0xff]
  %v80 = vld [vmem:[%s0 + $0x210] sm:$0xff]
  %v81 = vld [vmem:[%s0 + $0x218] sm:$0xff]
  %v82 = vld [vmem:[%s0 + $0x220] sm:$0xff]
  %v83 = vld [vmem:[%s0 + $0x228] sm:$0xff]
  %v84 = vld [vmem:[%s0 + $0x230] sm:$0xff]
  %v85 = vld [vmem:[%s0 + $0x238] sm:$0xff]
  %v86 = vld [vmem:[%s0 + $0x240] sm:$0xff]
  %v87 = vld [vmem:[%s0 + $0x248] sm:$0xff]
  %v88 = vld [vmem:[%s0 + $0x250] sm:$0xff]
  %89 = vrot.lane.b32.xlu0 %v14, 72
  %v90 = vpop.permute.xlu0 %89
  %91 = vrot.lane.b32.xlu0 %v39, 72
  %v92 = vpop.permute.xlu0 %91
  %93 = vrot.lane.b32.xlu0 %v64, 72
  %v94 = vpop.permute.xlu0 %93
  %95 = vrot.lane.b32.xlu0 %v15, 72
  %v96 = vpop.permute.xlu0 %95
  %97 = vrot.lane.b32.xlu0 %v40, 72
  %v98 = vpop.permute.xlu0 %97
  %99 = vrot.lane.b32.xlu0 %v65, 72
  %v100 = vpop.permute.xlu0 %99
  %101 = vrot.lane.b32.xlu0 %v16, 72
  %v102 = vpop.permute.xlu0 %101
  %103 = vrot.lane.b32.xlu0 %v41, 72
  %v104 = vpop.permute.xlu0 %103
  %105 = vrot.lane.b32.xlu0 %v66, 72
  %v106 = vpop.permute.xlu0 %105
  %107 = vrot.lane.b32.xlu0 %v17, 72
  %v108 = vpop.permute.xlu0 %107
  %109 = vrot.lane.b32.xlu0 %v42, 72
  %v110 = vpop.permute.xlu0 %109
  %111 = vrot.lane.b32.xlu0 %v67, 72
  %v112 = vpop.permute.xlu0 %111
  %113 = vrot.lane.b32.xlu0 %v18, 72
  %v114 = vpop.permute.xlu0 %113
  %115 = vrot.lane.b32.xlu0 %v43, 72
  %v116 = vpop.permute.xlu0 %115
  %117 = vrot.lane.b32.xlu0 %v68, 72
  %v118 = vpop.permute.xlu0 %117
  %119 = vrot.lane.b32.xlu0 %v19, 72
  %v120 = vpop.permute.xlu0 %119
  %121 = vrot.lane.b32.xlu0 %v44, 72
  %v122 = vpop.permute.xlu0 %121
  %123 = vrot.lane.b32.xlu0 %v69, 72
  %v124 = vpop.permute.xlu0 %123
  %125 = vrot.lane.b32.xlu0 %v20, 72
  %v126 = vpop.permute.xlu0 %125
  %127 = vrot.lane.b32.xlu0 %v45, 72
  %v128 = vpop.permute.xlu0 %127
  %129 = vrot.lane.b32.xlu0 %v70, 72
  %v130 = vpop.permute.xlu0 %129
  %131 = vrot.lane.b32.xlu0 %v21, 72
  %v132 = vpop.permute.xlu0 %131
  %133 = vrot.lane.b32.xlu0 %v46, 72
  %v134 = vpop.permute.xlu0 %133
  %135 = vrot.lane.b32.xlu0 %v71, 72
  %v136 = vpop.permute.xlu0 %135
  %137 = vrot.lane.b32.xlu0 %v22, 72
  %v138 = vpop.permute.xlu0 %137
  %139 = vrot.lane.b32.xlu0 %v47, 72
  %v140 = vpop.permute.xlu0 %139
  %141 = vrot.lane.b32.xlu0 %v72, 72
  %v142 = vpop.permute.xlu0 %141
  %143 = vrot.lane.b32.xlu0 %v23, 72
  %v144 = vpop.permute.xlu0 %143
  %145 = vrot.lane.b32.xlu0 %v48, 72
  %v146 = vpop.permute.xlu0 %145
  %147 = vrot.lane.b32.xlu0 %v73, 72
  %v148 = vpop.permute.xlu0 %147
  %149 = vrot.lane.b32.xlu0 %v24, 72
  %v150 = vpop.permute.xlu0 %149
  %151 = vrot.lane.b32.xlu0 %v49, 72
  %v152 = vpop.permute.xlu0 %151
  %153 = vrot.lane.b32.xlu0 %v74, 72
  %v154 = vpop.permute.xlu0 %153
  %155 = vrot.lane.b32.xlu0 %v25, 72
  %v156 = vpop.permute.xlu0 %155
  %157 = vrot.lane.b32.xlu0 %v50, 72
  %v158 = vpop.permute.xlu0 %157
  %159 = vrot.lane.b32.xlu0 %v75, 72
  %v160 = vpop.permute.xlu0 %159
  %161 = vrot.lane.b32.xlu0 %v26, 72
  %v162 = vpop.permute.xlu0 %161
  %163 = vrot.lane.b32.xlu0 %v51, 72
  %v164 = vpop.permute.xlu0 %163
  %165 = vrot.lane.b32.xlu0 %v76, 72
  %v166 = vpop.permute.xlu0 %165
  %167 = vrot.lane.b32.xlu0 %v27, 72
  %v168 = vpop.permute.xlu0 %167
  %169 = vrot.lane.b32.xlu0 %v52, 72
  %v170 = vpop.permute.xlu0 %169
  %171 = vrot.lane.b32.xlu0 %v77, 72
  %v172 = vpop.permute.xlu0 %171
  %173 = vrot.lane.b32.xlu0 %v28, 72
  %v174 = vpop.permute.xlu0 %173
  %175 = vrot.lane.b32.xlu0 %v53, 72
  %v176 = vpop.permute.xlu0 %175
  %177 = vrot.lane.b32.xlu0 %v78, 72
  %v178 = vpop.permute.xlu0 %177
  %179 = vrot.lane.b32.xlu0 %v29, 72
  %v180 = vpop.permute.xlu0 %179
  %181 = vrot.lane.b32.xlu0 %v54, 72
  %v182 = vpop.permute.xlu0 %181
  %183 = vrot.lane.b32.xlu0 %v79, 72
  %v184 = vpop.permute.xlu0 %183
  %185 = vrot.lane.b32.xlu0 %v30, 72
  %v186 = vpop.permute.xlu0 %185
  %187 = vrot.lane.b32.xlu0 %v55, 72
  %v188 = vpop.permute.xlu0 %187
  %189 = vrot.lane.b32.xlu0 %v80, 72
  %v190 = vpop.permute.xlu0 %189
  %191 = vrot.lane.b32.xlu0 %v31, 72
  %v192 = vpop.permute.xlu0 %191
  %193 = vrot.lane.b32.xlu0 %v56, 72
  %v194 = vpop.permute.xlu0 %193
  %195 = vrot.lane.b32.xlu0 %v81, 72
  %v196 = vpop.permute.xlu0 %195
  %197 = vrot.lane.b32.xlu0 %v32, 72
  %v198 = vpop.permute.xlu0 %197
  %199 = vrot.lane.b32.xlu0 %v57, 72
  %v200 = vpop.permute.xlu0 %199
  %201 = vrot.lane.b32.xlu0 %v82, 72
  %v202 = vpop.permute.xlu0 %201
  %203 = vrot.lane.b32.xlu0 %v33, 72
  %v204 = vpop.permute.xlu0 %203
  %205 = vrot.lane.b32.xlu0 %v58, 72
  %v206 = vpop.permute.xlu0 %205
  %207 = vrot.lane.b32.xlu0 %v83, 72
  %v208 = vpop.permute.xlu0 %207
  %209 = vrot.lane.b32.xlu0 %v34, 72
  %v210 = vpop.permute.xlu0 %209
  %211 = vrot.lane.b32.xlu0 %v59, 72
  %v212 = vpop.permute.xlu0 %211
  %213 = vrot.lane.b32.xlu0 %v84, 72
  %v214 = vpop.permute.xlu0 %213
  %215 = vrot.lane.b32.xlu0 %v35, 72
  %v216 = vpop.permute.xlu0 %215
  %217 = vrot.lane.b32.xlu0 %v60, 72
  %v218 = vpop.permute.xlu0 %217
  %219 = vrot.lane.b32.xlu0 %v85, 72
  %v220 = vpop.permute.xlu0 %219
  %221 = vrot.lane.b32.xlu0 %v36, 72
  %v222 = vpop.permute.xlu0 %221
  %223 = vrot.lane.b32.xlu0 %v61, 72
  %v224 = vpop.permute.xlu0 %223
  %225 = vrot.lane.b32.xlu0 %v86, 72
  %v226 = vpop.permute.xlu0 %225
  %227 = vrot.lane.b32.xlu0 %v37, 72
  %v228 = vpop.permute.xlu0 %227
  %229 = vrot.lane.b32.xlu0 %v62, 72
  %v230 = vpop.permute.xlu0 %229
  %231 = vrot.lane.b32.xlu0 %v87, 72
  %v232 = vpop.permute.xlu0 %231
  %233 = vrot.lane.b32.xlu0 %v38, 72
  %v234 = vpop.permute.xlu0 %233
  %235 = vrot.lane.b32.xlu0 %v63, 72
  %v236 = vpop.permute.xlu0 %235
  %237 = vrot.lane.b32.xlu0 %v88, 72
  %v238 = vpop.permute.xlu0 %237
  %v239 = vlaneseq
  %v240 = vand.u32 %v239, 127
  %vm241 = vcmp.lt.s32.totalorder %v240, 72
  %v242 = vsel %vm241, %v228, %v234
  %v243 = vsel %vm241, %v230, %v236
  %v244 = vsel %vm241, %v232, %v238
  %v245 = vsel %vm241, %v222, %v228
  %v246 = vsel %vm241, %v224, %v230
  %v247 = vsel %vm241, %v226, %v232
  %v248 = vsel %vm241, %v216, %v222
  %v249 = vsel %vm241, %v218, %v224
  %v250 = vsel %vm241, %v220, %v226
  %v251 = vsel %vm241, %v210, %v216
  %v252 = vsel %vm241, %v212, %v218
  %v253 = vsel %vm241, %v214, %v220
  %v254 = vsel %vm241, %v204, %v210
  %v255 = vsel %vm241, %v206, %v212
  %v256 = vsel %vm241, %v208, %v214
  %v257 = vsel %vm241, %v198, %v204
  %v258 = vsel %vm241, %v200, %v206
  %v259 = vsel %vm241, %v202, %v208
  %v260 = vsel %vm241, %v192, %v198
  %v261 = vsel %vm241, %v194, %v200
  %v262 = vsel %vm241, %v196, %v202
  %v263 = vsel %vm241, %v186, %v192
  %v264 = vsel %vm241, %v188, %v194
  %v265 = vsel %vm241, %v190, %v196
  %v266 = vsel %vm241, %v180, %v186
  %v267 = vsel %vm241, %v182, %v188
  %v268 = vsel %vm241, %v184, %v190
  %v269 = vsel %vm241, %v174, %v180
  %v270 = vsel %vm241, %v176, %v182
  %v271 = vsel %vm241, %v178, %v184
  %v272 = vsel %vm241, %v168, %v174
  %v273 = vsel %vm241, %v170, %v176
  %v274 = vsel %vm241, %v172, %v178
  %v275 = vsel %vm241, %v162, %v168
  %v276 = vsel %vm241, %v164, %v170
  %v277 = vsel %vm241, %v166, %v172
  %v278 = vsel %vm241, %v156, %v162
  %v279 = vsel %vm241, %v158, %v164
  %v280 = vsel %vm241, %v160, %v166
  %v281 = vsel %vm241, %v150, %v156
  %v282 = vsel %vm241, %v152, %v158
  %v283 = vsel %vm241, %v154, %v160
  %v284 = vsel %vm241, %v144, %v150
  %v285 = vsel %vm241, %v146, %v152
  %v286 = vsel %vm241, %v148, %v154
  %v287 = vsel %vm241, %v138, %v144
  %v288 = vsel %vm241, %v140, %v146
  %v289 = vsel %vm241, %v142, %v148
  %v290 = vsel %vm241, %v132, %v138
  %v291 = vsel %vm241, %v134, %v140
  %v292 = vsel %vm241, %v136, %v142
  %v293 = vsel %vm241, %v126, %v132
  %v294 = vsel %vm241, %v128, %v134
  %v295 = vsel %vm241, %v130, %v136
  %v296 = vsel %vm241, %v120, %v126
  %v297 = vsel %vm241, %v122, %v128
  %v298 = vsel %vm241, %v124, %v130
  %v299 = vsel %vm241, %v114, %v120
  %v300 = vsel %vm241, %v116, %v122
  %v301 = vsel %vm241, %v118, %v124
  %v302 = vsel %vm241, %v108, %v114
  %v303 = vsel %vm241, %v110, %v116
  %v304 = vsel %vm241, %v112, %v118
  %v305 = vsel %vm241, %v102, %v108
  %v306 = vsel %vm241, %v104, %v110
  %v307 = vsel %vm241, %v106, %v112
  %v308 = vsel %vm241, %v96, %v102
  %v309 = vsel %vm241, %v98, %v104
  %v310 = vsel %vm241, %v100, %v106
  %v311 = vsel %vm241, %v90, %v96
  %v312 = vsel %vm241, %v92, %v98
  %v313 = vsel %vm241, %v94, %v100
  %v314 = vsel %vm241, %v234, %v90
  %v315 = vsel %vm241, %v236, %v92
  %v316 = vsel %vm241, %v238, %v94
  %v317 = vld [vmem:[%s1] sm:$0xff]
  %v318 = vld [vmem:[%s1 + $0x8] sm:$0xff]
  %v319 = vld [vmem:[%s1 + $0x10] sm:$0xff]
  %v320 = vld [vmem:[%s1 + $0x18] sm:$0xff]
  %v321 = vld [vmem:[%s1 + $0x20] sm:$0xff]
  %v322 = vld [vmem:[%s1 + $0x28] sm:$0xff]
  %v323 = vld [vmem:[%s1 + $0x30] sm:$0xff]
  %v324 = vld [vmem:[%s1 + $0x38] sm:$0xff]
  %v325 = vld [vmem:[%s1 + $0x40] sm:$0xff]
  %v326 = vld [vmem:[%s1 + $0x48] sm:$0xff]
  %v327 = vld [vmem:[%s1 + $0x50] sm:$0xff]
  %v328 = vld [vmem:[%s1 + $0x58] sm:$0xff]
  %v329 = vld [vmem:[%s2] sm:$0xff]
  %v330 = vld [vmem:[%s2 + $0x8] sm:$0xff]
  %v331 = vld [vmem:[%s2 + $0x10] sm:$0xff]
  %v332 = vld [vmem:[%s2 + $0x18] sm:$0xff]
  %v333 = vld [vmem:[%s2 + $0x20] sm:$0xff]
  %v334 = vld [vmem:[%s2 + $0x28] sm:$0xff]
  %v335 = vld [vmem:[%s2 + $0x30] sm:$0xff]
  %v336 = vld [vmem:[%s2 + $0x38] sm:$0xff]
  %v337 = vld [vmem:[%s2 + $0x40] sm:$0xff]
  %v338 = vld [vmem:[%s2 + $0x48] sm:$0xff]
  %v339 = vld [vmem:[%s2 + $0x50] sm:$0xff]
  %v340 = vld [vmem:[%s2 + $0x58] sm:$0xff]
  %vm341 = vcmask 195584
  %v343 = vsel %vm341, %v329, 0
  %v346 = vsel %vm341, %v330, 0
  %v349 = vsel %vm341, %v331, 0
  %v352 = vsel %vm341, %v332, 0
  %v355 = vsel %vm341, %v333, 0
  %v358 = vsel %vm341, %v334, 0
  %v361 = vsel %vm341, %v335, 0
  %v364 = vsel %vm341, %v336, 0
  %v367 = vsel %vm341, %v337, 0
  %v370 = vsel %vm341, %v338, 0
  %v373 = vsel %vm341, %v339, 0
  %v376 = vsel %vm341, %v340, 0
  %378 = vmatpush.msra.mxu0 0.0
  %379 = vmatpush.msra.mxu0 0.0
  %380 = vmatpush.msra.mxu0 0.0
  %381 = vmatpush.msra.mxu0 0.0
  %382 = vmatpush.msra.mxu0 0.0
  %383 = vmatpush.msra.mxu0 0.0
  %384 = vmatpush.msra.mxu0 0.0
  %385 = vmatpush.msra.mxu0 0.0
  %386 = vmatpush.msra.mxu0 0.0
  %387 = vmatpush.msra.mxu0 0.0
  %388 = vmatpush.msra.mxu0 0.0
  %389 = vmatpush.msra.mxu0 0.0
  %390 = vmatpush.msra.mxu0 0.0
  %391 = vmatpush.msra.mxu0 %v313
  %392 = vmatpush.msra.mxu0 %v312
  %393 = vmatpush.msra.mxu0 %v311
  %394 = vmatmul.f32.gmra.mxu0 %v343
  %v395 = vpop.f32.mrf.mxu0
  %v396 = vadd.f32 0.0, %v395
  %397 = vmatmul.f32.gmra.mxu0 %v346
  %v398 = vpop.f32.mrf.mxu0
  %v399 = vadd.f32 0.0, %v398
  %400 = vmatmul.f32.gmra.mxu0 %v349
  %v401 = vpop.f32.mrf.mxu0
  %v402 = vadd.f32 0.0, %v401
  %403 = vmatmul.f32.gmra.mxu0 %v352
  %v404 = vpop.f32.mrf.mxu0
  %v405 = vadd.f32 0.0, %v404
  %406 = vmatmul.f32.gmra.mxu0 %v355
  %v407 = vpop.f32.mrf.mxu0
  %v408 = vadd.f32 0.0, %v407
  %409 = vmatmul.f32.gmra.mxu0 %v358
  %v410 = vpop.f32.mrf.mxu0
  %v411 = vadd.f32 0.0, %v410
  %412 = vmatmul.f32.gmra.mxu0 %v361
  %v413 = vpop.f32.mrf.mxu0
  %v414 = vadd.f32 0.0, %v413
  %415 = vmatmul.f32.gmra.mxu0 %v364
  %v416 = vpop.f32.mrf.mxu0
  %v417 = vadd.f32 0.0, %v416
  %418 = vmatmul.f32.gmra.mxu0 %v367
  %v419 = vpop.f32.mrf.mxu0
  %v420 = vadd.f32 0.0, %v419
  %421 = vmatmul.f32.gmra.mxu0 %v370
  %v422 = vpop.f32.mrf.mxu0
  %v423 = vadd.f32 0.0, %v422
  %424 = vmatmul.f32.gmra.mxu0 %v373
  %v425 = vpop.f32.mrf.mxu0
  %v426 = vadd.f32 0.0, %v425
  %427 = vmatmul.f32.gmra.mxu0 %v376
  %v428 = vpop.f32.mrf.mxu0
  %v429 = vadd.f32 0.0, %v428
  %430 = vdwg.mxu0
  %431 = vmatpush.msra.mxu0 0.0
  %432 = vmatpush.msra.mxu0 0.0
  %433 = vmatpush.msra.mxu0 0.0
  %434 = vmatpush.msra.mxu0 0.0
  %435 = vmatpush.msra.mxu0 0.0
  %436 = vmatpush.msra.mxu0 0.0
  %437 = vmatpush.msra.mxu0 0.0
  %438 = vmatpush.msra.mxu0 0.0
  %439 = vmatpush.msra.mxu0 0.0
  %440 = vmatpush.msra.mxu0 0.0
  %441 = vmatpush.msra.mxu0 0.0
  %442 = vmatpush.msra.mxu0 0.0
  %443 = vmatpush.msra.mxu0 0.0
  %444 = vmatpush.msra.mxu0 %v310
  %445 = vmatpush.msra.mxu0 %v309
  %446 = vmatpush.msra.mxu0 %v308
  %447 = vmatmul.f32.gmra.mxu0 %v343
  %v448 = vpop.f32.mrf.mxu0
  %v449 = vadd.f32 0.0, %v448
  %450 = vmatmul.f32.gmra.mxu0 %v346
  %v451 = vpop.f32.mrf.mxu0
  %v452 = vadd.f32 0.0, %v451
  %453 = vmatmul.f32.gmra.mxu0 %v349
  %v454 = vpop.f32.mrf.mxu0
  %v455 = vadd.f32 0.0, %v454
  %456 = vmatmul.f32.gmra.mxu0 %v352
  %v457 = vpop.f32.mrf.mxu0
  %v458 = vadd.f32 0.0, %v457
  %459 = vmatmul.f32.gmra.mxu0 %v355
  %v460 = vpop.f32.mrf.mxu0
  %v461 = vadd.f32 0.0, %v460
  %462 = vmatmul.f32.gmra.mxu0 %v358
  %v463 = vpop.f32.mrf.mxu0
  %v464 = vadd.f32 0.0, %v463
  %465 = vmatmul.f32.gmra.mxu0 %v361
  %v466 = vpop.f32.mrf.mxu0
  %v467 = vadd.f32 0.0, %v466
  %468 = vmatmul.f32.gmra.mxu0 %v364
  %v469 = vpop.f32.mrf.mxu0
  %v470 = vadd.f32 0.0, %v469
  %471 = vmatmul.f32.gmra.mxu0 %v367
  %v472 = vpop.f32.mrf.mxu0
  %v473 = vadd.f32 0.0, %v472
  %474 = vmatmul.f32.gmra.mxu0 %v370
  %v475 = vpop.f32.mrf.mxu0
  %v476 = vadd.f32 0.0, %v475
  %477 = vmatmul.f32.gmra.mxu0 %v373
  %v478 = vpop.f32.mrf.mxu0
  %v479 = vadd.f32 0.0, %v478
  %480 = vmatmul.f32.gmra.mxu0 %v376
  %v481 = vpop.f32.mrf.mxu0
  %v482 = vadd.f32 0.0, %v481
  %483 = vdwg.mxu0
  %484 = vmatpush.msra.mxu0 0.0
  %485 = vmatpush.msra.mxu0 0.0
  %486 = vmatpush.msra.mxu0 0.0
  %487 = vmatpush.msra.mxu0 0.0
  %488 = vmatpush.msra.mxu0 0.0
  %489 = vmatpush.msra.mxu0 0.0
  %490 = vmatpush.msra.mxu0 0.0
  %491 = vmatpush.msra.mxu0 0.0
  %492 = vmatpush.msra.mxu0 0.0
  %493 = vmatpush.msra.mxu0 0.0
  %494 = vmatpush.msra.mxu0 0.0
  %495 = vmatpush.msra.mxu0 0.0
  %496 = vmatpush.msra.mxu0 0.0
  %497 = vmatpush.msra.mxu0 %v307
  %498 = vmatpush.msra.mxu0 %v306
  %499 = vmatpush.msra.mxu0 %v305
  %500 = vmatmul.f32.gmra.mxu0 %v343
  %v501 = vpop.f32.mrf.mxu0
  %v502 = vadd.f32 0.0, %v501
  %503 = vmatmul.f32.gmra.mxu0 %v346
  %v504 = vpop.f32.mrf.mxu0
  %v505 = vadd.f32 0.0, %v504
  %506 = vmatmul.f32.gmra.mxu0 %v349
  %v507 = vpop.f32.mrf.mxu0
  %v508 = vadd.f32 0.0, %v507
  %509 = vmatmul.f32.gmra.mxu0 %v352
  %v510 = vpop.f32.mrf.mxu0
  %v511 = vadd.f32 0.0, %v510
  %512 = vmatmul.f32.gmra.mxu0 %v355
  %v513 = vpop.f32.mrf.mxu0
  %v514 = vadd.f32 0.0, %v513
  %515 = vmatmul.f32.gmra.mxu0 %v358
  %v516 = vpop.f32.mrf.mxu0
  %v517 = vadd.f32 0.0, %v516
  %518 = vmatmul.f32.gmra.mxu0 %v361
  %v519 = vpop.f32.mrf.mxu0
  %v520 = vadd.f32 0.0, %v519
  %521 = vmatmul.f32.gmra.mxu0 %v364
  %v522 = vpop.f32.mrf.mxu0
  %v523 = vadd.f32 0.0, %v522
  %524 = vmatmul.f32.gmra.mxu0 %v367
  %v525 = vpop.f32.mrf.mxu0
  %v526 = vadd.f32 0.0, %v525
  %527 = vmatmul.f32.gmra.mxu0 %v370
  %v528 = vpop.f32.mrf.mxu0
  %v529 = vadd.f32 0.0, %v528
  %530 = vmatmul.f32.gmra.mxu0 %v373
  %v531 = vpop.f32.mrf.mxu0
  %v532 = vadd.f32 0.0, %v531
  %533 = vmatmul.f32.gmra.mxu0 %v376
  %v534 = vpop.f32.mrf.mxu0
  %v535 = vadd.f32 0.0, %v534
  %536 = vdwg.mxu0
  %537 = vmatpush.msra.mxu0 0.0
  %538 = vmatpush.msra.mxu0 0.0
  %539 = vmatpush.msra.mxu0 0.0
  %540 = vmatpush.msra.mxu0 0.0
  %541 = vmatpush.msra.mxu0 0.0
  %542 = vmatpush.msra.mxu0 0.0
  %543 = vmatpush.msra.mxu0 0.0
  %544 = vmatpush.msra.mxu0 0.0
  %545 = vmatpush.msra.mxu0 0.0
  %546 = vmatpush.msra.mxu0 0.0
  %547 = vmatpush.msra.mxu0 0.0
  %548 = vmatpush.msra.mxu0 0.0
  %549 = vmatpush.msra.mxu0 0.0
  %550 = vmatpush.msra.mxu0 %v304
  %551 = vmatpush.msra.mxu0 %v303
  %552 = vmatpush.msra.mxu0 %v302
  %553 = vmatmul.f32.gmra.mxu0 %v343
  %v554 = vpop.f32.mrf.mxu0
  %v555 = vadd.f32 0.0, %v554
  %556 = vmatmul.f32.gmra.mxu0 %v346
  %v557 = vpop.f32.mrf.mxu0
  %v558 = vadd.f32 0.0, %v557
  %559 = vmatmul.f32.gmra.mxu0 %v349
  %v560 = vpop.f32.mrf.mxu0
  %v561 = vadd.f32 0.0, %v560
  %562 = vmatmul.f32.gmra.mxu0 %v352
  %v563 = vpop.f32.mrf.mxu0
  %v564 = vadd.f32 0.0, %v563
  %565 = vmatmul.f32.gmra.mxu0 %v355
  %v566 = vpop.f32.mrf.mxu0
  %v567 = vadd.f32 0.0, %v566
  %568 = vmatmul.f32.gmra.mxu0 %v358
  %v569 = vpop.f32.mrf.mxu0
  %v570 = vadd.f32 0.0, %v569
  %571 = vmatmul.f32.gmra.mxu0 %v361
  %v572 = vpop.f32.mrf.mxu0
  %v573 = vadd.f32 0.0, %v572
  %574 = vmatmul.f32.gmra.mxu0 %v364
  %v575 = vpop.f32.mrf.mxu0
  %v576 = vadd.f32 0.0, %v575
  %577 = vmatmul.f32.gmra.mxu0 %v367
  %v578 = vpop.f32.mrf.mxu0
  %v579 = vadd.f32 0.0, %v578
  %580 = vmatmul.f32.gmra.mxu0 %v370
  %v581 = vpop.f32.mrf.mxu0
  %v582 = vadd.f32 0.0, %v581
  %583 = vmatmul.f32.gmra.mxu0 %v373
  %v584 = vpop.f32.mrf.mxu0
  %v585 = vadd.f32 0.0, %v584
  %586 = vmatmul.f32.gmra.mxu0 %v376
  %v587 = vpop.f32.mrf.mxu0
  %v588 = vadd.f32 0.0, %v587
  %589 = vdwg.mxu0
  %590 = vmatpush.msra.mxu0 0.0
  %591 = vmatpush.msra.mxu0 0.0
  %592 = vmatpush.msra.mxu0 0.0
  %593 = vmatpush.msra.mxu0 0.0
  %594 = vmatpush.msra.mxu0 0.0
  %595 = vmatpush.msra.mxu0 0.0
  %596 = vmatpush.msra.mxu0 0.0
  %597 = vmatpush.msra.mxu0 0.0
  %598 = vmatpush.msra.mxu0 0.0
  %599 = vmatpush.msra.mxu0 0.0
  %600 = vmatpush.msra.mxu0 0.0
  %601 = vmatpush.msra.mxu0 0.0
  %602 = vmatpush.msra.mxu0 0.0
  %603 = vmatpush.msra.mxu0 %v301
  %604 = vmatpush.msra.mxu0 %v300
  %605 = vmatpush.msra.mxu0 %v299
  %606 = vmatmul.f32.gmra.mxu0 %v343
  %v607 = vpop.f32.mrf.mxu0
  %v608 = vadd.f32 0.0, %v607
  %609 = vmatmul.f32.gmra.mxu0 %v346
  %v610 = vpop.f32.mrf.mxu0
  %v611 = vadd.f32 0.0, %v610
  %612 = vmatmul.f32.gmra.mxu0 %v349
  %v613 = vpop.f32.mrf.mxu0
  %v614 = vadd.f32 0.0, %v613
  %615 = vmatmul.f32.gmra.mxu0 %v352
  %v616 = vpop.f32.mrf.mxu0
  %v617 = vadd.f32 0.0, %v616
  %618 = vmatmul.f32.gmra.mxu0 %v355
  %v619 = vpop.f32.mrf.mxu0
  %v620 = vadd.f32 0.0, %v619
  %621 = vmatmul.f32.gmra.mxu0 %v358
  %v622 = vpop.f32.mrf.mxu0
  %v623 = vadd.f32 0.0, %v622
  %624 = vmatmul.f32.gmra.mxu0 %v361
  %v625 = vpop.f32.mrf.mxu0
  %v626 = vadd.f32 0.0, %v625
  %627 = vmatmul.f32.gmra.mxu0 %v364
  %v628 = vpop.f32.mrf.mxu0
  %v629 = vadd.f32 0.0, %v628
  %630 = vmatmul.f32.gmra.mxu0 %v367
  %v631 = vpop.f32.mrf.mxu0
  %v632 = vadd.f32 0.0, %v631
  %633 = vmatmul.f32.gmra.mxu0 %v370
  %v634 = vpop.f32.mrf.mxu0
  %v635 = vadd.f32 0.0, %v634
  %636 = vmatmul.f32.gmra.mxu0 %v373
  %v637 = vpop.f32.mrf.mxu0
  %v638 = vadd.f32 0.0, %v637
  %639 = vmatmul.f32.gmra.mxu0 %v376
  %v640 = vpop.f32.mrf.mxu0
  %v641 = vadd.f32 0.0, %v640
  %642 = vdwg.mxu0
  %643 = vmatpush.msra.mxu0 0.0
  %644 = vmatpush.msra.mxu0 0.0
  %645 = vmatpush.msra.mxu0 0.0
  %646 = vmatpush.msra.mxu0 0.0
  %647 = vmatpush.msra.mxu0 0.0
  %648 = vmatpush.msra.mxu0 0.0
  %649 = vmatpush.msra.mxu0 0.0
  %650 = vmatpush.msra.mxu0 0.0
  %651 = vmatpush.msra.mxu0 0.0
  %652 = vmatpush.msra.mxu0 0.0
  %653 = vmatpush.msra.mxu0 0.0
  %654 = vmatpush.msra.mxu0 0.0
  %655 = vmatpush.msra.mxu0 0.0
  %656 = vmatpush.msra.mxu0 %v298
  %657 = vmatpush.msra.mxu0 %v297
  %658 = vmatpush.msra.mxu0 %v296
  %659 = vmatmul.f32.gmra.mxu0 %v343
  %v660 = vpop.f32.mrf.mxu0
  %v661 = vadd.f32 0.0, %v660
  %662 = vmatmul.f32.gmra.mxu0 %v346
  %v663 = vpop.f32.mrf.mxu0
  %v664 = vadd.f32 0.0, %v663
  %665 = vmatmul.f32.gmra.mxu0 %v349
  %v666 = vpop.f32.mrf.mxu0
  %v667 = vadd.f32 0.0, %v666
  %668 = vmatmul.f32.gmra.mxu0 %v352
  %v669 = vpop.f32.mrf.mxu0
  %v670 = vadd.f32 0.0, %v669
  %671 = vmatmul.f32.gmra.mxu0 %v355
  %v672 = vpop.f32.mrf.mxu0
  %v673 = vadd.f32 0.0, %v672
  %674 = vmatmul.f32.gmra.mxu0 %v358
  %v675 = vpop.f32.mrf.mxu0
  %v676 = vadd.f32 0.0, %v675
  %677 = vmatmul.f32.gmra.mxu0 %v361
  %v678 = vpop.f32.mrf.mxu0
  %v679 = vadd.f32 0.0, %v678
  %680 = vmatmul.f32.gmra.mxu0 %v364
  %v681 = vpop.f32.mrf.mxu0
  %v682 = vadd.f32 0.0, %v681
  %683 = vmatmul.f32.gmra.mxu0 %v367
  %v684 = vpop.f32.mrf.mxu0
  %v685 = vadd.f32 0.0, %v684
  %686 = vmatmul.f32.gmra.mxu0 %v370
  %v687 = vpop.f32.mrf.mxu0
  %v688 = vadd.f32 0.0, %v687
  %689 = vmatmul.f32.gmra.mxu0 %v373
  %v690 = vpop.f32.mrf.mxu0
  %v691 = vadd.f32 0.0, %v690
  %692 = vmatmul.f32.gmra.mxu0 %v376
  %v693 = vpop.f32.mrf.mxu0
  %v694 = vadd.f32 0.0, %v693
  %695 = vdwg.mxu0
  %696 = vmatpush.msra.mxu0 0.0
  %697 = vmatpush.msra.mxu0 0.0
  %698 = vmatpush.msra.mxu0 0.0
  %699 = vmatpush.msra.mxu0 0.0
  %700 = vmatpush.msra.mxu0 0.0
  %701 = vmatpush.msra.mxu0 0.0
  %702 = vmatpush.msra.mxu0 0.0
  %703 = vmatpush.msra.mxu0 0.0
  %704 = vmatpush.msra.mxu0 0.0
  %705 = vmatpush.msra.mxu0 0.0
  %706 = vmatpush.msra.mxu0 0.0
  %707 = vmatpush.msra.mxu0 0.0
  %708 = vmatpush.msra.mxu0 0.0
  %709 = vmatpush.msra.mxu0 %v295
  %710 = vmatpush.msra.mxu0 %v294
  %711 = vmatpush.msra.mxu0 %v293
  %712 = vmatmul.f32.gmra.mxu0 %v343
  %v713 = vpop.f32.mrf.mxu0
  %v714 = vadd.f32 0.0, %v713
  %715 = vmatmul.f32.gmra.mxu0 %v346
  %v716 = vpop.f32.mrf.mxu0
  %v717 = vadd.f32 0.0, %v716
  %718 = vmatmul.f32.gmra.mxu0 %v349
  %v719 = vpop.f32.mrf.mxu0
  %v720 = vadd.f32 0.0, %v719
  %721 = vmatmul.f32.gmra.mxu0 %v352
  %v722 = vpop.f32.mrf.mxu0
  %v723 = vadd.f32 0.0, %v722
  %724 = vmatmul.f32.gmra.mxu0 %v355
  %v725 = vpop.f32.mrf.mxu0
  %v726 = vadd.f32 0.0, %v725
  %727 = vmatmul.f32.gmra.mxu0 %v358
  %v728 = vpop.f32.mrf.mxu0
  %v729 = vadd.f32 0.0, %v728
  %730 = vmatmul.f32.gmra.mxu0 %v361
  %v731 = vpop.f32.mrf.mxu0
  %v732 = vadd.f32 0.0, %v731
  %733 = vmatmul.f32.gmra.mxu0 %v364
  %v734 = vpop.f32.mrf.mxu0
  %v735 = vadd.f32 0.0, %v734
  %736 = vmatmul.f32.gmra.mxu0 %v367
  %v737 = vpop.f32.mrf.mxu0
  %v738 = vadd.f32 0.0, %v737
  %739 = vmatmul.f32.gmra.mxu0 %v370
  %v740 = vpop.f32.mrf.mxu0
  %v741 = vadd.f32 0.0, %v740
  %742 = vmatmul.f32.gmra.mxu0 %v373
  %v743 = vpop.f32.mrf.mxu0
  %v744 = vadd.f32 0.0, %v743
  %745 = vmatmul.f32.gmra.mxu0 %v376
  %v746 = vpop.f32.mrf.mxu0
  %v747 = vadd.f32 0.0, %v746
  %748 = vdwg.mxu0
  %749 = vmatpush.msra.mxu0 0.0
  %750 = vmatpush.msra.mxu0 0.0
  %751 = vmatpush.msra.mxu0 0.0
  %752 = vmatpush.msra.mxu0 0.0
  %753 = vmatpush.msra.mxu0 0.0
  %754 = vmatpush.msra.mxu0 0.0
  %755 = vmatpush.msra.mxu0 0.0
  %756 = vmatpush.msra.mxu0 0.0
  %757 = vmatpush.msra.mxu0 0.0
  %758 = vmatpush.msra.mxu0 0.0
  %759 = vmatpush.msra.mxu0 0.0
  %760 = vmatpush.msra.mxu0 0.0
  %761 = vmatpush.msra.mxu0 0.0
  %762 = vmatpush.msra.mxu0 %v292
  %763 = vmatpush.msra.mxu0 %v291
  %764 = vmatpush.msra.mxu0 %v290
  %765 = vmatmul.f32.gmra.mxu0 %v343
  %v766 = vpop.f32.mrf.mxu0
  %v767 = vadd.f32 0.0, %v766
  %768 = vmatmul.f32.gmra.mxu0 %v346
  %v769 = vpop.f32.mrf.mxu0
  %v770 = vadd.f32 0.0, %v769
  %771 = vmatmul.f32.gmra.mxu0 %v349
  %v772 = vpop.f32.mrf.mxu0
  %v773 = vadd.f32 0.0, %v772
  %774 = vmatmul.f32.gmra.mxu0 %v352
  %v775 = vpop.f32.mrf.mxu0
  %v776 = vadd.f32 0.0, %v775
  %777 = vmatmul.f32.gmra.mxu0 %v355
  %v778 = vpop.f32.mrf.mxu0
  %v779 = vadd.f32 0.0, %v778
  %780 = vmatmul.f32.gmra.mxu0 %v358
  %v781 = vpop.f32.mrf.mxu0
  %v782 = vadd.f32 0.0, %v781
  %783 = vmatmul.f32.gmra.mxu0 %v361
  %v784 = vpop.f32.mrf.mxu0
  %v785 = vadd.f32 0.0, %v784
  %786 = vmatmul.f32.gmra.mxu0 %v364
  %v787 = vpop.f32.mrf.mxu0
  %v788 = vadd.f32 0.0, %v787
  %789 = vmatmul.f32.gmra.mxu0 %v367
  %v790 = vpop.f32.mrf.mxu0
  %v791 = vadd.f32 0.0, %v790
  %792 = vmatmul.f32.gmra.mxu0 %v370
  %v793 = vpop.f32.mrf.mxu0
  %v794 = vadd.f32 0.0, %v793
  %795 = vmatmul.f32.gmra.mxu0 %v373
  %v796 = vpop.f32.mrf.mxu0
  %v797 = vadd.f32 0.0, %v796
  %798 = vmatmul.f32.gmra.mxu0 %v376
  %v799 = vpop.f32.mrf.mxu0
  %v800 = vadd.f32 0.0, %v799
  %801 = vdwg.mxu0
  %802 = vmatpush.msra.mxu0 0.0
  %803 = vmatpush.msra.mxu0 0.0
  %804 = vmatpush.msra.mxu0 0.0
  %805 = vmatpush.msra.mxu0 0.0
  %806 = vmatpush.msra.mxu0 0.0
  %807 = vmatpush.msra.mxu0 0.0
  %808 = vmatpush.msra.mxu0 0.0
  %809 = vmatpush.msra.mxu0 0.0
  %810 = vmatpush.msra.mxu0 0.0
  %811 = vmatpush.msra.mxu0 0.0
  %812 = vmatpush.msra.mxu0 0.0
  %813 = vmatpush.msra.mxu0 0.0
  %814 = vmatpush.msra.mxu0 0.0
  %815 = vmatpush.msra.mxu0 %v289
  %816 = vmatpush.msra.mxu0 %v288
  %817 = vmatpush.msra.mxu0 %v287
  %818 = vmatmul.f32.gmra.mxu0 %v343
  %v819 = vpop.f32.mrf.mxu0
  %v820 = vadd.f32 0.0, %v819
  %821 = vmatmul.f32.gmra.mxu0 %v346
  %v822 = vpop.f32.mrf.mxu0
  %v823 = vadd.f32 0.0, %v822
  %824 = vmatmul.f32.gmra.mxu0 %v349
  %v825 = vpop.f32.mrf.mxu0
  %v826 = vadd.f32 0.0, %v825
  %827 = vmatmul.f32.gmra.mxu0 %v352
  %v828 = vpop.f32.mrf.mxu0
  %v829 = vadd.f32 0.0, %v828
  %830 = vmatmul.f32.gmra.mxu0 %v355
  %v831 = vpop.f32.mrf.mxu0
  %v832 = vadd.f32 0.0, %v831
  %833 = vmatmul.f32.gmra.mxu0 %v358
  %v834 = vpop.f32.mrf.mxu0
  %v835 = vadd.f32 0.0, %v834
  %836 = vmatmul.f32.gmra.mxu0 %v361
  %v837 = vpop.f32.mrf.mxu0
  %v838 = vadd.f32 0.0, %v837
  %839 = vmatmul.f32.gmra.mxu0 %v364
  %v840 = vpop.f32.mrf.mxu0
  %v841 = vadd.f32 0.0, %v840
  %842 = vmatmul.f32.gmra.mxu0 %v367
  %v843 = vpop.f32.mrf.mxu0
  %v844 = vadd.f32 0.0, %v843
  %845 = vmatmul.f32.gmra.mxu0 %v370
  %v846 = vpop.f32.mrf.mxu0
  %v847 = vadd.f32 0.0, %v846
  %848 = vmatmul.f32.gmra.mxu0 %v373
  %v849 = vpop.f32.mrf.mxu0
  %v850 = vadd.f32 0.0, %v849
  %851 = vmatmul.f32.gmra.mxu0 %v376
  %v852 = vpop.f32.mrf.mxu0
  %v853 = vadd.f32 0.0, %v852
  %854 = vdwg.mxu0
  %855 = vmatpush.msra.mxu0 0.0
  %856 = vmatpush.msra.mxu0 0.0
  %857 = vmatpush.msra.mxu0 0.0
  %858 = vmatpush.msra.mxu0 0.0
  %859 = vmatpush.msra.mxu0 0.0
  %860 = vmatpush.msra.mxu0 0.0
  %861 = vmatpush.msra.mxu0 0.0
  %862 = vmatpush.msra.mxu0 0.0
  %863 = vmatpush.msra.mxu0 0.0
  %864 = vmatpush.msra.mxu0 0.0
  %865 = vmatpush.msra.mxu0 0.0
  %866 = vmatpush.msra.mxu0 0.0
  %867 = vmatpush.msra.mxu0 0.0
  %868 = vmatpush.msra.mxu0 %v286
  %869 = vmatpush.msra.mxu0 %v285
  %870 = vmatpush.msra.mxu0 %v284
  %871 = vmatmul.f32.gmra.mxu0 %v343
  %v872 = vpop.f32.mrf.mxu0
  %v873 = vadd.f32 0.0, %v872
  %874 = vmatmul.f32.gmra.mxu0 %v346
  %v875 = vpop.f32.mrf.mxu0
  %v876 = vadd.f32 0.0, %v875
  %877 = vmatmul.f32.gmra.mxu0 %v349
  %v878 = vpop.f32.mrf.mxu0
  %v879 = vadd.f32 0.0, %v878
  %880 = vmatmul.f32.gmra.mxu0 %v352
  %v881 = vpop.f32.mrf.mxu0
  %v882 = vadd.f32 0.0, %v881
  %883 = vmatmul.f32.gmra.mxu0 %v355
  %v884 = vpop.f32.mrf.mxu0
  %v885 = vadd.f32 0.0, %v884
  %886 = vmatmul.f32.gmra.mxu0 %v358
  %v887 = vpop.f32.mrf.mxu0
  %v888 = vadd.f32 0.0, %v887
  %889 = vmatmul.f32.gmra.mxu0 %v361
  %v890 = vpop.f32.mrf.mxu0
  %v891 = vadd.f32 0.0, %v890
  %892 = vmatmul.f32.gmra.mxu0 %v364
  %v893 = vpop.f32.mrf.mxu0
  %v894 = vadd.f32 0.0, %v893
  %895 = vmatmul.f32.gmra.mxu0 %v367
  %v896 = vpop.f32.mrf.mxu0
  %v897 = vadd.f32 0.0, %v896
  %898 = vmatmul.f32.gmra.mxu0 %v370
  %v899 = vpop.f32.mrf.mxu0
  %v900 = vadd.f32 0.0, %v899
  %901 = vmatmul.f32.gmra.mxu0 %v373
  %v902 = vpop.f32.mrf.mxu0
  %v903 = vadd.f32 0.0, %v902
  %904 = vmatmul.f32.gmra.mxu0 %v376
  %v905 = vpop.f32.mrf.mxu0
  %v906 = vadd.f32 0.0, %v905
  %907 = vdwg.mxu0
  %908 = vmatpush.msra.mxu0 0.0
  %909 = vmatpush.msra.mxu0 0.0
  %910 = vmatpush.msra.mxu0 0.0
  %911 = vmatpush.msra.mxu0 0.0
  %912 = vmatpush.msra.mxu0 0.0
  %913 = vmatpush.msra.mxu0 0.0
  %914 = vmatpush.msra.mxu0 0.0
  %915 = vmatpush.msra.mxu0 0.0
  %916 = vmatpush.msra.mxu0 0.0
  %917 = vmatpush.msra.mxu0 0.0
  %918 = vmatpush.msra.mxu0 0.0
  %919 = vmatpush.msra.mxu0 0.0
  %920 = vmatpush.msra.mxu0 0.0
  %921 = vmatpush.msra.mxu0 %v283
  %922 = vmatpush.msra.mxu0 %v282
  %923 = vmatpush.msra.mxu0 %v281
  %924 = vmatmul.f32.gmra.mxu0 %v343
  %v925 = vpop.f32.mrf.mxu0
  %v926 = vadd.f32 0.0, %v925
  %927 = vmatmul.f32.gmra.mxu0 %v346
  %v928 = vpop.f32.mrf.mxu0
  %v929 = vadd.f32 0.0, %v928
  %930 = vmatmul.f32.gmra.mxu0 %v349
  %v931 = vpop.f32.mrf.mxu0
  %v932 = vadd.f32 0.0, %v931
  %933 = vmatmul.f32.gmra.mxu0 %v352
  %v934 = vpop.f32.mrf.mxu0
  %v935 = vadd.f32 0.0, %v934
  %936 = vmatmul.f32.gmra.mxu0 %v355
  %v937 = vpop.f32.mrf.mxu0
  %v938 = vadd.f32 0.0, %v937
  %939 = vmatmul.f32.gmra.mxu0 %v358
  %v940 = vpop.f32.mrf.mxu0
  %v941 = vadd.f32 0.0, %v940
  %942 = vmatmul.f32.gmra.mxu0 %v361
  %v943 = vpop.f32.mrf.mxu0
  %v944 = vadd.f32 0.0, %v943
  %945 = vmatmul.f32.gmra.mxu0 %v364
  %v946 = vpop.f32.mrf.mxu0
  %v947 = vadd.f32 0.0, %v946
  %948 = vmatmul.f32.gmra.mxu0 %v367
  %v949 = vpop.f32.mrf.mxu0
  %v950 = vadd.f32 0.0, %v949
  %951 = vmatmul.f32.gmra.mxu0 %v370
  %v952 = vpop.f32.mrf.mxu0
  %v953 = vadd.f32 0.0, %v952
  %954 = vmatmul.f32.gmra.mxu0 %v373
  %v955 = vpop.f32.mrf.mxu0
  %v956 = vadd.f32 0.0, %v955
  %957 = vmatmul.f32.gmra.mxu0 %v376
  %v958 = vpop.f32.mrf.mxu0
  %v959 = vadd.f32 0.0, %v958
  %960 = vdwg.mxu0
  %961 = vmatpush.msra.mxu0 0.0
  %962 = vmatpush.msra.mxu0 0.0
  %963 = vmatpush.msra.mxu0 0.0
  %964 = vmatpush.msra.mxu0 0.0
  %965 = vmatpush.msra.mxu0 0.0
  %966 = vmatpush.msra.mxu0 0.0
  %967 = vmatpush.msra.mxu0 0.0
  %968 = vmatpush.msra.mxu0 0.0
  %969 = vmatpush.msra.mxu0 0.0
  %970 = vmatpush.msra.mxu0 0.0
  %971 = vmatpush.msra.mxu0 0.0
  %972 = vmatpush.msra.mxu0 0.0
  %973 = vmatpush.msra.mxu0 0.0
  %974 = vmatpush.msra.mxu0 %v280
  %975 = vmatpush.msra.mxu0 %v279
  %976 = vmatpush.msra.mxu0 %v278
  %977 = vmatmul.f32.gmra.mxu0 %v343
  %v978 = vpop.f32.mrf.mxu0
  %v979 = vadd.f32 0.0, %v978
  %980 = vmatmul.f32.gmra.mxu0 %v346
  %v981 = vpop.f32.mrf.mxu0
  %v982 = vadd.f32 0.0, %v981
  %983 = vmatmul.f32.gmra.mxu0 %v349
  %v984 = vpop.f32.mrf.mxu0
  %v985 = vadd.f32 0.0, %v984
  %986 = vmatmul.f32.gmra.mxu0 %v352
  %v987 = vpop.f32.mrf.mxu0
  %v988 = vadd.f32 0.0, %v987
  %989 = vmatmul.f32.gmra.mxu0 %v355
  %v990 = vpop.f32.mrf.mxu0
  %v991 = vadd.f32 0.0, %v990
  %992 = vmatmul.f32.gmra.mxu0 %v358
  %v993 = vpop.f32.mrf.mxu0
  %v994 = vadd.f32 0.0, %v993
  %995 = vmatmul.f32.gmra.mxu0 %v361
  %v996 = vpop.f32.mrf.mxu0
  %v997 = vadd.f32 0.0, %v996
  %998 = vmatmul.f32.gmra.mxu0 %v364
  %v999 = vpop.f32.mrf.mxu0
  %v1000 = vadd.f32 0.0, %v999
  %1001 = vmatmul.f32.gmra.mxu0 %v367
  %v1002 = vpop.f32.mrf.mxu0
  %v1003 = vadd.f32 0.0, %v1002
  %1004 = vmatmul.f32.gmra.mxu0 %v370
  %v1005 = vpop.f32.mrf.mxu0
  %v1006 = vadd.f32 0.0, %v1005
  %1007 = vmatmul.f32.gmra.mxu0 %v373
  %v1008 = vpop.f32.mrf.mxu0
  %v1009 = vadd.f32 0.0, %v1008
  %1010 = vmatmul.f32.gmra.mxu0 %v376
  %v1011 = vpop.f32.mrf.mxu0
  %v1012 = vadd.f32 0.0, %v1011
  %1013 = vdwg.mxu0
  %1014 = vmatpush.msra.mxu0 0.0
  %1015 = vmatpush.msra.mxu0 0.0
  %1016 = vmatpush.msra.mxu0 0.0
  %1017 = vmatpush.msra.mxu0 0.0
  %1018 = vmatpush.msra.mxu0 0.0
  %1019 = vmatpush.msra.mxu0 0.0
  %1020 = vmatpush.msra.mxu0 0.0
  %1021 = vmatpush.msra.mxu0 0.0
  %1022 = vmatpush.msra.mxu0 0.0
  %1023 = vmatpush.msra.mxu0 0.0
  %1024 = vmatpush.msra.mxu0 0.0
  %1025 = vmatpush.msra.mxu0 0.0
  %1026 = vmatpush.msra.mxu0 0.0
  %1027 = vmatpush.msra.mxu0 %v277
  %1028 = vmatpush.msra.mxu0 %v276
  %1029 = vmatpush.msra.mxu0 %v275
  %1030 = vmatmul.f32.gmra.mxu0 %v343
  %v1031 = vpop.f32.mrf.mxu0
  %v1032 = vadd.f32 0.0, %v1031
  %1033 = vmatmul.f32.gmra.mxu0 %v346
  %v1034 = vpop.f32.mrf.mxu0
  %v1035 = vadd.f32 0.0, %v1034
  %1036 = vmatmul.f32.gmra.mxu0 %v349
  %v1037 = vpop.f32.mrf.mxu0
  %v1038 = vadd.f32 0.0, %v1037
  %1039 = vmatmul.f32.gmra.mxu0 %v352
  %v1040 = vpop.f32.mrf.mxu0
  %v1041 = vadd.f32 0.0, %v1040
  %1042 = vmatmul.f32.gmra.mxu0 %v355
  %v1043 = vpop.f32.mrf.mxu0
  %v1044 = vadd.f32 0.0, %v1043
  %1045 = vmatmul.f32.gmra.mxu0 %v358
  %v1046 = vpop.f32.mrf.mxu0
  %v1047 = vadd.f32 0.0, %v1046
  %1048 = vmatmul.f32.gmra.mxu0 %v361
  %v1049 = vpop.f32.mrf.mxu0
  %v1050 = vadd.f32 0.0, %v1049
  %1051 = vmatmul.f32.gmra.mxu0 %v364
  %v1052 = vpop.f32.mrf.mxu0
  %v1053 = vadd.f32 0.0, %v1052
  %1054 = vmatmul.f32.gmra.mxu0 %v367
  %v1055 = vpop.f32.mrf.mxu0
  %v1056 = vadd.f32 0.0, %v1055
  %1057 = vmatmul.f32.gmra.mxu0 %v370
  %v1058 = vpop.f32.mrf.mxu0
  %v1059 = vadd.f32 0.0, %v1058
  %1060 = vmatmul.f32.gmra.mxu0 %v373
  %v1061 = vpop.f32.mrf.mxu0
  %v1062 = vadd.f32 0.0, %v1061
  %1063 = vmatmul.f32.gmra.mxu0 %v376
  %v1064 = vpop.f32.mrf.mxu0
  %v1065 = vadd.f32 0.0, %v1064
  %1066 = vdwg.mxu0
  %1067 = vmatpush.msra.mxu0 0.0
  %1068 = vmatpush.msra.mxu0 0.0
  %1069 = vmatpush.msra.mxu0 0.0
  %1070 = vmatpush.msra.mxu0 0.0
  %1071 = vmatpush.msra.mxu0 0.0
  %1072 = vmatpush.msra.mxu0 0.0
  %1073 = vmatpush.msra.mxu0 0.0
  %1074 = vmatpush.msra.mxu0 0.0
  %1075 = vmatpush.msra.mxu0 0.0
  %1076 = vmatpush.msra.mxu0 0.0
  %1077 = vmatpush.msra.mxu0 0.0
  %1078 = vmatpush.msra.mxu0 0.0
  %1079 = vmatpush.msra.mxu0 0.0
  %1080 = vmatpush.msra.mxu0 %v274
  %1081 = vmatpush.msra.mxu0 %v273
  %1082 = vmatpush.msra.mxu0 %v272
  %1083 = vmatmul.f32.gmra.mxu0 %v343
  %v1084 = vpop.f32.mrf.mxu0
  %v1085 = vadd.f32 0.0, %v1084
  %1086 = vmatmul.f32.gmra.mxu0 %v346
  %v1087 = vpop.f32.mrf.mxu0
  %v1088 = vadd.f32 0.0, %v1087
  %1089 = vmatmul.f32.gmra.mxu0 %v349
  %v1090 = vpop.f32.mrf.mxu0
  %v1091 = vadd.f32 0.0, %v1090
  %1092 = vmatmul.f32.gmra.mxu0 %v352
  %v1093 = vpop.f32.mrf.mxu0
  %v1094 = vadd.f32 0.0, %v1093
  %1095 = vmatmul.f32.gmra.mxu0 %v355
  %v1096 = vpop.f32.mrf.mxu0
  %v1097 = vadd.f32 0.0, %v1096
  %1098 = vmatmul.f32.gmra.mxu0 %v358
  %v1099 = vpop.f32.mrf.mxu0
  %v1100 = vadd.f32 0.0, %v1099
  %1101 = vmatmul.f32.gmra.mxu0 %v361
  %v1102 = vpop.f32.mrf.mxu0
  %v1103 = vadd.f32 0.0, %v1102
  %1104 = vmatmul.f32.gmra.mxu0 %v364
  %v1105 = vpop.f32.mrf.mxu0
  %v1106 = vadd.f32 0.0, %v1105
  %1107 = vmatmul.f32.gmra.mxu0 %v367
  %v1108 = vpop.f32.mrf.mxu0
  %v1109 = vadd.f32 0.0, %v1108
  %1110 = vmatmul.f32.gmra.mxu0 %v370
  %v1111 = vpop.f32.mrf.mxu0
  %v1112 = vadd.f32 0.0, %v1111
  %1113 = vmatmul.f32.gmra.mxu0 %v373
  %v1114 = vpop.f32.mrf.mxu0
  %v1115 = vadd.f32 0.0, %v1114
  %1116 = vmatmul.f32.gmra.mxu0 %v376
  %v1117 = vpop.f32.mrf.mxu0
  %v1118 = vadd.f32 0.0, %v1117
  %1119 = vdwg.mxu0
  %1120 = vmatpush.msra.mxu0 0.0
  %1121 = vmatpush.msra.mxu0 0.0
  %1122 = vmatpush.msra.mxu0 0.0
  %1123 = vmatpush.msra.mxu0 0.0
  %1124 = vmatpush.msra.mxu0 0.0
  %1125 = vmatpush.msra.mxu0 0.0
  %1126 = vmatpush.msra.mxu0 0.0
  %1127 = vmatpush.msra.mxu0 0.0
  %1128 = vmatpush.msra.mxu0 0.0
  %1129 = vmatpush.msra.mxu0 0.0
  %1130 = vmatpush.msra.mxu0 0.0
  %1131 = vmatpush.msra.mxu0 0.0
  %1132 = vmatpush.msra.mxu0 0.0
  %1133 = vmatpush.msra.mxu0 %v271
  %1134 = vmatpush.msra.mxu0 %v270
  %1135 = vmatpush.msra.mxu0 %v269
  %1136 = vmatmul.f32.gmra.mxu0 %v343
  %v1137 = vpop.f32.mrf.mxu0
  %v1138 = vadd.f32 0.0, %v1137
  %1139 = vmatmul.f32.gmra.mxu0 %v346
  %v1140 = vpop.f32.mrf.mxu0
  %v1141 = vadd.f32 0.0, %v1140
  %1142 = vmatmul.f32.gmra.mxu0 %v349
  %v1143 = vpop.f32.mrf.mxu0
  %v1144 = vadd.f32 0.0, %v1143
  %1145 = vmatmul.f32.gmra.mxu0 %v352
  %v1146 = vpop.f32.mrf.mxu0
  %v1147 = vadd.f32 0.0, %v1146
  %1148 = vmatmul.f32.gmra.mxu0 %v355
  %v1149 = vpop.f32.mrf.mxu0
  %v1150 = vadd.f32 0.0, %v1149
  %1151 = vmatmul.f32.gmra.mxu0 %v358
  %v1152 = vpop.f32.mrf.mxu0
  %v1153 = vadd.f32 0.0, %v1152
  %1154 = vmatmul.f32.gmra.mxu0 %v361
  %v1155 = vpop.f32.mrf.mxu0
  %v1156 = vadd.f32 0.0, %v1155
  %1157 = vmatmul.f32.gmra.mxu0 %v364
  %v1158 = vpop.f32.mrf.mxu0
  %v1159 = vadd.f32 0.0, %v1158
  %1160 = vmatmul.f32.gmra.mxu0 %v367
  %v1161 = vpop.f32.mrf.mxu0
  %v1162 = vadd.f32 0.0, %v1161
  %1163 = vmatmul.f32.gmra.mxu0 %v370
  %v1164 = vpop.f32.mrf.mxu0
  %v1165 = vadd.f32 0.0, %v1164
  %1166 = vmatmul.f32.gmra.mxu0 %v373
  %v1167 = vpop.f32.mrf.mxu0
  %v1168 = vadd.f32 0.0, %v1167
  %1169 = vmatmul.f32.gmra.mxu0 %v376
  %v1170 = vpop.f32.mrf.mxu0
  %v1171 = vadd.f32 0.0, %v1170
  %1172 = vdwg.mxu0
  %1173 = vmatpush.msra.mxu0 0.0
  %1174 = vmatpush.msra.mxu0 0.0
  %1175 = vmatpush.msra.mxu0 0.0
  %1176 = vmatpush.msra.mxu0 0.0
  %1177 = vmatpush.msra.mxu0 0.0
  %1178 = vmatpush.msra.mxu0 0.0
  %1179 = vmatpush.msra.mxu0 0.0
  %1180 = vmatpush.msra.mxu0 0.0
  %1181 = vmatpush.msra.mxu0 0.0
  %1182 = vmatpush.msra.mxu0 0.0
  %1183 = vmatpush.msra.mxu0 0.0
  %1184 = vmatpush.msra.mxu0 0.0
  %1185 = vmatpush.msra.mxu0 0.0
  %1186 = vmatpush.msra.mxu0 %v268
  %1187 = vmatpush.msra.mxu0 %v267
  %1188 = vmatpush.msra.mxu0 %v266
  %1189 = vmatmul.f32.gmra.mxu0 %v343
  %v1190 = vpop.f32.mrf.mxu0
  %v1191 = vadd.f32 0.0, %v1190
  %1192 = vmatmul.f32.gmra.mxu0 %v346
  %v1193 = vpop.f32.mrf.mxu0
  %v1194 = vadd.f32 0.0, %v1193
  %1195 = vmatmul.f32.gmra.mxu0 %v349
  %v1196 = vpop.f32.mrf.mxu0
  %v1197 = vadd.f32 0.0, %v1196
  %1198 = vmatmul.f32.gmra.mxu0 %v352
  %v1199 = vpop.f32.mrf.mxu0
  %v1200 = vadd.f32 0.0, %v1199
  %1201 = vmatmul.f32.gmra.mxu0 %v355
  %v1202 = vpop.f32.mrf.mxu0
  %v1203 = vadd.f32 0.0, %v1202
  %1204 = vmatmul.f32.gmra.mxu0 %v358
  %v1205 = vpop.f32.mrf.mxu0
  %v1206 = vadd.f32 0.0, %v1205
  %1207 = vmatmul.f32.gmra.mxu0 %v361
  %v1208 = vpop.f32.mrf.mxu0
  %v1209 = vadd.f32 0.0, %v1208
  %1210 = vmatmul.f32.gmra.mxu0 %v364
  %v1211 = vpop.f32.mrf.mxu0
  %v1212 = vadd.f32 0.0, %v1211
  %1213 = vmatmul.f32.gmra.mxu0 %v367
  %v1214 = vpop.f32.mrf.mxu0
  %v1215 = vadd.f32 0.0, %v1214
  %1216 = vmatmul.f32.gmra.mxu0 %v370
  %v1217 = vpop.f32.mrf.mxu0
  %v1218 = vadd.f32 0.0, %v1217
  %1219 = vmatmul.f32.gmra.mxu0 %v373
  %v1220 = vpop.f32.mrf.mxu0
  %v1221 = vadd.f32 0.0, %v1220
  %1222 = vmatmul.f32.gmra.mxu0 %v376
  %v1223 = vpop.f32.mrf.mxu0
  %v1224 = vadd.f32 0.0, %v1223
  %1225 = vdwg.mxu0
  %1226 = vmatpush.msra.mxu0 0.0
  %1227 = vmatpush.msra.mxu0 0.0
  %1228 = vmatpush.msra.mxu0 0.0
  %1229 = vmatpush.msra.mxu0 0.0
  %1230 = vmatpush.msra.mxu0 0.0
  %1231 = vmatpush.msra.mxu0 0.0
  %1232 = vmatpush.msra.mxu0 0.0
  %1233 = vmatpush.msra.mxu0 0.0
  %1234 = vmatpush.msra.mxu0 0.0
  %1235 = vmatpush.msra.mxu0 0.0
  %1236 = vmatpush.msra.mxu0 0.0
  %1237 = vmatpush.msra.mxu0 0.0
  %1238 = vmatpush.msra.mxu0 0.0
  %1239 = vmatpush.msra.mxu0 %v265
  %1240 = vmatpush.msra.mxu0 %v264
  %1241 = vmatpush.msra.mxu0 %v263
  %1242 = vmatmul.f32.gmra.mxu0 %v343
  %v1243 = vpop.f32.mrf.mxu0
  %v1244 = vadd.f32 0.0, %v1243
  %1245 = vmatmul.f32.gmra.mxu0 %v346
  %v1246 = vpop.f32.mrf.mxu0
  %v1247 = vadd.f32 0.0, %v1246
  %1248 = vmatmul.f32.gmra.mxu0 %v349
  %v1249 = vpop.f32.mrf.mxu0
  %v1250 = vadd.f32 0.0, %v1249
  %1251 = vmatmul.f32.gmra.mxu0 %v352
  %v1252 = vpop.f32.mrf.mxu0
  %v1253 = vadd.f32 0.0, %v1252
  %1254 = vmatmul.f32.gmra.mxu0 %v355
  %v1255 = vpop.f32.mrf.mxu0
  %v1256 = vadd.f32 0.0, %v1255
  %1257 = vmatmul.f32.gmra.mxu0 %v358
  %v1258 = vpop.f32.mrf.mxu0
  %v1259 = vadd.f32 0.0, %v1258
  %1260 = vmatmul.f32.gmra.mxu0 %v361
  %v1261 = vpop.f32.mrf.mxu0
  %v1262 = vadd.f32 0.0, %v1261
  %1263 = vmatmul.f32.gmra.mxu0 %v364
  %v1264 = vpop.f32.mrf.mxu0
  %v1265 = vadd.f32 0.0, %v1264
  %1266 = vmatmul.f32.gmra.mxu0 %v367
  %v1267 = vpop.f32.mrf.mxu0
  %v1268 = vadd.f32 0.0, %v1267
  %1269 = vmatmul.f32.gmra.mxu0 %v370
  %v1270 = vpop.f32.mrf.mxu0
  %v1271 = vadd.f32 0.0, %v1270
  %1272 = vmatmul.f32.gmra.mxu0 %v373
  %v1273 = vpop.f32.mrf.mxu0
  %v1274 = vadd.f32 0.0, %v1273
  %1275 = vmatmul.f32.gmra.mxu0 %v376
  %v1276 = vpop.f32.mrf.mxu0
  %v1277 = vadd.f32 0.0, %v1276
  %1278 = vdwg.mxu0
  %1279 = vmatpush.msra.mxu0 0.0
  %1280 = vmatpush.msra.mxu0 0.0
  %1281 = vmatpush.msra.mxu0 0.0
  %1282 = vmatpush.msra.mxu0 0.0
  %1283 = vmatpush.msra.mxu0 0.0
  %1284 = vmatpush.msra.mxu0 0.0
  %1285 = vmatpush.msra.mxu0 0.0
  %1286 = vmatpush.msra.mxu0 0.0
  %1287 = vmatpush.msra.mxu0 0.0
  %1288 = vmatpush.msra.mxu0 0.0
  %1289 = vmatpush.msra.mxu0 0.0
  %1290 = vmatpush.msra.mxu0 0.0
  %1291 = vmatpush.msra.mxu0 0.0
  %1292 = vmatpush.msra.mxu0 %v262
  %1293 = vmatpush.msra.mxu0 %v261
  %1294 = vmatpush.msra.mxu0 %v260
  %1295 = vmatmul.f32.gmra.mxu0 %v343
  %v1296 = vpop.f32.mrf.mxu0
  %v1297 = vadd.f32 0.0, %v1296
  %1298 = vmatmul.f32.gmra.mxu0 %v346
  %v1299 = vpop.f32.mrf.mxu0
  %v1300 = vadd.f32 0.0, %v1299
  %1301 = vmatmul.f32.gmra.mxu0 %v349
  %v1302 = vpop.f32.mrf.mxu0
  %v1303 = vadd.f32 0.0, %v1302
  %1304 = vmatmul.f32.gmra.mxu0 %v352
  %v1305 = vpop.f32.mrf.mxu0
  %v1306 = vadd.f32 0.0, %v1305
  %1307 = vmatmul.f32.gmra.mxu0 %v355
  %v1308 = vpop.f32.mrf.mxu0
  %v1309 = vadd.f32 0.0, %v1308
  %1310 = vmatmul.f32.gmra.mxu0 %v358
  %v1311 = vpop.f32.mrf.mxu0
  %v1312 = vadd.f32 0.0, %v1311
  %1313 = vmatmul.f32.gmra.mxu0 %v361
  %v1314 = vpop.f32.mrf.mxu0
  %v1315 = vadd.f32 0.0, %v1314
  %1316 = vmatmul.f32.gmra.mxu0 %v364
  %v1317 = vpop.f32.mrf.mxu0
  %v1318 = vadd.f32 0.0, %v1317
  %1319 = vmatmul.f32.gmra.mxu0 %v367
  %v1320 = vpop.f32.mrf.mxu0
  %v1321 = vadd.f32 0.0, %v1320
  %1322 = vmatmul.f32.gmra.mxu0 %v370
  %v1323 = vpop.f32.mrf.mxu0
  %v1324 = vadd.f32 0.0, %v1323
  %1325 = vmatmul.f32.gmra.mxu0 %v373
  %v1326 = vpop.f32.mrf.mxu0
  %v1327 = vadd.f32 0.0, %v1326
  %1328 = vmatmul.f32.gmra.mxu0 %v376
  %v1329 = vpop.f32.mrf.mxu0
  %v1330 = vadd.f32 0.0, %v1329
  %1331 = vdwg.mxu0
  %1332 = vmatpush.msra.mxu0 0.0
  %1333 = vmatpush.msra.mxu0 0.0
  %1334 = vmatpush.msra.mxu0 0.0
  %1335 = vmatpush.msra.mxu0 0.0
  %1336 = vmatpush.msra.mxu0 0.0
  %1337 = vmatpush.msra.mxu0 0.0
  %1338 = vmatpush.msra.mxu0 0.0
  %1339 = vmatpush.msra.mxu0 0.0
  %1340 = vmatpush.msra.mxu0 0.0
  %1341 = vmatpush.msra.mxu0 0.0
  %1342 = vmatpush.msra.mxu0 0.0
  %1343 = vmatpush.msra.mxu0 0.0
  %1344 = vmatpush.msra.mxu0 0.0
  %1345 = vmatpush.msra.mxu0 %v259
  %1346 = vmatpush.msra.mxu0 %v258
  %1347 = vmatpush.msra.mxu0 %v257
  %1348 = vmatmul.f32.gmra.mxu0 %v343
  %v1349 = vpop.f32.mrf.mxu0
  %v1350 = vadd.f32 0.0, %v1349
  %1351 = vmatmul.f32.gmra.mxu0 %v346
  %v1352 = vpop.f32.mrf.mxu0
  %v1353 = vadd.f32 0.0, %v1352
  %1354 = vmatmul.f32.gmra.mxu0 %v349
  %v1355 = vpop.f32.mrf.mxu0
  %v1356 = vadd.f32 0.0, %v1355
  %1357 = vmatmul.f32.gmra.mxu0 %v352
  %v1358 = vpop.f32.mrf.mxu0
  %v1359 = vadd.f32 0.0, %v1358
  %1360 = vmatmul.f32.gmra.mxu0 %v355
  %v1361 = vpop.f32.mrf.mxu0
  %v1362 = vadd.f32 0.0, %v1361
  %1363 = vmatmul.f32.gmra.mxu0 %v358
  %v1364 = vpop.f32.mrf.mxu0
  %v1365 = vadd.f32 0.0, %v1364
  %1366 = vmatmul.f32.gmra.mxu0 %v361
  %v1367 = vpop.f32.mrf.mxu0
  %v1368 = vadd.f32 0.0, %v1367
  %1369 = vmatmul.f32.gmra.mxu0 %v364
  %v1370 = vpop.f32.mrf.mxu0
  %v1371 = vadd.f32 0.0, %v1370
  %1372 = vmatmul.f32.gmra.mxu0 %v367
  %v1373 = vpop.f32.mrf.mxu0
  %v1374 = vadd.f32 0.0, %v1373
  %1375 = vmatmul.f32.gmra.mxu0 %v370
  %v1376 = vpop.f32.mrf.mxu0
  %v1377 = vadd.f32 0.0, %v1376
  %1378 = vmatmul.f32.gmra.mxu0 %v373
  %v1379 = vpop.f32.mrf.mxu0
  %v1380 = vadd.f32 0.0, %v1379
  %1381 = vmatmul.f32.gmra.mxu0 %v376
  %v1382 = vpop.f32.mrf.mxu0
  %v1383 = vadd.f32 0.0, %v1382
  %1384 = vdwg.mxu0
  %1385 = vmatpush.msra.mxu0 0.0
  %1386 = vmatpush.msra.mxu0 0.0
  %1387 = vmatpush.msra.mxu0 0.0
  %1388 = vmatpush.msra.mxu0 0.0
  %1389 = vmatpush.msra.mxu0 0.0
  %1390 = vmatpush.msra.mxu0 0.0
  %1391 = vmatpush.msra.mxu0 0.0
  %1392 = vmatpush.msra.mxu0 0.0
  %1393 = vmatpush.msra.mxu0 0.0
  %1394 = vmatpush.msra.mxu0 0.0
  %1395 = vmatpush.msra.mxu0 0.0
  %1396 = vmatpush.msra.mxu0 0.0
  %1397 = vmatpush.msra.mxu0 0.0
  %1398 = vmatpush.msra.mxu0 %v256
  %1399 = vmatpush.msra.mxu0 %v255
  %1400 = vmatpush.msra.mxu0 %v254
  %1401 = vmatmul.f32.gmra.mxu0 %v343
  %v1402 = vpop.f32.mrf.mxu0
  %v1403 = vadd.f32 0.0, %v1402
  %1404 = vmatmul.f32.gmra.mxu0 %v346
  %v1405 = vpop.f32.mrf.mxu0
  %v1406 = vadd.f32 0.0, %v1405
  %1407 = vmatmul.f32.gmra.mxu0 %v349
  %v1408 = vpop.f32.mrf.mxu0
  %v1409 = vadd.f32 0.0, %v1408
  %1410 = vmatmul.f32.gmra.mxu0 %v352
  %v1411 = vpop.f32.mrf.mxu0
  %v1412 = vadd.f32 0.0, %v1411
  %1413 = vmatmul.f32.gmra.mxu0 %v355
  %v1414 = vpop.f32.mrf.mxu0
  %v1415 = vadd.f32 0.0, %v1414
  %1416 = vmatmul.f32.gmra.mxu0 %v358
  %v1417 = vpop.f32.mrf.mxu0
  %v1418 = vadd.f32 0.0, %v1417
  %1419 = vmatmul.f32.gmra.mxu0 %v361
  %v1420 = vpop.f32.mrf.mxu0
  %v1421 = vadd.f32 0.0, %v1420
  %1422 = vmatmul.f32.gmra.mxu0 %v364
  %v1423 = vpop.f32.mrf.mxu0
  %v1424 = vadd.f32 0.0, %v1423
  %1425 = vmatmul.f32.gmra.mxu0 %v367
  %v1426 = vpop.f32.mrf.mxu0
  %v1427 = vadd.f32 0.0, %v1426
  %1428 = vmatmul.f32.gmra.mxu0 %v370
  %v1429 = vpop.f32.mrf.mxu0
  %v1430 = vadd.f32 0.0, %v1429
  %1431 = vmatmul.f32.gmra.mxu0 %v373
  %v1432 = vpop.f32.mrf.mxu0
  %v1433 = vadd.f32 0.0, %v1432
  %1434 = vmatmul.f32.gmra.mxu0 %v376
  %v1435 = vpop.f32.mrf.mxu0
  %v1436 = vadd.f32 0.0, %v1435
  %1437 = vdwg.mxu0
  %1438 = vmatpush.msra.mxu0 0.0
  %1439 = vmatpush.msra.mxu0 0.0
  %1440 = vmatpush.msra.mxu0 0.0
  %1441 = vmatpush.msra.mxu0 0.0
  %1442 = vmatpush.msra.mxu0 0.0
  %1443 = vmatpush.msra.mxu0 0.0
  %1444 = vmatpush.msra.mxu0 0.0
  %1445 = vmatpush.msra.mxu0 0.0
  %1446 = vmatpush.msra.mxu0 0.0
  %1447 = vmatpush.msra.mxu0 0.0
  %1448 = vmatpush.msra.mxu0 0.0
  %1449 = vmatpush.msra.mxu0 0.0
  %1450 = vmatpush.msra.mxu0 0.0
  %1451 = vmatpush.msra.mxu0 %v253
  %1452 = vmatpush.msra.mxu0 %v252
  %1453 = vmatpush.msra.mxu0 %v251
  %1454 = vmatmul.f32.gmra.mxu0 %v343
  %v1455 = vpop.f32.mrf.mxu0
  %v1456 = vadd.f32 0.0, %v1455
  %1457 = vmatmul.f32.gmra.mxu0 %v346
  %v1458 = vpop.f32.mrf.mxu0
  %v1459 = vadd.f32 0.0, %v1458
  %1460 = vmatmul.f32.gmra.mxu0 %v349
  %v1461 = vpop.f32.mrf.mxu0
  %v1462 = vadd.f32 0.0, %v1461
  %1463 = vmatmul.f32.gmra.mxu0 %v352
  %v1464 = vpop.f32.mrf.mxu0
  %v1465 = vadd.f32 0.0, %v1464
  %1466 = vmatmul.f32.gmra.mxu0 %v355
  %v1467 = vpop.f32.mrf.mxu0
  %v1468 = vadd.f32 0.0, %v1467
  %1469 = vmatmul.f32.gmra.mxu0 %v358
  %v1470 = vpop.f32.mrf.mxu0
  %v1471 = vadd.f32 0.0, %v1470
  %1472 = vmatmul.f32.gmra.mxu0 %v361
  %v1473 = vpop.f32.mrf.mxu0
  %v1474 = vadd.f32 0.0, %v1473
  %1475 = vmatmul.f32.gmra.mxu0 %v364
  %v1476 = vpop.f32.mrf.mxu0
  %v1477 = vadd.f32 0.0, %v1476
  %1478 = vmatmul.f32.gmra.mxu0 %v367
  %v1479 = vpop.f32.mrf.mxu0
  %v1480 = vadd.f32 0.0, %v1479
  %1481 = vmatmul.f32.gmra.mxu0 %v370
  %v1482 = vpop.f32.mrf.mxu0
  %v1483 = vadd.f32 0.0, %v1482
  %1484 = vmatmul.f32.gmra.mxu0 %v373
  %v1485 = vpop.f32.mrf.mxu0
  %v1486 = vadd.f32 0.0, %v1485
  %1487 = vmatmul.f32.gmra.mxu0 %v376
  %v1488 = vpop.f32.mrf.mxu0
  %v1489 = vadd.f32 0.0, %v1488
  %1490 = vdwg.mxu0
  %1491 = vmatpush.msra.mxu0 0.0
  %1492 = vmatpush.msra.mxu0 0.0
  %1493 = vmatpush.msra.mxu0 0.0
  %1494 = vmatpush.msra.mxu0 0.0
  %1495 = vmatpush.msra.mxu0 0.0
  %1496 = vmatpush.msra.mxu0 0.0
  %1497 = vmatpush.msra.mxu0 0.0
  %1498 = vmatpush.msra.mxu0 0.0
  %1499 = vmatpush.msra.mxu0 0.0
  %1500 = vmatpush.msra.mxu0 0.0
  %1501 = vmatpush.msra.mxu0 0.0
  %1502 = vmatpush.msra.mxu0 0.0
  %1503 = vmatpush.msra.mxu0 0.0
  %1504 = vmatpush.msra.mxu0 %v250
  %1505 = vmatpush.msra.mxu0 %v249
  %1506 = vmatpush.msra.mxu0 %v248
  %1507 = vmatmul.f32.gmra.mxu0 %v343
  %v1508 = vpop.f32.mrf.mxu0
  %v1509 = vadd.f32 0.0, %v1508
  %1510 = vmatmul.f32.gmra.mxu0 %v346
  %v1511 = vpop.f32.mrf.mxu0
  %v1512 = vadd.f32 0.0, %v1511
  %1513 = vmatmul.f32.gmra.mxu0 %v349
  %v1514 = vpop.f32.mrf.mxu0
  %v1515 = vadd.f32 0.0, %v1514
  %1516 = vmatmul.f32.gmra.mxu0 %v352
  %v1517 = vpop.f32.mrf.mxu0
  %v1518 = vadd.f32 0.0, %v1517
  %1519 = vmatmul.f32.gmra.mxu0 %v355
  %v1520 = vpop.f32.mrf.mxu0
  %v1521 = vadd.f32 0.0, %v1520
  %1522 = vmatmul.f32.gmra.mxu0 %v358
  %v1523 = vpop.f32.mrf.mxu0
  %v1524 = vadd.f32 0.0, %v1523
  %1525 = vmatmul.f32.gmra.mxu0 %v361
  %v1526 = vpop.f32.mrf.mxu0
  %v1527 = vadd.f32 0.0, %v1526
  %1528 = vmatmul.f32.gmra.mxu0 %v364
  %v1529 = vpop.f32.mrf.mxu0
  %v1530 = vadd.f32 0.0, %v1529
  %1531 = vmatmul.f32.gmra.mxu0 %v367
  %v1532 = vpop.f32.mrf.mxu0
  %v1533 = vadd.f32 0.0, %v1532
  %1534 = vmatmul.f32.gmra.mxu0 %v370
  %v1535 = vpop.f32.mrf.mxu0
  %v1536 = vadd.f32 0.0, %v1535
  %1537 = vmatmul.f32.gmra.mxu0 %v373
  %v1538 = vpop.f32.mrf.mxu0
  %v1539 = vadd.f32 0.0, %v1538
  %1540 = vmatmul.f32.gmra.mxu0 %v376
  %v1541 = vpop.f32.mrf.mxu0
  %v1542 = vadd.f32 0.0, %v1541
  %1543 = vdwg.mxu0
  %1544 = vmatpush.msra.mxu0 0.0
  %1545 = vmatpush.msra.mxu0 0.0
  %1546 = vmatpush.msra.mxu0 0.0
  %1547 = vmatpush.msra.mxu0 0.0
  %1548 = vmatpush.msra.mxu0 0.0
  %1549 = vmatpush.msra.mxu0 0.0
  %1550 = vmatpush.msra.mxu0 0.0
  %1551 = vmatpush.msra.mxu0 0.0
  %1552 = vmatpush.msra.mxu0 0.0
  %1553 = vmatpush.msra.mxu0 0.0
  %1554 = vmatpush.msra.mxu0 0.0
  %1555 = vmatpush.msra.mxu0 0.0
  %1556 = vmatpush.msra.mxu0 0.0
  %1557 = vmatpush.msra.mxu0 %v247
  %1558 = vmatpush.msra.mxu0 %v246
  %1559 = vmatpush.msra.mxu0 %v245
  %1560 = vmatmul.f32.gmra.mxu0 %v343
  %v1561 = vpop.f32.mrf.mxu0
  %v1562 = vadd.f32 0.0, %v1561
  %1563 = vmatmul.f32.gmra.mxu0 %v346
  %v1564 = vpop.f32.mrf.mxu0
  %v1565 = vadd.f32 0.0, %v1564
  %1566 = vmatmul.f32.gmra.mxu0 %v349
  %v1567 = vpop.f32.mrf.mxu0
  %v1568 = vadd.f32 0.0, %v1567
  %1569 = vmatmul.f32.gmra.mxu0 %v352
  %v1570 = vpop.f32.mrf.mxu0
  %v1571 = vadd.f32 0.0, %v1570
  %1572 = vmatmul.f32.gmra.mxu0 %v355
  %v1573 = vpop.f32.mrf.mxu0
  %v1574 = vadd.f32 0.0, %v1573
  %1575 = vmatmul.f32.gmra.mxu0 %v358
  %v1576 = vpop.f32.mrf.mxu0
  %v1577 = vadd.f32 0.0, %v1576
  %1578 = vmatmul.f32.gmra.mxu0 %v361
  %v1579 = vpop.f32.mrf.mxu0
  %v1580 = vadd.f32 0.0, %v1579
  %1581 = vmatmul.f32.gmra.mxu0 %v364
  %v1582 = vpop.f32.mrf.mxu0
  %v1583 = vadd.f32 0.0, %v1582
  %1584 = vmatmul.f32.gmra.mxu0 %v367
  %v1585 = vpop.f32.mrf.mxu0
  %v1586 = vadd.f32 0.0, %v1585
  %1587 = vmatmul.f32.gmra.mxu0 %v370
  %v1588 = vpop.f32.mrf.mxu0
  %v1589 = vadd.f32 0.0, %v1588
  %1590 = vmatmul.f32.gmra.mxu0 %v373
  %v1591 = vpop.f32.mrf.mxu0
  %v1592 = vadd.f32 0.0, %v1591
  %1593 = vmatmul.f32.gmra.mxu0 %v376
  %v1594 = vpop.f32.mrf.mxu0
  %v1595 = vadd.f32 0.0, %v1594
  %1596 = vdwg.mxu0
  %1597 = vmatpush.msra.mxu0 0.0
  %1598 = vmatpush.msra.mxu0 0.0
  %1599 = vmatpush.msra.mxu0 0.0
  %1600 = vmatpush.msra.mxu0 0.0
  %1601 = vmatpush.msra.mxu0 0.0
  %1602 = vmatpush.msra.mxu0 0.0
  %1603 = vmatpush.msra.mxu0 0.0
  %1604 = vmatpush.msra.mxu0 0.0
  %1605 = vmatpush.msra.mxu0 0.0
  %1606 = vmatpush.msra.mxu0 0.0
  %1607 = vmatpush.msra.mxu0 0.0
  %1608 = vmatpush.msra.mxu0 0.0
  %1609 = vmatpush.msra.mxu0 0.0
  %1610 = vmatpush.msra.mxu0 %v244
  %1611 = vmatpush.msra.mxu0 %v243
  %1612 = vmatpush.msra.mxu0 %v242
  %1613 = vmatmul.f32.gmra.mxu0 %v343
  %v1614 = vpop.f32.mrf.mxu0
  %v1615 = vadd.f32 0.0, %v1614
  %1616 = vmatmul.f32.gmra.mxu0 %v346
  %v1617 = vpop.f32.mrf.mxu0
  %v1618 = vadd.f32 0.0, %v1617
  %1619 = vmatmul.f32.gmra.mxu0 %v349
  %v1620 = vpop.f32.mrf.mxu0
  %v1621 = vadd.f32 0.0, %v1620
  %1622 = vmatmul.f32.gmra.mxu0 %v352
  %v1623 = vpop.f32.mrf.mxu0
  %v1624 = vadd.f32 0.0, %v1623
  %1625 = vmatmul.f32.gmra.mxu0 %v355
  %v1626 = vpop.f32.mrf.mxu0
  %v1627 = vadd.f32 0.0, %v1626
  %1628 = vmatmul.f32.gmra.mxu0 %v358
  %v1629 = vpop.f32.mrf.mxu0
  %v1630 = vadd.f32 0.0, %v1629
  %1631 = vmatmul.f32.gmra.mxu0 %v361
  %v1632 = vpop.f32.mrf.mxu0
  %v1633 = vadd.f32 0.0, %v1632
  %1634 = vmatmul.f32.gmra.mxu0 %v364
  %v1635 = vpop.f32.mrf.mxu0
  %v1636 = vadd.f32 0.0, %v1635
  %1637 = vmatmul.f32.gmra.mxu0 %v367
  %v1638 = vpop.f32.mrf.mxu0
  %v1639 = vadd.f32 0.0, %v1638
  %1640 = vmatmul.f32.gmra.mxu0 %v370
  %v1641 = vpop.f32.mrf.mxu0
  %v1642 = vadd.f32 0.0, %v1641
  %1643 = vmatmul.f32.gmra.mxu0 %v373
  %v1644 = vpop.f32.mrf.mxu0
  %v1645 = vadd.f32 0.0, %v1644
  %1646 = vmatmul.f32.gmra.mxu0 %v376
  %v1647 = vpop.f32.mrf.mxu0
  %v1648 = vadd.f32 0.0, %v1647
  %1649 = vdwg.mxu0
  %1650 = vmatpush.msra.mxu0 0.0
  %1651 = vmatpush.msra.mxu0 0.0
  %1652 = vmatpush.msra.mxu0 0.0
  %1653 = vmatpush.msra.mxu0 0.0
  %1654 = vmatpush.msra.mxu0 0.0
  %1655 = vmatpush.msra.mxu0 0.0
  %1656 = vmatpush.msra.mxu0 0.0
  %1657 = vmatpush.msra.mxu0 0.0
  %1658 = vmatpush.msra.mxu0 0.0
  %1659 = vmatpush.msra.mxu0 0.0
  %1660 = vmatpush.msra.mxu0 0.0
  %1661 = vmatpush.msra.mxu0 0.0
  %1662 = vmatpush.msra.mxu0 0.0
  %1663 = vmatpush.msra.mxu0 %v316
  %1664 = vmatpush.msra.mxu0 %v315
  %1665 = vmatpush.msra.mxu0 %v314
  %1666 = vmatmul.f32.gmra.mxu0 %v343
  %v1667 = vpop.f32.mrf.mxu0
  %v1668 = vadd.f32 0.0, %v1667
  %1669 = vmatmul.f32.gmra.mxu0 %v346
  %v1670 = vpop.f32.mrf.mxu0
  %v1671 = vadd.f32 0.0, %v1670
  %1672 = vmatmul.f32.gmra.mxu0 %v349
  %v1673 = vpop.f32.mrf.mxu0
  %v1674 = vadd.f32 0.0, %v1673
  %1675 = vmatmul.f32.gmra.mxu0 %v352
  %v1676 = vpop.f32.mrf.mxu0
  %v1677 = vadd.f32 0.0, %v1676
  %1678 = vmatmul.f32.gmra.mxu0 %v355
  %v1679 = vpop.f32.mrf.mxu0
  %v1680 = vadd.f32 0.0, %v1679
  %1681 = vmatmul.f32.gmra.mxu0 %v358
  %v1682 = vpop.f32.mrf.mxu0
  %v1683 = vadd.f32 0.0, %v1682
  %1684 = vmatmul.f32.gmra.mxu0 %v361
  %v1685 = vpop.f32.mrf.mxu0
  %v1686 = vadd.f32 0.0, %v1685
  %1687 = vmatmul.f32.gmra.mxu0 %v364
  %v1688 = vpop.f32.mrf.mxu0
  %v1689 = vadd.f32 0.0, %v1688
  %1690 = vmatmul.f32.gmra.mxu0 %v367
  %v1691 = vpop.f32.mrf.mxu0
  %v1692 = vadd.f32 0.0, %v1691
  %1693 = vmatmul.f32.gmra.mxu0 %v370
  %v1694 = vpop.f32.mrf.mxu0
  %v1695 = vadd.f32 0.0, %v1694
  %1696 = vmatmul.f32.gmra.mxu0 %v373
  %v1697 = vpop.f32.mrf.mxu0
  %v1698 = vadd.f32 0.0, %v1697
  %1699 = vmatmul.f32.gmra.mxu0 %v376
  %v1700 = vpop.f32.mrf.mxu0
  %v1701 = vadd.f32 0.0, %v1700
  %1702 = vdwg.mxu0
  %v1704 = vsel %vm341, %v317, 0
  %v1707 = vsel %vm341, %v318, 0
  %v1710 = vsel %vm341, %v319, 0
  %v1713 = vsel %vm341, %v320, 0
  %v1716 = vsel %vm341, %v321, 0
  %v1719 = vsel %vm341, %v322, 0
  %v1722 = vsel %vm341, %v323, 0
  %v1725 = vsel %vm341, %v324, 0
  %v1728 = vsel %vm341, %v325, 0
  %v1731 = vsel %vm341, %v326, 0
  %v1734 = vsel %vm341, %v327, 0
  %v1737 = vsel %vm341, %v328, 0
  %1739 = vmatpush.msra.mxu0 0.0
  %1740 = vmatpush.msra.mxu0 0.0
  %1741 = vmatpush.msra.mxu0 0.0
  %1742 = vmatpush.msra.mxu0 0.0
  %1743 = vmatpush.msra.mxu0 0.0
  %1744 = vmatpush.msra.mxu0 0.0
  %1745 = vmatpush.msra.mxu0 0.0
  %1746 = vmatpush.msra.mxu0 0.0
  %1747 = vmatpush.msra.mxu0 0.0
  %1748 = vmatpush.msra.mxu0 0.0
  %1749 = vmatpush.msra.mxu0 0.0
  %1750 = vmatpush.msra.mxu0 0.0
  %1751 = vmatpush.msra.mxu0 0.0
  %1752 = vmatpush.msra.mxu0 %v64
  %1753 = vmatpush.msra.mxu0 %v39
  %1754 = vmatpush.msra.mxu0 %v14
  %1755 = vmatmul.f32.gmra.mxu0 %v1704
  %v1756 = vpop.f32.mrf.mxu0
  %v1757 = vadd.f32 %v396, %v1756
  %1758 = vmatmul.f32.gmra.mxu0 %v1707
  %v1759 = vpop.f32.mrf.mxu0
  %v1760 = vadd.f32 %v399, %v1759
  %1761 = vmatmul.f32.gmra.mxu0 %v1710
  %v1762 = vpop.f32.mrf.mxu0
  %v1763 = vadd.f32 %v402, %v1762
  %1764 = vmatmul.f32.gmra.mxu0 %v1713
  %v1765 = vpop.f32.mrf.mxu0
  %v1766 = vadd.f32 %v405, %v1765
  %1767 = vmatmul.f32.gmra.mxu0 %v1716
  %v1768 = vpop.f32.mrf.mxu0
  %v1769 = vadd.f32 %v408, %v1768
  %1770 = vmatmul.f32.gmra.mxu0 %v1719
  %v1771 = vpop.f32.mrf.mxu0
  %v1772 = vadd.f32 %v411, %v1771
  %1773 = vmatmul.f32.gmra.mxu0 %v1722
  %v1774 = vpop.f32.mrf.mxu0
  %v1775 = vadd.f32 %v414, %v1774
  %1776 = vmatmul.f32.gmra.mxu0 %v1725
  %v1777 = vpop.f32.mrf.mxu0
  %v1778 = vadd.f32 %v417, %v1777
  %1779 = vmatmul.f32.gmra.mxu0 %v1728
  %v1780 = vpop.f32.mrf.mxu0
  %v1781 = vadd.f32 %v420, %v1780
  %1782 = vmatmul.f32.gmra.mxu0 %v1731
  %v1783 = vpop.f32.mrf.mxu0
  %v1784 = vadd.f32 %v423, %v1783
  %1785 = vmatmul.f32.gmra.mxu0 %v1734
  %v1786 = vpop.f32.mrf.mxu0
  %v1787 = vadd.f32 %v426, %v1786
  %1788 = vmatmul.f32.gmra.mxu0 %v1737
  %v1789 = vpop.f32.mrf.mxu0
  %v1790 = vadd.f32 %v429, %v1789
  %1791 = vdwg.mxu0
  %1792 = vmatpush.msra.mxu0 0.0
  %1793 = vmatpush.msra.mxu0 0.0
  %1794 = vmatpush.msra.mxu0 0.0
  %1795 = vmatpush.msra.mxu0 0.0
  %1796 = vmatpush.msra.mxu0 0.0
  %1797 = vmatpush.msra.mxu0 0.0
  %1798 = vmatpush.msra.mxu0 0.0
  %1799 = vmatpush.msra.mxu0 0.0
  %1800 = vmatpush.msra.mxu0 0.0
  %1801 = vmatpush.msra.mxu0 0.0
  %1802 = vmatpush.msra.mxu0 0.0
  %1803 = vmatpush.msra.mxu0 0.0
  %1804 = vmatpush.msra.mxu0 0.0
  %1805 = vmatpush.msra.mxu0 %v65
  %1806 = vmatpush.msra.mxu0 %v40
  %1807 = vmatpush.msra.mxu0 %v15
  %1808 = vmatmul.f32.gmra.mxu0 %v1704
  %v1809 = vpop.f32.mrf.mxu0
  %v1810 = vadd.f32 %v449, %v1809
  %1811 = vmatmul.f32.gmra.mxu0 %v1707
  %v1812 = vpop.f32.mrf.mxu0
  %v1813 = vadd.f32 %v452, %v1812
  %1814 = vmatmul.f32.gmra.mxu0 %v1710
  %v1815 = vpop.f32.mrf.mxu0
  %v1816 = vadd.f32 %v455, %v1815
  %1817 = vmatmul.f32.gmra.mxu0 %v1713
  %v1818 = vpop.f32.mrf.mxu0
  %v1819 = vadd.f32 %v458, %v1818
  %1820 = vmatmul.f32.gmra.mxu0 %v1716
  %v1821 = vpop.f32.mrf.mxu0
  %v1822 = vadd.f32 %v461, %v1821
  %1823 = vmatmul.f32.gmra.mxu0 %v1719
  %v1824 = vpop.f32.mrf.mxu0
  %v1825 = vadd.f32 %v464, %v1824
  %1826 = vmatmul.f32.gmra.mxu0 %v1722
  %v1827 = vpop.f32.mrf.mxu0
  %v1828 = vadd.f32 %v467, %v1827
  %1829 = vmatmul.f32.gmra.mxu0 %v1725
  %v1830 = vpop.f32.mrf.mxu0
  %v1831 = vadd.f32 %v470, %v1830
  %1832 = vmatmul.f32.gmra.mxu0 %v1728
  %v1833 = vpop.f32.mrf.mxu0
  %v1834 = vadd.f32 %v473, %v1833
  %1835 = vmatmul.f32.gmra.mxu0 %v1731
  %v1836 = vpop.f32.mrf.mxu0
  %v1837 = vadd.f32 %v476, %v1836
  %1838 = vmatmul.f32.gmra.mxu0 %v1734
  %v1839 = vpop.f32.mrf.mxu0
  %v1840 = vadd.f32 %v479, %v1839
  %1841 = vmatmul.f32.gmra.mxu0 %v1737
  %v1842 = vpop.f32.mrf.mxu0
  %v1843 = vadd.f32 %v482, %v1842
  %1844 = vdwg.mxu0
  %1845 = vmatpush.msra.mxu0 0.0
  %1846 = vmatpush.msra.mxu0 0.0
  %1847 = vmatpush.msra.mxu0 0.0
  %1848 = vmatpush.msra.mxu0 0.0
  %1849 = vmatpush.msra.mxu0 0.0
  %1850 = vmatpush.msra.mxu0 0.0
  %1851 = vmatpush.msra.mxu0 0.0
  %1852 = vmatpush.msra.mxu0 0.0
  %1853 = vmatpush.msra.mxu0 0.0
  %1854 = vmatpush.msra.mxu0 0.0
  %1855 = vmatpush.msra.mxu0 0.0
  %1856 = vmatpush.msra.mxu0 0.0
  %1857 = vmatpush.msra.mxu0 0.0
  %1858 = vmatpush.msra.mxu0 %v66
  %1859 = vmatpush.msra.mxu0 %v41
  %1860 = vmatpush.msra.mxu0 %v16
  %1861 = vmatmul.f32.gmra.mxu0 %v1704
  %v1862 = vpop.f32.mrf.mxu0
  %v1863 = vadd.f32 %v502, %v1862
  %1864 = vmatmul.f32.gmra.mxu0 %v1707
  %v1865 = vpop.f32.mrf.mxu0
  %v1866 = vadd.f32 %v505, %v1865
  %1867 = vmatmul.f32.gmra.mxu0 %v1710
  %v1868 = vpop.f32.mrf.mxu0
  %v1869 = vadd.f32 %v508, %v1868
  %1870 = vmatmul.f32.gmra.mxu0 %v1713
  %v1871 = vpop.f32.mrf.mxu0
  %v1872 = vadd.f32 %v511, %v1871
  %1873 = vmatmul.f32.gmra.mxu0 %v1716
  %v1874 = vpop.f32.mrf.mxu0
  %v1875 = vadd.f32 %v514, %v1874
  %1876 = vmatmul.f32.gmra.mxu0 %v1719
  %v1877 = vpop.f32.mrf.mxu0
  %v1878 = vadd.f32 %v517, %v1877
  %1879 = vmatmul.f32.gmra.mxu0 %v1722
  %v1880 = vpop.f32.mrf.mxu0
  %v1881 = vadd.f32 %v520, %v1880
  %1882 = vmatmul.f32.gmra.mxu0 %v1725
  %v1883 = vpop.f32.mrf.mxu0
  %v1884 = vadd.f32 %v523, %v1883
  %1885 = vmatmul.f32.gmra.mxu0 %v1728
  %v1886 = vpop.f32.mrf.mxu0
  %v1887 = vadd.f32 %v526, %v1886
  %1888 = vmatmul.f32.gmra.mxu0 %v1731
  %v1889 = vpop.f32.mrf.mxu0
  %v1890 = vadd.f32 %v529, %v1889
  %1891 = vmatmul.f32.gmra.mxu0 %v1734
  %v1892 = vpop.f32.mrf.mxu0
  %v1893 = vadd.f32 %v532, %v1892
  %1894 = vmatmul.f32.gmra.mxu0 %v1737
  %v1895 = vpop.f32.mrf.mxu0
  %v1896 = vadd.f32 %v535, %v1895
  %1897 = vdwg.mxu0
  %1898 = vmatpush.msra.mxu0 0.0
  %1899 = vmatpush.msra.mxu0 0.0
  %1900 = vmatpush.msra.mxu0 0.0
  %1901 = vmatpush.msra.mxu0 0.0
  %1902 = vmatpush.msra.mxu0 0.0
  %1903 = vmatpush.msra.mxu0 0.0
  %1904 = vmatpush.msra.mxu0 0.0
  %1905 = vmatpush.msra.mxu0 0.0
  %1906 = vmatpush.msra.mxu0 0.0
  %1907 = vmatpush.msra.mxu0 0.0
  %1908 = vmatpush.msra.mxu0 0.0
  %1909 = vmatpush.msra.mxu0 0.0
  %1910 = vmatpush.msra.mxu0 0.0
  %1911 = vmatpush.msra.mxu0 %v67
  %1912 = vmatpush.msra.mxu0 %v42
  %1913 = vmatpush.msra.mxu0 %v17
  %1914 = vmatmul.f32.gmra.mxu0 %v1704
  %v1915 = vpop.f32.mrf.mxu0
  %v1916 = vadd.f32 %v555, %v1915
  %1917 = vmatmul.f32.gmra.mxu0 %v1707
  %v1918 = vpop.f32.mrf.mxu0
  %v1919 = vadd.f32 %v558, %v1918
  %1920 = vmatmul.f32.gmra.mxu0 %v1710
  %v1921 = vpop.f32.mrf.mxu0
  %v1922 = vadd.f32 %v561, %v1921
  %1923 = vmatmul.f32.gmra.mxu0 %v1713
  %v1924 = vpop.f32.mrf.mxu0
  %v1925 = vadd.f32 %v564, %v1924
  %1926 = vmatmul.f32.gmra.mxu0 %v1716
  %v1927 = vpop.f32.mrf.mxu0
  %v1928 = vadd.f32 %v567, %v1927
  %1929 = vmatmul.f32.gmra.mxu0 %v1719
  %v1930 = vpop.f32.mrf.mxu0
  %v1931 = vadd.f32 %v570, %v1930
  %1932 = vmatmul.f32.gmra.mxu0 %v1722
  %v1933 = vpop.f32.mrf.mxu0
  %v1934 = vadd.f32 %v573, %v1933
  %1935 = vmatmul.f32.gmra.mxu0 %v1725
  %v1936 = vpop.f32.mrf.mxu0
  %v1937 = vadd.f32 %v576, %v1936
  %1938 = vmatmul.f32.gmra.mxu0 %v1728
  %v1939 = vpop.f32.mrf.mxu0
  %v1940 = vadd.f32 %v579, %v1939
  %1941 = vmatmul.f32.gmra.mxu0 %v1731
  %v1942 = vpop.f32.mrf.mxu0
  %v1943 = vadd.f32 %v582, %v1942
  %1944 = vmatmul.f32.gmra.mxu0 %v1734
  %v1945 = vpop.f32.mrf.mxu0
  %v1946 = vadd.f32 %v585, %v1945
  %1947 = vmatmul.f32.gmra.mxu0 %v1737
  %v1948 = vpop.f32.mrf.mxu0
  %v1949 = vadd.f32 %v588, %v1948
  %1950 = vdwg.mxu0
  %1951 = vmatpush.msra.mxu0 0.0
  %1952 = vmatpush.msra.mxu0 0.0
  %1953 = vmatpush.msra.mxu0 0.0
  %1954 = vmatpush.msra.mxu0 0.0
  %1955 = vmatpush.msra.mxu0 0.0
  %1956 = vmatpush.msra.mxu0 0.0
  %1957 = vmatpush.msra.mxu0 0.0
  %1958 = vmatpush.msra.mxu0 0.0
  %1959 = vmatpush.msra.mxu0 0.0
  %1960 = vmatpush.msra.mxu0 0.0
  %1961 = vmatpush.msra.mxu0 0.0
  %1962 = vmatpush.msra.mxu0 0.0
  %1963 = vmatpush.msra.mxu0 0.0
  %1964 = vmatpush.msra.mxu0 %v68
  %1965 = vmatpush.msra.mxu0 %v43
  %1966 = vmatpush.msra.mxu0 %v18
  %1967 = vmatmul.f32.gmra.mxu0 %v1704
  %v1968 = vpop.f32.mrf.mxu0
  %v1969 = vadd.f32 %v608, %v1968
  %1970 = vmatmul.f32.gmra.mxu0 %v1707
  %v1971 = vpop.f32.mrf.mxu0
  %v1972 = vadd.f32 %v611, %v1971
  %1973 = vmatmul.f32.gmra.mxu0 %v1710
  %v1974 = vpop.f32.mrf.mxu0
  %v1975 = vadd.f32 %v614, %v1974
  %1976 = vmatmul.f32.gmra.mxu0 %v1713
  %v1977 = vpop.f32.mrf.mxu0
  %v1978 = vadd.f32 %v617, %v1977
  %1979 = vmatmul.f32.gmra.mxu0 %v1716
  %v1980 = vpop.f32.mrf.mxu0
  %v1981 = vadd.f32 %v620, %v1980
  %1982 = vmatmul.f32.gmra.mxu0 %v1719
  %v1983 = vpop.f32.mrf.mxu0
  %v1984 = vadd.f32 %v623, %v1983
  %1985 = vmatmul.f32.gmra.mxu0 %v1722
  %v1986 = vpop.f32.mrf.mxu0
  %v1987 = vadd.f32 %v626, %v1986
  %1988 = vmatmul.f32.gmra.mxu0 %v1725
  %v1989 = vpop.f32.mrf.mxu0
  %v1990 = vadd.f32 %v629, %v1989
  %1991 = vmatmul.f32.gmra.mxu0 %v1728
  %v1992 = vpop.f32.mrf.mxu0
  %v1993 = vadd.f32 %v632, %v1992
  %1994 = vmatmul.f32.gmra.mxu0 %v1731
  %v1995 = vpop.f32.mrf.mxu0
  %v1996 = vadd.f32 %v635, %v1995
  %1997 = vmatmul.f32.gmra.mxu0 %v1734
  %v1998 = vpop.f32.mrf.mxu0
  %v1999 = vadd.f32 %v638, %v1998
  %2000 = vmatmul.f32.gmra.mxu0 %v1737
  %v2001 = vpop.f32.mrf.mxu0
  %v2002 = vadd.f32 %v641, %v2001
  %2003 = vdwg.mxu0
  %2004 = vmatpush.msra.mxu0 0.0
  %2005 = vmatpush.msra.mxu0 0.0
  %2006 = vmatpush.msra.mxu0 0.0
  %2007 = vmatpush.msra.mxu0 0.0
  %2008 = vmatpush.msra.mxu0 0.0
  %2009 = vmatpush.msra.mxu0 0.0
  %2010 = vmatpush.msra.mxu0 0.0
  %2011 = vmatpush.msra.mxu0 0.0
  %2012 = vmatpush.msra.mxu0 0.0
  %2013 = vmatpush.msra.mxu0 0.0
  %2014 = vmatpush.msra.mxu0 0.0
  %2015 = vmatpush.msra.mxu0 0.0
  %2016 = vmatpush.msra.mxu0 0.0
  %2017 = vmatpush.msra.mxu0 %v69
  %2018 = vmatpush.msra.mxu0 %v44
  %2019 = vmatpush.msra.mxu0 %v19
  %2020 = vmatmul.f32.gmra.mxu0 %v1704
  %v2021 = vpop.f32.mrf.mxu0
  %v2022 = vadd.f32 %v661, %v2021
  %2023 = vmatmul.f32.gmra.mxu0 %v1707
  %v2024 = vpop.f32.mrf.mxu0
  %v2025 = vadd.f32 %v664, %v2024
  %2026 = vmatmul.f32.gmra.mxu0 %v1710
  %v2027 = vpop.f32.mrf.mxu0
  %v2028 = vadd.f32 %v667, %v2027
  %2029 = vmatmul.f32.gmra.mxu0 %v1713
  %v2030 = vpop.f32.mrf.mxu0
  %v2031 = vadd.f32 %v670, %v2030
  %2032 = vmatmul.f32.gmra.mxu0 %v1716
  %v2033 = vpop.f32.mrf.mxu0
  %v2034 = vadd.f32 %v673, %v2033
  %2035 = vmatmul.f32.gmra.mxu0 %v1719
  %v2036 = vpop.f32.mrf.mxu0
  %v2037 = vadd.f32 %v676, %v2036
  %2038 = vmatmul.f32.gmra.mxu0 %v1722
  %v2039 = vpop.f32.mrf.mxu0
  %v2040 = vadd.f32 %v679, %v2039
  %2041 = vmatmul.f32.gmra.mxu0 %v1725
  %v2042 = vpop.f32.mrf.mxu0
  %v2043 = vadd.f32 %v682, %v2042
  %2044 = vmatmul.f32.gmra.mxu0 %v1728
  %v2045 = vpop.f32.mrf.mxu0
  %v2046 = vadd.f32 %v685, %v2045
  %2047 = vmatmul.f32.gmra.mxu0 %v1731
  %v2048 = vpop.f32.mrf.mxu0
  %v2049 = vadd.f32 %v688, %v2048
  %2050 = vmatmul.f32.gmra.mxu0 %v1734
  %v2051 = vpop.f32.mrf.mxu0
  %v2052 = vadd.f32 %v691, %v2051
  %2053 = vmatmul.f32.gmra.mxu0 %v1737
  %v2054 = vpop.f32.mrf.mxu0
  %v2055 = vadd.f32 %v694, %v2054
  %2056 = vdwg.mxu0
  %2057 = vmatpush.msra.mxu0 0.0
  %2058 = vmatpush.msra.mxu0 0.0
  %2059 = vmatpush.msra.mxu0 0.0
  %2060 = vmatpush.msra.mxu0 0.0
  %2061 = vmatpush.msra.mxu0 0.0
  %2062 = vmatpush.msra.mxu0 0.0
  %2063 = vmatpush.msra.mxu0 0.0
  %2064 = vmatpush.msra.mxu0 0.0
  %2065 = vmatpush.msra.mxu0 0.0
  %2066 = vmatpush.msra.mxu0 0.0
  %2067 = vmatpush.msra.mxu0 0.0
  %2068 = vmatpush.msra.mxu0 0.0
  %2069 = vmatpush.msra.mxu0 0.0
  %2070 = vmatpush.msra.mxu0 %v70
  %2071 = vmatpush.msra.mxu0 %v45
  %2072 = vmatpush.msra.mxu0 %v20
  %2073 = vmatmul.f32.gmra.mxu0 %v1704
  %v2074 = vpop.f32.mrf.mxu0
  %v2075 = vadd.f32 %v714, %v2074
  %2076 = vmatmul.f32.gmra.mxu0 %v1707
  %v2077 = vpop.f32.mrf.mxu0
  %v2078 = vadd.f32 %v717, %v2077
  %2079 = vmatmul.f32.gmra.mxu0 %v1710
  %v2080 = vpop.f32.mrf.mxu0
  %v2081 = vadd.f32 %v720, %v2080
  %2082 = vmatmul.f32.gmra.mxu0 %v1713
  %v2083 = vpop.f32.mrf.mxu0
  %v2084 = vadd.f32 %v723, %v2083
  %2085 = vmatmul.f32.gmra.mxu0 %v1716
  %v2086 = vpop.f32.mrf.mxu0
  %v2087 = vadd.f32 %v726, %v2086
  %2088 = vmatmul.f32.gmra.mxu0 %v1719
  %v2089 = vpop.f32.mrf.mxu0
  %v2090 = vadd.f32 %v729, %v2089
  %2091 = vmatmul.f32.gmra.mxu0 %v1722
  %v2092 = vpop.f32.mrf.mxu0
  %v2093 = vadd.f32 %v732, %v2092
  %2094 = vmatmul.f32.gmra.mxu0 %v1725
  %v2095 = vpop.f32.mrf.mxu0
  %v2096 = vadd.f32 %v735, %v2095
  %2097 = vmatmul.f32.gmra.mxu0 %v1728
  %v2098 = vpop.f32.mrf.mxu0
  %v2099 = vadd.f32 %v738, %v2098
  %2100 = vmatmul.f32.gmra.mxu0 %v1731
  %v2101 = vpop.f32.mrf.mxu0
  %v2102 = vadd.f32 %v741, %v2101
  %2103 = vmatmul.f32.gmra.mxu0 %v1734
  %v2104 = vpop.f32.mrf.mxu0
  %v2105 = vadd.f32 %v744, %v2104
  %2106 = vmatmul.f32.gmra.mxu0 %v1737
  %v2107 = vpop.f32.mrf.mxu0
  %v2108 = vadd.f32 %v747, %v2107
  %2109 = vdwg.mxu0
  %2110 = vmatpush.msra.mxu0 0.0
  %2111 = vmatpush.msra.mxu0 0.0
  %2112 = vmatpush.msra.mxu0 0.0
  %2113 = vmatpush.msra.mxu0 0.0
  %2114 = vmatpush.msra.mxu0 0.0
  %2115 = vmatpush.msra.mxu0 0.0
  %2116 = vmatpush.msra.mxu0 0.0
  %2117 = vmatpush.msra.mxu0 0.0
  %2118 = vmatpush.msra.mxu0 0.0
  %2119 = vmatpush.msra.mxu0 0.0
  %2120 = vmatpush.msra.mxu0 0.0
  %2121 = vmatpush.msra.mxu0 0.0
  %2122 = vmatpush.msra.mxu0 0.0
  %2123 = vmatpush.msra.mxu0 %v71
  %2124 = vmatpush.msra.mxu0 %v46
  %2125 = vmatpush.msra.mxu0 %v21
  %2126 = vmatmul.f32.gmra.mxu0 %v1704
  %v2127 = vpop.f32.mrf.mxu0
  %v2128 = vadd.f32 %v767, %v2127
  %2129 = vmatmul.f32.gmra.mxu0 %v1707
  %v2130 = vpop.f32.mrf.mxu0
  %v2131 = vadd.f32 %v770, %v2130
  %2132 = vmatmul.f32.gmra.mxu0 %v1710
  %v2133 = vpop.f32.mrf.mxu0
  %v2134 = vadd.f32 %v773, %v2133
  %2135 = vmatmul.f32.gmra.mxu0 %v1713
  %v2136 = vpop.f32.mrf.mxu0
  %v2137 = vadd.f32 %v776, %v2136
  %2138 = vmatmul.f32.gmra.mxu0 %v1716
  %v2139 = vpop.f32.mrf.mxu0
  %v2140 = vadd.f32 %v779, %v2139
  %2141 = vmatmul.f32.gmra.mxu0 %v1719
  %v2142 = vpop.f32.mrf.mxu0
  %v2143 = vadd.f32 %v782, %v2142
  %2144 = vmatmul.f32.gmra.mxu0 %v1722
  %v2145 = vpop.f32.mrf.mxu0
  %v2146 = vadd.f32 %v785, %v2145
  %2147 = vmatmul.f32.gmra.mxu0 %v1725
  %v2148 = vpop.f32.mrf.mxu0
  %v2149 = vadd.f32 %v788, %v2148
  %2150 = vmatmul.f32.gmra.mxu0 %v1728
  %v2151 = vpop.f32.mrf.mxu0
  %v2152 = vadd.f32 %v791, %v2151
  %2153 = vmatmul.f32.gmra.mxu0 %v1731
  %v2154 = vpop.f32.mrf.mxu0
  %v2155 = vadd.f32 %v794, %v2154
  %2156 = vmatmul.f32.gmra.mxu0 %v1734
  %v2157 = vpop.f32.mrf.mxu0
  %v2158 = vadd.f32 %v797, %v2157
  %2159 = vmatmul.f32.gmra.mxu0 %v1737
  %v2160 = vpop.f32.mrf.mxu0
  %v2161 = vadd.f32 %v800, %v2160
  %2162 = vdwg.mxu0
  %2163 = vmatpush.msra.mxu0 0.0
  %2164 = vmatpush.msra.mxu0 0.0
  %2165 = vmatpush.msra.mxu0 0.0
  %2166 = vmatpush.msra.mxu0 0.0
  %2167 = vmatpush.msra.mxu0 0.0
  %2168 = vmatpush.msra.mxu0 0.0
  %2169 = vmatpush.msra.mxu0 0.0
  %2170 = vmatpush.msra.mxu0 0.0
  %2171 = vmatpush.msra.mxu0 0.0
  %2172 = vmatpush.msra.mxu0 0.0
  %2173 = vmatpush.msra.mxu0 0.0
  %2174 = vmatpush.msra.mxu0 0.0
  %2175 = vmatpush.msra.mxu0 0.0
  %2176 = vmatpush.msra.mxu0 %v72
  %2177 = vmatpush.msra.mxu0 %v47
  %2178 = vmatpush.msra.mxu0 %v22
  %2179 = vmatmul.f32.gmra.mxu0 %v1704
  %v2180 = vpop.f32.mrf.mxu0
  %v2181 = vadd.f32 %v820, %v2180
  %2182 = vmatmul.f32.gmra.mxu0 %v1707
  %v2183 = vpop.f32.mrf.mxu0
  %v2184 = vadd.f32 %v823, %v2183
  %2185 = vmatmul.f32.gmra.mxu0 %v1710
  %v2186 = vpop.f32.mrf.mxu0
  %v2187 = vadd.f32 %v826, %v2186
  %2188 = vmatmul.f32.gmra.mxu0 %v1713
  %v2189 = vpop.f32.mrf.mxu0
  %v2190 = vadd.f32 %v829, %v2189
  %2191 = vmatmul.f32.gmra.mxu0 %v1716
  %v2192 = vpop.f32.mrf.mxu0
  %v2193 = vadd.f32 %v832, %v2192
  %2194 = vmatmul.f32.gmra.mxu0 %v1719
  %v2195 = vpop.f32.mrf.mxu0
  %v2196 = vadd.f32 %v835, %v2195
  %2197 = vmatmul.f32.gmra.mxu0 %v1722
  %v2198 = vpop.f32.mrf.mxu0
  %v2199 = vadd.f32 %v838, %v2198
  %2200 = vmatmul.f32.gmra.mxu0 %v1725
  %v2201 = vpop.f32.mrf.mxu0
  %v2202 = vadd.f32 %v841, %v2201
  %2203 = vmatmul.f32.gmra.mxu0 %v1728
  %v2204 = vpop.f32.mrf.mxu0
  %v2205 = vadd.f32 %v844, %v2204
  %2206 = vmatmul.f32.gmra.mxu0 %v1731
  %v2207 = vpop.f32.mrf.mxu0
  %v2208 = vadd.f32 %v847, %v2207
  %2209 = vmatmul.f32.gmra.mxu0 %v1734
  %v2210 = vpop.f32.mrf.mxu0
  %v2211 = vadd.f32 %v850, %v2210
  %2212 = vmatmul.f32.gmra.mxu0 %v1737
  %v2213 = vpop.f32.mrf.mxu0
  %v2214 = vadd.f32 %v853, %v2213
  %2215 = vdwg.mxu0
  %2216 = vmatpush.msra.mxu0 0.0
  %2217 = vmatpush.msra.mxu0 0.0
  %2218 = vmatpush.msra.mxu0 0.0
  %2219 = vmatpush.msra.mxu0 0.0
  %2220 = vmatpush.msra.mxu0 0.0
  %2221 = vmatpush.msra.mxu0 0.0
  %2222 = vmatpush.msra.mxu0 0.0
  %2223 = vmatpush.msra.mxu0 0.0
  %2224 = vmatpush.msra.mxu0 0.0
  %2225 = vmatpush.msra.mxu0 0.0
  %2226 = vmatpush.msra.mxu0 0.0
  %2227 = vmatpush.msra.mxu0 0.0
  %2228 = vmatpush.msra.mxu0 0.0
  %2229 = vmatpush.msra.mxu0 %v73
  %2230 = vmatpush.msra.mxu0 %v48
  %2231 = vmatpush.msra.mxu0 %v23
  %2232 = vmatmul.f32.gmra.mxu0 %v1704
  %v2233 = vpop.f32.mrf.mxu0
  %v2234 = vadd.f32 %v873, %v2233
  %2235 = vmatmul.f32.gmra.mxu0 %v1707
  %v2236 = vpop.f32.mrf.mxu0
  %v2237 = vadd.f32 %v876, %v2236
  %2238 = vmatmul.f32.gmra.mxu0 %v1710
  %v2239 = vpop.f32.mrf.mxu0
  %v2240 = vadd.f32 %v879, %v2239
  %2241 = vmatmul.f32.gmra.mxu0 %v1713
  %v2242 = vpop.f32.mrf.mxu0
  %v2243 = vadd.f32 %v882, %v2242
  %2244 = vmatmul.f32.gmra.mxu0 %v1716
  %v2245 = vpop.f32.mrf.mxu0
  %v2246 = vadd.f32 %v885, %v2245
  %2247 = vmatmul.f32.gmra.mxu0 %v1719
  %v2248 = vpop.f32.mrf.mxu0
  %v2249 = vadd.f32 %v888, %v2248
  %2250 = vmatmul.f32.gmra.mxu0 %v1722
  %v2251 = vpop.f32.mrf.mxu0
  %v2252 = vadd.f32 %v891, %v2251
  %2253 = vmatmul.f32.gmra.mxu0 %v1725
  %v2254 = vpop.f32.mrf.mxu0
  %v2255 = vadd.f32 %v894, %v2254
  %2256 = vmatmul.f32.gmra.mxu0 %v1728
  %v2257 = vpop.f32.mrf.mxu0
  %v2258 = vadd.f32 %v897, %v2257
  %2259 = vmatmul.f32.gmra.mxu0 %v1731
  %v2260 = vpop.f32.mrf.mxu0
  %v2261 = vadd.f32 %v900, %v2260
  %2262 = vmatmul.f32.gmra.mxu0 %v1734
  %v2263 = vpop.f32.mrf.mxu0
  %v2264 = vadd.f32 %v903, %v2263
  %2265 = vmatmul.f32.gmra.mxu0 %v1737
  %v2266 = vpop.f32.mrf.mxu0
  %v2267 = vadd.f32 %v906, %v2266
  %2268 = vdwg.mxu0
  %2269 = vmatpush.msra.mxu0 0.0
  %2270 = vmatpush.msra.mxu0 0.0
  %2271 = vmatpush.msra.mxu0 0.0
  %2272 = vmatpush.msra.mxu0 0.0
  %2273 = vmatpush.msra.mxu0 0.0
  %2274 = vmatpush.msra.mxu0 0.0
  %2275 = vmatpush.msra.mxu0 0.0
  %2276 = vmatpush.msra.mxu0 0.0
  %2277 = vmatpush.msra.mxu0 0.0
  %2278 = vmatpush.msra.mxu0 0.0
  %2279 = vmatpush.msra.mxu0 0.0
  %2280 = vmatpush.msra.mxu0 0.0
  %2281 = vmatpush.msra.mxu0 0.0
  %2282 = vmatpush.msra.mxu0 %v74
  %2283 = vmatpush.msra.mxu0 %v49
  %2284 = vmatpush.msra.mxu0 %v24
  %2285 = vmatmul.f32.gmra.mxu0 %v1704
  %v2286 = vpop.f32.mrf.mxu0
  %v2287 = vadd.f32 %v926, %v2286
  %2288 = vmatmul.f32.gmra.mxu0 %v1707
  %v2289 = vpop.f32.mrf.mxu0
  %v2290 = vadd.f32 %v929, %v2289
  %2291 = vmatmul.f32.gmra.mxu0 %v1710
  %v2292 = vpop.f32.mrf.mxu0
  %v2293 = vadd.f32 %v932, %v2292
  %2294 = vmatmul.f32.gmra.mxu0 %v1713
  %v2295 = vpop.f32.mrf.mxu0
  %v2296 = vadd.f32 %v935, %v2295
  %2297 = vmatmul.f32.gmra.mxu0 %v1716
  %v2298 = vpop.f32.mrf.mxu0
  %v2299 = vadd.f32 %v938, %v2298
  %2300 = vmatmul.f32.gmra.mxu0 %v1719
  %v2301 = vpop.f32.mrf.mxu0
  %v2302 = vadd.f32 %v941, %v2301
  %2303 = vmatmul.f32.gmra.mxu0 %v1722
  %v2304 = vpop.f32.mrf.mxu0
  %v2305 = vadd.f32 %v944, %v2304
  %2306 = vmatmul.f32.gmra.mxu0 %v1725
  %v2307 = vpop.f32.mrf.mxu0
  %v2308 = vadd.f32 %v947, %v2307
  %2309 = vmatmul.f32.gmra.mxu0 %v1728
  %v2310 = vpop.f32.mrf.mxu0
  %v2311 = vadd.f32 %v950, %v2310
  %2312 = vmatmul.f32.gmra.mxu0 %v1731
  %v2313 = vpop.f32.mrf.mxu0
  %v2314 = vadd.f32 %v953, %v2313
  %2315 = vmatmul.f32.gmra.mxu0 %v1734
  %v2316 = vpop.f32.mrf.mxu0
  %v2317 = vadd.f32 %v956, %v2316
  %2318 = vmatmul.f32.gmra.mxu0 %v1737
  %v2319 = vpop.f32.mrf.mxu0
  %v2320 = vadd.f32 %v959, %v2319
  %2321 = vdwg.mxu0
  %2322 = vmatpush.msra.mxu0 0.0
  %2323 = vmatpush.msra.mxu0 0.0
  %2324 = vmatpush.msra.mxu0 0.0
  %2325 = vmatpush.msra.mxu0 0.0
  %2326 = vmatpush.msra.mxu0 0.0
  %2327 = vmatpush.msra.mxu0 0.0
  %2328 = vmatpush.msra.mxu0 0.0
  %2329 = vmatpush.msra.mxu0 0.0
  %2330 = vmatpush.msra.mxu0 0.0
  %2331 = vmatpush.msra.mxu0 0.0
  %2332 = vmatpush.msra.mxu0 0.0
  %2333 = vmatpush.msra.mxu0 0.0
  %2334 = vmatpush.msra.mxu0 0.0
  %2335 = vmatpush.msra.mxu0 %v75
  %2336 = vmatpush.msra.mxu0 %v50
  %2337 = vmatpush.msra.mxu0 %v25
  %2338 = vmatmul.f32.gmra.mxu0 %v1704
  %v2339 = vpop.f32.mrf.mxu0
  %v2340 = vadd.f32 %v979, %v2339
  %2341 = vmatmul.f32.gmra.mxu0 %v1707
  %v2342 = vpop.f32.mrf.mxu0
  %v2343 = vadd.f32 %v982, %v2342
  %2344 = vmatmul.f32.gmra.mxu0 %v1710
  %v2345 = vpop.f32.mrf.mxu0
  %v2346 = vadd.f32 %v985, %v2345
  %2347 = vmatmul.f32.gmra.mxu0 %v1713
  %v2348 = vpop.f32.mrf.mxu0
  %v2349 = vadd.f32 %v988, %v2348
  %2350 = vmatmul.f32.gmra.mxu0 %v1716
  %v2351 = vpop.f32.mrf.mxu0
  %v2352 = vadd.f32 %v991, %v2351
  %2353 = vmatmul.f32.gmra.mxu0 %v1719
  %v2354 = vpop.f32.mrf.mxu0
  %v2355 = vadd.f32 %v994, %v2354
  %2356 = vmatmul.f32.gmra.mxu0 %v1722
  %v2357 = vpop.f32.mrf.mxu0
  %v2358 = vadd.f32 %v997, %v2357
  %2359 = vmatmul.f32.gmra.mxu0 %v1725
  %v2360 = vpop.f32.mrf.mxu0
  %v2361 = vadd.f32 %v1000, %v2360
  %2362 = vmatmul.f32.gmra.mxu0 %v1728
  %v2363 = vpop.f32.mrf.mxu0
  %v2364 = vadd.f32 %v1003, %v2363
  %2365 = vmatmul.f32.gmra.mxu0 %v1731
  %v2366 = vpop.f32.mrf.mxu0
  %v2367 = vadd.f32 %v1006, %v2366
  %2368 = vmatmul.f32.gmra.mxu0 %v1734
  %v2369 = vpop.f32.mrf.mxu0
  %v2370 = vadd.f32 %v1009, %v2369
  %2371 = vmatmul.f32.gmra.mxu0 %v1737
  %v2372 = vpop.f32.mrf.mxu0
  %v2373 = vadd.f32 %v1012, %v2372
  %2374 = vdwg.mxu0
  %2375 = vmatpush.msra.mxu0 0.0
  %2376 = vmatpush.msra.mxu0 0.0
  %2377 = vmatpush.msra.mxu0 0.0
  %2378 = vmatpush.msra.mxu0 0.0
  %2379 = vmatpush.msra.mxu0 0.0
  %2380 = vmatpush.msra.mxu0 0.0
  %2381 = vmatpush.msra.mxu0 0.0
  %2382 = vmatpush.msra.mxu0 0.0
  %2383 = vmatpush.msra.mxu0 0.0
  %2384 = vmatpush.msra.mxu0 0.0
  %2385 = vmatpush.msra.mxu0 0.0
  %2386 = vmatpush.msra.mxu0 0.0
  %2387 = vmatpush.msra.mxu0 0.0
  %2388 = vmatpush.msra.mxu0 %v76
  %2389 = vmatpush.msra.mxu0 %v51
  %2390 = vmatpush.msra.mxu0 %v26
  %2391 = vmatmul.f32.gmra.mxu0 %v1704
  %v2392 = vpop.f32.mrf.mxu0
  %v2393 = vadd.f32 %v1032, %v2392
  %2394 = vmatmul.f32.gmra.mxu0 %v1707
  %v2395 = vpop.f32.mrf.mxu0
  %v2396 = vadd.f32 %v1035, %v2395
  %2397 = vmatmul.f32.gmra.mxu0 %v1710
  %v2398 = vpop.f32.mrf.mxu0
  %v2399 = vadd.f32 %v1038, %v2398
  %2400 = vmatmul.f32.gmra.mxu0 %v1713
  %v2401 = vpop.f32.mrf.mxu0
  %v2402 = vadd.f32 %v1041, %v2401
  %2403 = vmatmul.f32.gmra.mxu0 %v1716
  %v2404 = vpop.f32.mrf.mxu0
  %v2405 = vadd.f32 %v1044, %v2404
  %2406 = vmatmul.f32.gmra.mxu0 %v1719
  %v2407 = vpop.f32.mrf.mxu0
  %v2408 = vadd.f32 %v1047, %v2407
  %2409 = vmatmul.f32.gmra.mxu0 %v1722
  %v2410 = vpop.f32.mrf.mxu0
  %v2411 = vadd.f32 %v1050, %v2410
  %2412 = vmatmul.f32.gmra.mxu0 %v1725
  %v2413 = vpop.f32.mrf.mxu0
  %v2414 = vadd.f32 %v1053, %v2413
  %2415 = vmatmul.f32.gmra.mxu0 %v1728
  %v2416 = vpop.f32.mrf.mxu0
  %v2417 = vadd.f32 %v1056, %v2416
  %2418 = vmatmul.f32.gmra.mxu0 %v1731
  %v2419 = vpop.f32.mrf.mxu0
  %v2420 = vadd.f32 %v1059, %v2419
  %2421 = vmatmul.f32.gmra.mxu0 %v1734
  %v2422 = vpop.f32.mrf.mxu0
  %v2423 = vadd.f32 %v1062, %v2422
  %2424 = vmatmul.f32.gmra.mxu0 %v1737
  %v2425 = vpop.f32.mrf.mxu0
  %v2426 = vadd.f32 %v1065, %v2425
  %2427 = vdwg.mxu0
  %2428 = vmatpush.msra.mxu0 0.0
  %2429 = vmatpush.msra.mxu0 0.0
  %2430 = vmatpush.msra.mxu0 0.0
  %2431 = vmatpush.msra.mxu0 0.0
  %2432 = vmatpush.msra.mxu0 0.0
  %2433 = vmatpush.msra.mxu0 0.0
  %2434 = vmatpush.msra.mxu0 0.0
  %2435 = vmatpush.msra.mxu0 0.0
  %2436 = vmatpush.msra.mxu0 0.0
  %2437 = vmatpush.msra.mxu0 0.0
  %2438 = vmatpush.msra.mxu0 0.0
  %2439 = vmatpush.msra.mxu0 0.0
  %2440 = vmatpush.msra.mxu0 0.0
  %2441 = vmatpush.msra.mxu0 %v77
  %2442 = vmatpush.msra.mxu0 %v52
  %2443 = vmatpush.msra.mxu0 %v27
  %2444 = vmatmul.f32.gmra.mxu0 %v1704
  %v2445 = vpop.f32.mrf.mxu0
  %v2446 = vadd.f32 %v1085, %v2445
  %2447 = vmatmul.f32.gmra.mxu0 %v1707
  %v2448 = vpop.f32.mrf.mxu0
  %v2449 = vadd.f32 %v1088, %v2448
  %2450 = vmatmul.f32.gmra.mxu0 %v1710
  %v2451 = vpop.f32.mrf.mxu0
  %v2452 = vadd.f32 %v1091, %v2451
  %2453 = vmatmul.f32.gmra.mxu0 %v1713
  %v2454 = vpop.f32.mrf.mxu0
  %v2455 = vadd.f32 %v1094, %v2454
  %2456 = vmatmul.f32.gmra.mxu0 %v1716
  %v2457 = vpop.f32.mrf.mxu0
  %v2458 = vadd.f32 %v1097, %v2457
  %2459 = vmatmul.f32.gmra.mxu0 %v1719
  %v2460 = vpop.f32.mrf.mxu0
  %v2461 = vadd.f32 %v1100, %v2460
  %2462 = vmatmul.f32.gmra.mxu0 %v1722
  %v2463 = vpop.f32.mrf.mxu0
  %v2464 = vadd.f32 %v1103, %v2463
  %2465 = vmatmul.f32.gmra.mxu0 %v1725
  %v2466 = vpop.f32.mrf.mxu0
  %v2467 = vadd.f32 %v1106, %v2466
  %2468 = vmatmul.f32.gmra.mxu0 %v1728
  %v2469 = vpop.f32.mrf.mxu0
  %v2470 = vadd.f32 %v1109, %v2469
  %2471 = vmatmul.f32.gmra.mxu0 %v1731
  %v2472 = vpop.f32.mrf.mxu0
  %v2473 = vadd.f32 %v1112, %v2472
  %2474 = vmatmul.f32.gmra.mxu0 %v1734
  %v2475 = vpop.f32.mrf.mxu0
  %v2476 = vadd.f32 %v1115, %v2475
  %2477 = vmatmul.f32.gmra.mxu0 %v1737
  %v2478 = vpop.f32.mrf.mxu0
  %v2479 = vadd.f32 %v1118, %v2478
  %2480 = vdwg.mxu0
  %2481 = vmatpush.msra.mxu0 0.0
  %2482 = vmatpush.msra.mxu0 0.0
  %2483 = vmatpush.msra.mxu0 0.0
  %2484 = vmatpush.msra.mxu0 0.0
  %2485 = vmatpush.msra.mxu0 0.0
  %2486 = vmatpush.msra.mxu0 0.0
  %2487 = vmatpush.msra.mxu0 0.0
  %2488 = vmatpush.msra.mxu0 0.0
  %2489 = vmatpush.msra.mxu0 0.0
  %2490 = vmatpush.msra.mxu0 0.0
  %2491 = vmatpush.msra.mxu0 0.0
  %2492 = vmatpush.msra.mxu0 0.0
  %2493 = vmatpush.msra.mxu0 0.0
  %2494 = vmatpush.msra.mxu0 %v78
  %2495 = vmatpush.msra.mxu0 %v53
  %2496 = vmatpush.msra.mxu0 %v28
  %2497 = vmatmul.f32.gmra.mxu0 %v1704
  %v2498 = vpop.f32.mrf.mxu0
  %v2499 = vadd.f32 %v1138, %v2498
  %2500 = vmatmul.f32.gmra.mxu0 %v1707
  %v2501 = vpop.f32.mrf.mxu0
  %v2502 = vadd.f32 %v1141, %v2501
  %2503 = vmatmul.f32.gmra.mxu0 %v1710
  %v2504 = vpop.f32.mrf.mxu0
  %v2505 = vadd.f32 %v1144, %v2504
  %2506 = vmatmul.f32.gmra.mxu0 %v1713
  %v2507 = vpop.f32.mrf.mxu0
  %v2508 = vadd.f32 %v1147, %v2507
  %2509 = vmatmul.f32.gmra.mxu0 %v1716
  %v2510 = vpop.f32.mrf.mxu0
  %v2511 = vadd.f32 %v1150, %v2510
  %2512 = vmatmul.f32.gmra.mxu0 %v1719
  %v2513 = vpop.f32.mrf.mxu0
  %v2514 = vadd.f32 %v1153, %v2513
  %2515 = vmatmul.f32.gmra.mxu0 %v1722
  %v2516 = vpop.f32.mrf.mxu0
  %v2517 = vadd.f32 %v1156, %v2516
  %2518 = vmatmul.f32.gmra.mxu0 %v1725
  %v2519 = vpop.f32.mrf.mxu0
  %v2520 = vadd.f32 %v1159, %v2519
  %2521 = vmatmul.f32.gmra.mxu0 %v1728
  %v2522 = vpop.f32.mrf.mxu0
  %v2523 = vadd.f32 %v1162, %v2522
  %2524 = vmatmul.f32.gmra.mxu0 %v1731
  %v2525 = vpop.f32.mrf.mxu0
  %v2526 = vadd.f32 %v1165, %v2525
  %2527 = vmatmul.f32.gmra.mxu0 %v1734
  %v2528 = vpop.f32.mrf.mxu0
  %v2529 = vadd.f32 %v1168, %v2528
  %2530 = vmatmul.f32.gmra.mxu0 %v1737
  %v2531 = vpop.f32.mrf.mxu0
  %v2532 = vadd.f32 %v1171, %v2531
  %2533 = vdwg.mxu0
  %2534 = vmatpush.msra.mxu0 0.0
  %2535 = vmatpush.msra.mxu0 0.0
  %2536 = vmatpush.msra.mxu0 0.0
  %2537 = vmatpush.msra.mxu0 0.0
  %2538 = vmatpush.msra.mxu0 0.0
  %2539 = vmatpush.msra.mxu0 0.0
  %2540 = vmatpush.msra.mxu0 0.0
  %2541 = vmatpush.msra.mxu0 0.0
  %2542 = vmatpush.msra.mxu0 0.0
  %2543 = vmatpush.msra.mxu0 0.0
  %2544 = vmatpush.msra.mxu0 0.0
  %2545 = vmatpush.msra.mxu0 0.0
  %2546 = vmatpush.msra.mxu0 0.0
  %2547 = vmatpush.msra.mxu0 %v79
  %2548 = vmatpush.msra.mxu0 %v54
  %2549 = vmatpush.msra.mxu0 %v29
  %2550 = vmatmul.f32.gmra.mxu0 %v1704
  %v2551 = vpop.f32.mrf.mxu0
  %v2552 = vadd.f32 %v1191, %v2551
  %2553 = vmatmul.f32.gmra.mxu0 %v1707
  %v2554 = vpop.f32.mrf.mxu0
  %v2555 = vadd.f32 %v1194, %v2554
  %2556 = vmatmul.f32.gmra.mxu0 %v1710
  %v2557 = vpop.f32.mrf.mxu0
  %v2558 = vadd.f32 %v1197, %v2557
  %2559 = vmatmul.f32.gmra.mxu0 %v1713
  %v2560 = vpop.f32.mrf.mxu0
  %v2561 = vadd.f32 %v1200, %v2560
  %2562 = vmatmul.f32.gmra.mxu0 %v1716
  %v2563 = vpop.f32.mrf.mxu0
  %v2564 = vadd.f32 %v1203, %v2563
  %2565 = vmatmul.f32.gmra.mxu0 %v1719
  %v2566 = vpop.f32.mrf.mxu0
  %v2567 = vadd.f32 %v1206, %v2566
  %2568 = vmatmul.f32.gmra.mxu0 %v1722
  %v2569 = vpop.f32.mrf.mxu0
  %v2570 = vadd.f32 %v1209, %v2569
  %2571 = vmatmul.f32.gmra.mxu0 %v1725
  %v2572 = vpop.f32.mrf.mxu0
  %v2573 = vadd.f32 %v1212, %v2572
  %2574 = vmatmul.f32.gmra.mxu0 %v1728
  %v2575 = vpop.f32.mrf.mxu0
  %v2576 = vadd.f32 %v1215, %v2575
  %2577 = vmatmul.f32.gmra.mxu0 %v1731
  %v2578 = vpop.f32.mrf.mxu0
  %v2579 = vadd.f32 %v1218, %v2578
  %2580 = vmatmul.f32.gmra.mxu0 %v1734
  %v2581 = vpop.f32.mrf.mxu0
  %v2582 = vadd.f32 %v1221, %v2581
  %2583 = vmatmul.f32.gmra.mxu0 %v1737
  %v2584 = vpop.f32.mrf.mxu0
  %v2585 = vadd.f32 %v1224, %v2584
  %2586 = vdwg.mxu0
  %2587 = vmatpush.msra.mxu0 0.0
  %2588 = vmatpush.msra.mxu0 0.0
  %2589 = vmatpush.msra.mxu0 0.0
  %2590 = vmatpush.msra.mxu0 0.0
  %2591 = vmatpush.msra.mxu0 0.0
  %2592 = vmatpush.msra.mxu0 0.0
  %2593 = vmatpush.msra.mxu0 0.0
  %2594 = vmatpush.msra.mxu0 0.0
  %2595 = vmatpush.msra.mxu0 0.0
  %2596 = vmatpush.msra.mxu0 0.0
  %2597 = vmatpush.msra.mxu0 0.0
  %2598 = vmatpush.msra.mxu0 0.0
  %2599 = vmatpush.msra.mxu0 0.0
  %2600 = vmatpush.msra.mxu0 %v80
  %2601 = vmatpush.msra.mxu0 %v55
  %2602 = vmatpush.msra.mxu0 %v30
  %2603 = vmatmul.f32.gmra.mxu0 %v1704
  %v2604 = vpop.f32.mrf.mxu0
  %v2605 = vadd.f32 %v1244, %v2604
  %2606 = vmatmul.f32.gmra.mxu0 %v1707
  %v2607 = vpop.f32.mrf.mxu0
  %v2608 = vadd.f32 %v1247, %v2607
  %2609 = vmatmul.f32.gmra.mxu0 %v1710
  %v2610 = vpop.f32.mrf.mxu0
  %v2611 = vadd.f32 %v1250, %v2610
  %2612 = vmatmul.f32.gmra.mxu0 %v1713
  %v2613 = vpop.f32.mrf.mxu0
  %v2614 = vadd.f32 %v1253, %v2613
  %2615 = vmatmul.f32.gmra.mxu0 %v1716
  %v2616 = vpop.f32.mrf.mxu0
  %v2617 = vadd.f32 %v1256, %v2616
  %2618 = vmatmul.f32.gmra.mxu0 %v1719
  %v2619 = vpop.f32.mrf.mxu0
  %v2620 = vadd.f32 %v1259, %v2619
  %2621 = vmatmul.f32.gmra.mxu0 %v1722
  %v2622 = vpop.f32.mrf.mxu0
  %v2623 = vadd.f32 %v1262, %v2622
  %2624 = vmatmul.f32.gmra.mxu0 %v1725
  %v2625 = vpop.f32.mrf.mxu0
  %v2626 = vadd.f32 %v1265, %v2625
  %2627 = vmatmul.f32.gmra.mxu0 %v1728
  %v2628 = vpop.f32.mrf.mxu0
  %v2629 = vadd.f32 %v1268, %v2628
  %2630 = vmatmul.f32.gmra.mxu0 %v1731
  %v2631 = vpop.f32.mrf.mxu0
  %v2632 = vadd.f32 %v1271, %v2631
  %2633 = vmatmul.f32.gmra.mxu0 %v1734
  %v2634 = vpop.f32.mrf.mxu0
  %v2635 = vadd.f32 %v1274, %v2634
  %2636 = vmatmul.f32.gmra.mxu0 %v1737
  %v2637 = vpop.f32.mrf.mxu0
  %v2638 = vadd.f32 %v1277, %v2637
  %2639 = vdwg.mxu0
  %2640 = vmatpush.msra.mxu0 0.0
  %2641 = vmatpush.msra.mxu0 0.0
  %2642 = vmatpush.msra.mxu0 0.0
  %2643 = vmatpush.msra.mxu0 0.0
  %2644 = vmatpush.msra.mxu0 0.0
  %2645 = vmatpush.msra.mxu0 0.0
  %2646 = vmatpush.msra.mxu0 0.0
  %2647 = vmatpush.msra.mxu0 0.0
  %2648 = vmatpush.msra.mxu0 0.0
  %2649 = vmatpush.msra.mxu0 0.0
  %2650 = vmatpush.msra.mxu0 0.0
  %2651 = vmatpush.msra.mxu0 0.0
  %2652 = vmatpush.msra.mxu0 0.0
  %2653 = vmatpush.msra.mxu0 %v81
  %2654 = vmatpush.msra.mxu0 %v56
  %2655 = vmatpush.msra.mxu0 %v31
  %2656 = vmatmul.f32.gmra.mxu0 %v1704
  %v2657 = vpop.f32.mrf.mxu0
  %v2658 = vadd.f32 %v1297, %v2657
  %2659 = vmatmul.f32.gmra.mxu0 %v1707
  %v2660 = vpop.f32.mrf.mxu0
  %v2661 = vadd.f32 %v1300, %v2660
  %2662 = vmatmul.f32.gmra.mxu0 %v1710
  %v2663 = vpop.f32.mrf.mxu0
  %v2664 = vadd.f32 %v1303, %v2663
  %2665 = vmatmul.f32.gmra.mxu0 %v1713
  %v2666 = vpop.f32.mrf.mxu0
  %v2667 = vadd.f32 %v1306, %v2666
  %2668 = vmatmul.f32.gmra.mxu0 %v1716
  %v2669 = vpop.f32.mrf.mxu0
  %v2670 = vadd.f32 %v1309, %v2669
  %2671 = vmatmul.f32.gmra.mxu0 %v1719
  %v2672 = vpop.f32.mrf.mxu0
  %v2673 = vadd.f32 %v1312, %v2672
  %2674 = vmatmul.f32.gmra.mxu0 %v1722
  %v2675 = vpop.f32.mrf.mxu0
  %v2676 = vadd.f32 %v1315, %v2675
  %2677 = vmatmul.f32.gmra.mxu0 %v1725
  %v2678 = vpop.f32.mrf.mxu0
  %v2679 = vadd.f32 %v1318, %v2678
  %2680 = vmatmul.f32.gmra.mxu0 %v1728
  %v2681 = vpop.f32.mrf.mxu0
  %v2682 = vadd.f32 %v1321, %v2681
  %2683 = vmatmul.f32.gmra.mxu0 %v1731
  %v2684 = vpop.f32.mrf.mxu0
  %v2685 = vadd.f32 %v1324, %v2684
  %2686 = vmatmul.f32.gmra.mxu0 %v1734
  %v2687 = vpop.f32.mrf.mxu0
  %v2688 = vadd.f32 %v1327, %v2687
  %2689 = vmatmul.f32.gmra.mxu0 %v1737
  %v2690 = vpop.f32.mrf.mxu0
  %v2691 = vadd.f32 %v1330, %v2690
  %2692 = vdwg.mxu0
  %2693 = vmatpush.msra.mxu0 0.0
  %2694 = vmatpush.msra.mxu0 0.0
  %2695 = vmatpush.msra.mxu0 0.0
  %2696 = vmatpush.msra.mxu0 0.0
  %2697 = vmatpush.msra.mxu0 0.0
  %2698 = vmatpush.msra.mxu0 0.0
  %2699 = vmatpush.msra.mxu0 0.0
  %2700 = vmatpush.msra.mxu0 0.0
  %2701 = vmatpush.msra.mxu0 0.0
  %2702 = vmatpush.msra.mxu0 0.0
  %2703 = vmatpush.msra.mxu0 0.0
  %2704 = vmatpush.msra.mxu0 0.0
  %2705 = vmatpush.msra.mxu0 0.0
  %2706 = vmatpush.msra.mxu0 %v82
  %2707 = vmatpush.msra.mxu0 %v57
  %2708 = vmatpush.msra.mxu0 %v32
  %2709 = vmatmul.f32.gmra.mxu0 %v1704
  %v2710 = vpop.f32.mrf.mxu0
  %v2711 = vadd.f32 %v1350, %v2710
  %2712 = vmatmul.f32.gmra.mxu0 %v1707
  %v2713 = vpop.f32.mrf.mxu0
  %v2714 = vadd.f32 %v1353, %v2713
  %2715 = vmatmul.f32.gmra.mxu0 %v1710
  %v2716 = vpop.f32.mrf.mxu0
  %v2717 = vadd.f32 %v1356, %v2716
  %2718 = vmatmul.f32.gmra.mxu0 %v1713
  %v2719 = vpop.f32.mrf.mxu0
  %v2720 = vadd.f32 %v1359, %v2719
  %2721 = vmatmul.f32.gmra.mxu0 %v1716
  %v2722 = vpop.f32.mrf.mxu0
  %v2723 = vadd.f32 %v1362, %v2722
  %2724 = vmatmul.f32.gmra.mxu0 %v1719
  %v2725 = vpop.f32.mrf.mxu0
  %v2726 = vadd.f32 %v1365, %v2725
  %2727 = vmatmul.f32.gmra.mxu0 %v1722
  %v2728 = vpop.f32.mrf.mxu0
  %v2729 = vadd.f32 %v1368, %v2728
  %2730 = vmatmul.f32.gmra.mxu0 %v1725
  %v2731 = vpop.f32.mrf.mxu0
  %v2732 = vadd.f32 %v1371, %v2731
  %2733 = vmatmul.f32.gmra.mxu0 %v1728
  %v2734 = vpop.f32.mrf.mxu0
  %v2735 = vadd.f32 %v1374, %v2734
  %2736 = vmatmul.f32.gmra.mxu0 %v1731
  %v2737 = vpop.f32.mrf.mxu0
  %v2738 = vadd.f32 %v1377, %v2737
  %2739 = vmatmul.f32.gmra.mxu0 %v1734
  %v2740 = vpop.f32.mrf.mxu0
  %v2741 = vadd.f32 %v1380, %v2740
  %2742 = vmatmul.f32.gmra.mxu0 %v1737
  %v2743 = vpop.f32.mrf.mxu0
  %v2744 = vadd.f32 %v1383, %v2743
  %2745 = vdwg.mxu0
  %2746 = vmatpush.msra.mxu0 0.0
  %2747 = vmatpush.msra.mxu0 0.0
  %2748 = vmatpush.msra.mxu0 0.0
  %2749 = vmatpush.msra.mxu0 0.0
  %2750 = vmatpush.msra.mxu0 0.0
  %2751 = vmatpush.msra.mxu0 0.0
  %2752 = vmatpush.msra.mxu0 0.0
  %2753 = vmatpush.msra.mxu0 0.0
  %2754 = vmatpush.msra.mxu0 0.0
  %2755 = vmatpush.msra.mxu0 0.0
  %2756 = vmatpush.msra.mxu0 0.0
  %2757 = vmatpush.msra.mxu0 0.0
  %2758 = vmatpush.msra.mxu0 0.0
  %2759 = vmatpush.msra.mxu0 %v83
  %2760 = vmatpush.msra.mxu0 %v58
  %2761 = vmatpush.msra.mxu0 %v33
  %2762 = vmatmul.f32.gmra.mxu0 %v1704
  %v2763 = vpop.f32.mrf.mxu0
  %v2764 = vadd.f32 %v1403, %v2763
  %2765 = vmatmul.f32.gmra.mxu0 %v1707
  %v2766 = vpop.f32.mrf.mxu0
  %v2767 = vadd.f32 %v1406, %v2766
  %2768 = vmatmul.f32.gmra.mxu0 %v1710
  %v2769 = vpop.f32.mrf.mxu0
  %v2770 = vadd.f32 %v1409, %v2769
  %2771 = vmatmul.f32.gmra.mxu0 %v1713
  %v2772 = vpop.f32.mrf.mxu0
  %v2773 = vadd.f32 %v1412, %v2772
  %2774 = vmatmul.f32.gmra.mxu0 %v1716
  %v2775 = vpop.f32.mrf.mxu0
  %v2776 = vadd.f32 %v1415, %v2775
  %2777 = vmatmul.f32.gmra.mxu0 %v1719
  %v2778 = vpop.f32.mrf.mxu0
  %v2779 = vadd.f32 %v1418, %v2778
  %2780 = vmatmul.f32.gmra.mxu0 %v1722
  %v2781 = vpop.f32.mrf.mxu0
  %v2782 = vadd.f32 %v1421, %v2781
  %2783 = vmatmul.f32.gmra.mxu0 %v1725
  %v2784 = vpop.f32.mrf.mxu0
  %v2785 = vadd.f32 %v1424, %v2784
  %2786 = vmatmul.f32.gmra.mxu0 %v1728
  %v2787 = vpop.f32.mrf.mxu0
  %v2788 = vadd.f32 %v1427, %v2787
  %2789 = vmatmul.f32.gmra.mxu0 %v1731
  %v2790 = vpop.f32.mrf.mxu0
  %v2791 = vadd.f32 %v1430, %v2790
  %2792 = vmatmul.f32.gmra.mxu0 %v1734
  %v2793 = vpop.f32.mrf.mxu0
  %v2794 = vadd.f32 %v1433, %v2793
  %2795 = vmatmul.f32.gmra.mxu0 %v1737
  %v2796 = vpop.f32.mrf.mxu0
  %v2797 = vadd.f32 %v1436, %v2796
  %2798 = vdwg.mxu0
  %2799 = vmatpush.msra.mxu0 0.0
  %2800 = vmatpush.msra.mxu0 0.0
  %2801 = vmatpush.msra.mxu0 0.0
  %2802 = vmatpush.msra.mxu0 0.0
  %2803 = vmatpush.msra.mxu0 0.0
  %2804 = vmatpush.msra.mxu0 0.0
  %2805 = vmatpush.msra.mxu0 0.0
  %2806 = vmatpush.msra.mxu0 0.0
  %2807 = vmatpush.msra.mxu0 0.0
  %2808 = vmatpush.msra.mxu0 0.0
  %2809 = vmatpush.msra.mxu0 0.0
  %2810 = vmatpush.msra.mxu0 0.0
  %2811 = vmatpush.msra.mxu0 0.0
  %2812 = vmatpush.msra.mxu0 %v84
  %2813 = vmatpush.msra.mxu0 %v59
  %2814 = vmatpush.msra.mxu0 %v34
  %2815 = vmatmul.f32.gmra.mxu0 %v1704
  %v2816 = vpop.f32.mrf.mxu0
  %v2817 = vadd.f32 %v1456, %v2816
  %2818 = vmatmul.f32.gmra.mxu0 %v1707
  %v2819 = vpop.f32.mrf.mxu0
  %v2820 = vadd.f32 %v1459, %v2819
  %2821 = vmatmul.f32.gmra.mxu0 %v1710
  %v2822 = vpop.f32.mrf.mxu0
  %v2823 = vadd.f32 %v1462, %v2822
  %2824 = vmatmul.f32.gmra.mxu0 %v1713
  %v2825 = vpop.f32.mrf.mxu0
  %v2826 = vadd.f32 %v1465, %v2825
  %2827 = vmatmul.f32.gmra.mxu0 %v1716
  %v2828 = vpop.f32.mrf.mxu0
  %v2829 = vadd.f32 %v1468, %v2828
  %2830 = vmatmul.f32.gmra.mxu0 %v1719
  %v2831 = vpop.f32.mrf.mxu0
  %v2832 = vadd.f32 %v1471, %v2831
  %2833 = vmatmul.f32.gmra.mxu0 %v1722
  %v2834 = vpop.f32.mrf.mxu0
  %v2835 = vadd.f32 %v1474, %v2834
  %2836 = vmatmul.f32.gmra.mxu0 %v1725
  %v2837 = vpop.f32.mrf.mxu0
  %v2838 = vadd.f32 %v1477, %v2837
  %2839 = vmatmul.f32.gmra.mxu0 %v1728
  %v2840 = vpop.f32.mrf.mxu0
  %v2841 = vadd.f32 %v1480, %v2840
  %2842 = vmatmul.f32.gmra.mxu0 %v1731
  %v2843 = vpop.f32.mrf.mxu0
  %v2844 = vadd.f32 %v1483, %v2843
  %2845 = vmatmul.f32.gmra.mxu0 %v1734
  %v2846 = vpop.f32.mrf.mxu0
  %v2847 = vadd.f32 %v1486, %v2846
  %2848 = vmatmul.f32.gmra.mxu0 %v1737
  %v2849 = vpop.f32.mrf.mxu0
  %v2850 = vadd.f32 %v1489, %v2849
  %2851 = vdwg.mxu0
  %2852 = vmatpush.msra.mxu0 0.0
  %2853 = vmatpush.msra.mxu0 0.0
  %2854 = vmatpush.msra.mxu0 0.0
  %2855 = vmatpush.msra.mxu0 0.0
  %2856 = vmatpush.msra.mxu0 0.0
  %2857 = vmatpush.msra.mxu0 0.0
  %2858 = vmatpush.msra.mxu0 0.0
  %2859 = vmatpush.msra.mxu0 0.0
  %2860 = vmatpush.msra.mxu0 0.0
  %2861 = vmatpush.msra.mxu0 0.0
  %2862 = vmatpush.msra.mxu0 0.0
  %2863 = vmatpush.msra.mxu0 0.0
  %2864 = vmatpush.msra.mxu0 0.0
  %2865 = vmatpush.msra.mxu0 %v85
  %2866 = vmatpush.msra.mxu0 %v60
  %2867 = vmatpush.msra.mxu0 %v35
  %2868 = vmatmul.f32.gmra.mxu0 %v1704
  %v2869 = vpop.f32.mrf.mxu0
  %v2870 = vadd.f32 %v1509, %v2869
  %2871 = vmatmul.f32.gmra.mxu0 %v1707
  %v2872 = vpop.f32.mrf.mxu0
  %v2873 = vadd.f32 %v1512, %v2872
  %2874 = vmatmul.f32.gmra.mxu0 %v1710
  %v2875 = vpop.f32.mrf.mxu0
  %v2876 = vadd.f32 %v1515, %v2875
  %2877 = vmatmul.f32.gmra.mxu0 %v1713
  %v2878 = vpop.f32.mrf.mxu0
  %v2879 = vadd.f32 %v1518, %v2878
  %2880 = vmatmul.f32.gmra.mxu0 %v1716
  %v2881 = vpop.f32.mrf.mxu0
  %v2882 = vadd.f32 %v1521, %v2881
  %2883 = vmatmul.f32.gmra.mxu0 %v1719
  %v2884 = vpop.f32.mrf.mxu0
  %v2885 = vadd.f32 %v1524, %v2884
  %2886 = vmatmul.f32.gmra.mxu0 %v1722
  %v2887 = vpop.f32.mrf.mxu0
  %v2888 = vadd.f32 %v1527, %v2887
  %2889 = vmatmul.f32.gmra.mxu0 %v1725
  %v2890 = vpop.f32.mrf.mxu0
  %v2891 = vadd.f32 %v1530, %v2890
  %2892 = vmatmul.f32.gmra.mxu0 %v1728
  %v2893 = vpop.f32.mrf.mxu0
  %v2894 = vadd.f32 %v1533, %v2893
  %2895 = vmatmul.f32.gmra.mxu0 %v1731
  %v2896 = vpop.f32.mrf.mxu0
  %v2897 = vadd.f32 %v1536, %v2896
  %2898 = vmatmul.f32.gmra.mxu0 %v1734
  %v2899 = vpop.f32.mrf.mxu0
  %v2900 = vadd.f32 %v1539, %v2899
  %2901 = vmatmul.f32.gmra.mxu0 %v1737
  %v2902 = vpop.f32.mrf.mxu0
  %v2903 = vadd.f32 %v1542, %v2902
  %2904 = vdwg.mxu0
  %2905 = vmatpush.msra.mxu0 0.0
  %2906 = vmatpush.msra.mxu0 0.0
  %2907 = vmatpush.msra.mxu0 0.0
  %2908 = vmatpush.msra.mxu0 0.0
  %2909 = vmatpush.msra.mxu0 0.0
  %2910 = vmatpush.msra.mxu0 0.0
  %2911 = vmatpush.msra.mxu0 0.0
  %2912 = vmatpush.msra.mxu0 0.0
  %2913 = vmatpush.msra.mxu0 0.0
  %2914 = vmatpush.msra.mxu0 0.0
  %2915 = vmatpush.msra.mxu0 0.0
  %2916 = vmatpush.msra.mxu0 0.0
  %2917 = vmatpush.msra.mxu0 0.0
  %2918 = vmatpush.msra.mxu0 %v86
  %2919 = vmatpush.msra.mxu0 %v61
  %2920 = vmatpush.msra.mxu0 %v36
  %2921 = vmatmul.f32.gmra.mxu0 %v1704
  %v2922 = vpop.f32.mrf.mxu0
  %v2923 = vadd.f32 %v1562, %v2922
  %2924 = vmatmul.f32.gmra.mxu0 %v1707
  %v2925 = vpop.f32.mrf.mxu0
  %v2926 = vadd.f32 %v1565, %v2925
  %2927 = vmatmul.f32.gmra.mxu0 %v1710
  %v2928 = vpop.f32.mrf.mxu0
  %v2929 = vadd.f32 %v1568, %v2928
  %2930 = vmatmul.f32.gmra.mxu0 %v1713
  %v2931 = vpop.f32.mrf.mxu0
  %v2932 = vadd.f32 %v1571, %v2931
  %2933 = vmatmul.f32.gmra.mxu0 %v1716
  %v2934 = vpop.f32.mrf.mxu0
  %v2935 = vadd.f32 %v1574, %v2934
  %2936 = vmatmul.f32.gmra.mxu0 %v1719
  %v2937 = vpop.f32.mrf.mxu0
  %v2938 = vadd.f32 %v1577, %v2937
  %2939 = vmatmul.f32.gmra.mxu0 %v1722
  %v2940 = vpop.f32.mrf.mxu0
  %v2941 = vadd.f32 %v1580, %v2940
  %2942 = vmatmul.f32.gmra.mxu0 %v1725
  %v2943 = vpop.f32.mrf.mxu0
  %v2944 = vadd.f32 %v1583, %v2943
  %2945 = vmatmul.f32.gmra.mxu0 %v1728
  %v2946 = vpop.f32.mrf.mxu0
  %v2947 = vadd.f32 %v1586, %v2946
  %2948 = vmatmul.f32.gmra.mxu0 %v1731
  %v2949 = vpop.f32.mrf.mxu0
  %v2950 = vadd.f32 %v1589, %v2949
  %2951 = vmatmul.f32.gmra.mxu0 %v1734
  %v2952 = vpop.f32.mrf.mxu0
  %v2953 = vadd.f32 %v1592, %v2952
  %2954 = vmatmul.f32.gmra.mxu0 %v1737
  %v2955 = vpop.f32.mrf.mxu0
  %v2956 = vadd.f32 %v1595, %v2955
  %2957 = vdwg.mxu0
  %2958 = vmatpush.msra.mxu0 0.0
  %2959 = vmatpush.msra.mxu0 0.0
  %2960 = vmatpush.msra.mxu0 0.0
  %2961 = vmatpush.msra.mxu0 0.0
  %2962 = vmatpush.msra.mxu0 0.0
  %2963 = vmatpush.msra.mxu0 0.0
  %2964 = vmatpush.msra.mxu0 0.0
  %2965 = vmatpush.msra.mxu0 0.0
  %2966 = vmatpush.msra.mxu0 0.0
  %2967 = vmatpush.msra.mxu0 0.0
  %2968 = vmatpush.msra.mxu0 0.0
  %2969 = vmatpush.msra.mxu0 0.0
  %2970 = vmatpush.msra.mxu0 0.0
  %2971 = vmatpush.msra.mxu0 %v87
  %2972 = vmatpush.msra.mxu0 %v62
  %2973 = vmatpush.msra.mxu0 %v37
  %2974 = vmatmul.f32.gmra.mxu0 %v1704
  %v2975 = vpop.f32.mrf.mxu0
  %v2976 = vadd.f32 %v1615, %v2975
  %2977 = vmatmul.f32.gmra.mxu0 %v1707
  %v2978 = vpop.f32.mrf.mxu0
  %v2979 = vadd.f32 %v1618, %v2978
  %2980 = vmatmul.f32.gmra.mxu0 %v1710
  %v2981 = vpop.f32.mrf.mxu0
  %v2982 = vadd.f32 %v1621, %v2981
  %2983 = vmatmul.f32.gmra.mxu0 %v1713
  %v2984 = vpop.f32.mrf.mxu0
  %v2985 = vadd.f32 %v1624, %v2984
  %2986 = vmatmul.f32.gmra.mxu0 %v1716
  %v2987 = vpop.f32.mrf.mxu0
  %v2988 = vadd.f32 %v1627, %v2987
  %2989 = vmatmul.f32.gmra.mxu0 %v1719
  %v2990 = vpop.f32.mrf.mxu0
  %v2991 = vadd.f32 %v1630, %v2990
  %2992 = vmatmul.f32.gmra.mxu0 %v1722
  %v2993 = vpop.f32.mrf.mxu0
  %v2994 = vadd.f32 %v1633, %v2993
  %2995 = vmatmul.f32.gmra.mxu0 %v1725
  %v2996 = vpop.f32.mrf.mxu0
  %v2997 = vadd.f32 %v1636, %v2996
  %2998 = vmatmul.f32.gmra.mxu0 %v1728
  %v2999 = vpop.f32.mrf.mxu0
  %v3000 = vadd.f32 %v1639, %v2999
  %3001 = vmatmul.f32.gmra.mxu0 %v1731
  %v3002 = vpop.f32.mrf.mxu0
  %v3003 = vadd.f32 %v1642, %v3002
  %3004 = vmatmul.f32.gmra.mxu0 %v1734
  %v3005 = vpop.f32.mrf.mxu0
  %v3006 = vadd.f32 %v1645, %v3005
  %3007 = vmatmul.f32.gmra.mxu0 %v1737
  %v3008 = vpop.f32.mrf.mxu0
  %v3009 = vadd.f32 %v1648, %v3008
  %3010 = vdwg.mxu0
  %3011 = vmatpush.msra.mxu0 0.0
  %3012 = vmatpush.msra.mxu0 0.0
  %3013 = vmatpush.msra.mxu0 0.0
  %3014 = vmatpush.msra.mxu0 0.0
  %3015 = vmatpush.msra.mxu0 0.0
  %3016 = vmatpush.msra.mxu0 0.0
  %3017 = vmatpush.msra.mxu0 0.0
  %3018 = vmatpush.msra.mxu0 0.0
  %3019 = vmatpush.msra.mxu0 0.0
  %3020 = vmatpush.msra.mxu0 0.0
  %3021 = vmatpush.msra.mxu0 0.0
  %3022 = vmatpush.msra.mxu0 0.0
  %3023 = vmatpush.msra.mxu0 0.0
  %3024 = vmatpush.msra.mxu0 %v88
  %3025 = vmatpush.msra.mxu0 %v63
  %3026 = vmatpush.msra.mxu0 %v38
  %3027 = vmatmul.f32.gmra.mxu0 %v1704
  %v3028 = vpop.f32.mrf.mxu0
  %v3029 = vadd.f32 %v1668, %v3028
  %3030 = vmatmul.f32.gmra.mxu0 %v1707
  %v3031 = vpop.f32.mrf.mxu0
  %v3032 = vadd.f32 %v1671, %v3031
  %3033 = vmatmul.f32.gmra.mxu0 %v1710
  %v3034 = vpop.f32.mrf.mxu0
  %v3035 = vadd.f32 %v1674, %v3034
  %3036 = vmatmul.f32.gmra.mxu0 %v1713
  %v3037 = vpop.f32.mrf.mxu0
  %v3038 = vadd.f32 %v1677, %v3037
  %3039 = vmatmul.f32.gmra.mxu0 %v1716
  %v3040 = vpop.f32.mrf.mxu0
  %v3041 = vadd.f32 %v1680, %v3040
  %3042 = vmatmul.f32.gmra.mxu0 %v1719
  %v3043 = vpop.f32.mrf.mxu0
  %v3044 = vadd.f32 %v1683, %v3043
  %3045 = vmatmul.f32.gmra.mxu0 %v1722
  %v3046 = vpop.f32.mrf.mxu0
  %v3047 = vadd.f32 %v1686, %v3046
  %3048 = vmatmul.f32.gmra.mxu0 %v1725
  %v3049 = vpop.f32.mrf.mxu0
  %v3050 = vadd.f32 %v1689, %v3049
  %3051 = vmatmul.f32.gmra.mxu0 %v1728
  %v3052 = vpop.f32.mrf.mxu0
  %v3053 = vadd.f32 %v1692, %v3052
  %3054 = vmatmul.f32.gmra.mxu0 %v1731
  %v3055 = vpop.f32.mrf.mxu0
  %v3056 = vadd.f32 %v1695, %v3055
  %3057 = vmatmul.f32.gmra.mxu0 %v1734
  %v3058 = vpop.f32.mrf.mxu0
  %v3059 = vadd.f32 %v1698, %v3058
  %3060 = vmatmul.f32.gmra.mxu0 %v1737
  %v3061 = vpop.f32.mrf.mxu0
  %v3062 = vadd.f32 %v1701, %v3061
  %3063 = vdwg.mxu0
  %3064 = vst [vmem:[%s3] sm:$0xff] %v1757
  %3065 = vst [vmem:[%s3 + $0x8] sm:$0xff] %v1810
  %3066 = vst [vmem:[%s3 + $0x10] sm:$0xff] %v1863
  %3067 = vst [vmem:[%s3 + $0x18] sm:$0xff] %v1916
  %3068 = vst [vmem:[%s3 + $0x20] sm:$0xff] %v1969
  %3069 = vst [vmem:[%s3 + $0x28] sm:$0xff] %v2022
  %3070 = vst [vmem:[%s3 + $0x30] sm:$0xff] %v2075
  %3071 = vst [vmem:[%s3 + $0x38] sm:$0xff] %v2128
  %3072 = vst [vmem:[%s3 + $0x40] sm:$0xff] %v2181
  %3073 = vst [vmem:[%s3 + $0x48] sm:$0xff] %v2234
  %3074 = vst [vmem:[%s3 + $0x50] sm:$0xff] %v2287
  %3075 = vst [vmem:[%s3 + $0x58] sm:$0xff] %v2340
  %3076 = vst [vmem:[%s3 + $0x60] sm:$0xff] %v2393
  %3077 = vst [vmem:[%s3 + $0x68] sm:$0xff] %v2446
  %3078 = vst [vmem:[%s3 + $0x70] sm:$0xff] %v2499
  %3079 = vst [vmem:[%s3 + $0x78] sm:$0xff] %v2552
  %3080 = vst [vmem:[%s3 + $0x80] sm:$0xff] %v2605
  %3081 = vst [vmem:[%s3 + $0x88] sm:$0xff] %v2658
  %3082 = vst [vmem:[%s3 + $0x90] sm:$0xff] %v2711
  %3083 = vst [vmem:[%s3 + $0x98] sm:$0xff] %v2764
  %3084 = vst [vmem:[%s3 + $0xa0] sm:$0xff] %v2817
  %3085 = vst [vmem:[%s3 + $0xa8] sm:$0xff] %v2870
  %3086 = vst [vmem:[%s3 + $0xb0] sm:$0xff] %v2923
  %3087 = vst [vmem:[%s3 + $0xb8] sm:$0xff] %v2976
  %vm3088 = vcmask 523264
  %3089 = vst.msk [vmem:[%s3 + $0xc0] sm:$0xff] %vm3088, %v3029
  %3090 = vst [vmem:[%s3 + $0xc8] sm:$0xff] %v1760
  %3091 = vst [vmem:[%s3 + $0xd0] sm:$0xff] %v1813
  %3092 = vst [vmem:[%s3 + $0xd8] sm:$0xff] %v1866
  %3093 = vst [vmem:[%s3 + $0xe0] sm:$0xff] %v1919
  %3094 = vst [vmem:[%s3 + $0xe8] sm:$0xff] %v1972
  %3095 = vst [vmem:[%s3 + $0xf0] sm:$0xff] %v2025
  %3096 = vst [vmem:[%s3 + $0xf8] sm:$0xff] %v2078
  %3097 = vst [vmem:[%s3 + $0x100] sm:$0xff] %v2131
  %3098 = vst [vmem:[%s3 + $0x108] sm:$0xff] %v2184
  %3099 = vst [vmem:[%s3 + $0x110] sm:$0xff] %v2237
  %3100 = vst [vmem:[%s3 + $0x118] sm:$0xff] %v2290
  %3101 = vst [vmem:[%s3 + $0x120] sm:$0xff] %v2343
  %3102 = vst [vmem:[%s3 + $0x128] sm:$0xff] %v2396
  %3103 = vst [vmem:[%s3 + $0x130] sm:$0xff] %v2449
  %3104 = vst [vmem:[%s3 + $0x138] sm:$0xff] %v2502
  %3105 = vst [vmem:[%s3 + $0x140] sm:$0xff] %v2555
  %3106 = vst [vmem:[%s3 + $0x148] sm:$0xff] %v2608
  %3107 = vst [vmem:[%s3 + $0x150] sm:$0xff] %v2661
  %3108 = vst [vmem:[%s3 + $0x158] sm:$0xff] %v2714
  %3109 = vst [vmem:[%s3 + $0x160] sm:$0xff] %v2767
  %3110 = vst [vmem:[%s3 + $0x168] sm:$0xff] %v2820
  %3111 = vst [vmem:[%s3 + $0x170] sm:$0xff] %v2873
  %3112 = vst [vmem:[%s3 + $0x178] sm:$0xff] %v2926
  %3113 = vst [vmem:[%s3 + $0x180] sm:$0xff] %v2979
  %3114 = vst.msk [vmem:[%s3 + $0x188] sm:$0xff] %vm3088, %v3032
  %3115 = vst [vmem:[%s3 + $0x190] sm:$0xff] %v1763
  %3116 = vst [vmem:[%s3 + $0x198] sm:$0xff] %v1816
  %3117 = vst [vmem:[%s3 + $0x1a0] sm:$0xff] %v1869
  %3118 = vst [vmem:[%s3 + $0x1a8] sm:$0xff] %v1922
  %3119 = vst [vmem:[%s3 + $0x1b0] sm:$0xff] %v1975
  %3120 = vst [vmem:[%s3 + $0x1b8] sm:$0xff] %v2028
  %3121 = vst [vmem:[%s3 + $0x1c0] sm:$0xff] %v2081
  %3122 = vst [vmem:[%s3 + $0x1c8] sm:$0xff] %v2134
  %3123 = vst [vmem:[%s3 + $0x1d0] sm:$0xff] %v2187
  %3124 = vst [vmem:[%s3 + $0x1d8] sm:$0xff] %v2240
  %3125 = vst [vmem:[%s3 + $0x1e0] sm:$0xff] %v2293
  %3126 = vst [vmem:[%s3 + $0x1e8] sm:$0xff] %v2346
  %3127 = vst [vmem:[%s3 + $0x1f0] sm:$0xff] %v2399
  %3128 = vst [vmem:[%s3 + $0x1f8] sm:$0xff] %v2452
  %3129 = vst [vmem:[%s3 + $0x200] sm:$0xff] %v2505
  %3130 = vst [vmem:[%s3 + $0x208] sm:$0xff] %v2558
  %3131 = vst [vmem:[%s3 + $0x210] sm:$0xff] %v2611
  %3132 = vst [vmem:[%s3 + $0x218] sm:$0xff] %v2664
  %3133 = vst [vmem:[%s3 + $0x220] sm:$0xff] %v2717
  %3134 = vst [vmem:[%s3 + $0x228] sm:$0xff] %v2770
  %3135 = vst [vmem:[%s3 + $0x230] sm:$0xff] %v2823
  %3136 = vst [vmem:[%s3 + $0x238] sm:$0xff] %v2876
  %3137 = vst [vmem:[%s3 + $0x240] sm:$0xff] %v2929
  %3138 = vst [vmem:[%s3 + $0x248] sm:$0xff] %v2982
  %3139 = vst.msk [vmem:[%s3 + $0x250] sm:$0xff] %vm3088, %v3035
  %3140 = vst [vmem:[%s3 + $0x258] sm:$0xff] %v1766
  %3141 = vst [vmem:[%s3 + $0x260] sm:$0xff] %v1819
  %3142 = vst [vmem:[%s3 + $0x268] sm:$0xff] %v1872
  %3143 = vst [vmem:[%s3 + $0x270] sm:$0xff] %v1925
  %3144 = vst [vmem:[%s3 + $0x278] sm:$0xff] %v1978
  %3145 = vst [vmem:[%s3 + $0x280] sm:$0xff] %v2031
  %3146 = vst [vmem:[%s3 + $0x288] sm:$0xff] %v2084
  %3147 = vst [vmem:[%s3 + $0x290] sm:$0xff] %v2137
  %3148 = vst [vmem:[%s3 + $0x298] sm:$0xff] %v2190
  %3149 = vst [vmem:[%s3 + $0x2a0] sm:$0xff] %v2243
  %3150 = vst [vmem:[%s3 + $0x2a8] sm:$0xff] %v2296
  %3151 = vst [vmem:[%s3 + $0x2b0] sm:$0xff] %v2349
  %3152 = vst [vmem:[%s3 + $0x2b8] sm:$0xff] %v2402
  %3153 = vst [vmem:[%s3 + $0x2c0] sm:$0xff] %v2455
  %3154 = vst [vmem:[%s3 + $0x2c8] sm:$0xff] %v2508
  %3155 = vst [vmem:[%s3 + $0x2d0] sm:$0xff] %v2561
  %3156 = vst [vmem:[%s3 + $0x2d8] sm:$0xff] %v2614
  %3157 = vst [vmem:[%s3 + $0x2e0] sm:$0xff] %v2667
  %3158 = vst [vmem:[%s3 + $0x2e8] sm:$0xff] %v2720
  %3159 = vst [vmem:[%s3 + $0x2f0] sm:$0xff] %v2773
  %3160 = vst [vmem:[%s3 + $0x2f8] sm:$0xff] %v2826
  %3161 = vst [vmem:[%s3 + $0x300] sm:$0xff] %v2879
  %3162 = vst [vmem:[%s3 + $0x308] sm:$0xff] %v2932
  %3163 = vst [vmem:[%s3 + $0x310] sm:$0xff] %v2985
  %3164 = vst.msk [vmem:[%s3 + $0x318] sm:$0xff] %vm3088, %v3038
  %3165 = vst [vmem:[%s3 + $0x320] sm:$0xff] %v1769
  %3166 = vst [vmem:[%s3 + $0x328] sm:$0xff] %v1822
  %3167 = vst [vmem:[%s3 + $0x330] sm:$0xff] %v1875
  %3168 = vst [vmem:[%s3 + $0x338] sm:$0xff] %v1928
  %3169 = vst [vmem:[%s3 + $0x340] sm:$0xff] %v1981
  %3170 = vst [vmem:[%s3 + $0x348] sm:$0xff] %v2034
  %3171 = vst [vmem:[%s3 + $0x350] sm:$0xff] %v2087
  %3172 = vst [vmem:[%s3 + $0x358] sm:$0xff] %v2140
  %3173 = vst [vmem:[%s3 + $0x360] sm:$0xff] %v2193
  %3174 = vst [vmem:[%s3 + $0x368] sm:$0xff] %v2246
  %3175 = vst [vmem:[%s3 + $0x370] sm:$0xff] %v2299
  %3176 = vst [vmem:[%s3 + $0x378] sm:$0xff] %v2352
  %3177 = vst [vmem:[%s3 + $0x380] sm:$0xff] %v2405
  %3178 = vst [vmem:[%s3 + $0x388] sm:$0xff] %v2458
  %3179 = vst [vmem:[%s3 + $0x390] sm:$0xff] %v2511
  %3180 = vst [vmem:[%s3 + $0x398] sm:$0xff] %v2564
  %3181 = vst [vmem:[%s3 + $0x3a0] sm:$0xff] %v2617
  %3182 = vst [vmem:[%s3 + $0x3a8] sm:$0xff] %v2670
  %3183 = vst [vmem:[%s3 + $0x3b0] sm:$0xff] %v2723
  %3184 = vst [vmem:[%s3 + $0x3b8] sm:$0xff] %v2776
  %3185 = vst [vmem:[%s3 + $0x3c0] sm:$0xff] %v2829
  %3186 = vst [vmem:[%s3 + $0x3c8] sm:$0xff] %v2882
  %3187 = vst [vmem:[%s3 + $0x3d0] sm:$0xff] %v2935
  %3188 = vst [vmem:[%s3 + $0x3d8] sm:$0xff] %v2988
  %3189 = vst.msk [vmem:[%s3 + $0x3e0] sm:$0xff] %vm3088, %v3041
  %3190 = vst [vmem:[%s3 + $0x3e8] sm:$0xff] %v1772
  %3191 = vst [vmem:[%s3 + $0x3f0] sm:$0xff] %v1825
  %3192 = vst [vmem:[%s3 + $0x3f8] sm:$0xff] %v1878
  %3193 = vst [vmem:[%s3 + $0x400] sm:$0xff] %v1931
  %3194 = vst [vmem:[%s3 + $0x408] sm:$0xff] %v1984
  %3195 = vst [vmem:[%s3 + $0x410] sm:$0xff] %v2037
  %3196 = vst [vmem:[%s3 + $0x418] sm:$0xff] %v2090
  %3197 = vst [vmem:[%s3 + $0x420] sm:$0xff] %v2143
  %3198 = vst [vmem:[%s3 + $0x428] sm:$0xff] %v2196
  %3199 = vst [vmem:[%s3 + $0x430] sm:$0xff] %v2249
  %3200 = vst [vmem:[%s3 + $0x438] sm:$0xff] %v2302
  %3201 = vst [vmem:[%s3 + $0x440] sm:$0xff] %v2355
  %3202 = vst [vmem:[%s3 + $0x448] sm:$0xff] %v2408
  %3203 = vst [vmem:[%s3 + $0x450] sm:$0xff] %v2461
  %3204 = vst [vmem:[%s3 + $0x458] sm:$0xff] %v2514
  %3205 = vst [vmem:[%s3 + $0x460] sm:$0xff] %v2567
  %3206 = vst [vmem:[%s3 + $0x468] sm:$0xff] %v2620
  %3207 = vst [vmem:[%s3 + $0x470] sm:$0xff] %v2673
  %3208 = vst [vmem:[%s3 + $0x478] sm:$0xff] %v2726
  %3209 = vst [vmem:[%s3 + $0x480] sm:$0xff] %v2779
  %3210 = vst [vmem:[%s3 + $0x488] sm:$0xff] %v2832
  %3211 = vst [vmem:[%s3 + $0x490] sm:$0xff] %v2885
  %3212 = vst [vmem:[%s3 + $0x498] sm:$0xff] %v2938
  %3213 = vst [vmem:[%s3 + $0x4a0] sm:$0xff] %v2991
  %3214 = vst.msk [vmem:[%s3 + $0x4a8] sm:$0xff] %vm3088, %v3044
  %3215 = vst [vmem:[%s3 + $0x4b0] sm:$0xff] %v1775
  %3216 = vst [vmem:[%s3 + $0x4b8] sm:$0xff] %v1828
  %3217 = vst [vmem:[%s3 + $0x4c0] sm:$0xff] %v1881
  %3218 = vst [vmem:[%s3 + $0x4c8] sm:$0xff] %v1934
  %3219 = vst [vmem:[%s3 + $0x4d0] sm:$0xff] %v1987
  %3220 = vst [vmem:[%s3 + $0x4d8] sm:$0xff] %v2040
  %3221 = vst [vmem:[%s3 + $0x4e0] sm:$0xff] %v2093
  %3222 = vst [vmem:[%s3 + $0x4e8] sm:$0xff] %v2146
  %3223 = vst [vmem:[%s3 + $0x4f0] sm:$0xff] %v2199
  %3224 = vst [vmem:[%s3 + $0x4f8] sm:$0xff] %v2252
  %3225 = vst [vmem:[%s3 + $0x500] sm:$0xff] %v2305
  %3226 = vst [vmem:[%s3 + $0x508] sm:$0xff] %v2358
  %3227 = vst [vmem:[%s3 + $0x510] sm:$0xff] %v2411
  %3228 = vst [vmem:[%s3 + $0x518] sm:$0xff] %v2464
  %3229 = vst [vmem:[%s3 + $0x520] sm:$0xff] %v2517
  %3230 = vst [vmem:[%s3 + $0x528] sm:$0xff] %v2570
  %3231 = vst [vmem:[%s3 + $0x530] sm:$0xff] %v2623
  %3232 = vst [vmem:[%s3 + $0x538] sm:$0xff] %v2676
  %3233 = vst [vmem:[%s3 + $0x540] sm:$0xff] %v2729
  %3234 = vst [vmem:[%s3 + $0x548] sm:$0xff] %v2782
  %3235 = vst [vmem:[%s3 + $0x550] sm:$0xff] %v2835
  %3236 = vst [vmem:[%s3 + $0x558] sm:$0xff] %v2888
  %3237 = vst [vmem:[%s3 + $0x560] sm:$0xff] %v2941
  %3238 = vst [vmem:[%s3 + $0x568] sm:$0xff] %v2994
  %3239 = vst.msk [vmem:[%s3 + $0x570] sm:$0xff] %vm3088, %v3047
  %3240 = vst [vmem:[%s3 + $0x578] sm:$0xff] %v1778
  %3241 = vst [vmem:[%s3 + $0x580] sm:$0xff] %v1831
  %3242 = vst [vmem:[%s3 + $0x588] sm:$0xff] %v1884
  %3243 = vst [vmem:[%s3 + $0x590] sm:$0xff] %v1937
  %3244 = vst [vmem:[%s3 + $0x598] sm:$0xff] %v1990
  %3245 = vst [vmem:[%s3 + $0x5a0] sm:$0xff] %v2043
  %3246 = vst [vmem:[%s3 + $0x5a8] sm:$0xff] %v2096
  %3247 = vst [vmem:[%s3 + $0x5b0] sm:$0xff] %v2149
  %3248 = vst [vmem:[%s3 + $0x5b8] sm:$0xff] %v2202
  %3249 = vst [vmem:[%s3 + $0x5c0] sm:$0xff] %v2255
  %3250 = vst [vmem:[%s3 + $0x5c8] sm:$0xff] %v2308
  %3251 = vst [vmem:[%s3 + $0x5d0] sm:$0xff] %v2361
  %3252 = vst [vmem:[%s3 + $0x5d8] sm:$0xff] %v2414
  %3253 = vst [vmem:[%s3 + $0x5e0] sm:$0xff] %v2467
  %3254 = vst [vmem:[%s3 + $0x5e8] sm:$0xff] %v2520
  %3255 = vst [vmem:[%s3 + $0x5f0] sm:$0xff] %v2573
  %3256 = vst [vmem:[%s3 + $0x5f8] sm:$0xff] %v2626
  %3257 = vst [vmem:[%s3 + $0x600] sm:$0xff] %v2679
  %3258 = vst [vmem:[%s3 + $0x608] sm:$0xff] %v2732
  %3259 = vst [vmem:[%s3 + $0x610] sm:$0xff] %v2785
  %3260 = vst [vmem:[%s3 + $0x618] sm:$0xff] %v2838
  %3261 = vst [vmem:[%s3 + $0x620] sm:$0xff] %v2891
  %3262 = vst [vmem:[%s3 + $0x628] sm:$0xff] %v2944
  %3263 = vst [vmem:[%s3 + $0x630] sm:$0xff] %v2997
  %3264 = vst.msk [vmem:[%s3 + $0x638] sm:$0xff] %vm3088, %v3050
  %3265 = vst [vmem:[%s3 + $0x640] sm:$0xff] %v1781
  %3266 = vst [vmem:[%s3 + $0x648] sm:$0xff] %v1834
  %3267 = vst [vmem:[%s3 + $0x650] sm:$0xff] %v1887
  %3268 = vst [vmem:[%s3 + $0x658] sm:$0xff] %v1940
  %3269 = vst [vmem:[%s3 + $0x660] sm:$0xff] %v1993
  %3270 = vst [vmem:[%s3 + $0x668] sm:$0xff] %v2046
  %3271 = vst [vmem:[%s3 + $0x670] sm:$0xff] %v2099
  %3272 = vst [vmem:[%s3 + $0x678] sm:$0xff] %v2152
  %3273 = vst [vmem:[%s3 + $0x680] sm:$0xff] %v2205
  %3274 = vst [vmem:[%s3 + $0x688] sm:$0xff] %v2258
  %3275 = vst [vmem:[%s3 + $0x690] sm:$0xff] %v2311
  %3276 = vst [vmem:[%s3 + $0x698] sm:$0xff] %v2364
  %3277 = vst [vmem:[%s3 + $0x6a0] sm:$0xff] %v2417
  %3278 = vst [vmem:[%s3 + $0x6a8] sm:$0xff] %v2470
  %3279 = vst [vmem:[%s3 + $0x6b0] sm:$0xff] %v2523
  %3280 = vst [vmem:[%s3 + $0x6b8] sm:$0xff] %v2576
  %3281 = vst [vmem:[%s3 + $0x6c0] sm:$0xff] %v2629
  %3282 = vst [vmem:[%s3 + $0x6c8] sm:$0xff] %v2682
  %3283 = vst [vmem:[%s3 + $0x6d0] sm:$0xff] %v2735
  %3284 = vst [vmem:[%s3 + $0x6d8] sm:$0xff] %v2788
  %3285 = vst [vmem:[%s3 + $0x6e0] sm:$0xff] %v2841
  %3286 = vst [vmem:[%s3 + $0x6e8] sm:$0xff] %v2894
  %3287 = vst [vmem:[%s3 + $0x6f0] sm:$0xff] %v2947
  %3288 = vst [vmem:[%s3 + $0x6f8] sm:$0xff] %v3000
  %3289 = vst.msk [vmem:[%s3 + $0x700] sm:$0xff] %vm3088, %v3053
  %3290 = vst [vmem:[%s3 + $0x708] sm:$0xff] %v1784
  %3291 = vst [vmem:[%s3 + $0x710] sm:$0xff] %v1837
  %3292 = vst [vmem:[%s3 + $0x718] sm:$0xff] %v1890
  %3293 = vst [vmem:[%s3 + $0x720] sm:$0xff] %v1943
  %3294 = vst [vmem:[%s3 + $0x728] sm:$0xff] %v1996
  %3295 = vst [vmem:[%s3 + $0x730] sm:$0xff] %v2049
  %3296 = vst [vmem:[%s3 + $0x738] sm:$0xff] %v2102
  %3297 = vst [vmem:[%s3 + $0x740] sm:$0xff] %v2155
  %3298 = vst [vmem:[%s3 + $0x748] sm:$0xff] %v2208
  %3299 = vst [vmem:[%s3 + $0x750] sm:$0xff] %v2261
  %3300 = vst [vmem:[%s3 + $0x758] sm:$0xff] %v2314
  %3301 = vst [vmem:[%s3 + $0x760] sm:$0xff] %v2367
  %3302 = vst [vmem:[%s3 + $0x768] sm:$0xff] %v2420
  %3303 = vst [vmem:[%s3 + $0x770] sm:$0xff] %v2473
  %3304 = vst [vmem:[%s3 + $0x778] sm:$0xff] %v2526
  %3305 = vst [vmem:[%s3 + $0x780] sm:$0xff] %v2579
  %3306 = vst [vmem:[%s3 + $0x788] sm:$0xff] %v2632
  %3307 = vst [vmem:[%s3 + $0x790] sm:$0xff] %v2685
  %3308 = vst [vmem:[%s3 + $0x798] sm:$0xff] %v2738
  %3309 = vst [vmem:[%s3 + $0x7a0] sm:$0xff] %v2791
  %3310 = vst [vmem:[%s3 + $0x7a8] sm:$0xff] %v2844
  %3311 = vst [vmem:[%s3 + $0x7b0] sm:$0xff] %v2897
  %3312 = vst [vmem:[%s3 + $0x7b8] sm:$0xff] %v2950
  %3313 = vst [vmem:[%s3 + $0x7c0] sm:$0xff] %v3003
  %3314 = vst.msk [vmem:[%s3 + $0x7c8] sm:$0xff] %vm3088, %v3056
  %3315 = vst [vmem:[%s3 + $0x7d0] sm:$0xff] %v1787
  %3316 = vst [vmem:[%s3 + $0x7d8] sm:$0xff] %v1840
  %3317 = vst [vmem:[%s3 + $0x7e0] sm:$0xff] %v1893
  %3318 = vst [vmem:[%s3 + $0x7e8] sm:$0xff] %v1946
  %3319 = vst [vmem:[%s3 + $0x7f0] sm:$0xff] %v1999
  %3320 = vst [vmem:[%s3 + $0x7f8] sm:$0xff] %v2052
  %3321 = vst [vmem:[%s3 + $0x800] sm:$0xff] %v2105
  %3322 = vst [vmem:[%s3 + $0x808] sm:$0xff] %v2158
  %3323 = vst [vmem:[%s3 + $0x810] sm:$0xff] %v2211
  %3324 = vst [vmem:[%s3 + $0x818] sm:$0xff] %v2264
  %3325 = vst [vmem:[%s3 + $0x820] sm:$0xff] %v2317
  %3326 = vst [vmem:[%s3 + $0x828] sm:$0xff] %v2370
  %3327 = vst [vmem:[%s3 + $0x830] sm:$0xff] %v2423
  %3328 = vst [vmem:[%s3 + $0x838] sm:$0xff] %v2476
  %3329 = vst [vmem:[%s3 + $0x840] sm:$0xff] %v2529
  %3330 = vst [vmem:[%s3 + $0x848] sm:$0xff] %v2582
  %3331 = vst [vmem:[%s3 + $0x850] sm:$0xff] %v2635
  %3332 = vst [vmem:[%s3 + $0x858] sm:$0xff] %v2688
  %3333 = vst [vmem:[%s3 + $0x860] sm:$0xff] %v2741
  %3334 = vst [vmem:[%s3 + $0x868] sm:$0xff] %v2794
  %3335 = vst [vmem:[%s3 + $0x870] sm:$0xff] %v2847
  %3336 = vst [vmem:[%s3 + $0x878] sm:$0xff] %v2900
  %3337 = vst [vmem:[%s3 + $0x880] sm:$0xff] %v2953
  %3338 = vst [vmem:[%s3 + $0x888] sm:$0xff] %v3006
  %3339 = vst.msk [vmem:[%s3 + $0x890] sm:$0xff] %vm3088, %v3059
  %3340 = vst [vmem:[%s3 + $0x898] sm:$0xff] %v1790
  %3341 = vst [vmem:[%s3 + $0x8a0] sm:$0xff] %v1843
  %3342 = vst [vmem:[%s3 + $0x8a8] sm:$0xff] %v1896
  %3343 = vst [vmem:[%s3 + $0x8b0] sm:$0xff] %v1949
  %3344 = vst [vmem:[%s3 + $0x8b8] sm:$0xff] %v2002
  %3345 = vst [vmem:[%s3 + $0x8c0] sm:$0xff] %v2055
  %3346 = vst [vmem:[%s3 + $0x8c8] sm:$0xff] %v2108
  %3347 = vst [vmem:[%s3 + $0x8d0] sm:$0xff] %v2161
  %3348 = vst [vmem:[%s3 + $0x8d8] sm:$0xff] %v2214
  %3349 = vst [vmem:[%s3 + $0x8e0] sm:$0xff] %v2267
  %3350 = vst [vmem:[%s3 + $0x8e8] sm:$0xff] %v2320
  %3351 = vst [vmem:[%s3 + $0x8f0] sm:$0xff] %v2373
  %3352 = vst [vmem:[%s3 + $0x8f8] sm:$0xff] %v2426
  %3353 = vst [vmem:[%s3 + $0x900] sm:$0xff] %v2479
  %3354 = vst [vmem:[%s3 + $0x908] sm:$0xff] %v2532
  %3355 = vst [vmem:[%s3 + $0x910] sm:$0xff] %v2585
  %3356 = vst [vmem:[%s3 + $0x918] sm:$0xff] %v2638
  %3357 = vst [vmem:[%s3 + $0x920] sm:$0xff] %v2691
  %3358 = vst [vmem:[%s3 + $0x928] sm:$0xff] %v2744
  %3359 = vst [vmem:[%s3 + $0x930] sm:$0xff] %v2797
  %3360 = vst [vmem:[%s3 + $0x938] sm:$0xff] %v2850
  %3361 = vst [vmem:[%s3 + $0x940] sm:$0xff] %v2903
  %3362 = vst [vmem:[%s3 + $0x948] sm:$0xff] %v2956
  %3363 = vst [vmem:[%s3 + $0x950] sm:$0xff] %v3009
  %3364 = vst.msk [vmem:[%s3 + $0x958] sm:$0xff] %vm3088, %v3062
  // Predicated region
  $region14: #{_forward_impl.1} parent=0 // pred_check
    _
  $region15: #{_forward_impl.1} parent=0 // pred_check_branch
    %3366 = sbr.rel (0) target = $region17
  $region16: #{_forward_impl.1} parent=0 // pred_region
    _
  $region17: #{_forward_impl.1} parent=0 // pred_fallthru
    _
  // Predicated region
  $region18: #{_forward_impl.1} parent=0 // pred_check
    _
  $region19: #{_forward_impl.1} parent=0 // pred_check_branch
    %3368 = sbr.rel (0) target = $region21
  $region20: #{_forward_impl.1} parent=0 // pred_region
    _
  $region21: #{_forward_impl.1} parent=0 // pred_fallthru
    _

// kernel: _forward_impl.1
$region0: #{_forward_impl.1}
  #allocation0 [shape = 'u32[]', space=smem, size = 0x4, offset = 0x4, fixed_abs, tag = 'smem constant byte address 0x4 - core index']
  #allocation1 [shape = 'u32[72,128]{1,0:T(1,128)}', space=vmem, size = 0x9000, scoped, tag = 'internal scratch']
  %s0 = inlined_call_operand.vmem [shape: f32[24,3136], index: 0, kind: input, shape index: {}]
  %s1 = inlined_call_operand.vmem [shape: f32[24,3136], index: 1, kind: input, shape index: {}]
  %s2 = inlined_call_operand.vmem [shape: f32[96,24], index: 2, kind: input, shape index: {}]
  %s3 = inlined_call_operand.vmem [shape: f32[96,24], index: 3, kind: input, shape index: {}]
  %s4 = inlined_call_operand.vmem [shape: f32[96,3136], index: 4, kind: output, shape index: {}]
  %s5 = sld [smem:[#allocation0]]
  $region26: #{_forward_impl.1} parent=0
    _
  %s7 = ssub.s32 1, %s5
  %s8 = scalar_select 0, %s7, %s5
  // Predicated region
  $region2: #{_forward_impl.1} parent=0 // pred_check
    _
  $region3: #{_forward_impl.1} parent=0 // pred_check_branch
    %10 = sbr.rel (0) target = $region5
  $region4: #{_forward_impl.1} parent=0 // pred_region
    _
  $region5: #{_forward_impl.1} parent=0 // pred_fallthru
    _
  // Predicated region
  $region6: #{_forward_impl.1} parent=0 // pred_check
    _
  $region7: #{_forward_impl.1} parent=0 // pred_check_branch
    %12 = sbr.rel (0) target = $region9
  $region8: #{_forward_impl.1} parent=0 // pred_region
    _
  $region9: #{_forward_impl.1} parent=0 // pred_fallthru
    _
  // Predicated region
  $region10: #{_forward_impl.1} parent=0 // pred_check
    _
  $region11: #{_forward_impl.1} parent=0 // pred_check_branch
    %14 = sbr.rel (0) target = $region13
  $region12: #{_forward_impl.1} parent=0 // pred_region
    _
  $region13: #{_forward_impl.1} parent=0 // pred_fallthru
    _
  // Predicated region
  $region14: #{_forward_impl.1} parent=0 // pred_check
    _
  $region15: #{_forward_impl.1} parent=0 // pred_check_branch
    %16 = sbr.rel (0) target = $region17
  $region16: #{_forward_impl.1} parent=0 // pred_region
    _
  $region17: #{_forward_impl.1} parent=0 // pred_fallthru
    _
  %v17 = vld [vmem:[%s2] sm:$0xff]
  %v18 = vld [vmem:[%s2 + $0x8] sm:$0xff]
  %v19 = vld [vmem:[%s2 + $0x10] sm:$0xff]
  %v20 = vld [vmem:[%s2 + $0x18] sm:$0xff]
  %v21 = vld [vmem:[%s2 + $0x20] sm:$0xff]
  %v22 = vld [vmem:[%s2 + $0x28] sm:$0xff]
  %v23 = vld [vmem:[%s2 + $0x30] sm:$0xff]
  %v24 = vld [vmem:[%s2 + $0x38] sm:$0xff]
  %v25 = vld [vmem:[%s2 + $0x40] sm:$0xff]
  %v26 = vld [vmem:[%s2 + $0x48] sm:$0xff]
  %v27 = vld [vmem:[%s2 + $0x50] sm:$0xff]
  %v28 = vld [vmem:[%s2 + $0x58] sm:$0xff]
  %v29 = vld [vmem:[%s0] sm:$0xff]
  %v30 = vld [vmem:[%s0 + $0x8] sm:$0xff]
  %v31 = vld [vmem:[%s0 + $0x10] sm:$0xff]
  %v32 = vld [vmem:[%s0 + $0x18] sm:$0xff]
  %v33 = vld [vmem:[%s0 + $0x20] sm:$0xff]
  %v34 = vld [vmem:[%s0 + $0x28] sm:$0xff]
  %v35 = vld [vmem:[%s0 + $0x30] sm:$0xff]
  %v36 = vld [vmem:[%s0 + $0x38] sm:$0xff]
  %v37 = vld [vmem:[%s0 + $0x40] sm:$0xff]
  %v38 = vld [vmem:[%s0 + $0x48] sm:$0xff]
  %v39 = vld [vmem:[%s0 + $0x50] sm:$0xff]
  %v40 = vld [vmem:[%s0 + $0x58] sm:$0xff]
  %v41 = vld [vmem:[%s0 + $0x60] sm:$0xff]
  %v42 = vld [vmem:[%s0 + $0x68] sm:$0xff]
  %v43 = vld [vmem:[%s0 + $0x70] sm:$0xff]
  %v44 = vld [vmem:[%s0 + $0x78] sm:$0xff]
  %v45 = vld [vmem:[%s0 + $0x80] sm:$0xff]
  %v46 = vld [vmem:[%s0 + $0x88] sm:$0xff]
  %v47 = vld [vmem:[%s0 + $0x90] sm:$0xff]
  %v48 = vld [vmem:[%s0 + $0x98] sm:$0xff]
  %v49 = vld [vmem:[%s0 + $0xa0] sm:$0xff]
  %v50 = vld [vmem:[%s0 + $0xa8] sm:$0xff]
  %v51 = vld [vmem:[%s0 + $0xb0] sm:$0xff]
  %v52 = vld [vmem:[%s0 + $0xb8] sm:$0xff]
  %v53 = vld [vmem:[%s0 + $0xc0] sm:$0xff]
  %v54 = vld [vmem:[%s0 + $0xc8] sm:$0xff]
  %v55 = vld [vmem:[%s0 + $0xd0] sm:$0xff]
  %v56 = vld [vmem:[%s0 + $0xd8] sm:$0xff]
  %v57 = vld [vmem:[%s0 + $0xe0] sm:$0xff]
  %v58 = vld [vmem:[%s0 + $0xe8] sm:$0xff]
  %v59 = vld [vmem:[%s0 + $0xf0] sm:$0xff]
  %v60 = vld [vmem:[%s0 + $0xf8] sm:$0xff]
  %v61 = vld [vmem:[%s0 + $0x100] sm:$0xff]
  %v62 = vld [vmem:[%s0 + $0x108] sm:$0xff]
  %v63 = vld [vmem:[%s0 + $0x110] sm:$0xff]
  %v64 = vld [vmem:[%s0 + $0x118] sm:$0xff]
  %v65 = vld [vmem:[%s0 + $0x120] sm:$0xff]
  %v66 = vld [vmem:[%s0 + $0x128] sm:$0xff]
  %v67 = vld [vmem:[%s0 + $0x130] sm:$0xff]
  %v68 = vld [vmem:[%s0 + $0x138] sm:$0xff]
  %v69 = vld [vmem:[%s0 + $0x140] sm:$0xff]
  %v70 = vld [vmem:[%s0 + $0x148] sm:$0xff]
  %v71 = vld [vmem:[%s0 + $0x150] sm:$0xff]
  %v72 = vld [vmem:[%s0 + $0x158] sm:$0xff]
  %v73 = vld [vmem:[%s0 + $0x160] sm:$0xff]
  %v74 = vld [vmem:[%s0 + $0x168] sm:$0xff]
  %v75 = vld [vmem:[%s0 + $0x170] sm:$0xff]
  %v76 = vld [vmem:[%s0 + $0x178] sm:$0xff]
  %v77 = vld [vmem:[%s0 + $0x180] sm:$0xff]
  %v78 = vld [vmem:[%s0 + $0x188] sm:$0xff]
  %v79 = vld [vmem:[%s0 + $0x190] sm:$0xff]
  %v80 = vld [vmem:[%s0 + $0x198] sm:$0xff]
  %v81 = vld [vmem:[%s0 + $0x1a0] sm:$0xff]
  %v82 = vld [vmem:[%s0 + $0x1a8] sm:$0xff]
  %v83 = vld [vmem:[%s0 + $0x1b0] sm:$0xff]
  %v84 = vld [vmem:[%s0 + $0x1b8] sm:$0xff]
  %v85 = vld [vmem:[%s0 + $0x1c0] sm:$0xff]
  %v86 = vld [vmem:[%s0 + $0x1c8] sm:$0xff]
  %v87 = vld [vmem:[%s0 + $0x1d0] sm:$0xff]
  %v88 = vld [vmem:[%s0 + $0x1d8] sm:$0xff]
  %v89 = vld [vmem:[%s0 + $0x1e0] sm:$0xff]
  %v90 = vld [vmem:[%s0 + $0x1e8] sm:$0xff]
  %v91 = vld [vmem:[%s0 + $0x1f0] sm:$0xff]
  %v92 = vld [vmem:[%s0 + $0x1f8] sm:$0xff]
  %v93 = vld [vmem:[%s0 + $0x200] sm:$0xff]
  %v94 = vld [vmem:[%s0 + $0x208] sm:$0xff]
  %v95 = vld [vmem:[%s0 + $0x210] sm:$0xff]
  %v96 = vld [vmem:[%s0 + $0x218] sm:$0xff]
  %v97 = vld [vmem:[%s0 + $0x220] sm:$0xff]
  %v98 = vld [vmem:[%s0 + $0x228] sm:$0xff]
  %v99 = vld [vmem:[%s0 + $0x230] sm:$0xff]
  %v100 = vld [vmem:[%s0 + $0x238] sm:$0xff]
  %v101 = vld [vmem:[%s0 + $0x240] sm:$0xff]
  %v102 = vld [vmem:[%s0 + $0x248] sm:$0xff]
  %v103 = vld [vmem:[%s0 + $0x250] sm:$0xff]
  %v104 = vld [vmem:[%s3] sm:$0xff]
  %v105 = vld [vmem:[%s3 + $0x8] sm:$0xff]
  %v106 = vld [vmem:[%s3 + $0x10] sm:$0xff]
  %v107 = vld [vmem:[%s3 + $0x18] sm:$0xff]
  %v108 = vld [vmem:[%s3 + $0x20] sm:$0xff]
  %v109 = vld [vmem:[%s3 + $0x28] sm:$0xff]
  %v110 = vld [vmem:[%s3 + $0x30] sm:$0xff]
  %v111 = vld [vmem:[%s3 + $0x38] sm:$0xff]
  %v112 = vld [vmem:[%s3 + $0x40] sm:$0xff]
  %v113 = vld [vmem:[%s3 + $0x48] sm:$0xff]
  %v114 = vld [vmem:[%s3 + $0x50] sm:$0xff]
  %v115 = vld [vmem:[%s3 + $0x58] sm:$0xff]
  %v116 = vld [vmem:[%s1] sm:$0xff]
  %v117 = vld [vmem:[%s1 + $0x8] sm:$0xff]
  %v118 = vld [vmem:[%s1 + $0x10] sm:$0xff]
  %v119 = vld [vmem:[%s1 + $0x18] sm:$0xff]
  %v120 = vld [vmem:[%s1 + $0x20] sm:$0xff]
  %v121 = vld [vmem:[%s1 + $0x28] sm:$0xff]
  %v122 = vld [vmem:[%s1 + $0x30] sm:$0xff]
  %v123 = vld [vmem:[%s1 + $0x38] sm:$0xff]
  %v124 = vld [vmem:[%s1 + $0x40] sm:$0xff]
  %v125 = vld [vmem:[%s1 + $0x48] sm:$0xff]
  %v126 = vld [vmem:[%s1 + $0x50] sm:$0xff]
  %v127 = vld [vmem:[%s1 + $0x58] sm:$0xff]
  %v128 = vld [vmem:[%s1 + $0x60] sm:$0xff]
  %v129 = vld [vmem:[%s1 + $0x68] sm:$0xff]
  %v130 = vld [vmem:[%s1 + $0x70] sm:$0xff]
  %v131 = vld [vmem:[%s1 + $0x78] sm:$0xff]
  %v132 = vld [vmem:[%s1 + $0x80] sm:$0xff]
  %v133 = vld [vmem:[%s1 + $0x88] sm:$0xff]
  %v134 = vld [vmem:[%s1 + $0x90] sm:$0xff]
  %v135 = vld [vmem:[%s1 + $0x98] sm:$0xff]
  %v136 = vld [vmem:[%s1 + $0xa0] sm:$0xff]
  %v137 = vld [vmem:[%s1 + $0xa8] sm:$0xff]
  %v138 = vld [vmem:[%s1 + $0xb0] sm:$0xff]
  %v139 = vld [vmem:[%s1 + $0xb8] sm:$0xff]
  %v140 = vld [vmem:[%s1 + $0xc0] sm:$0xff]
  %v141 = vld [vmem:[%s1 + $0xc8] sm:$0xff]
  %v142 = vld [vmem:[%s1 + $0xd0] sm:$0xff]
  %v143 = vld [vmem:[%s1 + $0xd8] sm:$0xff]
  %v144 = vld [vmem:[%s1 + $0xe0] sm:$0xff]
  %v145 = vld [vmem:[%s1 + $0xe8] sm:$0xff]
  %v146 = vld [vmem:[%s1 + $0xf0] sm:$0xff]
  %v147 = vld [vmem:[%s1 + $0xf8] sm:$0xff]
  %v148 = vld [vmem:[%s1 + $0x100] sm:$0xff]
  %v149 = vld [vmem:[%s1 + $0x108] sm:$0xff]
  %v150 = vld [vmem:[%s1 + $0x110] sm:$0xff]
  %v151 = vld [vmem:[%s1 + $0x118] sm:$0xff]
  %v152 = vld [vmem:[%s1 + $0x120] sm:$0xff]
  %v153 = vld [vmem:[%s1 + $0x128] sm:$0xff]
  %v154 = vld [vmem:[%s1 + $0x130] sm:$0xff]
  %v155 = vld [vmem:[%s1 + $0x138] sm:$0xff]
  %v156 = vld [vmem:[%s1 + $0x140] sm:$0xff]
  %v157 = vld [vmem:[%s1 + $0x148] sm:$0xff]
  %v158 = vld [vmem:[%s1 + $0x150] sm:$0xff]
  %v159 = vld [vmem:[%s1 + $0x158] sm:$0xff]
  %v160 = vld [vmem:[%s1 + $0x160] sm:$0xff]
  %v161 = vld [vmem:[%s1 + $0x168] sm:$0xff]
  %v162 = vld [vmem:[%s1 + $0x170] sm:$0xff]
  %v163 = vld [vmem:[%s1 + $0x178] sm:$0xff]
  %v164 = vld [vmem:[%s1 + $0x180] sm:$0xff]
  %v165 = vld [vmem:[%s1 + $0x188] sm:$0xff]
  %v166 = vld [vmem:[%s1 + $0x190] sm:$0xff]
  %v167 = vld [vmem:[%s1 + $0x198] sm:$0xff]
  %v168 = vld [vmem:[%s1 + $0x1a0] sm:$0xff]
  %v169 = vld [vmem:[%s1 + $0x1a8] sm:$0xff]
  %v170 = vld [vmem:[%s1 + $0x1b0] sm:$0xff]
  %v171 = vld [vmem:[%s1 + $0x1b8] sm:$0xff]
  %v172 = vld [vmem:[%s1 + $0x1c0] sm:$0xff]
  %v173 = vld [vmem:[%s1 + $0x1c8] sm:$0xff]
  %v174 = vld [vmem:[%s1 + $0x1d0] sm:$0xff]
  %v175 = vld [vmem:[%s1 + $0x1d8] sm:$0xff]
  %v176 = vld [vmem:[%s1 + $0x1e0] sm:$0xff]
  %v177 = vld [vmem:[%s1 + $0x1e8] sm:$0xff]
  %v178 = vld [vmem:[%s1 + $0x1f0] sm:$0xff]
  %v179 = vld [vmem:[%s1 + $0x1f8] sm:$0xff]
  %v180 = vld [vmem:[%s1 + $0x200] sm:$0xff]
  %v181 = vld [vmem:[%s1 + $0x208] sm:$0xff]
  %v182 = vld [vmem:[%s1 + $0x210] sm:$0xff]
  %v183 = vld [vmem:[%s1 + $0x218] sm:$0xff]
  %v184 = vld [vmem:[%s1 + $0x220] sm:$0xff]
  %v185 = vld [vmem:[%s1 + $0x228] sm:$0xff]
  %v186 = vld [vmem:[%s1 + $0x230] sm:$0xff]
  %v187 = vld [vmem:[%s1 + $0x238] sm:$0xff]
  %v188 = vld [vmem:[%s1 + $0x240] sm:$0xff]
  %v189 = vld [vmem:[%s1 + $0x248] sm:$0xff]
  %v190 = vld [vmem:[%s1 + $0x250] sm:$0xff]
  %vm191 = vcmask 195584
  %v193 = vsel %vm191, %v104, 0
  %v196 = vsel %vm191, %v105, 0
  %v199 = vsel %vm191, %v106, 0
  %v202 = vsel %vm191, %v107, 0
  %v205 = vsel %vm191, %v108, 0
  %v208 = vsel %vm191, %v109, 0
  %v211 = vsel %vm191, %v110, 0
  %v214 = vsel %vm191, %v111, 0
  %v217 = vsel %vm191, %v112, 0
  %v220 = vsel %vm191, %v113, 0
  %v223 = vsel %vm191, %v114, 0
  %v226 = vsel %vm191, %v115, 0
  %228 = vmatpush.msra.mxu0 0.0
  %229 = vmatpush.msra.mxu0 0.0
  %230 = vmatpush.msra.mxu0 0.0
  %231 = vmatpush.msra.mxu0 0.0
  %232 = vmatpush.msra.mxu0 0.0
  %233 = vmatpush.msra.mxu0 0.0
  %234 = vmatpush.msra.mxu0 0.0
  %235 = vmatpush.msra.mxu0 0.0
  %236 = vmatpush.msra.mxu0 0.0
  %237 = vmatpush.msra.mxu0 0.0
  %238 = vmatpush.msra.mxu0 0.0
  %239 = vmatpush.msra.mxu0 0.0
  %240 = vmatpush.msra.mxu0 0.0
  %241 = vmatpush.msra.mxu0 %v166
  %242 = vmatpush.msra.mxu0 %v141
  %243 = vmatpush.msra.mxu0 %v116
  %244 = vmatmul.f32.gmra.mxu0 %v193
  %v245 = vpop.f32.mrf.mxu0
  %v246 = vadd.f32 0.0, %v245
  %247 = vmatmul.f32.gmra.mxu0 %v196
  %v248 = vpop.f32.mrf.mxu0
  %v249 = vadd.f32 0.0, %v248
  %250 = vmatmul.f32.gmra.mxu0 %v199
  %v251 = vpop.f32.mrf.mxu0
  %v252 = vadd.f32 0.0, %v251
  %253 = vmatmul.f32.gmra.mxu0 %v202
  %v254 = vpop.f32.mrf.mxu0
  %v255 = vadd.f32 0.0, %v254
  %256 = vmatmul.f32.gmra.mxu0 %v205
  %v257 = vpop.f32.mrf.mxu0
  %v258 = vadd.f32 0.0, %v257
  %259 = vmatmul.f32.gmra.mxu0 %v208
  %v260 = vpop.f32.mrf.mxu0
  %v261 = vadd.f32 0.0, %v260
  %262 = vmatmul.f32.gmra.mxu0 %v211
  %v263 = vpop.f32.mrf.mxu0
  %v264 = vadd.f32 0.0, %v263
  %265 = vmatmul.f32.gmra.mxu0 %v214
  %v266 = vpop.f32.mrf.mxu0
  %v267 = vadd.f32 0.0, %v266
  %268 = vmatmul.f32.gmra.mxu0 %v217
  %v269 = vpop.f32.mrf.mxu0
  %v270 = vadd.f32 0.0, %v269
  %271 = vmatmul.f32.gmra.mxu0 %v220
  %v272 = vpop.f32.mrf.mxu0
  %v273 = vadd.f32 0.0, %v272
  %274 = vmatmul.f32.gmra.mxu0 %v223
  %v275 = vpop.f32.mrf.mxu0
  %v276 = vadd.f32 0.0, %v275
  %277 = vmatmul.f32.gmra.mxu0 %v226
  %v278 = vpop.f32.mrf.mxu0
  %v279 = vadd.f32 0.0, %v278
  %280 = vdwg.mxu0
  %281 = vmatpush.msra.mxu0 0.0
  %282 = vmatpush.msra.mxu0 0.0
  %283 = vmatpush.msra.mxu0 0.0
  %284 = vmatpush.msra.mxu0 0.0
  %285 = vmatpush.msra.mxu0 0.0
  %286 = vmatpush.msra.mxu0 0.0
  %287 = vmatpush.msra.mxu0 0.0
  %288 = vmatpush.msra.mxu0 0.0
  %289 = vmatpush.msra.mxu0 0.0
  %290 = vmatpush.msra.mxu0 0.0
  %291 = vmatpush.msra.mxu0 0.0
  %292 = vmatpush.msra.mxu0 0.0
  %293 = vmatpush.msra.mxu0 0.0
  %294 = vmatpush.msra.mxu0 %v167
  %295 = vmatpush.msra.mxu0 %v142
  %296 = vmatpush.msra.mxu0 %v117
  %297 = vmatmul.f32.gmra.mxu0 %v193
  %v298 = vpop.f32.mrf.mxu0
  %v299 = vadd.f32 0.0, %v298
  %300 = vmatmul.f32.gmra.mxu0 %v196
  %v301 = vpop.f32.mrf.mxu0
  %v302 = vadd.f32 0.0, %v301
  %303 = vmatmul.f32.gmra.mxu0 %v199
  %v304 = vpop.f32.mrf.mxu0
  %v305 = vadd.f32 0.0, %v304
  %306 = vmatmul.f32.gmra.mxu0 %v202
  %v307 = vpop.f32.mrf.mxu0
  %v308 = vadd.f32 0.0, %v307
  %309 = vmatmul.f32.gmra.mxu0 %v205
  %v310 = vpop.f32.mrf.mxu0
  %v311 = vadd.f32 0.0, %v310
  %312 = vmatmul.f32.gmra.mxu0 %v208
  %v313 = vpop.f32.mrf.mxu0
  %v314 = vadd.f32 0.0, %v313
  %315 = vmatmul.f32.gmra.mxu0 %v211
  %v316 = vpop.f32.mrf.mxu0
  %v317 = vadd.f32 0.0, %v316
  %318 = vmatmul.f32.gmra.mxu0 %v214
  %v319 = vpop.f32.mrf.mxu0
  %v320 = vadd.f32 0.0, %v319
  %321 = vmatmul.f32.gmra.mxu0 %v217
  %v322 = vpop.f32.mrf.mxu0
  %v323 = vadd.f32 0.0, %v322
  %324 = vmatmul.f32.gmra.mxu0 %v220
  %v325 = vpop.f32.mrf.mxu0
  %v326 = vadd.f32 0.0, %v325
  %327 = vmatmul.f32.gmra.mxu0 %v223
  %v328 = vpop.f32.mrf.mxu0
  %v329 = vadd.f32 0.0, %v328
  %330 = vmatmul.f32.gmra.mxu0 %v226
  %v331 = vpop.f32.mrf.mxu0
  %v332 = vadd.f32 0.0, %v331
  %333 = vdwg.mxu0
  %334 = vmatpush.msra.mxu0 0.0
  %335 = vmatpush.msra.mxu0 0.0
  %336 = vmatpush.msra.mxu0 0.0
  %337 = vmatpush.msra.mxu0 0.0
  %338 = vmatpush.msra.mxu0 0.0
  %339 = vmatpush.msra.mxu0 0.0
  %340 = vmatpush.msra.mxu0 0.0
  %341 = vmatpush.msra.mxu0 0.0
  %342 = vmatpush.msra.mxu0 0.0
  %343 = vmatpush.msra.mxu0 0.0
  %344 = vmatpush.msra.mxu0 0.0
  %345 = vmatpush.msra.mxu0 0.0
  %346 = vmatpush.msra.mxu0 0.0
  %347 = vmatpush.msra.mxu0 %v168
  %348 = vmatpush.msra.mxu0 %v143
  %349 = vmatpush.msra.mxu0 %v118
  %350 = vmatmul.f32.gmra.mxu0 %v193
  %v351 = vpop.f32.mrf.mxu0
  %v352 = vadd.f32 0.0, %v351
  %353 = vmatmul.f32.gmra.mxu0 %v196
  %v354 = vpop.f32.mrf.mxu0
  %v355 = vadd.f32 0.0, %v354
  %356 = vmatmul.f32.gmra.mxu0 %v199
  %v357 = vpop.f32.mrf.mxu0
  %v358 = vadd.f32 0.0, %v357
  %359 = vmatmul.f32.gmra.mxu0 %v202
  %v360 = vpop.f32.mrf.mxu0
  %v361 = vadd.f32 0.0, %v360
  %362 = vmatmul.f32.gmra.mxu0 %v205
  %v363 = vpop.f32.mrf.mxu0
  %v364 = vadd.f32 0.0, %v363
  %365 = vmatmul.f32.gmra.mxu0 %v208
  %v366 = vpop.f32.mrf.mxu0
  %v367 = vadd.f32 0.0, %v366
  %368 = vmatmul.f32.gmra.mxu0 %v211
  %v369 = vpop.f32.mrf.mxu0
  %v370 = vadd.f32 0.0, %v369
  %371 = vmatmul.f32.gmra.mxu0 %v214
  %v372 = vpop.f32.mrf.mxu0
  %v373 = vadd.f32 0.0, %v372
  %374 = vmatmul.f32.gmra.mxu0 %v217
  %v375 = vpop.f32.mrf.mxu0
  %v376 = vadd.f32 0.0, %v375
  %377 = vmatmul.f32.gmra.mxu0 %v220
  %v378 = vpop.f32.mrf.mxu0
  %v379 = vadd.f32 0.0, %v378
  %380 = vmatmul.f32.gmra.mxu0 %v223
  %v381 = vpop.f32.mrf.mxu0
  %v382 = vadd.f32 0.0, %v381
  %383 = vmatmul.f32.gmra.mxu0 %v226
  %v384 = vpop.f32.mrf.mxu0
  %v385 = vadd.f32 0.0, %v384
  %386 = vdwg.mxu0
  %387 = vmatpush.msra.mxu0 0.0
  %388 = vmatpush.msra.mxu0 0.0
  %389 = vmatpush.msra.mxu0 0.0
  %390 = vmatpush.msra.mxu0 0.0
  %391 = vmatpush.msra.mxu0 0.0
  %392 = vmatpush.msra.mxu0 0.0
  %393 = vmatpush.msra.mxu0 0.0
  %394 = vmatpush.msra.mxu0 0.0
  %395 = vmatpush.msra.mxu0 0.0
  %396 = vmatpush.msra.mxu0 0.0
  %397 = vmatpush.msra.mxu0 0.0
  %398 = vmatpush.msra.mxu0 0.0
  %399 = vmatpush.msra.mxu0 0.0
  %400 = vmatpush.msra.mxu0 %v169
  %401 = vmatpush.msra.mxu0 %v144
  %402 = vmatpush.msra.mxu0 %v119
  %403 = vmatmul.f32.gmra.mxu0 %v193
  %v404 = vpop.f32.mrf.mxu0
  %v405 = vadd.f32 0.0, %v404
  %406 = vmatmul.f32.gmra.mxu0 %v196
  %v407 = vpop.f32.mrf.mxu0
  %v408 = vadd.f32 0.0, %v407
  %409 = vmatmul.f32.gmra.mxu0 %v199
  %v410 = vpop.f32.mrf.mxu0
  %v411 = vadd.f32 0.0, %v410
  %412 = vmatmul.f32.gmra.mxu0 %v202
  %v413 = vpop.f32.mrf.mxu0
  %v414 = vadd.f32 0.0, %v413
  %415 = vmatmul.f32.gmra.mxu0 %v205
  %v416 = vpop.f32.mrf.mxu0
  %v417 = vadd.f32 0.0, %v416
  %418 = vmatmul.f32.gmra.mxu0 %v208
  %v419 = vpop.f32.mrf.mxu0
  %v420 = vadd.f32 0.0, %v419
  %421 = vmatmul.f32.gmra.mxu0 %v211
  %v422 = vpop.f32.mrf.mxu0
  %v423 = vadd.f32 0.0, %v422
  %424 = vmatmul.f32.gmra.mxu0 %v214
  %v425 = vpop.f32.mrf.mxu0
  %v426 = vadd.f32 0.0, %v425
  %427 = vmatmul.f32.gmra.mxu0 %v217
  %v428 = vpop.f32.mrf.mxu0
  %v429 = vadd.f32 0.0, %v428
  %430 = vmatmul.f32.gmra.mxu0 %v220
  %v431 = vpop.f32.mrf.mxu0
  %v432 = vadd.f32 0.0, %v431
  %433 = vmatmul.f32.gmra.mxu0 %v223
  %v434 = vpop.f32.mrf.mxu0
  %v435 = vadd.f32 0.0, %v434
  %436 = vmatmul.f32.gmra.mxu0 %v226
  %v437 = vpop.f32.mrf.mxu0
  %v438 = vadd.f32 0.0, %v437
  %439 = vdwg.mxu0
  %440 = vmatpush.msra.mxu0 0.0
  %441 = vmatpush.msra.mxu0 0.0
  %442 = vmatpush.msra.mxu0 0.0
  %443 = vmatpush.msra.mxu0 0.0
  %444 = vmatpush.msra.mxu0 0.0
  %445 = vmatpush.msra.mxu0 0.0
  %446 = vmatpush.msra.mxu0 0.0
  %447 = vmatpush.msra.mxu0 0.0
  %448 = vmatpush.msra.mxu0 0.0
  %449 = vmatpush.msra.mxu0 0.0
  %450 = vmatpush.msra.mxu0 0.0
  %451 = vmatpush.msra.mxu0 0.0
  %452 = vmatpush.msra.mxu0 0.0
  %453 = vmatpush.msra.mxu0 %v170
  %454 = vmatpush.msra.mxu0 %v145
  %455 = vmatpush.msra.mxu0 %v120
  %456 = vmatmul.f32.gmra.mxu0 %v193
  %v457 = vpop.f32.mrf.mxu0
  %v458 = vadd.f32 0.0, %v457
  %459 = vmatmul.f32.gmra.mxu0 %v196
  %v460 = vpop.f32.mrf.mxu0
  %v461 = vadd.f32 0.0, %v460
  %462 = vmatmul.f32.gmra.mxu0 %v199
  %v463 = vpop.f32.mrf.mxu0
  %v464 = vadd.f32 0.0, %v463
  %465 = vmatmul.f32.gmra.mxu0 %v202
  %v466 = vpop.f32.mrf.mxu0
  %v467 = vadd.f32 0.0, %v466
  %468 = vmatmul.f32.gmra.mxu0 %v205
  %v469 = vpop.f32.mrf.mxu0
  %v470 = vadd.f32 0.0, %v469
  %471 = vmatmul.f32.gmra.mxu0 %v208
  %v472 = vpop.f32.mrf.mxu0
  %v473 = vadd.f32 0.0, %v472
  %474 = vmatmul.f32.gmra.mxu0 %v211
  %v475 = vpop.f32.mrf.mxu0
  %v476 = vadd.f32 0.0, %v475
  %477 = vmatmul.f32.gmra.mxu0 %v214
  %v478 = vpop.f32.mrf.mxu0
  %v479 = vadd.f32 0.0, %v478
  %480 = vmatmul.f32.gmra.mxu0 %v217
  %v481 = vpop.f32.mrf.mxu0
  %v482 = vadd.f32 0.0, %v481
  %483 = vmatmul.f32.gmra.mxu0 %v220
  %v484 = vpop.f32.mrf.mxu0
  %v485 = vadd.f32 0.0, %v484
  %486 = vmatmul.f32.gmra.mxu0 %v223
  %v487 = vpop.f32.mrf.mxu0
  %v488 = vadd.f32 0.0, %v487
  %489 = vmatmul.f32.gmra.mxu0 %v226
  %v490 = vpop.f32.mrf.mxu0
  %v491 = vadd.f32 0.0, %v490
  %492 = vdwg.mxu0
  %493 = vmatpush.msra.mxu0 0.0
  %494 = vmatpush.msra.mxu0 0.0
  %495 = vmatpush.msra.mxu0 0.0
  %496 = vmatpush.msra.mxu0 0.0
  %497 = vmatpush.msra.mxu0 0.0
  %498 = vmatpush.msra.mxu0 0.0
  %499 = vmatpush.msra.mxu0 0.0
  %500 = vmatpush.msra.mxu0 0.0
  %501 = vmatpush.msra.mxu0 0.0
  %502 = vmatpush.msra.mxu0 0.0
  %503 = vmatpush.msra.mxu0 0.0
  %504 = vmatpush.msra.mxu0 0.0
  %505 = vmatpush.msra.mxu0 0.0
  %506 = vmatpush.msra.mxu0 %v171
  %507 = vmatpush.msra.mxu0 %v146
  %508 = vmatpush.msra.mxu0 %v121
  %509 = vmatmul.f32.gmra.mxu0 %v193
  %v510 = vpop.f32.mrf.mxu0
  %v511 = vadd.f32 0.0, %v510
  %512 = vmatmul.f32.gmra.mxu0 %v196
  %v513 = vpop.f32.mrf.mxu0
  %v514 = vadd.f32 0.0, %v513
  %515 = vmatmul.f32.gmra.mxu0 %v199
  %v516 = vpop.f32.mrf.mxu0
  %v517 = vadd.f32 0.0, %v516
  %518 = vmatmul.f32.gmra.mxu0 %v202
  %v519 = vpop.f32.mrf.mxu0
  %v520 = vadd.f32 0.0, %v519
  %521 = vmatmul.f32.gmra.mxu0 %v205
  %v522 = vpop.f32.mrf.mxu0
  %v523 = vadd.f32 0.0, %v522
  %524 = vmatmul.f32.gmra.mxu0 %v208
  %v525 = vpop.f32.mrf.mxu0
  %v526 = vadd.f32 0.0, %v525
  %527 = vmatmul.f32.gmra.mxu0 %v211
  %v528 = vpop.f32.mrf.mxu0
  %v529 = vadd.f32 0.0, %v528
  %530 = vmatmul.f32.gmra.mxu0 %v214
  %v531 = vpop.f32.mrf.mxu0
  %v532 = vadd.f32 0.0, %v531
  %533 = vmatmul.f32.gmra.mxu0 %v217
  %v534 = vpop.f32.mrf.mxu0
  %v535 = vadd.f32 0.0, %v534
  %536 = vmatmul.f32.gmra.mxu0 %v220
  %v537 = vpop.f32.mrf.mxu0
  %v538 = vadd.f32 0.0, %v537
  %539 = vmatmul.f32.gmra.mxu0 %v223
  %v540 = vpop.f32.mrf.mxu0
  %v541 = vadd.f32 0.0, %v540
  %542 = vmatmul.f32.gmra.mxu0 %v226
  %v543 = vpop.f32.mrf.mxu0
  %v544 = vadd.f32 0.0, %v543
  %545 = vdwg.mxu0
  %546 = vmatpush.msra.mxu0 0.0
  %547 = vmatpush.msra.mxu0 0.0
  %548 = vmatpush.msra.mxu0 0.0
  %549 = vmatpush.msra.mxu0 0.0
  %550 = vmatpush.msra.mxu0 0.0
  %551 = vmatpush.msra.mxu0 0.0
  %552 = vmatpush.msra.mxu0 0.0
  %553 = vmatpush.msra.mxu0 0.0
  %554 = vmatpush.msra.mxu0 0.0
  %555 = vmatpush.msra.mxu0 0.0
  %556 = vmatpush.msra.mxu0 0.0
  %557 = vmatpush.msra.mxu0 0.0
  %558 = vmatpush.msra.mxu0 0.0
  %559 = vmatpush.msra.mxu0 %v172
  %560 = vmatpush.msra.mxu0 %v147
  %561 = vmatpush.msra.mxu0 %v122
  %562 = vmatmul.f32.gmra.mxu0 %v193
  %v563 = vpop.f32.mrf.mxu0
  %v564 = vadd.f32 0.0, %v563
  %565 = vmatmul.f32.gmra.mxu0 %v196
  %v566 = vpop.f32.mrf.mxu0
  %v567 = vadd.f32 0.0, %v566
  %568 = vmatmul.f32.gmra.mxu0 %v199
  %v569 = vpop.f32.mrf.mxu0
  %v570 = vadd.f32 0.0, %v569
  %571 = vmatmul.f32.gmra.mxu0 %v202
  %v572 = vpop.f32.mrf.mxu0
  %v573 = vadd.f32 0.0, %v572
  %574 = vmatmul.f32.gmra.mxu0 %v205
  %v575 = vpop.f32.mrf.mxu0
  %v576 = vadd.f32 0.0, %v575
  %577 = vmatmul.f32.gmra.mxu0 %v208
  %v578 = vpop.f32.mrf.mxu0
  %v579 = vadd.f32 0.0, %v578
  %580 = vmatmul.f32.gmra.mxu0 %v211
  %v581 = vpop.f32.mrf.mxu0
  %v582 = vadd.f32 0.0, %v581
  %583 = vmatmul.f32.gmra.mxu0 %v214
  %v584 = vpop.f32.mrf.mxu0
  %v585 = vadd.f32 0.0, %v584
  %586 = vmatmul.f32.gmra.mxu0 %v217
  %v587 = vpop.f32.mrf.mxu0
  %v588 = vadd.f32 0.0, %v587
  %589 = vmatmul.f32.gmra.mxu0 %v220
  %v590 = vpop.f32.mrf.mxu0
  %v591 = vadd.f32 0.0, %v590
  %592 = vmatmul.f32.gmra.mxu0 %v223
  %v593 = vpop.f32.mrf.mxu0
  %v594 = vadd.f32 0.0, %v593
  %595 = vmatmul.f32.gmra.mxu0 %v226
  %v596 = vpop.f32.mrf.mxu0
  %v597 = vadd.f32 0.0, %v596
  %598 = vdwg.mxu0
  %599 = vmatpush.msra.mxu0 0.0
  %600 = vmatpush.msra.mxu0 0.0
  %601 = vmatpush.msra.mxu0 0.0
  %602 = vmatpush.msra.mxu0 0.0
  %603 = vmatpush.msra.mxu0 0.0
  %604 = vmatpush.msra.mxu0 0.0
  %605 = vmatpush.msra.mxu0 0.0
  %606 = vmatpush.msra.mxu0 0.0
  %607 = vmatpush.msra.mxu0 0.0
  %608 = vmatpush.msra.mxu0 0.0
  %609 = vmatpush.msra.mxu0 0.0
  %610 = vmatpush.msra.mxu0 0.0
  %611 = vmatpush.msra.mxu0 0.0
  %612 = vmatpush.msra.mxu0 %v173
  %613 = vmatpush.msra.mxu0 %v148
  %614 = vmatpush.msra.mxu0 %v123
  %615 = vmatmul.f32.gmra.mxu0 %v193
  %v616 = vpop.f32.mrf.mxu0
  %v617 = vadd.f32 0.0, %v616
  %618 = vmatmul.f32.gmra.mxu0 %v196
  %v619 = vpop.f32.mrf.mxu0
  %v620 = vadd.f32 0.0, %v619
  %621 = vmatmul.f32.gmra.mxu0 %v199
  %v622 = vpop.f32.mrf.mxu0
  %v623 = vadd.f32 0.0, %v622
  %624 = vmatmul.f32.gmra.mxu0 %v202
  %v625 = vpop.f32.mrf.mxu0
  %v626 = vadd.f32 0.0, %v625
  %627 = vmatmul.f32.gmra.mxu0 %v205
  %v628 = vpop.f32.mrf.mxu0
  %v629 = vadd.f32 0.0, %v628
  %630 = vmatmul.f32.gmra.mxu0 %v208
  %v631 = vpop.f32.mrf.mxu0
  %v632 = vadd.f32 0.0, %v631
  %633 = vmatmul.f32.gmra.mxu0 %v211
  %v634 = vpop.f32.mrf.mxu0
  %v635 = vadd.f32 0.0, %v634
  %636 = vmatmul.f32.gmra.mxu0 %v214
  %v637 = vpop.f32.mrf.mxu0
  %v638 = vadd.f32 0.0, %v637
  %639 = vmatmul.f32.gmra.mxu0 %v217
  %v640 = vpop.f32.mrf.mxu0
  %v641 = vadd.f32 0.0, %v640
  %642 = vmatmul.f32.gmra.mxu0 %v220
  %v643 = vpop.f32.mrf.mxu0
  %v644 = vadd.f32 0.0, %v643
  %645 = vmatmul.f32.gmra.mxu0 %v223
  %v646 = vpop.f32.mrf.mxu0
  %v647 = vadd.f32 0.0, %v646
  %648 = vmatmul.f32.gmra.mxu0 %v226
  %v649 = vpop.f32.mrf.mxu0
  %v650 = vadd.f32 0.0, %v649
  %651 = vdwg.mxu0
  %652 = vmatpush.msra.mxu0 0.0
  %653 = vmatpush.msra.mxu0 0.0
  %654 = vmatpush.msra.mxu0 0.0
  %655 = vmatpush.msra.mxu0 0.0
  %656 = vmatpush.msra.mxu0 0.0
  %657 = vmatpush.msra.mxu0 0.0
  %658 = vmatpush.msra.mxu0 0.0
  %659 = vmatpush.msra.mxu0 0.0
  %660 = vmatpush.msra.mxu0 0.0
  %661 = vmatpush.msra.mxu0 0.0
  %662 = vmatpush.msra.mxu0 0.0
  %663 = vmatpush.msra.mxu0 0.0
  %664 = vmatpush.msra.mxu0 0.0
  %665 = vmatpush.msra.mxu0 %v174
  %666 = vmatpush.msra.mxu0 %v149
  %667 = vmatpush.msra.mxu0 %v124
  %668 = vmatmul.f32.gmra.mxu0 %v193
  %v669 = vpop.f32.mrf.mxu0
  %v670 = vadd.f32 0.0, %v669
  %671 = vmatmul.f32.gmra.mxu0 %v196
  %v672 = vpop.f32.mrf.mxu0
  %v673 = vadd.f32 0.0, %v672
  %674 = vmatmul.f32.gmra.mxu0 %v199
  %v675 = vpop.f32.mrf.mxu0
  %v676 = vadd.f32 0.0, %v675
  %677 = vmatmul.f32.gmra.mxu0 %v202
  %v678 = vpop.f32.mrf.mxu0
  %v679 = vadd.f32 0.0, %v678
  %680 = vmatmul.f32.gmra.mxu0 %v205
  %v681 = vpop.f32.mrf.mxu0
  %v682 = vadd.f32 0.0, %v681
  %683 = vmatmul.f32.gmra.mxu0 %v208
  %v684 = vpop.f32.mrf.mxu0
  %v685 = vadd.f32 0.0, %v684
  %686 = vmatmul.f32.gmra.mxu0 %v211
  %v687 = vpop.f32.mrf.mxu0
  %v688 = vadd.f32 0.0, %v687
  %689 = vmatmul.f32.gmra.mxu0 %v214
  %v690 = vpop.f32.mrf.mxu0
  %v691 = vadd.f32 0.0, %v690
  %692 = vmatmul.f32.gmra.mxu0 %v217
  %v693 = vpop.f32.mrf.mxu0
  %v694 = vadd.f32 0.0, %v693
  %695 = vmatmul.f32.gmra.mxu0 %v220
  %v696 = vpop.f32.mrf.mxu0
  %v697 = vadd.f32 0.0, %v696
  %698 = vmatmul.f32.gmra.mxu0 %v223
  %v699 = vpop.f32.mrf.mxu0
  %v700 = vadd.f32 0.0, %v699
  %701 = vmatmul.f32.gmra.mxu0 %v226
  %v702 = vpop.f32.mrf.mxu0
  %v703 = vadd.f32 0.0, %v702
  %704 = vdwg.mxu0
  %705 = vmatpush.msra.mxu0 0.0
  %706 = vmatpush.msra.mxu0 0.0
  %707 = vmatpush.msra.mxu0 0.0
  %708 = vmatpush.msra.mxu0 0.0
  %709 = vmatpush.msra.mxu0 0.0
  %710 = vmatpush.msra.mxu0 0.0
  %711 = vmatpush.msra.mxu0 0.0
  %712 = vmatpush.msra.mxu0 0.0
  %713 = vmatpush.msra.mxu0 0.0
  %714 = vmatpush.msra.mxu0 0.0
  %715 = vmatpush.msra.mxu0 0.0
  %716 = vmatpush.msra.mxu0 0.0
  %717 = vmatpush.msra.mxu0 0.0
  %718 = vmatpush.msra.mxu0 %v175
  %719 = vmatpush.msra.mxu0 %v150
  %720 = vmatpush.msra.mxu0 %v125
  %721 = vmatmul.f32.gmra.mxu0 %v193
  %v722 = vpop.f32.mrf.mxu0
  %v723 = vadd.f32 0.0, %v722
  %724 = vmatmul.f32.gmra.mxu0 %v196
  %v725 = vpop.f32.mrf.mxu0
  %v726 = vadd.f32 0.0, %v725
  %727 = vmatmul.f32.gmra.mxu0 %v199
  %v728 = vpop.f32.mrf.mxu0
  %v729 = vadd.f32 0.0, %v728
  %730 = vmatmul.f32.gmra.mxu0 %v202
  %v731 = vpop.f32.mrf.mxu0
  %v732 = vadd.f32 0.0, %v731
  %733 = vmatmul.f32.gmra.mxu0 %v205
  %v734 = vpop.f32.mrf.mxu0
  %v735 = vadd.f32 0.0, %v734
  %736 = vmatmul.f32.gmra.mxu0 %v208
  %v737 = vpop.f32.mrf.mxu0
  %v738 = vadd.f32 0.0, %v737
  %739 = vmatmul.f32.gmra.mxu0 %v211
  %v740 = vpop.f32.mrf.mxu0
  %v741 = vadd.f32 0.0, %v740
  %742 = vmatmul.f32.gmra.mxu0 %v214
  %v743 = vpop.f32.mrf.mxu0
  %v744 = vadd.f32 0.0, %v743
  %745 = vmatmul.f32.gmra.mxu0 %v217
  %v746 = vpop.f32.mrf.mxu0
  %v747 = vadd.f32 0.0, %v746
  %748 = vmatmul.f32.gmra.mxu0 %v220
  %v749 = vpop.f32.mrf.mxu0
  %v750 = vadd.f32 0.0, %v749
  %751 = vmatmul.f32.gmra.mxu0 %v223
  %v752 = vpop.f32.mrf.mxu0
  %v753 = vadd.f32 0.0, %v752
  %754 = vmatmul.f32.gmra.mxu0 %v226
  %v755 = vpop.f32.mrf.mxu0
  %v756 = vadd.f32 0.0, %v755
  %757 = vdwg.mxu0
  %758 = vmatpush.msra.mxu0 0.0
  %759 = vmatpush.msra.mxu0 0.0
  %760 = vmatpush.msra.mxu0 0.0
  %761 = vmatpush.msra.mxu0 0.0
  %762 = vmatpush.msra.mxu0 0.0
  %763 = vmatpush.msra.mxu0 0.0
  %764 = vmatpush.msra.mxu0 0.0
  %765 = vmatpush.msra.mxu0 0.0
  %766 = vmatpush.msra.mxu0 0.0
  %767 = vmatpush.msra.mxu0 0.0
  %768 = vmatpush.msra.mxu0 0.0
  %769 = vmatpush.msra.mxu0 0.0
  %770 = vmatpush.msra.mxu0 0.0
  %771 = vmatpush.msra.mxu0 %v176
  %772 = vmatpush.msra.mxu0 %v151
  %773 = vmatpush.msra.mxu0 %v126
  %774 = vmatmul.f32.gmra.mxu0 %v193
  %v775 = vpop.f32.mrf.mxu0
  %v776 = vadd.f32 0.0, %v775
  %777 = vmatmul.f32.gmra.mxu0 %v196
  %v778 = vpop.f32.mrf.mxu0
  %v779 = vadd.f32 0.0, %v778
  %780 = vmatmul.f32.gmra.mxu0 %v199
  %v781 = vpop.f32.mrf.mxu0
  %v782 = vadd.f32 0.0, %v781
  %783 = vmatmul.f32.gmra.mxu0 %v202
  %v784 = vpop.f32.mrf.mxu0
  %v785 = vadd.f32 0.0, %v784
  %786 = vmatmul.f32.gmra.mxu0 %v205
  %v787 = vpop.f32.mrf.mxu0
  %v788 = vadd.f32 0.0, %v787
  %789 = vmatmul.f32.gmra.mxu0 %v208
  %v790 = vpop.f32.mrf.mxu0
  %v791 = vadd.f32 0.0, %v790
  %792 = vmatmul.f32.gmra.mxu0 %v211
  %v793 = vpop.f32.mrf.mxu0
  %v794 = vadd.f32 0.0, %v793
  %795 = vmatmul.f32.gmra.mxu0 %v214
  %v796 = vpop.f32.mrf.mxu0
  %v797 = vadd.f32 0.0, %v796
  %798 = vmatmul.f32.gmra.mxu0 %v217
  %v799 = vpop.f32.mrf.mxu0
  %v800 = vadd.f32 0.0, %v799
  %801 = vmatmul.f32.gmra.mxu0 %v220
  %v802 = vpop.f32.mrf.mxu0
  %v803 = vadd.f32 0.0, %v802
  %804 = vmatmul.f32.gmra.mxu0 %v223
  %v805 = vpop.f32.mrf.mxu0
  %v806 = vadd.f32 0.0, %v805
  %807 = vmatmul.f32.gmra.mxu0 %v226
  %v808 = vpop.f32.mrf.mxu0
  %v809 = vadd.f32 0.0, %v808
  %810 = vdwg.mxu0
  %811 = vmatpush.msra.mxu0 0.0
  %812 = vmatpush.msra.mxu0 0.0
  %813 = vmatpush.msra.mxu0 0.0
  %814 = vmatpush.msra.mxu0 0.0
  %815 = vmatpush.msra.mxu0 0.0
  %816 = vmatpush.msra.mxu0 0.0
  %817 = vmatpush.msra.mxu0 0.0
  %818 = vmatpush.msra.mxu0 0.0
  %819 = vmatpush.msra.mxu0 0.0
  %820 = vmatpush.msra.mxu0 0.0
  %821 = vmatpush.msra.mxu0 0.0
  %822 = vmatpush.msra.mxu0 0.0
  %823 = vmatpush.msra.mxu0 0.0
  %824 = vmatpush.msra.mxu0 %v177
  %825 = vmatpush.msra.mxu0 %v152
  %826 = vmatpush.msra.mxu0 %v127
  %827 = vmatmul.f32.gmra.mxu0 %v193
  %v828 = vpop.f32.mrf.mxu0
  %v829 = vadd.f32 0.0, %v828
  %830 = vmatmul.f32.gmra.mxu0 %v196
  %v831 = vpop.f32.mrf.mxu0
  %v832 = vadd.f32 0.0, %v831
  %833 = vmatmul.f32.gmra.mxu0 %v199
  %v834 = vpop.f32.mrf.mxu0
  %v835 = vadd.f32 0.0, %v834
  %836 = vmatmul.f32.gmra.mxu0 %v202
  %v837 = vpop.f32.mrf.mxu0
  %v838 = vadd.f32 0.0, %v837
  %839 = vmatmul.f32.gmra.mxu0 %v205
  %v840 = vpop.f32.mrf.mxu0
  %v841 = vadd.f32 0.0, %v840
  %842 = vmatmul.f32.gmra.mxu0 %v208
  %v843 = vpop.f32.mrf.mxu0
  %v844 = vadd.f32 0.0, %v843
  %845 = vmatmul.f32.gmra.mxu0 %v211
  %v846 = vpop.f32.mrf.mxu0
  %v847 = vadd.f32 0.0, %v846
  %848 = vmatmul.f32.gmra.mxu0 %v214
  %v849 = vpop.f32.mrf.mxu0
  %v850 = vadd.f32 0.0, %v849
  %851 = vmatmul.f32.gmra.mxu0 %v217
  %v852 = vpop.f32.mrf.mxu0
  %v853 = vadd.f32 0.0, %v852
  %854 = vmatmul.f32.gmra.mxu0 %v220
  %v855 = vpop.f32.mrf.mxu0
  %v856 = vadd.f32 0.0, %v855
  %857 = vmatmul.f32.gmra.mxu0 %v223
  %v858 = vpop.f32.mrf.mxu0
  %v859 = vadd.f32 0.0, %v858
  %860 = vmatmul.f32.gmra.mxu0 %v226
  %v861 = vpop.f32.mrf.mxu0
  %v862 = vadd.f32 0.0, %v861
  %863 = vdwg.mxu0
  %864 = vmatpush.msra.mxu0 0.0
  %865 = vmatpush.msra.mxu0 0.0
  %866 = vmatpush.msra.mxu0 0.0
  %867 = vmatpush.msra.mxu0 0.0
  %868 = vmatpush.msra.mxu0 0.0
  %869 = vmatpush.msra.mxu0 0.0
  %870 = vmatpush.msra.mxu0 0.0
  %871 = vmatpush.msra.mxu0 0.0
  %872 = vmatpush.msra.mxu0 0.0
  %873 = vmatpush.msra.mxu0 0.0
  %874 = vmatpush.msra.mxu0 0.0
  %875 = vmatpush.msra.mxu0 0.0
  %876 = vmatpush.msra.mxu0 0.0
  %877 = vmatpush.msra.mxu0 %v178
  %878 = vmatpush.msra.mxu0 %v153
  %879 = vmatpush.msra.mxu0 %v128
  %880 = vmatmul.f32.gmra.mxu0 %v193
  %v881 = vpop.f32.mrf.mxu0
  %v882 = vadd.f32 0.0, %v881
  %883 = vmatmul.f32.gmra.mxu0 %v196
  %v884 = vpop.f32.mrf.mxu0
  %v885 = vadd.f32 0.0, %v884
  %886 = vmatmul.f32.gmra.mxu0 %v199
  %v887 = vpop.f32.mrf.mxu0
  %v888 = vadd.f32 0.0, %v887
  %889 = vmatmul.f32.gmra.mxu0 %v202
  %v890 = vpop.f32.mrf.mxu0
  %v891 = vadd.f32 0.0, %v890
  %892 = vmatmul.f32.gmra.mxu0 %v205
  %v893 = vpop.f32.mrf.mxu0
  %v894 = vadd.f32 0.0, %v893
  %895 = vmatmul.f32.gmra.mxu0 %v208
  %v896 = vpop.f32.mrf.mxu0
  %v897 = vadd.f32 0.0, %v896
  %898 = vmatmul.f32.gmra.mxu0 %v211
  %v899 = vpop.f32.mrf.mxu0
  %v900 = vadd.f32 0.0, %v899
  %901 = vmatmul.f32.gmra.mxu0 %v214
  %v902 = vpop.f32.mrf.mxu0
  %v903 = vadd.f32 0.0, %v902
  %904 = vmatmul.f32.gmra.mxu0 %v217
  %v905 = vpop.f32.mrf.mxu0
  %v906 = vadd.f32 0.0, %v905
  %907 = vmatmul.f32.gmra.mxu0 %v220
  %v908 = vpop.f32.mrf.mxu0
  %v909 = vadd.f32 0.0, %v908
  %910 = vmatmul.f32.gmra.mxu0 %v223
  %v911 = vpop.f32.mrf.mxu0
  %v912 = vadd.f32 0.0, %v911
  %913 = vmatmul.f32.gmra.mxu0 %v226
  %v914 = vpop.f32.mrf.mxu0
  %v915 = vadd.f32 0.0, %v914
  %916 = vdwg.mxu0
  %917 = vmatpush.msra.mxu0 0.0
  %918 = vmatpush.msra.mxu0 0.0
  %919 = vmatpush.msra.mxu0 0.0
  %920 = vmatpush.msra.mxu0 0.0
  %921 = vmatpush.msra.mxu0 0.0
  %922 = vmatpush.msra.mxu0 0.0
  %923 = vmatpush.msra.mxu0 0.0
  %924 = vmatpush.msra.mxu0 0.0
  %925 = vmatpush.msra.mxu0 0.0
  %926 = vmatpush.msra.mxu0 0.0
  %927 = vmatpush.msra.mxu0 0.0
  %928 = vmatpush.msra.mxu0 0.0
  %929 = vmatpush.msra.mxu0 0.0
  %930 = vmatpush.msra.mxu0 %v179
  %931 = vmatpush.msra.mxu0 %v154
  %932 = vmatpush.msra.mxu0 %v129
  %933 = vmatmul.f32.gmra.mxu0 %v193
  %v934 = vpop.f32.mrf.mxu0
  %v935 = vadd.f32 0.0, %v934
  %936 = vmatmul.f32.gmra.mxu0 %v196
  %v937 = vpop.f32.mrf.mxu0
  %v938 = vadd.f32 0.0, %v937
  %939 = vmatmul.f32.gmra.mxu0 %v199
  %v940 = vpop.f32.mrf.mxu0
  %v941 = vadd.f32 0.0, %v940
  %942 = vmatmul.f32.gmra.mxu0 %v202
  %v943 = vpop.f32.mrf.mxu0
  %v944 = vadd.f32 0.0, %v943
  %945 = vmatmul.f32.gmra.mxu0 %v205
  %v946 = vpop.f32.mrf.mxu0
  %v947 = vadd.f32 0.0, %v946
  %948 = vmatmul.f32.gmra.mxu0 %v208
  %v949 = vpop.f32.mrf.mxu0
  %v950 = vadd.f32 0.0, %v949
  %951 = vmatmul.f32.gmra.mxu0 %v211
  %v952 = vpop.f32.mrf.mxu0
  %v953 = vadd.f32 0.0, %v952
  %954 = vmatmul.f32.gmra.mxu0 %v214
  %v955 = vpop.f32.mrf.mxu0
  %v956 = vadd.f32 0.0, %v955
  %957 = vmatmul.f32.gmra.mxu0 %v217
  %v958 = vpop.f32.mrf.mxu0
  %v959 = vadd.f32 0.0, %v958
  %960 = vmatmul.f32.gmra.mxu0 %v220
  %v961 = vpop.f32.mrf.mxu0
  %v962 = vadd.f32 0.0, %v961
  %963 = vmatmul.f32.gmra.mxu0 %v223
  %v964 = vpop.f32.mrf.mxu0
  %v965 = vadd.f32 0.0, %v964
  %966 = vmatmul.f32.gmra.mxu0 %v226
  %v967 = vpop.f32.mrf.mxu0
  %v968 = vadd.f32 0.0, %v967
  %969 = vdwg.mxu0
  %970 = vmatpush.msra.mxu0 0.0
  %971 = vmatpush.msra.mxu0 0.0
  %972 = vmatpush.msra.mxu0 0.0
  %973 = vmatpush.msra.mxu0 0.0
  %974 = vmatpush.msra.mxu0 0.0
  %975 = vmatpush.msra.mxu0 0.0
  %976 = vmatpush.msra.mxu0 0.0
  %977 = vmatpush.msra.mxu0 0.0
  %978 = vmatpush.msra.mxu0 0.0
  %979 = vmatpush.msra.mxu0 0.0
  %980 = vmatpush.msra.mxu0 0.0
  %981 = vmatpush.msra.mxu0 0.0
  %982 = vmatpush.msra.mxu0 0.0
  %983 = vmatpush.msra.mxu0 %v180
  %984 = vmatpush.msra.mxu0 %v155
  %985 = vmatpush.msra.mxu0 %v130
  %986 = vmatmul.f32.gmra.mxu0 %v193
  %v987 = vpop.f32.mrf.mxu0
  %v988 = vadd.f32 0.0, %v987
  %989 = vmatmul.f32.gmra.mxu0 %v196
  %v990 = vpop.f32.mrf.mxu0
  %v991 = vadd.f32 0.0, %v990
  %992 = vmatmul.f32.gmra.mxu0 %v199
  %v993 = vpop.f32.mrf.mxu0
  %v994 = vadd.f32 0.0, %v993
  %995 = vmatmul.f32.gmra.mxu0 %v202
  %v996 = vpop.f32.mrf.mxu0
  %v997 = vadd.f32 0.0, %v996
  %998 = vmatmul.f32.gmra.mxu0 %v205
  %v999 = vpop.f32.mrf.mxu0
  %v1000 = vadd.f32 0.0, %v999
  %1001 = vmatmul.f32.gmra.mxu0 %v208
  %v1002 = vpop.f32.mrf.mxu0
  %v1003 = vadd.f32 0.0, %v1002
  %1004 = vmatmul.f32.gmra.mxu0 %v211
  %v1005 = vpop.f32.mrf.mxu0
  %v1006 = vadd.f32 0.0, %v1005
  %1007 = vmatmul.f32.gmra.mxu0 %v214
  %v1008 = vpop.f32.mrf.mxu0
  %v1009 = vadd.f32 0.0, %v1008
  %1010 = vmatmul.f32.gmra.mxu0 %v217
  %v1011 = vpop.f32.mrf.mxu0
  %v1012 = vadd.f32 0.0, %v1011
  %1013 = vmatmul.f32.gmra.mxu0 %v220
  %v1014 = vpop.f32.mrf.mxu0
  %v1015 = vadd.f32 0.0, %v1014
  %1016 = vmatmul.f32.gmra.mxu0 %v223
  %v1017 = vpop.f32.mrf.mxu0
  %v1018 = vadd.f32 0.0, %v1017
  %1019 = vmatmul.f32.gmra.mxu0 %v226
  %v1020 = vpop.f32.mrf.mxu0
  %v1021 = vadd.f32 0.0, %v1020
  %1022 = vdwg.mxu0
  %1023 = vmatpush.msra.mxu0 0.0
  %1024 = vmatpush.msra.mxu0 0.0
  %1025 = vmatpush.msra.mxu0 0.0
  %1026 = vmatpush.msra.mxu0 0.0
  %1027 = vmatpush.msra.mxu0 0.0
  %1028 = vmatpush.msra.mxu0 0.0
  %1029 = vmatpush.msra.mxu0 0.0
  %1030 = vmatpush.msra.mxu0 0.0
  %1031 = vmatpush.msra.mxu0 0.0
  %1032 = vmatpush.msra.mxu0 0.0
  %1033 = vmatpush.msra.mxu0 0.0
  %1034 = vmatpush.msra.mxu0 0.0
  %1035 = vmatpush.msra.mxu0 0.0
  %1036 = vmatpush.msra.mxu0 %v181
  %1037 = vmatpush.msra.mxu0 %v156
  %1038 = vmatpush.msra.mxu0 %v131
  %1039 = vmatmul.f32.gmra.mxu0 %v193
  %v1040 = vpop.f32.mrf.mxu0
  %v1041 = vadd.f32 0.0, %v1040
  %1042 = vmatmul.f32.gmra.mxu0 %v196
  %v1043 = vpop.f32.mrf.mxu0
  %v1044 = vadd.f32 0.0, %v1043
  %1045 = vmatmul.f32.gmra.mxu0 %v199
  %v1046 = vpop.f32.mrf.mxu0
  %v1047 = vadd.f32 0.0, %v1046
  %1048 = vmatmul.f32.gmra.mxu0 %v202
  %v1049 = vpop.f32.mrf.mxu0
  %v1050 = vadd.f32 0.0, %v1049
  %1051 = vmatmul.f32.gmra.mxu0 %v205
  %v1052 = vpop.f32.mrf.mxu0
  %v1053 = vadd.f32 0.0, %v1052
  %1054 = vmatmul.f32.gmra.mxu0 %v208
  %v1055 = vpop.f32.mrf.mxu0
  %v1056 = vadd.f32 0.0, %v1055
  %1057 = vmatmul.f32.gmra.mxu0 %v211
  %v1058 = vpop.f32.mrf.mxu0
  %v1059 = vadd.f32 0.0, %v1058
  %1060 = vmatmul.f32.gmra.mxu0 %v214
  %v1061 = vpop.f32.mrf.mxu0
  %v1062 = vadd.f32 0.0, %v1061
  %1063 = vmatmul.f32.gmra.mxu0 %v217
  %v1064 = vpop.f32.mrf.mxu0
  %v1065 = vadd.f32 0.0, %v1064
  %1066 = vmatmul.f32.gmra.mxu0 %v220
  %v1067 = vpop.f32.mrf.mxu0
  %v1068 = vadd.f32 0.0, %v1067
  %1069 = vmatmul.f32.gmra.mxu0 %v223
  %v1070 = vpop.f32.mrf.mxu0
  %v1071 = vadd.f32 0.0, %v1070
  %1072 = vmatmul.f32.gmra.mxu0 %v226
  %v1073 = vpop.f32.mrf.mxu0
  %v1074 = vadd.f32 0.0, %v1073
  %1075 = vdwg.mxu0
  %1076 = vmatpush.msra.mxu0 0.0
  %1077 = vmatpush.msra.mxu0 0.0
  %1078 = vmatpush.msra.mxu0 0.0
  %1079 = vmatpush.msra.mxu0 0.0
  %1080 = vmatpush.msra.mxu0 0.0
  %1081 = vmatpush.msra.mxu0 0.0
  %1082 = vmatpush.msra.mxu0 0.0
  %1083 = vmatpush.msra.mxu0 0.0
  %1084 = vmatpush.msra.mxu0 0.0
  %1085 = vmatpush.msra.mxu0 0.0
  %1086 = vmatpush.msra.mxu0 0.0
  %1087 = vmatpush.msra.mxu0 0.0
  %1088 = vmatpush.msra.mxu0 0.0
  %1089 = vmatpush.msra.mxu0 %v182
  %1090 = vmatpush.msra.mxu0 %v157
  %1091 = vmatpush.msra.mxu0 %v132
  %1092 = vmatmul.f32.gmra.mxu0 %v193
  %v1093 = vpop.f32.mrf.mxu0
  %v1094 = vadd.f32 0.0, %v1093
  %1095 = vmatmul.f32.gmra.mxu0 %v196
  %v1096 = vpop.f32.mrf.mxu0
  %v1097 = vadd.f32 0.0, %v1096
  %1098 = vmatmul.f32.gmra.mxu0 %v199
  %v1099 = vpop.f32.mrf.mxu0
  %v1100 = vadd.f32 0.0, %v1099
  %1101 = vmatmul.f32.gmra.mxu0 %v202
  %v1102 = vpop.f32.mrf.mxu0
  %v1103 = vadd.f32 0.0, %v1102
  %1104 = vmatmul.f32.gmra.mxu0 %v205
  %v1105 = vpop.f32.mrf.mxu0
  %v1106 = vadd.f32 0.0, %v1105
  %1107 = vmatmul.f32.gmra.mxu0 %v208
  %v1108 = vpop.f32.mrf.mxu0
  %v1109 = vadd.f32 0.0, %v1108
  %1110 = vmatmul.f32.gmra.mxu0 %v211
  %v1111 = vpop.f32.mrf.mxu0
  %v1112 = vadd.f32 0.0, %v1111
  %1113 = vmatmul.f32.gmra.mxu0 %v214
  %v1114 = vpop.f32.mrf.mxu0
  %v1115 = vadd.f32 0.0, %v1114
  %1116 = vmatmul.f32.gmra.mxu0 %v217
  %v1117 = vpop.f32.mrf.mxu0
  %v1118 = vadd.f32 0.0, %v1117
  %1119 = vmatmul.f32.gmra.mxu0 %v220
  %v1120 = vpop.f32.mrf.mxu0
  %v1121 = vadd.f32 0.0, %v1120
  %1122 = vmatmul.f32.gmra.mxu0 %v223
  %v1123 = vpop.f32.mrf.mxu0
  %v1124 = vadd.f32 0.0, %v1123
  %1125 = vmatmul.f32.gmra.mxu0 %v226
  %v1126 = vpop.f32.mrf.mxu0
  %v1127 = vadd.f32 0.0, %v1126
  %1128 = vdwg.mxu0
  %1129 = vmatpush.msra.mxu0 0.0
  %1130 = vmatpush.msra.mxu0 0.0
  %1131 = vmatpush.msra.mxu0 0.0
  %1132 = vmatpush.msra.mxu0 0.0
  %1133 = vmatpush.msra.mxu0 0.0
  %1134 = vmatpush.msra.mxu0 0.0
  %1135 = vmatpush.msra.mxu0 0.0
  %1136 = vmatpush.msra.mxu0 0.0
  %1137 = vmatpush.msra.mxu0 0.0
  %1138 = vmatpush.msra.mxu0 0.0
  %1139 = vmatpush.msra.mxu0 0.0
  %1140 = vmatpush.msra.mxu0 0.0
  %1141 = vmatpush.msra.mxu0 0.0
  %1142 = vmatpush.msra.mxu0 %v183
  %1143 = vmatpush.msra.mxu0 %v158
  %1144 = vmatpush.msra.mxu0 %v133
  %1145 = vmatmul.f32.gmra.mxu0 %v193
  %v1146 = vpop.f32.mrf.mxu0
  %v1147 = vadd.f32 0.0, %v1146
  %1148 = vmatmul.f32.gmra.mxu0 %v196
  %v1149 = vpop.f32.mrf.mxu0
  %v1150 = vadd.f32 0.0, %v1149
  %1151 = vmatmul.f32.gmra.mxu0 %v199
  %v1152 = vpop.f32.mrf.mxu0
  %v1153 = vadd.f32 0.0, %v1152
  %1154 = vmatmul.f32.gmra.mxu0 %v202
  %v1155 = vpop.f32.mrf.mxu0
  %v1156 = vadd.f32 0.0, %v1155
  %1157 = vmatmul.f32.gmra.mxu0 %v205
  %v1158 = vpop.f32.mrf.mxu0
  %v1159 = vadd.f32 0.0, %v1158
  %1160 = vmatmul.f32.gmra.mxu0 %v208
  %v1161 = vpop.f32.mrf.mxu0
  %v1162 = vadd.f32 0.0, %v1161
  %1163 = vmatmul.f32.gmra.mxu0 %v211
  %v1164 = vpop.f32.mrf.mxu0
  %v1165 = vadd.f32 0.0, %v1164
  %1166 = vmatmul.f32.gmra.mxu0 %v214
  %v1167 = vpop.f32.mrf.mxu0
  %v1168 = vadd.f32 0.0, %v1167
  %1169 = vmatmul.f32.gmra.mxu0 %v217
  %v1170 = vpop.f32.mrf.mxu0
  %v1171 = vadd.f32 0.0, %v1170
  %1172 = vmatmul.f32.gmra.mxu0 %v220
  %v1173 = vpop.f32.mrf.mxu0
  %v1174 = vadd.f32 0.0, %v1173
  %1175 = vmatmul.f32.gmra.mxu0 %v223
  %v1176 = vpop.f32.mrf.mxu0
  %v1177 = vadd.f32 0.0, %v1176
  %1178 = vmatmul.f32.gmra.mxu0 %v226
  %v1179 = vpop.f32.mrf.mxu0
  %v1180 = vadd.f32 0.0, %v1179
  %1181 = vdwg.mxu0
  %1182 = vmatpush.msra.mxu0 0.0
  %1183 = vmatpush.msra.mxu0 0.0
  %1184 = vmatpush.msra.mxu0 0.0
  %1185 = vmatpush.msra.mxu0 0.0
  %1186 = vmatpush.msra.mxu0 0.0
  %1187 = vmatpush.msra.mxu0 0.0
  %1188 = vmatpush.msra.mxu0 0.0
  %1189 = vmatpush.msra.mxu0 0.0
  %1190 = vmatpush.msra.mxu0 0.0
  %1191 = vmatpush.msra.mxu0 0.0
  %1192 = vmatpush.msra.mxu0 0.0
  %1193 = vmatpush.msra.mxu0 0.0
  %1194 = vmatpush.msra.mxu0 0.0
  %1195 = vmatpush.msra.mxu0 %v184
  %1196 = vmatpush.msra.mxu0 %v159
  %1197 = vmatpush.msra.mxu0 %v134
  %1198 = vmatmul.f32.gmra.mxu0 %v193
  %v1199 = vpop.f32.mrf.mxu0
  %v1200 = vadd.f32 0.0, %v1199
  %1201 = vmatmul.f32.gmra.mxu0 %v196
  %v1202 = vpop.f32.mrf.mxu0
  %v1203 = vadd.f32 0.0, %v1202
  %1204 = vmatmul.f32.gmra.mxu0 %v199
  %v1205 = vpop.f32.mrf.mxu0
  %v1206 = vadd.f32 0.0, %v1205
  %1207 = vmatmul.f32.gmra.mxu0 %v202
  %v1208 = vpop.f32.mrf.mxu0
  %v1209 = vadd.f32 0.0, %v1208
  %1210 = vmatmul.f32.gmra.mxu0 %v205
  %v1211 = vpop.f32.mrf.mxu0
  %v1212 = vadd.f32 0.0, %v1211
  %1213 = vmatmul.f32.gmra.mxu0 %v208
  %v1214 = vpop.f32.mrf.mxu0
  %v1215 = vadd.f32 0.0, %v1214
  %1216 = vmatmul.f32.gmra.mxu0 %v211
  %v1217 = vpop.f32.mrf.mxu0
  %v1218 = vadd.f32 0.0, %v1217
  %1219 = vmatmul.f32.gmra.mxu0 %v214
  %v1220 = vpop.f32.mrf.mxu0
  %v1221 = vadd.f32 0.0, %v1220
  %1222 = vmatmul.f32.gmra.mxu0 %v217
  %v1223 = vpop.f32.mrf.mxu0
  %v1224 = vadd.f32 0.0, %v1223
  %1225 = vmatmul.f32.gmra.mxu0 %v220
  %v1226 = vpop.f32.mrf.mxu0
  %v1227 = vadd.f32 0.0, %v1226
  %1228 = vmatmul.f32.gmra.mxu0 %v223
  %v1229 = vpop.f32.mrf.mxu0
  %v1230 = vadd.f32 0.0, %v1229
  %1231 = vmatmul.f32.gmra.mxu0 %v226
  %v1232 = vpop.f32.mrf.mxu0
  %v1233 = vadd.f32 0.0, %v1232
  %1234 = vdwg.mxu0
  %1235 = vmatpush.msra.mxu0 0.0
  %1236 = vmatpush.msra.mxu0 0.0
  %1237 = vmatpush.msra.mxu0 0.0
  %1238 = vmatpush.msra.mxu0 0.0
  %1239 = vmatpush.msra.mxu0 0.0
  %1240 = vmatpush.msra.mxu0 0.0
  %1241 = vmatpush.msra.mxu0 0.0
  %1242 = vmatpush.msra.mxu0 0.0
  %1243 = vmatpush.msra.mxu0 0.0
  %1244 = vmatpush.msra.mxu0 0.0
  %1245 = vmatpush.msra.mxu0 0.0
  %1246 = vmatpush.msra.mxu0 0.0
  %1247 = vmatpush.msra.mxu0 0.0
  %1248 = vmatpush.msra.mxu0 %v185
  %1249 = vmatpush.msra.mxu0 %v160
  %1250 = vmatpush.msra.mxu0 %v135
  %1251 = vmatmul.f32.gmra.mxu0 %v193
  %v1252 = vpop.f32.mrf.mxu0
  %v1253 = vadd.f32 0.0, %v1252
  %1254 = vmatmul.f32.gmra.mxu0 %v196
  %v1255 = vpop.f32.mrf.mxu0
  %v1256 = vadd.f32 0.0, %v1255
  %1257 = vmatmul.f32.gmra.mxu0 %v199
  %v1258 = vpop.f32.mrf.mxu0
  %v1259 = vadd.f32 0.0, %v1258
  %1260 = vmatmul.f32.gmra.mxu0 %v202
  %v1261 = vpop.f32.mrf.mxu0
  %v1262 = vadd.f32 0.0, %v1261
  %1263 = vmatmul.f32.gmra.mxu0 %v205
  %v1264 = vpop.f32.mrf.mxu0
  %v1265 = vadd.f32 0.0, %v1264
  %1266 = vmatmul.f32.gmra.mxu0 %v208
  %v1267 = vpop.f32.mrf.mxu0
  %v1268 = vadd.f32 0.0, %v1267
  %1269 = vmatmul.f32.gmra.mxu0 %v211
  %v1270 = vpop.f32.mrf.mxu0
  %v1271 = vadd.f32 0.0, %v1270
  %1272 = vmatmul.f32.gmra.mxu0 %v214
  %v1273 = vpop.f32.mrf.mxu0
  %v1274 = vadd.f32 0.0, %v1273
  %1275 = vmatmul.f32.gmra.mxu0 %v217
  %v1276 = vpop.f32.mrf.mxu0
  %v1277 = vadd.f32 0.0, %v1276
  %1278 = vmatmul.f32.gmra.mxu0 %v220
  %v1279 = vpop.f32.mrf.mxu0
  %v1280 = vadd.f32 0.0, %v1279
  %1281 = vmatmul.f32.gmra.mxu0 %v223
  %v1282 = vpop.f32.mrf.mxu0
  %v1283 = vadd.f32 0.0, %v1282
  %1284 = vmatmul.f32.gmra.mxu0 %v226
  %v1285 = vpop.f32.mrf.mxu0
  %v1286 = vadd.f32 0.0, %v1285
  %1287 = vdwg.mxu0
  %1288 = vmatpush.msra.mxu0 0.0
  %1289 = vmatpush.msra.mxu0 0.0
  %1290 = vmatpush.msra.mxu0 0.0
  %1291 = vmatpush.msra.mxu0 0.0
  %1292 = vmatpush.msra.mxu0 0.0
  %1293 = vmatpush.msra.mxu0 0.0
  %1294 = vmatpush.msra.mxu0 0.0
  %1295 = vmatpush.msra.mxu0 0.0
  %1296 = vmatpush.msra.mxu0 0.0
  %1297 = vmatpush.msra.mxu0 0.0
  %1298 = vmatpush.msra.mxu0 0.0
  %1299 = vmatpush.msra.mxu0 0.0
  %1300 = vmatpush.msra.mxu0 0.0
  %1301 = vmatpush.msra.mxu0 %v186
  %1302 = vmatpush.msra.mxu0 %v161
  %1303 = vmatpush.msra.mxu0 %v136
  %1304 = vmatmul.f32.gmra.mxu0 %v193
  %v1305 = vpop.f32.mrf.mxu0
  %v1306 = vadd.f32 0.0, %v1305
  %1307 = vmatmul.f32.gmra.mxu0 %v196
  %v1308 = vpop.f32.mrf.mxu0
  %v1309 = vadd.f32 0.0, %v1308
  %1310 = vmatmul.f32.gmra.mxu0 %v199
  %v1311 = vpop.f32.mrf.mxu0
  %v1312 = vadd.f32 0.0, %v1311
  %1313 = vmatmul.f32.gmra.mxu0 %v202
  %v1314 = vpop.f32.mrf.mxu0
  %v1315 = vadd.f32 0.0, %v1314
  %1316 = vmatmul.f32.gmra.mxu0 %v205
  %v1317 = vpop.f32.mrf.mxu0
  %v1318 = vadd.f32 0.0, %v1317
  %1319 = vmatmul.f32.gmra.mxu0 %v208
  %v1320 = vpop.f32.mrf.mxu0
  %v1321 = vadd.f32 0.0, %v1320
  %1322 = vmatmul.f32.gmra.mxu0 %v211
  %v1323 = vpop.f32.mrf.mxu0
  %v1324 = vadd.f32 0.0, %v1323
  %1325 = vmatmul.f32.gmra.mxu0 %v214
  %v1326 = vpop.f32.mrf.mxu0
  %v1327 = vadd.f32 0.0, %v1326
  %1328 = vmatmul.f32.gmra.mxu0 %v217
  %v1329 = vpop.f32.mrf.mxu0
  %v1330 = vadd.f32 0.0, %v1329
  %1331 = vmatmul.f32.gmra.mxu0 %v220
  %v1332 = vpop.f32.mrf.mxu0
  %v1333 = vadd.f32 0.0, %v1332
  %1334 = vmatmul.f32.gmra.mxu0 %v223
  %v1335 = vpop.f32.mrf.mxu0
  %v1336 = vadd.f32 0.0, %v1335
  %1337 = vmatmul.f32.gmra.mxu0 %v226
  %v1338 = vpop.f32.mrf.mxu0
  %v1339 = vadd.f32 0.0, %v1338
  %1340 = vdwg.mxu0
  %1341 = vmatpush.msra.mxu0 0.0
  %1342 = vmatpush.msra.mxu0 0.0
  %1343 = vmatpush.msra.mxu0 0.0
  %1344 = vmatpush.msra.mxu0 0.0
  %1345 = vmatpush.msra.mxu0 0.0
  %1346 = vmatpush.msra.mxu0 0.0
  %1347 = vmatpush.msra.mxu0 0.0
  %1348 = vmatpush.msra.mxu0 0.0
  %1349 = vmatpush.msra.mxu0 0.0
  %1350 = vmatpush.msra.mxu0 0.0
  %1351 = vmatpush.msra.mxu0 0.0
  %1352 = vmatpush.msra.mxu0 0.0
  %1353 = vmatpush.msra.mxu0 0.0
  %1354 = vmatpush.msra.mxu0 %v187
  %1355 = vmatpush.msra.mxu0 %v162
  %1356 = vmatpush.msra.mxu0 %v137
  %1357 = vmatmul.f32.gmra.mxu0 %v193
  %v1358 = vpop.f32.mrf.mxu0
  %v1359 = vadd.f32 0.0, %v1358
  %1360 = vmatmul.f32.gmra.mxu0 %v196
  %v1361 = vpop.f32.mrf.mxu0
  %v1362 = vadd.f32 0.0, %v1361
  %1363 = vmatmul.f32.gmra.mxu0 %v199
  %v1364 = vpop.f32.mrf.mxu0
  %v1365 = vadd.f32 0.0, %v1364
  %1366 = vmatmul.f32.gmra.mxu0 %v202
  %v1367 = vpop.f32.mrf.mxu0
  %v1368 = vadd.f32 0.0, %v1367
  %1369 = vmatmul.f32.gmra.mxu0 %v205
  %v1370 = vpop.f32.mrf.mxu0
  %v1371 = vadd.f32 0.0, %v1370
  %1372 = vmatmul.f32.gmra.mxu0 %v208
  %v1373 = vpop.f32.mrf.mxu0
  %v1374 = vadd.f32 0.0, %v1373
  %1375 = vmatmul.f32.gmra.mxu0 %v211
  %v1376 = vpop.f32.mrf.mxu0
  %v1377 = vadd.f32 0.0, %v1376
  %1378 = vmatmul.f32.gmra.mxu0 %v214
  %v1379 = vpop.f32.mrf.mxu0
  %v1380 = vadd.f32 0.0, %v1379
  %1381 = vmatmul.f32.gmra.mxu0 %v217
  %v1382 = vpop.f32.mrf.mxu0
  %v1383 = vadd.f32 0.0, %v1382
  %1384 = vmatmul.f32.gmra.mxu0 %v220
  %v1385 = vpop.f32.mrf.mxu0
  %v1386 = vadd.f32 0.0, %v1385
  %1387 = vmatmul.f32.gmra.mxu0 %v223
  %v1388 = vpop.f32.mrf.mxu0
  %v1389 = vadd.f32 0.0, %v1388
  %1390 = vmatmul.f32.gmra.mxu0 %v226
  %v1391 = vpop.f32.mrf.mxu0
  %v1392 = vadd.f32 0.0, %v1391
  %1393 = vdwg.mxu0
  %1394 = vmatpush.msra.mxu0 0.0
  %1395 = vmatpush.msra.mxu0 0.0
  %1396 = vmatpush.msra.mxu0 0.0
  %1397 = vmatpush.msra.mxu0 0.0
  %1398 = vmatpush.msra.mxu0 0.0
  %1399 = vmatpush.msra.mxu0 0.0
  %1400 = vmatpush.msra.mxu0 0.0
  %1401 = vmatpush.msra.mxu0 0.0
  %1402 = vmatpush.msra.mxu0 0.0
  %1403 = vmatpush.msra.mxu0 0.0
  %1404 = vmatpush.msra.mxu0 0.0
  %1405 = vmatpush.msra.mxu0 0.0
  %1406 = vmatpush.msra.mxu0 0.0
  %1407 = vmatpush.msra.mxu0 %v188
  %1408 = vmatpush.msra.mxu0 %v163
  %1409 = vmatpush.msra.mxu0 %v138
  %1410 = vmatmul.f32.gmra.mxu0 %v193
  %v1411 = vpop.f32.mrf.mxu0
  %v1412 = vadd.f32 0.0, %v1411
  %1413 = vmatmul.f32.gmra.mxu0 %v196
  %v1414 = vpop.f32.mrf.mxu0
  %v1415 = vadd.f32 0.0, %v1414
  %1416 = vmatmul.f32.gmra.mxu0 %v199
  %v1417 = vpop.f32.mrf.mxu0
  %v1418 = vadd.f32 0.0, %v1417
  %1419 = vmatmul.f32.gmra.mxu0 %v202
  %v1420 = vpop.f32.mrf.mxu0
  %v1421 = vadd.f32 0.0, %v1420
  %1422 = vmatmul.f32.gmra.mxu0 %v205
  %v1423 = vpop.f32.mrf.mxu0
  %v1424 = vadd.f32 0.0, %v1423
  %1425 = vmatmul.f32.gmra.mxu0 %v208
  %v1426 = vpop.f32.mrf.mxu0
  %v1427 = vadd.f32 0.0, %v1426
  %1428 = vmatmul.f32.gmra.mxu0 %v211
  %v1429 = vpop.f32.mrf.mxu0
  %v1430 = vadd.f32 0.0, %v1429
  %1431 = vmatmul.f32.gmra.mxu0 %v214
  %v1432 = vpop.f32.mrf.mxu0
  %v1433 = vadd.f32 0.0, %v1432
  %1434 = vmatmul.f32.gmra.mxu0 %v217
  %v1435 = vpop.f32.mrf.mxu0
  %v1436 = vadd.f32 0.0, %v1435
  %1437 = vmatmul.f32.gmra.mxu0 %v220
  %v1438 = vpop.f32.mrf.mxu0
  %v1439 = vadd.f32 0.0, %v1438
  %1440 = vmatmul.f32.gmra.mxu0 %v223
  %v1441 = vpop.f32.mrf.mxu0
  %v1442 = vadd.f32 0.0, %v1441
  %1443 = vmatmul.f32.gmra.mxu0 %v226
  %v1444 = vpop.f32.mrf.mxu0
  %v1445 = vadd.f32 0.0, %v1444
  %1446 = vdwg.mxu0
  %1447 = vmatpush.msra.mxu0 0.0
  %1448 = vmatpush.msra.mxu0 0.0
  %1449 = vmatpush.msra.mxu0 0.0
  %1450 = vmatpush.msra.mxu0 0.0
  %1451 = vmatpush.msra.mxu0 0.0
  %1452 = vmatpush.msra.mxu0 0.0
  %1453 = vmatpush.msra.mxu0 0.0
  %1454 = vmatpush.msra.mxu0 0.0
  %1455 = vmatpush.msra.mxu0 0.0
  %1456 = vmatpush.msra.mxu0 0.0
  %1457 = vmatpush.msra.mxu0 0.0
  %1458 = vmatpush.msra.mxu0 0.0
  %1459 = vmatpush.msra.mxu0 0.0
  %1460 = vmatpush.msra.mxu0 %v189
  %1461 = vmatpush.msra.mxu0 %v164
  %1462 = vmatpush.msra.mxu0 %v139
  %1463 = vmatmul.f32.gmra.mxu0 %v193
  %v1464 = vpop.f32.mrf.mxu0
  %v1465 = vadd.f32 0.0, %v1464
  %1466 = vmatmul.f32.gmra.mxu0 %v196
  %v1467 = vpop.f32.mrf.mxu0
  %v1468 = vadd.f32 0.0, %v1467
  %1469 = vmatmul.f32.gmra.mxu0 %v199
  %v1470 = vpop.f32.mrf.mxu0
  %v1471 = vadd.f32 0.0, %v1470
  %1472 = vmatmul.f32.gmra.mxu0 %v202
  %v1473 = vpop.f32.mrf.mxu0
  %v1474 = vadd.f32 0.0, %v1473
  %1475 = vmatmul.f32.gmra.mxu0 %v205
  %v1476 = vpop.f32.mrf.mxu0
  %v1477 = vadd.f32 0.0, %v1476
  %1478 = vmatmul.f32.gmra.mxu0 %v208
  %v1479 = vpop.f32.mrf.mxu0
  %v1480 = vadd.f32 0.0, %v1479
  %1481 = vmatmul.f32.gmra.mxu0 %v211
  %v1482 = vpop.f32.mrf.mxu0
  %v1483 = vadd.f32 0.0, %v1482
  %1484 = vmatmul.f32.gmra.mxu0 %v214
  %v1485 = vpop.f32.mrf.mxu0
  %v1486 = vadd.f32 0.0, %v1485
  %1487 = vmatmul.f32.gmra.mxu0 %v217
  %v1488 = vpop.f32.mrf.mxu0
  %v1489 = vadd.f32 0.0, %v1488
  %1490 = vmatmul.f32.gmra.mxu0 %v220
  %v1491 = vpop.f32.mrf.mxu0
  %v1492 = vadd.f32 0.0, %v1491
  %1493 = vmatmul.f32.gmra.mxu0 %v223
  %v1494 = vpop.f32.mrf.mxu0
  %v1495 = vadd.f32 0.0, %v1494
  %1496 = vmatmul.f32.gmra.mxu0 %v226
  %v1497 = vpop.f32.mrf.mxu0
  %v1498 = vadd.f32 0.0, %v1497
  %1499 = vdwg.mxu0
  %1500 = vmatpush.msra.mxu0 0.0
  %1501 = vmatpush.msra.mxu0 0.0
  %1502 = vmatpush.msra.mxu0 0.0
  %1503 = vmatpush.msra.mxu0 0.0
  %1504 = vmatpush.msra.mxu0 0.0
  %1505 = vmatpush.msra.mxu0 0.0
  %1506 = vmatpush.msra.mxu0 0.0
  %1507 = vmatpush.msra.mxu0 0.0
  %1508 = vmatpush.msra.mxu0 0.0
  %1509 = vmatpush.msra.mxu0 0.0
  %1510 = vmatpush.msra.mxu0 0.0
  %1511 = vmatpush.msra.mxu0 0.0
  %1512 = vmatpush.msra.mxu0 0.0
  %1513 = vmatpush.msra.mxu0 %v190
  %1514 = vmatpush.msra.mxu0 %v165
  %1515 = vmatpush.msra.mxu0 %v140
  %1516 = vmatmul.f32.gmra.mxu0 %v193
  %v1517 = vpop.f32.mrf.mxu0
  %v1518 = vadd.f32 0.0, %v1517
  %1519 = vmatmul.f32.gmra.mxu0 %v196
  %v1520 = vpop.f32.mrf.mxu0
  %v1521 = vadd.f32 0.0, %v1520
  %1522 = vmatmul.f32.gmra.mxu0 %v199
  %v1523 = vpop.f32.mrf.mxu0
  %v1524 = vadd.f32 0.0, %v1523
  %1525 = vmatmul.f32.gmra.mxu0 %v202
  %v1526 = vpop.f32.mrf.mxu0
  %v1527 = vadd.f32 0.0, %v1526
  %1528 = vmatmul.f32.gmra.mxu0 %v205
  %v1529 = vpop.f32.mrf.mxu0
  %v1530 = vadd.f32 0.0, %v1529
  %1531 = vmatmul.f32.gmra.mxu0 %v208
  %v1532 = vpop.f32.mrf.mxu0
  %v1533 = vadd.f32 0.0, %v1532
  %1534 = vmatmul.f32.gmra.mxu0 %v211
  %v1535 = vpop.f32.mrf.mxu0
  %v1536 = vadd.f32 0.0, %v1535
  %1537 = vmatmul.f32.gmra.mxu0 %v214
  %v1538 = vpop.f32.mrf.mxu0
  %v1539 = vadd.f32 0.0, %v1538
  %1540 = vmatmul.f32.gmra.mxu0 %v217
  %v1541 = vpop.f32.mrf.mxu0
  %v1542 = vadd.f32 0.0, %v1541
  %1543 = vmatmul.f32.gmra.mxu0 %v220
  %v1544 = vpop.f32.mrf.mxu0
  %v1545 = vadd.f32 0.0, %v1544
  %1546 = vmatmul.f32.gmra.mxu0 %v223
  %v1547 = vpop.f32.mrf.mxu0
  %v1548 = vadd.f32 0.0, %v1547
  %1549 = vmatmul.f32.gmra.mxu0 %v226
  %v1550 = vpop.f32.mrf.mxu0
  %v1551 = vadd.f32 0.0, %v1550
  %1552 = vdwg.mxu0
  %v1554 = vsel %vm191, %v17, 0
  %v1557 = vsel %vm191, %v18, 0
  %v1560 = vsel %vm191, %v19, 0
  %v1563 = vsel %vm191, %v20, 0
  %v1566 = vsel %vm191, %v21, 0
  %v1569 = vsel %vm191, %v22, 0
  %v1572 = vsel %vm191, %v23, 0
  %v1575 = vsel %vm191, %v24, 0
  %v1578 = vsel %vm191, %v25, 0
  %v1581 = vsel %vm191, %v26, 0
  %v1584 = vsel %vm191, %v27, 0
  %v1587 = vsel %vm191, %v28, 0
  %1589 = vmatpush.msra.mxu0 0.0
  %1590 = vmatpush.msra.mxu0 0.0
  %1591 = vmatpush.msra.mxu0 0.0
  %1592 = vmatpush.msra.mxu0 0.0
  %1593 = vmatpush.msra.mxu0 0.0
  %1594 = vmatpush.msra.mxu0 0.0
  %1595 = vmatpush.msra.mxu0 0.0
  %1596 = vmatpush.msra.mxu0 0.0
  %1597 = vmatpush.msra.mxu0 0.0
  %1598 = vmatpush.msra.mxu0 0.0
  %1599 = vmatpush.msra.mxu0 0.0
  %1600 = vmatpush.msra.mxu0 0.0
  %1601 = vmatpush.msra.mxu0 0.0
  %1602 = vmatpush.msra.mxu0 %v79
  %1603 = vmatpush.msra.mxu0 %v54
  %1604 = vmatpush.msra.mxu0 %v29
  %1605 = vmatmul.f32.gmra.mxu0 %v1554
  %v1606 = vpop.f32.mrf.mxu0
  %v1607 = vadd.f32 %v246, %v1606
  %1608 = vmatmul.f32.gmra.mxu0 %v1557
  %v1609 = vpop.f32.mrf.mxu0
  %v1610 = vadd.f32 %v249, %v1609
  %1611 = vmatmul.f32.gmra.mxu0 %v1560
  %v1612 = vpop.f32.mrf.mxu0
  %v1613 = vadd.f32 %v252, %v1612
  %1614 = vmatmul.f32.gmra.mxu0 %v1563
  %v1615 = vpop.f32.mrf.mxu0
  %v1616 = vadd.f32 %v255, %v1615
  %1617 = vmatmul.f32.gmra.mxu0 %v1566
  %v1618 = vpop.f32.mrf.mxu0
  %v1619 = vadd.f32 %v258, %v1618
  %1620 = vmatmul.f32.gmra.mxu0 %v1569
  %v1621 = vpop.f32.mrf.mxu0
  %v1622 = vadd.f32 %v261, %v1621
  %1623 = vmatmul.f32.gmra.mxu0 %v1572
  %v1624 = vpop.f32.mrf.mxu0
  %v1625 = vadd.f32 %v264, %v1624
  %1626 = vmatmul.f32.gmra.mxu0 %v1575
  %v1627 = vpop.f32.mrf.mxu0
  %v1628 = vadd.f32 %v267, %v1627
  %1629 = vmatmul.f32.gmra.mxu0 %v1578
  %v1630 = vpop.f32.mrf.mxu0
  %v1631 = vadd.f32 %v270, %v1630
  %1632 = vmatmul.f32.gmra.mxu0 %v1581
  %v1633 = vpop.f32.mrf.mxu0
  %v1634 = vadd.f32 %v273, %v1633
  %1635 = vmatmul.f32.gmra.mxu0 %v1584
  %v1636 = vpop.f32.mrf.mxu0
  %v1637 = vadd.f32 %v276, %v1636
  %1638 = vmatmul.f32.gmra.mxu0 %v1587
  %v1639 = vpop.f32.mrf.mxu0
  %v1640 = vadd.f32 %v279, %v1639
  %1641 = vdwg.mxu0
  %1642 = vmatpush.msra.mxu0 0.0
  %1643 = vmatpush.msra.mxu0 0.0
  %1644 = vmatpush.msra.mxu0 0.0
  %1645 = vmatpush.msra.mxu0 0.0
  %1646 = vmatpush.msra.mxu0 0.0
  %1647 = vmatpush.msra.mxu0 0.0
  %1648 = vmatpush.msra.mxu0 0.0
  %1649 = vmatpush.msra.mxu0 0.0
  %1650 = vmatpush.msra.mxu0 0.0
  %1651 = vmatpush.msra.mxu0 0.0
  %1652 = vmatpush.msra.mxu0 0.0
  %1653 = vmatpush.msra.mxu0 0.0
  %1654 = vmatpush.msra.mxu0 0.0
  %1655 = vmatpush.msra.mxu0 %v80
  %1656 = vmatpush.msra.mxu0 %v55
  %1657 = vmatpush.msra.mxu0 %v30
  %1658 = vmatmul.f32.gmra.mxu0 %v1554
  %v1659 = vpop.f32.mrf.mxu0
  %v1660 = vadd.f32 %v299, %v1659
  %1661 = vmatmul.f32.gmra.mxu0 %v1557
  %v1662 = vpop.f32.mrf.mxu0
  %v1663 = vadd.f32 %v302, %v1662
  %1664 = vmatmul.f32.gmra.mxu0 %v1560
  %v1665 = vpop.f32.mrf.mxu0
  %v1666 = vadd.f32 %v305, %v1665
  %1667 = vmatmul.f32.gmra.mxu0 %v1563
  %v1668 = vpop.f32.mrf.mxu0
  %v1669 = vadd.f32 %v308, %v1668
  %1670 = vmatmul.f32.gmra.mxu0 %v1566
  %v1671 = vpop.f32.mrf.mxu0
  %v1672 = vadd.f32 %v311, %v1671
  %1673 = vmatmul.f32.gmra.mxu0 %v1569
  %v1674 = vpop.f32.mrf.mxu0
  %v1675 = vadd.f32 %v314, %v1674
  %1676 = vmatmul.f32.gmra.mxu0 %v1572
  %v1677 = vpop.f32.mrf.mxu0
  %v1678 = vadd.f32 %v317, %v1677
  %1679 = vmatmul.f32.gmra.mxu0 %v1575
  %v1680 = vpop.f32.mrf.mxu0
  %v1681 = vadd.f32 %v320, %v1680
  %1682 = vmatmul.f32.gmra.mxu0 %v1578
  %v1683 = vpop.f32.mrf.mxu0
  %v1684 = vadd.f32 %v323, %v1683
  %1685 = vmatmul.f32.gmra.mxu0 %v1581
  %v1686 = vpop.f32.mrf.mxu0
  %v1687 = vadd.f32 %v326, %v1686
  %1688 = vmatmul.f32.gmra.mxu0 %v1584
  %v1689 = vpop.f32.mrf.mxu0
  %v1690 = vadd.f32 %v329, %v1689
  %1691 = vmatmul.f32.gmra.mxu0 %v1587
  %v1692 = vpop.f32.mrf.mxu0
  %v1693 = vadd.f32 %v332, %v1692
  %1694 = vdwg.mxu0
  %1695 = vmatpush.msra.mxu0 0.0
  %1696 = vmatpush.msra.mxu0 0.0
  %1697 = vmatpush.msra.mxu0 0.0
  %1698 = vmatpush.msra.mxu0 0.0
  %1699 = vmatpush.msra.mxu0 0.0
  %1700 = vmatpush.msra.mxu0 0.0
  %1701 = vmatpush.msra.mxu0 0.0
  %1702 = vmatpush.msra.mxu0 0.0
  %1703 = vmatpush.msra.mxu0 0.0
  %1704 = vmatpush.msra.mxu0 0.0
  %1705 = vmatpush.msra.mxu0 0.0
  %1706 = vmatpush.msra.mxu0 0.0
  %1707 = vmatpush.msra.mxu0 0.0
  %1708 = vmatpush.msra.mxu0 %v81
  %1709 = vmatpush.msra.mxu0 %v56
  %1710 = vmatpush.msra.mxu0 %v31
  %1711 = vmatmul.f32.gmra.mxu0 %v1554
  %v1712 = vpop.f32.mrf.mxu0
  %v1713 = vadd.f32 %v352, %v1712
  %1714 = vmatmul.f32.gmra.mxu0 %v1557
  %v1715 = vpop.f32.mrf.mxu0
  %v1716 = vadd.f32 %v355, %v1715
  %1717 = vmatmul.f32.gmra.mxu0 %v1560
  %v1718 = vpop.f32.mrf.mxu0
  %v1719 = vadd.f32 %v358, %v1718
  %1720 = vmatmul.f32.gmra.mxu0 %v1563
  %v1721 = vpop.f32.mrf.mxu0
  %v1722 = vadd.f32 %v361, %v1721
  %1723 = vmatmul.f32.gmra.mxu0 %v1566
  %v1724 = vpop.f32.mrf.mxu0
  %v1725 = vadd.f32 %v364, %v1724
  %1726 = vmatmul.f32.gmra.mxu0 %v1569
  %v1727 = vpop.f32.mrf.mxu0
  %v1728 = vadd.f32 %v367, %v1727
  %1729 = vmatmul.f32.gmra.mxu0 %v1572
  %v1730 = vpop.f32.mrf.mxu0
  %v1731 = vadd.f32 %v370, %v1730
  %1732 = vmatmul.f32.gmra.mxu0 %v1575
  %v1733 = vpop.f32.mrf.mxu0
  %v1734 = vadd.f32 %v373, %v1733
  %1735 = vmatmul.f32.gmra.mxu0 %v1578
  %v1736 = vpop.f32.mrf.mxu0
  %v1737 = vadd.f32 %v376, %v1736
  %1738 = vmatmul.f32.gmra.mxu0 %v1581
  %v1739 = vpop.f32.mrf.mxu0
  %v1740 = vadd.f32 %v379, %v1739
  %1741 = vmatmul.f32.gmra.mxu0 %v1584
  %v1742 = vpop.f32.mrf.mxu0
  %v1743 = vadd.f32 %v382, %v1742
  %1744 = vmatmul.f32.gmra.mxu0 %v1587
  %v1745 = vpop.f32.mrf.mxu0
  %v1746 = vadd.f32 %v385, %v1745
  %1747 = vdwg.mxu0
  %1748 = vmatpush.msra.mxu0 0.0
  %1749 = vmatpush.msra.mxu0 0.0
  %1750 = vmatpush.msra.mxu0 0.0
  %1751 = vmatpush.msra.mxu0 0.0
  %1752 = vmatpush.msra.mxu0 0.0
  %1753 = vmatpush.msra.mxu0 0.0
  %1754 = vmatpush.msra.mxu0 0.0
  %1755 = vmatpush.msra.mxu0 0.0
  %1756 = vmatpush.msra.mxu0 0.0
  %1757 = vmatpush.msra.mxu0 0.0
  %1758 = vmatpush.msra.mxu0 0.0
  %1759 = vmatpush.msra.mxu0 0.0
  %1760 = vmatpush.msra.mxu0 0.0
  %1761 = vmatpush.msra.mxu0 %v82
  %1762 = vmatpush.msra.mxu0 %v57
  %1763 = vmatpush.msra.mxu0 %v32
  %1764 = vmatmul.f32.gmra.mxu0 %v1554
  %v1765 = vpop.f32.mrf.mxu0
  %v1766 = vadd.f32 %v405, %v1765
  %1767 = vmatmul.f32.gmra.mxu0 %v1557
  %v1768 = vpop.f32.mrf.mxu0
  %v1769 = vadd.f32 %v408, %v1768
  %1770 = vmatmul.f32.gmra.mxu0 %v1560
  %v1771 = vpop.f32.mrf.mxu0
  %v1772 = vadd.f32 %v411, %v1771
  %1773 = vmatmul.f32.gmra.mxu0 %v1563
  %v1774 = vpop.f32.mrf.mxu0
  %v1775 = vadd.f32 %v414, %v1774
  %1776 = vmatmul.f32.gmra.mxu0 %v1566
  %v1777 = vpop.f32.mrf.mxu0
  %v1778 = vadd.f32 %v417, %v1777
  %1779 = vmatmul.f32.gmra.mxu0 %v1569
  %v1780 = vpop.f32.mrf.mxu0
  %v1781 = vadd.f32 %v420, %v1780
  %1782 = vmatmul.f32.gmra.mxu0 %v1572
  %v1783 = vpop.f32.mrf.mxu0
  %v1784 = vadd.f32 %v423, %v1783
  %1785 = vmatmul.f32.gmra.mxu0 %v1575
  %v1786 = vpop.f32.mrf.mxu0
  %v1787 = vadd.f32 %v426, %v1786
  %1788 = vmatmul.f32.gmra.mxu0 %v1578
  %v1789 = vpop.f32.mrf.mxu0
  %v1790 = vadd.f32 %v429, %v1789
  %1791 = vmatmul.f32.gmra.mxu0 %v1581
  %v1792 = vpop.f32.mrf.mxu0
  %v1793 = vadd.f32 %v432, %v1792
  %1794 = vmatmul.f32.gmra.mxu0 %v1584
  %v1795 = vpop.f32.mrf.mxu0
  %v1796 = vadd.f32 %v435, %v1795
  %1797 = vmatmul.f32.gmra.mxu0 %v1587
  %v1798 = vpop.f32.mrf.mxu0
  %v1799 = vadd.f32 %v438, %v1798
  %1800 = vdwg.mxu0
  %1801 = vmatpush.msra.mxu0 0.0
  %1802 = vmatpush.msra.mxu0 0.0
  %1803 = vmatpush.msra.mxu0 0.0
  %1804 = vmatpush.msra.mxu0 0.0
  %1805 = vmatpush.msra.mxu0 0.0
  %1806 = vmatpush.msra.mxu0 0.0
  %1807 = vmatpush.msra.mxu0 0.0
  %1808 = vmatpush.msra.mxu0 0.0
  %1809 = vmatpush.msra.mxu0 0.0
  %1810 = vmatpush.msra.mxu0 0.0
  %1811 = vmatpush.msra.mxu0 0.0
  %1812 = vmatpush.msra.mxu0 0.0
  %1813 = vmatpush.msra.mxu0 0.0
  %1814 = vmatpush.msra.mxu0 %v83
  %1815 = vmatpush.msra.mxu0 %v58
  %1816 = vmatpush.msra.mxu0 %v33
  %1817 = vmatmul.f32.gmra.mxu0 %v1554
  %v1818 = vpop.f32.mrf.mxu0
  %v1819 = vadd.f32 %v458, %v1818
  %1820 = vmatmul.f32.gmra.mxu0 %v1557
  %v1821 = vpop.f32.mrf.mxu0
  %v1822 = vadd.f32 %v461, %v1821
  %1823 = vmatmul.f32.gmra.mxu0 %v1560
  %v1824 = vpop.f32.mrf.mxu0
  %v1825 = vadd.f32 %v464, %v1824
  %1826 = vmatmul.f32.gmra.mxu0 %v1563
  %v1827 = vpop.f32.mrf.mxu0
  %v1828 = vadd.f32 %v467, %v1827
  %1829 = vmatmul.f32.gmra.mxu0 %v1566
  %v1830 = vpop.f32.mrf.mxu0
  %v1831 = vadd.f32 %v470, %v1830
  %1832 = vmatmul.f32.gmra.mxu0 %v1569
  %v1833 = vpop.f32.mrf.mxu0
  %v1834 = vadd.f32 %v473, %v1833
  %1835 = vmatmul.f32.gmra.mxu0 %v1572
  %v1836 = vpop.f32.mrf.mxu0
  %v1837 = vadd.f32 %v476, %v1836
  %1838 = vmatmul.f32.gmra.mxu0 %v1575
  %v1839 = vpop.f32.mrf.mxu0
  %v1840 = vadd.f32 %v479, %v1839
  %1841 = vmatmul.f32.gmra.mxu0 %v1578
  %v1842 = vpop.f32.mrf.mxu0
  %v1843 = vadd.f32 %v482, %v1842
  %1844 = vmatmul.f32.gmra.mxu0 %v1581
  %v1845 = vpop.f32.mrf.mxu0
  %v1846 = vadd.f32 %v485, %v1845
  %1847 = vmatmul.f32.gmra.mxu0 %v1584
  %v1848 = vpop.f32.mrf.mxu0
  %v1849 = vadd.f32 %v488, %v1848
  %1850 = vmatmul.f32.gmra.mxu0 %v1587
  %v1851 = vpop.f32.mrf.mxu0
  %v1852 = vadd.f32 %v491, %v1851
  %1853 = vdwg.mxu0
  %1854 = vmatpush.msra.mxu0 0.0
  %1855 = vmatpush.msra.mxu0 0.0
  %1856 = vmatpush.msra.mxu0 0.0
  %1857 = vmatpush.msra.mxu0 0.0
  %1858 = vmatpush.msra.mxu0 0.0
  %1859 = vmatpush.msra.mxu0 0.0
  %1860 = vmatpush.msra.mxu0 0.0
  %1861 = vmatpush.msra.mxu0 0.0
  %1862 = vmatpush.msra.mxu0 0.0
  %1863 = vmatpush.msra.mxu0 0.0
  %1864 = vmatpush.msra.mxu0 0.0
  %1865 = vmatpush.msra.mxu0 0.0
  %1866 = vmatpush.msra.mxu0 0.0
  %1867 = vmatpush.msra.mxu0 %v84
  %1868 = vmatpush.msra.mxu0 %v59
  %1869 = vmatpush.msra.mxu0 %v34
  %1870 = vmatmul.f32.gmra.mxu0 %v1554
  %v1871 = vpop.f32.mrf.mxu0
  %v1872 = vadd.f32 %v511, %v1871
  %1873 = vmatmul.f32.gmra.mxu0 %v1557
  %v1874 = vpop.f32.mrf.mxu0
  %v1875 = vadd.f32 %v514, %v1874
  %1876 = vmatmul.f32.gmra.mxu0 %v1560
  %v1877 = vpop.f32.mrf.mxu0
  %v1878 = vadd.f32 %v517, %v1877
  %1879 = vmatmul.f32.gmra.mxu0 %v1563
  %v1880 = vpop.f32.mrf.mxu0
  %v1881 = vadd.f32 %v520, %v1880
  %1882 = vmatmul.f32.gmra.mxu0 %v1566
  %v1883 = vpop.f32.mrf.mxu0
  %v1884 = vadd.f32 %v523, %v1883
  %1885 = vmatmul.f32.gmra.mxu0 %v1569
  %v1886 = vpop.f32.mrf.mxu0
  %v1887 = vadd.f32 %v526, %v1886
  %1888 = vmatmul.f32.gmra.mxu0 %v1572
  %v1889 = vpop.f32.mrf.mxu0
  %v1890 = vadd.f32 %v529, %v1889
  %1891 = vmatmul.f32.gmra.mxu0 %v1575
  %v1892 = vpop.f32.mrf.mxu0
  %v1893 = vadd.f32 %v532, %v1892
  %1894 = vmatmul.f32.gmra.mxu0 %v1578
  %v1895 = vpop.f32.mrf.mxu0
  %v1896 = vadd.f32 %v535, %v1895
  %1897 = vmatmul.f32.gmra.mxu0 %v1581
  %v1898 = vpop.f32.mrf.mxu0
  %v1899 = vadd.f32 %v538, %v1898
  %1900 = vmatmul.f32.gmra.mxu0 %v1584
  %v1901 = vpop.f32.mrf.mxu0
  %v1902 = vadd.f32 %v541, %v1901
  %1903 = vmatmul.f32.gmra.mxu0 %v1587
  %v1904 = vpop.f32.mrf.mxu0
  %v1905 = vadd.f32 %v544, %v1904
  %1906 = vdwg.mxu0
  %1907 = vmatpush.msra.mxu0 0.0
  %1908 = vmatpush.msra.mxu0 0.0
  %1909 = vmatpush.msra.mxu0 0.0
  %1910 = vmatpush.msra.mxu0 0.0
  %1911 = vmatpush.msra.mxu0 0.0
  %1912 = vmatpush.msra.mxu0 0.0
  %1913 = vmatpush.msra.mxu0 0.0
  %1914 = vmatpush.msra.mxu0 0.0
  %1915 = vmatpush.msra.mxu0 0.0
  %1916 = vmatpush.msra.mxu0 0.0
  %1917 = vmatpush.msra.mxu0 0.0
  %1918 = vmatpush.msra.mxu0 0.0
  %1919 = vmatpush.msra.mxu0 0.0
  %1920 = vmatpush.msra.mxu0 %v85
  %1921 = vmatpush.msra.mxu0 %v60
  %1922 = vmatpush.msra.mxu0 %v35
  %1923 = vmatmul.f32.gmra.mxu0 %v1554
  %v1924 = vpop.f32.mrf.mxu0
  %v1925 = vadd.f32 %v564, %v1924
  %1926 = vmatmul.f32.gmra.mxu0 %v1557
  %v1927 = vpop.f32.mrf.mxu0
  %v1928 = vadd.f32 %v567, %v1927
  %1929 = vmatmul.f32.gmra.mxu0 %v1560
  %v1930 = vpop.f32.mrf.mxu0
  %v1931 = vadd.f32 %v570, %v1930
  %1932 = vmatmul.f32.gmra.mxu0 %v1563
  %v1933 = vpop.f32.mrf.mxu0
  %v1934 = vadd.f32 %v573, %v1933
  %1935 = vmatmul.f32.gmra.mxu0 %v1566
  %v1936 = vpop.f32.mrf.mxu0
  %v1937 = vadd.f32 %v576, %v1936
  %1938 = vmatmul.f32.gmra.mxu0 %v1569
  %v1939 = vpop.f32.mrf.mxu0
  %v1940 = vadd.f32 %v579, %v1939
  %1941 = vmatmul.f32.gmra.mxu0 %v1572
  %v1942 = vpop.f32.mrf.mxu0
  %v1943 = vadd.f32 %v582, %v1942
  %1944 = vmatmul.f32.gmra.mxu0 %v1575
  %v1945 = vpop.f32.mrf.mxu0
  %v1946 = vadd.f32 %v585, %v1945
  %1947 = vmatmul.f32.gmra.mxu0 %v1578
  %v1948 = vpop.f32.mrf.mxu0
  %v1949 = vadd.f32 %v588, %v1948
  %1950 = vmatmul.f32.gmra.mxu0 %v1581
  %v1951 = vpop.f32.mrf.mxu0
  %v1952 = vadd.f32 %v591, %v1951
  %1953 = vmatmul.f32.gmra.mxu0 %v1584
  %v1954 = vpop.f32.mrf.mxu0
  %v1955 = vadd.f32 %v594, %v1954
  %1956 = vmatmul.f32.gmra.mxu0 %v1587
  %v1957 = vpop.f32.mrf.mxu0
  %v1958 = vadd.f32 %v597, %v1957
  %1959 = vdwg.mxu0
  %1960 = vmatpush.msra.mxu0 0.0
  %1961 = vmatpush.msra.mxu0 0.0
  %1962 = vmatpush.msra.mxu0 0.0
  %1963 = vmatpush.msra.mxu0 0.0
  %1964 = vmatpush.msra.mxu0 0.0
  %1965 = vmatpush.msra.mxu0 0.0
  %1966 = vmatpush.msra.mxu0 0.0
  %1967 = vmatpush.msra.mxu0 0.0
  %1968 = vmatpush.msra.mxu0 0.0
  %1969 = vmatpush.msra.mxu0 0.0
  %1970 = vmatpush.msra.mxu0 0.0
  %1971 = vmatpush.msra.mxu0 0.0
  %1972 = vmatpush.msra.mxu0 0.0
  %1973 = vmatpush.msra.mxu0 %v86
  %1974 = vmatpush.msra.mxu0 %v61
  %1975 = vmatpush.msra.mxu0 %v36
  %1976 = vmatmul.f32.gmra.mxu0 %v1554
  %v1977 = vpop.f32.mrf.mxu0
  %v1978 = vadd.f32 %v617, %v1977
  %1979 = vmatmul.f32.gmra.mxu0 %v1557
  %v1980 = vpop.f32.mrf.mxu0
  %v1981 = vadd.f32 %v620, %v1980
  %1982 = vmatmul.f32.gmra.mxu0 %v1560
  %v1983 = vpop.f32.mrf.mxu0
  %v1984 = vadd.f32 %v623, %v1983
  %1985 = vmatmul.f32.gmra.mxu0 %v1563
  %v1986 = vpop.f32.mrf.mxu0
  %v1987 = vadd.f32 %v626, %v1986
  %1988 = vmatmul.f32.gmra.mxu0 %v1566
  %v1989 = vpop.f32.mrf.mxu0
  %v1990 = vadd.f32 %v629, %v1989
  %1991 = vmatmul.f32.gmra.mxu0 %v1569
  %v1992 = vpop.f32.mrf.mxu0
  %v1993 = vadd.f32 %v632, %v1992
  %1994 = vmatmul.f32.gmra.mxu0 %v1572
  %v1995 = vpop.f32.mrf.mxu0
  %v1996 = vadd.f32 %v635, %v1995
  %1997 = vmatmul.f32.gmra.mxu0 %v1575
  %v1998 = vpop.f32.mrf.mxu0
  %v1999 = vadd.f32 %v638, %v1998
  %2000 = vmatmul.f32.gmra.mxu0 %v1578
  %v2001 = vpop.f32.mrf.mxu0
  %v2002 = vadd.f32 %v641, %v2001
  %2003 = vmatmul.f32.gmra.mxu0 %v1581
  %v2004 = vpop.f32.mrf.mxu0
  %v2005 = vadd.f32 %v644, %v2004
  %2006 = vmatmul.f32.gmra.mxu0 %v1584
  %v2007 = vpop.f32.mrf.mxu0
  %v2008 = vadd.f32 %v647, %v2007
  %2009 = vmatmul.f32.gmra.mxu0 %v1587
  %v2010 = vpop.f32.mrf.mxu0
  %v2011 = vadd.f32 %v650, %v2010
  %2012 = vdwg.mxu0
  %2013 = vmatpush.msra.mxu0 0.0
  %2014 = vmatpush.msra.mxu0 0.0
  %2015 = vmatpush.msra.mxu0 0.0
  %2016 = vmatpush.msra.mxu0 0.0
  %2017 = vmatpush.msra.mxu0 0.0
  %2018 = vmatpush.msra.mxu0 0.0
  %2019 = vmatpush.msra.mxu0 0.0
  %2020 = vmatpush.msra.mxu0 0.0
  %2021 = vmatpush.msra.mxu0 0.0
  %2022 = vmatpush.msra.mxu0 0.0
  %2023 = vmatpush.msra.mxu0 0.0
  %2024 = vmatpush.msra.mxu0 0.0
  %2025 = vmatpush.msra.mxu0 0.0
  %2026 = vmatpush.msra.mxu0 %v87
  %2027 = vmatpush.msra.mxu0 %v62
  %2028 = vmatpush.msra.mxu0 %v37
  %2029 = vmatmul.f32.gmra.mxu0 %v1554
  %v2030 = vpop.f32.mrf.mxu0
  %v2031 = vadd.f32 %v670, %v2030
  %2032 = vmatmul.f32.gmra.mxu0 %v1557
  %v2033 = vpop.f32.mrf.mxu0
  %v2034 = vadd.f32 %v673, %v2033
  %2035 = vmatmul.f32.gmra.mxu0 %v1560
  %v2036 = vpop.f32.mrf.mxu0
  %v2037 = vadd.f32 %v676, %v2036
  %2038 = vmatmul.f32.gmra.mxu0 %v1563
  %v2039 = vpop.f32.mrf.mxu0
  %v2040 = vadd.f32 %v679, %v2039
  %2041 = vmatmul.f32.gmra.mxu0 %v1566
  %v2042 = vpop.f32.mrf.mxu0
  %v2043 = vadd.f32 %v682, %v2042
  %2044 = vmatmul.f32.gmra.mxu0 %v1569
  %v2045 = vpop.f32.mrf.mxu0
  %v2046 = vadd.f32 %v685, %v2045
  %2047 = vmatmul.f32.gmra.mxu0 %v1572
  %v2048 = vpop.f32.mrf.mxu0
  %v2049 = vadd.f32 %v688, %v2048
  %2050 = vmatmul.f32.gmra.mxu0 %v1575
  %v2051 = vpop.f32.mrf.mxu0
  %v2052 = vadd.f32 %v691, %v2051
  %2053 = vmatmul.f32.gmra.mxu0 %v1578
  %v2054 = vpop.f32.mrf.mxu0
  %v2055 = vadd.f32 %v694, %v2054
  %2056 = vmatmul.f32.gmra.mxu0 %v1581
  %v2057 = vpop.f32.mrf.mxu0
  %v2058 = vadd.f32 %v697, %v2057
  %2059 = vmatmul.f32.gmra.mxu0 %v1584
  %v2060 = vpop.f32.mrf.mxu0
  %v2061 = vadd.f32 %v700, %v2060
  %2062 = vmatmul.f32.gmra.mxu0 %v1587
  %v2063 = vpop.f32.mrf.mxu0
  %v2064 = vadd.f32 %v703, %v2063
  %2065 = vdwg.mxu0
  %2066 = vmatpush.msra.mxu0 0.0
  %2067 = vmatpush.msra.mxu0 0.0
  %2068 = vmatpush.msra.mxu0 0.0
  %2069 = vmatpush.msra.mxu0 0.0
  %2070 = vmatpush.msra.mxu0 0.0
  %2071 = vmatpush.msra.mxu0 0.0
  %2072 = vmatpush.msra.mxu0 0.0
  %2073 = vmatpush.msra.mxu0 0.0
  %2074 = vmatpush.msra.mxu0 0.0
  %2075 = vmatpush.msra.mxu0 0.0
  %2076 = vmatpush.msra.mxu0 0.0
  %2077 = vmatpush.msra.mxu0 0.0
  %2078 = vmatpush.msra.mxu0 0.0
  %2079 = vmatpush.msra.mxu0 %v88
  %2080 = vmatpush.msra.mxu0 %v63
  %2081 = vmatpush.msra.mxu0 %v38
  %2082 = vmatmul.f32.gmra.mxu0 %v1554
  %v2083 = vpop.f32.mrf.mxu0
  %v2084 = vadd.f32 %v723, %v2083
  %2085 = vmatmul.f32.gmra.mxu0 %v1557
  %v2086 = vpop.f32.mrf.mxu0
  %v2087 = vadd.f32 %v726, %v2086
  %2088 = vmatmul.f32.gmra.mxu0 %v1560
  %v2089 = vpop.f32.mrf.mxu0
  %v2090 = vadd.f32 %v729, %v2089
  %2091 = vmatmul.f32.gmra.mxu0 %v1563
  %v2092 = vpop.f32.mrf.mxu0
  %v2093 = vadd.f32 %v732, %v2092
  %2094 = vmatmul.f32.gmra.mxu0 %v1566
  %v2095 = vpop.f32.mrf.mxu0
  %v2096 = vadd.f32 %v735, %v2095
  %2097 = vmatmul.f32.gmra.mxu0 %v1569
  %v2098 = vpop.f32.mrf.mxu0
  %v2099 = vadd.f32 %v738, %v2098
  %2100 = vmatmul.f32.gmra.mxu0 %v1572
  %v2101 = vpop.f32.mrf.mxu0
  %v2102 = vadd.f32 %v741, %v2101
  %2103 = vmatmul.f32.gmra.mxu0 %v1575
  %v2104 = vpop.f32.mrf.mxu0
  %v2105 = vadd.f32 %v744, %v2104
  %2106 = vmatmul.f32.gmra.mxu0 %v1578
  %v2107 = vpop.f32.mrf.mxu0
  %v2108 = vadd.f32 %v747, %v2107
  %2109 = vmatmul.f32.gmra.mxu0 %v1581
  %v2110 = vpop.f32.mrf.mxu0
  %v2111 = vadd.f32 %v750, %v2110
  %2112 = vmatmul.f32.gmra.mxu0 %v1584
  %v2113 = vpop.f32.mrf.mxu0
  %v2114 = vadd.f32 %v753, %v2113
  %2115 = vmatmul.f32.gmra.mxu0 %v1587
  %v2116 = vpop.f32.mrf.mxu0
  %v2117 = vadd.f32 %v756, %v2116
  %2118 = vdwg.mxu0
  %2119 = vmatpush.msra.mxu0 0.0
  %2120 = vmatpush.msra.mxu0 0.0
  %2121 = vmatpush.msra.mxu0 0.0
  %2122 = vmatpush.msra.mxu0 0.0
  %2123 = vmatpush.msra.mxu0 0.0
  %2124 = vmatpush.msra.mxu0 0.0
  %2125 = vmatpush.msra.mxu0 0.0
  %2126 = vmatpush.msra.mxu0 0.0
  %2127 = vmatpush.msra.mxu0 0.0
  %2128 = vmatpush.msra.mxu0 0.0
  %2129 = vmatpush.msra.mxu0 0.0
  %2130 = vmatpush.msra.mxu0 0.0
  %2131 = vmatpush.msra.mxu0 0.0
  %2132 = vmatpush.msra.mxu0 %v89
  %2133 = vmatpush.msra.mxu0 %v64
  %2134 = vmatpush.msra.mxu0 %v39
  %2135 = vmatmul.f32.gmra.mxu0 %v1554
  %v2136 = vpop.f32.mrf.mxu0
  %v2137 = vadd.f32 %v776, %v2136
  %2138 = vmatmul.f32.gmra.mxu0 %v1557
  %v2139 = vpop.f32.mrf.mxu0
  %v2140 = vadd.f32 %v779, %v2139
  %2141 = vmatmul.f32.gmra.mxu0 %v1560
  %v2142 = vpop.f32.mrf.mxu0
  %v2143 = vadd.f32 %v782, %v2142
  %2144 = vmatmul.f32.gmra.mxu0 %v1563
  %v2145 = vpop.f32.mrf.mxu0
  %v2146 = vadd.f32 %v785, %v2145
  %2147 = vmatmul.f32.gmra.mxu0 %v1566
  %v2148 = vpop.f32.mrf.mxu0
  %v2149 = vadd.f32 %v788, %v2148
  %2150 = vmatmul.f32.gmra.mxu0 %v1569
  %v2151 = vpop.f32.mrf.mxu0
  %v2152 = vadd.f32 %v791, %v2151
  %2153 = vmatmul.f32.gmra.mxu0 %v1572
  %v2154 = vpop.f32.mrf.mxu0
  %v2155 = vadd.f32 %v794, %v2154
  %2156 = vmatmul.f32.gmra.mxu0 %v1575
  %v2157 = vpop.f32.mrf.mxu0
  %v2158 = vadd.f32 %v797, %v2157
  %2159 = vmatmul.f32.gmra.mxu0 %v1578
  %v2160 = vpop.f32.mrf.mxu0
  %v2161 = vadd.f32 %v800, %v2160
  %2162 = vmatmul.f32.gmra.mxu0 %v1581
  %v2163 = vpop.f32.mrf.mxu0
  %v2164 = vadd.f32 %v803, %v2163
  %2165 = vmatmul.f32.gmra.mxu0 %v1584
  %v2166 = vpop.f32.mrf.mxu0
  %v2167 = vadd.f32 %v806, %v2166
  %2168 = vmatmul.f32.gmra.mxu0 %v1587
  %v2169 = vpop.f32.mrf.mxu0
  %v2170 = vadd.f32 %v809, %v2169
  %2171 = vdwg.mxu0
  %2172 = vmatpush.msra.mxu0 0.0
  %2173 = vmatpush.msra.mxu0 0.0
  %2174 = vmatpush.msra.mxu0 0.0
  %2175 = vmatpush.msra.mxu0 0.0
  %2176 = vmatpush.msra.mxu0 0.0
  %2177 = vmatpush.msra.mxu0 0.0
  %2178 = vmatpush.msra.mxu0 0.0
  %2179 = vmatpush.msra.mxu0 0.0
  %2180 = vmatpush.msra.mxu0 0.0
  %2181 = vmatpush.msra.mxu0 0.0
  %2182 = vmatpush.msra.mxu0 0.0
  %2183 = vmatpush.msra.mxu0 0.0
  %2184 = vmatpush.msra.mxu0 0.0
  %2185 = vmatpush.msra.mxu0 %v90
  %2186 = vmatpush.msra.mxu0 %v65
  %2187 = vmatpush.msra.mxu0 %v40
  %2188 = vmatmul.f32.gmra.mxu0 %v1554
  %v2189 = vpop.f32.mrf.mxu0
  %v2190 = vadd.f32 %v829, %v2189
  %2191 = vmatmul.f32.gmra.mxu0 %v1557
  %v2192 = vpop.f32.mrf.mxu0
  %v2193 = vadd.f32 %v832, %v2192
  %2194 = vmatmul.f32.gmra.mxu0 %v1560
  %v2195 = vpop.f32.mrf.mxu0
  %v2196 = vadd.f32 %v835, %v2195
  %2197 = vmatmul.f32.gmra.mxu0 %v1563
  %v2198 = vpop.f32.mrf.mxu0
  %v2199 = vadd.f32 %v838, %v2198
  %2200 = vmatmul.f32.gmra.mxu0 %v1566
  %v2201 = vpop.f32.mrf.mxu0
  %v2202 = vadd.f32 %v841, %v2201
  %2203 = vmatmul.f32.gmra.mxu0 %v1569
  %v2204 = vpop.f32.mrf.mxu0
  %v2205 = vadd.f32 %v844, %v2204
  %2206 = vmatmul.f32.gmra.mxu0 %v1572
  %v2207 = vpop.f32.mrf.mxu0
  %v2208 = vadd.f32 %v847, %v2207
  %2209 = vmatmul.f32.gmra.mxu0 %v1575
  %v2210 = vpop.f32.mrf.mxu0
  %v2211 = vadd.f32 %v850, %v2210
  %2212 = vmatmul.f32.gmra.mxu0 %v1578
  %v2213 = vpop.f32.mrf.mxu0
  %v2214 = vadd.f32 %v853, %v2213
  %2215 = vmatmul.f32.gmra.mxu0 %v1581
  %v2216 = vpop.f32.mrf.mxu0
  %v2217 = vadd.f32 %v856, %v2216
  %2218 = vmatmul.f32.gmra.mxu0 %v1584
  %v2219 = vpop.f32.mrf.mxu0
  %v2220 = vadd.f32 %v859, %v2219
  %2221 = vmatmul.f32.gmra.mxu0 %v1587
  %v2222 = vpop.f32.mrf.mxu0
  %v2223 = vadd.f32 %v862, %v2222
  %2224 = vdwg.mxu0
  %2225 = vmatpush.msra.mxu0 0.0
  %2226 = vmatpush.msra.mxu0 0.0
  %2227 = vmatpush.msra.mxu0 0.0
  %2228 = vmatpush.msra.mxu0 0.0
  %2229 = vmatpush.msra.mxu0 0.0
  %2230 = vmatpush.msra.mxu0 0.0
  %2231 = vmatpush.msra.mxu0 0.0
  %2232 = vmatpush.msra.mxu0 0.0
  %2233 = vmatpush.msra.mxu0 0.0
  %2234 = vmatpush.msra.mxu0 0.0
  %2235 = vmatpush.msra.mxu0 0.0
  %2236 = vmatpush.msra.mxu0 0.0
  %2237 = vmatpush.msra.mxu0 0.0
  %2238 = vmatpush.msra.mxu0 %v91
  %2239 = vmatpush.msra.mxu0 %v66
  %2240 = vmatpush.msra.mxu0 %v41
  %2241 = vmatmul.f32.gmra.mxu0 %v1554
  %v2242 = vpop.f32.mrf.mxu0
  %v2243 = vadd.f32 %v882, %v2242
  %2244 = vmatmul.f32.gmra.mxu0 %v1557
  %v2245 = vpop.f32.mrf.mxu0
  %v2246 = vadd.f32 %v885, %v2245
  %2247 = vmatmul.f32.gmra.mxu0 %v1560
  %v2248 = vpop.f32.mrf.mxu0
  %v2249 = vadd.f32 %v888, %v2248
  %2250 = vmatmul.f32.gmra.mxu0 %v1563
  %v2251 = vpop.f32.mrf.mxu0
  %v2252 = vadd.f32 %v891, %v2251
  %2253 = vmatmul.f32.gmra.mxu0 %v1566
  %v2254 = vpop.f32.mrf.mxu0
  %v2255 = vadd.f32 %v894, %v2254
  %2256 = vmatmul.f32.gmra.mxu0 %v1569
  %v2257 = vpop.f32.mrf.mxu0
  %v2258 = vadd.f32 %v897, %v2257
  %2259 = vmatmul.f32.gmra.mxu0 %v1572
  %v2260 = vpop.f32.mrf.mxu0
  %v2261 = vadd.f32 %v900, %v2260
  %2262 = vmatmul.f32.gmra.mxu0 %v1575
  %v2263 = vpop.f32.mrf.mxu0
  %v2264 = vadd.f32 %v903, %v2263
  %2265 = vmatmul.f32.gmra.mxu0 %v1578
  %v2266 = vpop.f32.mrf.mxu0
  %v2267 = vadd.f32 %v906, %v2266
  %2268 = vmatmul.f32.gmra.mxu0 %v1581
  %v2269 = vpop.f32.mrf.mxu0
  %v2270 = vadd.f32 %v909, %v2269
  %2271 = vmatmul.f32.gmra.mxu0 %v1584
  %v2272 = vpop.f32.mrf.mxu0
  %v2273 = vadd.f32 %v912, %v2272
  %2274 = vmatmul.f32.gmra.mxu0 %v1587
  %v2275 = vpop.f32.mrf.mxu0
  %v2276 = vadd.f32 %v915, %v2275
  %2277 = vdwg.mxu0
  %2278 = vmatpush.msra.mxu0 0.0
  %2279 = vmatpush.msra.mxu0 0.0
  %2280 = vmatpush.msra.mxu0 0.0
  %2281 = vmatpush.msra.mxu0 0.0
  %2282 = vmatpush.msra.mxu0 0.0
  %2283 = vmatpush.msra.mxu0 0.0
  %2284 = vmatpush.msra.mxu0 0.0
  %2285 = vmatpush.msra.mxu0 0.0
  %2286 = vmatpush.msra.mxu0 0.0
  %2287 = vmatpush.msra.mxu0 0.0
  %2288 = vmatpush.msra.mxu0 0.0
  %2289 = vmatpush.msra.mxu0 0.0
  %2290 = vmatpush.msra.mxu0 0.0
  %2291 = vmatpush.msra.mxu0 %v92
  %2292 = vmatpush.msra.mxu0 %v67
  %2293 = vmatpush.msra.mxu0 %v42
  %2294 = vmatmul.f32.gmra.mxu0 %v1554
  %v2295 = vpop.f32.mrf.mxu0
  %v2296 = vadd.f32 %v935, %v2295
  %2297 = vmatmul.f32.gmra.mxu0 %v1557
  %v2298 = vpop.f32.mrf.mxu0
  %v2299 = vadd.f32 %v938, %v2298
  %2300 = vmatmul.f32.gmra.mxu0 %v1560
  %v2301 = vpop.f32.mrf.mxu0
  %v2302 = vadd.f32 %v941, %v2301
  %2303 = vmatmul.f32.gmra.mxu0 %v1563
  %v2304 = vpop.f32.mrf.mxu0
  %v2305 = vadd.f32 %v944, %v2304
  %2306 = vmatmul.f32.gmra.mxu0 %v1566
  %v2307 = vpop.f32.mrf.mxu0
  %v2308 = vadd.f32 %v947, %v2307
  %2309 = vmatmul.f32.gmra.mxu0 %v1569
  %v2310 = vpop.f32.mrf.mxu0
  %v2311 = vadd.f32 %v950, %v2310
  %2312 = vmatmul.f32.gmra.mxu0 %v1572
  %v2313 = vpop.f32.mrf.mxu0
  %v2314 = vadd.f32 %v953, %v2313
  %2315 = vmatmul.f32.gmra.mxu0 %v1575
  %v2316 = vpop.f32.mrf.mxu0
  %v2317 = vadd.f32 %v956, %v2316
  %2318 = vmatmul.f32.gmra.mxu0 %v1578
  %v2319 = vpop.f32.mrf.mxu0
  %v2320 = vadd.f32 %v959, %v2319
  %2321 = vmatmul.f32.gmra.mxu0 %v1581
  %v2322 = vpop.f32.mrf.mxu0
  %v2323 = vadd.f32 %v962, %v2322
  %2324 = vmatmul.f32.gmra.mxu0 %v1584
  %v2325 = vpop.f32.mrf.mxu0
  %v2326 = vadd.f32 %v965, %v2325
  %2327 = vmatmul.f32.gmra.mxu0 %v1587
  %v2328 = vpop.f32.mrf.mxu0
  %v2329 = vadd.f32 %v968, %v2328
  %2330 = vdwg.mxu0
  %2331 = vmatpush.msra.mxu0 0.0
  %2332 = vmatpush.msra.mxu0 0.0
  %2333 = vmatpush.msra.mxu0 0.0
  %2334 = vmatpush.msra.mxu0 0.0
  %2335 = vmatpush.msra.mxu0 0.0
  %2336 = vmatpush.msra.mxu0 0.0
  %2337 = vmatpush.msra.mxu0 0.0
  %2338 = vmatpush.msra.mxu0 0.0
  %2339 = vmatpush.msra.mxu0 0.0
  %2340 = vmatpush.msra.mxu0 0.0
  %2341 = vmatpush.msra.mxu0 0.0
  %2342 = vmatpush.msra.mxu0 0.0
  %2343 = vmatpush.msra.mxu0 0.0
  %2344 = vmatpush.msra.mxu0 %v93
  %2345 = vmatpush.msra.mxu0 %v68
  %2346 = vmatpush.msra.mxu0 %v43
  %2347 = vmatmul.f32.gmra.mxu0 %v1554
  %v2348 = vpop.f32.mrf.mxu0
  %v2349 = vadd.f32 %v988, %v2348
  %2350 = vmatmul.f32.gmra.mxu0 %v1557
  %v2351 = vpop.f32.mrf.mxu0
  %v2352 = vadd.f32 %v991, %v2351
  %2353 = vmatmul.f32.gmra.mxu0 %v1560
  %v2354 = vpop.f32.mrf.mxu0
  %v2355 = vadd.f32 %v994, %v2354
  %2356 = vmatmul.f32.gmra.mxu0 %v1563
  %v2357 = vpop.f32.mrf.mxu0
  %v2358 = vadd.f32 %v997, %v2357
  %2359 = vmatmul.f32.gmra.mxu0 %v1566
  %v2360 = vpop.f32.mrf.mxu0
  %v2361 = vadd.f32 %v1000, %v2360
  %2362 = vmatmul.f32.gmra.mxu0 %v1569
  %v2363 = vpop.f32.mrf.mxu0
  %v2364 = vadd.f32 %v1003, %v2363
  %2365 = vmatmul.f32.gmra.mxu0 %v1572
  %v2366 = vpop.f32.mrf.mxu0
  %v2367 = vadd.f32 %v1006, %v2366
  %2368 = vmatmul.f32.gmra.mxu0 %v1575
  %v2369 = vpop.f32.mrf.mxu0
  %v2370 = vadd.f32 %v1009, %v2369
  %2371 = vmatmul.f32.gmra.mxu0 %v1578
  %v2372 = vpop.f32.mrf.mxu0
  %v2373 = vadd.f32 %v1012, %v2372
  %2374 = vmatmul.f32.gmra.mxu0 %v1581
  %v2375 = vpop.f32.mrf.mxu0
  %v2376 = vadd.f32 %v1015, %v2375
  %2377 = vmatmul.f32.gmra.mxu0 %v1584
  %v2378 = vpop.f32.mrf.mxu0
  %v2379 = vadd.f32 %v1018, %v2378
  %2380 = vmatmul.f32.gmra.mxu0 %v1587
  %v2381 = vpop.f32.mrf.mxu0
  %v2382 = vadd.f32 %v1021, %v2381
  %2383 = vdwg.mxu0
  %2384 = vmatpush.msra.mxu0 0.0
  %2385 = vmatpush.msra.mxu0 0.0
  %2386 = vmatpush.msra.mxu0 0.0
  %2387 = vmatpush.msra.mxu0 0.0
  %2388 = vmatpush.msra.mxu0 0.0
  %2389 = vmatpush.msra.mxu0 0.0
  %2390 = vmatpush.msra.mxu0 0.0
  %2391 = vmatpush.msra.mxu0 0.0
  %2392 = vmatpush.msra.mxu0 0.0
  %2393 = vmatpush.msra.mxu0 0.0
  %2394 = vmatpush.msra.mxu0 0.0
  %2395 = vmatpush.msra.mxu0 0.0
  %2396 = vmatpush.msra.mxu0 0.0
  %2397 = vmatpush.msra.mxu0 %v94
  %2398 = vmatpush.msra.mxu0 %v69
  %2399 = vmatpush.msra.mxu0 %v44
  %2400 = vmatmul.f32.gmra.mxu0 %v1554
  %v2401 = vpop.f32.mrf.mxu0
  %v2402 = vadd.f32 %v1041, %v2401
  %2403 = vmatmul.f32.gmra.mxu0 %v1557
  %v2404 = vpop.f32.mrf.mxu0
  %v2405 = vadd.f32 %v1044, %v2404
  %2406 = vmatmul.f32.gmra.mxu0 %v1560
  %v2407 = vpop.f32.mrf.mxu0
  %v2408 = vadd.f32 %v1047, %v2407
  %2409 = vmatmul.f32.gmra.mxu0 %v1563
  %v2410 = vpop.f32.mrf.mxu0
  %v2411 = vadd.f32 %v1050, %v2410
  %2412 = vmatmul.f32.gmra.mxu0 %v1566
  %v2413 = vpop.f32.mrf.mxu0
  %v2414 = vadd.f32 %v1053, %v2413
  %2415 = vmatmul.f32.gmra.mxu0 %v1569
  %v2416 = vpop.f32.mrf.mxu0
  %v2417 = vadd.f32 %v1056, %v2416
  %2418 = vmatmul.f32.gmra.mxu0 %v1572
  %v2419 = vpop.f32.mrf.mxu0
  %v2420 = vadd.f32 %v1059, %v2419
  %2421 = vmatmul.f32.gmra.mxu0 %v1575
  %v2422 = vpop.f32.mrf.mxu0
  %v2423 = vadd.f32 %v1062, %v2422
  %2424 = vmatmul.f32.gmra.mxu0 %v1578
  %v2425 = vpop.f32.mrf.mxu0
  %v2426 = vadd.f32 %v1065, %v2425
  %2427 = vmatmul.f32.gmra.mxu0 %v1581
  %v2428 = vpop.f32.mrf.mxu0
  %v2429 = vadd.f32 %v1068, %v2428
  %2430 = vmatmul.f32.gmra.mxu0 %v1584
  %v2431 = vpop.f32.mrf.mxu0
  %v2432 = vadd.f32 %v1071, %v2431
  %2433 = vmatmul.f32.gmra.mxu0 %v1587
  %v2434 = vpop.f32.mrf.mxu0
  %v2435 = vadd.f32 %v1074, %v2434
  %2436 = vdwg.mxu0
  %2437 = vmatpush.msra.mxu0 0.0
  %2438 = vmatpush.msra.mxu0 0.0
  %2439 = vmatpush.msra.mxu0 0.0
  %2440 = vmatpush.msra.mxu0 0.0
  %2441 = vmatpush.msra.mxu0 0.0
  %2442 = vmatpush.msra.mxu0 0.0
  %2443 = vmatpush.msra.mxu0 0.0
  %2444 = vmatpush.msra.mxu0 0.0
  %2445 = vmatpush.msra.mxu0 0.0
  %2446 = vmatpush.msra.mxu0 0.0
  %2447 = vmatpush.msra.mxu0 0.0
  %2448 = vmatpush.msra.mxu0 0.0
  %2449 = vmatpush.msra.mxu0 0.0
  %2450 = vmatpush.msra.mxu0 %v95
  %2451 = vmatpush.msra.mxu0 %v70
  %2452 = vmatpush.msra.mxu0 %v45
  %2453 = vmatmul.f32.gmra.mxu0 %v1554
  %v2454 = vpop.f32.mrf.mxu0
  %v2455 = vadd.f32 %v1094, %v2454
  %2456 = vmatmul.f32.gmra.mxu0 %v1557
  %v2457 = vpop.f32.mrf.mxu0
  %v2458 = vadd.f32 %v1097, %v2457
  %2459 = vmatmul.f32.gmra.mxu0 %v1560
  %v2460 = vpop.f32.mrf.mxu0
  %v2461 = vadd.f32 %v1100, %v2460
  %2462 = vmatmul.f32.gmra.mxu0 %v1563
  %v2463 = vpop.f32.mrf.mxu0
  %v2464 = vadd.f32 %v1103, %v2463
  %2465 = vmatmul.f32.gmra.mxu0 %v1566
  %v2466 = vpop.f32.mrf.mxu0
  %v2467 = vadd.f32 %v1106, %v2466
  %2468 = vmatmul.f32.gmra.mxu0 %v1569
  %v2469 = vpop.f32.mrf.mxu0
  %v2470 = vadd.f32 %v1109, %v2469
  %2471 = vmatmul.f32.gmra.mxu0 %v1572
  %v2472 = vpop.f32.mrf.mxu0
  %v2473 = vadd.f32 %v1112, %v2472
  %2474 = vmatmul.f32.gmra.mxu0 %v1575
  %v2475 = vpop.f32.mrf.mxu0
  %v2476 = vadd.f32 %v1115, %v2475
  %2477 = vmatmul.f32.gmra.mxu0 %v1578
  %v2478 = vpop.f32.mrf.mxu0
  %v2479 = vadd.f32 %v1118, %v2478
  %2480 = vmatmul.f32.gmra.mxu0 %v1581
  %v2481 = vpop.f32.mrf.mxu0
  %v2482 = vadd.f32 %v1121, %v2481
  %2483 = vmatmul.f32.gmra.mxu0 %v1584
  %v2484 = vpop.f32.mrf.mxu0
  %v2485 = vadd.f32 %v1124, %v2484
  %2486 = vmatmul.f32.gmra.mxu0 %v1587
  %v2487 = vpop.f32.mrf.mxu0
  %v2488 = vadd.f32 %v1127, %v2487
  %2489 = vdwg.mxu0
  %2490 = vmatpush.msra.mxu0 0.0
  %2491 = vmatpush.msra.mxu0 0.0
  %2492 = vmatpush.msra.mxu0 0.0
  %2493 = vmatpush.msra.mxu0 0.0
  %2494 = vmatpush.msra.mxu0 0.0
  %2495 = vmatpush.msra.mxu0 0.0
  %2496 = vmatpush.msra.mxu0 0.0
  %2497 = vmatpush.msra.mxu0 0.0
  %2498 = vmatpush.msra.mxu0 0.0
  %2499 = vmatpush.msra.mxu0 0.0
  %2500 = vmatpush.msra.mxu0 0.0
  %2501 = vmatpush.msra.mxu0 0.0
  %2502 = vmatpush.msra.mxu0 0.0
  %2503 = vmatpush.msra.mxu0 %v96
  %2504 = vmatpush.msra.mxu0 %v71
  %2505 = vmatpush.msra.mxu0 %v46
  %2506 = vmatmul.f32.gmra.mxu0 %v1554
  %v2507 = vpop.f32.mrf.mxu0
  %v2508 = vadd.f32 %v1147, %v2507
  %2509 = vmatmul.f32.gmra.mxu0 %v1557
  %v2510 = vpop.f32.mrf.mxu0
  %v2511 = vadd.f32 %v1150, %v2510
  %2512 = vmatmul.f32.gmra.mxu0 %v1560
  %v2513 = vpop.f32.mrf.mxu0
  %v2514 = vadd.f32 %v1153, %v2513
  %2515 = vmatmul.f32.gmra.mxu0 %v1563
  %v2516 = vpop.f32.mrf.mxu0
  %v2517 = vadd.f32 %v1156, %v2516
  %2518 = vmatmul.f32.gmra.mxu0 %v1566
  %v2519 = vpop.f32.mrf.mxu0
  %v2520 = vadd.f32 %v1159, %v2519
  %2521 = vmatmul.f32.gmra.mxu0 %v1569
  %v2522 = vpop.f32.mrf.mxu0
  %v2523 = vadd.f32 %v1162, %v2522
  %2524 = vmatmul.f32.gmra.mxu0 %v1572
  %v2525 = vpop.f32.mrf.mxu0
  %v2526 = vadd.f32 %v1165, %v2525
  %2527 = vmatmul.f32.gmra.mxu0 %v1575
  %v2528 = vpop.f32.mrf.mxu0
  %v2529 = vadd.f32 %v1168, %v2528
  %2530 = vmatmul.f32.gmra.mxu0 %v1578
  %v2531 = vpop.f32.mrf.mxu0
  %v2532 = vadd.f32 %v1171, %v2531
  %2533 = vmatmul.f32.gmra.mxu0 %v1581
  %v2534 = vpop.f32.mrf.mxu0
  %v2535 = vadd.f32 %v1174, %v2534
  %2536 = vmatmul.f32.gmra.mxu0 %v1584
  %v2537 = vpop.f32.mrf.mxu0
  %v2538 = vadd.f32 %v1177, %v2537
  %2539 = vmatmul.f32.gmra.mxu0 %v1587
  %v2540 = vpop.f32.mrf.mxu0
  %v2541 = vadd.f32 %v1180, %v2540
  %2542 = vdwg.mxu0
  %2543 = vmatpush.msra.mxu0 0.0
  %2544 = vmatpush.msra.mxu0 0.0
  %2545 = vmatpush.msra.mxu0 0.0
  %2546 = vmatpush.msra.mxu0 0.0
  %2547 = vmatpush.msra.mxu0 0.0
  %2548 = vmatpush.msra.mxu0 0.0
  %2549 = vmatpush.msra.mxu0 0.0
  %2550 = vmatpush.msra.mxu0 0.0
  %2551 = vmatpush.msra.mxu0 0.0
  %2552 = vmatpush.msra.mxu0 0.0
  %2553 = vmatpush.msra.mxu0 0.0
  %2554 = vmatpush.msra.mxu0 0.0
  %2555 = vmatpush.msra.mxu0 0.0
  %2556 = vmatpush.msra.mxu0 %v97
  %2557 = vmatpush.msra.mxu0 %v72
  %2558 = vmatpush.msra.mxu0 %v47
  %2559 = vmatmul.f32.gmra.mxu0 %v1554
  %v2560 = vpop.f32.mrf.mxu0
  %v2561 = vadd.f32 %v1200, %v2560
  %2562 = vmatmul.f32.gmra.mxu0 %v1557
  %v2563 = vpop.f32.mrf.mxu0
  %v2564 = vadd.f32 %v1203, %v2563
  %2565 = vmatmul.f32.gmra.mxu0 %v1560
  %v2566 = vpop.f32.mrf.mxu0
  %v2567 = vadd.f32 %v1206, %v2566
  %2568 = vmatmul.f32.gmra.mxu0 %v1563
  %v2569 = vpop.f32.mrf.mxu0
  %v2570 = vadd.f32 %v1209, %v2569
  %2571 = vmatmul.f32.gmra.mxu0 %v1566
  %v2572 = vpop.f32.mrf.mxu0
  %v2573 = vadd.f32 %v1212, %v2572
  %2574 = vmatmul.f32.gmra.mxu0 %v1569
  %v2575 = vpop.f32.mrf.mxu0
  %v2576 = vadd.f32 %v1215, %v2575
  %2577 = vmatmul.f32.gmra.mxu0 %v1572
  %v2578 = vpop.f32.mrf.mxu0
  %v2579 = vadd.f32 %v1218, %v2578
  %2580 = vmatmul.f32.gmra.mxu0 %v1575
  %v2581 = vpop.f32.mrf.mxu0
  %v2582 = vadd.f32 %v1221, %v2581
  %2583 = vmatmul.f32.gmra.mxu0 %v1578
  %v2584 = vpop.f32.mrf.mxu0
  %v2585 = vadd.f32 %v1224, %v2584
  %2586 = vmatmul.f32.gmra.mxu0 %v1581
  %v2587 = vpop.f32.mrf.mxu0
  %v2588 = vadd.f32 %v1227, %v2587
  %2589 = vmatmul.f32.gmra.mxu0 %v1584
  %v2590 = vpop.f32.mrf.mxu0
  %v2591 = vadd.f32 %v1230, %v2590
  %2592 = vmatmul.f32.gmra.mxu0 %v1587
  %v2593 = vpop.f32.mrf.mxu0
  %v2594 = vadd.f32 %v1233, %v2593
  %2595 = vdwg.mxu0
  %2596 = vmatpush.msra.mxu0 0.0
  %2597 = vmatpush.msra.mxu0 0.0
  %2598 = vmatpush.msra.mxu0 0.0
  %2599 = vmatpush.msra.mxu0 0.0
  %2600 = vmatpush.msra.mxu0 0.0
  %2601 = vmatpush.msra.mxu0 0.0
  %2602 = vmatpush.msra.mxu0 0.0
  %2603 = vmatpush.msra.mxu0 0.0
  %2604 = vmatpush.msra.mxu0 0.0
  %2605 = vmatpush.msra.mxu0 0.0
  %2606 = vmatpush.msra.mxu0 0.0
  %2607 = vmatpush.msra.mxu0 0.0
  %2608 = vmatpush.msra.mxu0 0.0
  %2609 = vmatpush.msra.mxu0 %v98
  %2610 = vmatpush.msra.mxu0 %v73
  %2611 = vmatpush.msra.mxu0 %v48
  %2612 = vmatmul.f32.gmra.mxu0 %v1554
  %v2613 = vpop.f32.mrf.mxu0
  %v2614 = vadd.f32 %v1253, %v2613
  %2615 = vmatmul.f32.gmra.mxu0 %v1557
  %v2616 = vpop.f32.mrf.mxu0
  %v2617 = vadd.f32 %v1256, %v2616
  %2618 = vmatmul.f32.gmra.mxu0 %v1560
  %v2619 = vpop.f32.mrf.mxu0
  %v2620 = vadd.f32 %v1259, %v2619
  %2621 = vmatmul.f32.gmra.mxu0 %v1563
  %v2622 = vpop.f32.mrf.mxu0
  %v2623 = vadd.f32 %v1262, %v2622
  %2624 = vmatmul.f32.gmra.mxu0 %v1566
  %v2625 = vpop.f32.mrf.mxu0
  %v2626 = vadd.f32 %v1265, %v2625
  %2627 = vmatmul.f32.gmra.mxu0 %v1569
  %v2628 = vpop.f32.mrf.mxu0
  %v2629 = vadd.f32 %v1268, %v2628
  %2630 = vmatmul.f32.gmra.mxu0 %v1572
  %v2631 = vpop.f32.mrf.mxu0
  %v2632 = vadd.f32 %v1271, %v2631
  %2633 = vmatmul.f32.gmra.mxu0 %v1575
  %v2634 = vpop.f32.mrf.mxu0
  %v2635 = vadd.f32 %v1274, %v2634
  %2636 = vmatmul.f32.gmra.mxu0 %v1578
  %v2637 = vpop.f32.mrf.mxu0
  %v2638 = vadd.f32 %v1277, %v2637
  %2639 = vmatmul.f32.gmra.mxu0 %v1581
  %v2640 = vpop.f32.mrf.mxu0
  %v2641 = vadd.f32 %v1280, %v2640
  %2642 = vmatmul.f32.gmra.mxu0 %v1584
  %v2643 = vpop.f32.mrf.mxu0
  %v2644 = vadd.f32 %v1283, %v2643
  %2645 = vmatmul.f32.gmra.mxu0 %v1587
  %v2646 = vpop.f32.mrf.mxu0
  %v2647 = vadd.f32 %v1286, %v2646
  %2648 = vdwg.mxu0
  %2649 = vmatpush.msra.mxu0 0.0
  %2650 = vmatpush.msra.mxu0 0.0
  %2651 = vmatpush.msra.mxu0 0.0
  %2652 = vmatpush.msra.mxu0 0.0
  %2653 = vmatpush.msra.mxu0 0.0
  %2654 = vmatpush.msra.mxu0 0.0
  %2655 = vmatpush.msra.mxu0 0.0
  %2656 = vmatpush.msra.mxu0 0.0
  %2657 = vmatpush.msra.mxu0 0.0
  %2658 = vmatpush.msra.mxu0 0.0
  %2659 = vmatpush.msra.mxu0 0.0
  %2660 = vmatpush.msra.mxu0 0.0
  %2661 = vmatpush.msra.mxu0 0.0
  %2662 = vmatpush.msra.mxu0 %v99
  %2663 = vmatpush.msra.mxu0 %v74
  %2664 = vmatpush.msra.mxu0 %v49
  %2665 = vmatmul.f32.gmra.mxu0 %v1554
  %v2666 = vpop.f32.mrf.mxu0
  %v2667 = vadd.f32 %v1306, %v2666
  %2668 = vmatmul.f32.gmra.mxu0 %v1557
  %v2669 = vpop.f32.mrf.mxu0
  %v2670 = vadd.f32 %v1309, %v2669
  %2671 = vmatmul.f32.gmra.mxu0 %v1560
  %v2672 = vpop.f32.mrf.mxu0
  %v2673 = vadd.f32 %v1312, %v2672
  %2674 = vmatmul.f32.gmra.mxu0 %v1563
  %v2675 = vpop.f32.mrf.mxu0
  %v2676 = vadd.f32 %v1315, %v2675
  %2677 = vmatmul.f32.gmra.mxu0 %v1566
  %v2678 = vpop.f32.mrf.mxu0
  %v2679 = vadd.f32 %v1318, %v2678
  %2680 = vmatmul.f32.gmra.mxu0 %v1569
  %v2681 = vpop.f32.mrf.mxu0
  %v2682 = vadd.f32 %v1321, %v2681
  %2683 = vmatmul.f32.gmra.mxu0 %v1572
  %v2684 = vpop.f32.mrf.mxu0
  %v2685 = vadd.f32 %v1324, %v2684
  %2686 = vmatmul.f32.gmra.mxu0 %v1575
  %v2687 = vpop.f32.mrf.mxu0
  %v2688 = vadd.f32 %v1327, %v2687
  %2689 = vmatmul.f32.gmra.mxu0 %v1578
  %v2690 = vpop.f32.mrf.mxu0
  %v2691 = vadd.f32 %v1330, %v2690
  %2692 = vmatmul.f32.gmra.mxu0 %v1581
  %v2693 = vpop.f32.mrf.mxu0
  %v2694 = vadd.f32 %v1333, %v2693
  %2695 = vmatmul.f32.gmra.mxu0 %v1584
  %v2696 = vpop.f32.mrf.mxu0
  %v2697 = vadd.f32 %v1336, %v2696
  %2698 = vmatmul.f32.gmra.mxu0 %v1587
  %v2699 = vpop.f32.mrf.mxu0
  %v2700 = vadd.f32 %v1339, %v2699
  %2701 = vdwg.mxu0
  %2702 = vmatpush.msra.mxu0 0.0
  %2703 = vmatpush.msra.mxu0 0.0
  %2704 = vmatpush.msra.mxu0 0.0
  %2705 = vmatpush.msra.mxu0 0.0
  %2706 = vmatpush.msra.mxu0 0.0
  %2707 = vmatpush.msra.mxu0 0.0
  %2708 = vmatpush.msra.mxu0 0.0
  %2709 = vmatpush.msra.mxu0 0.0
  %2710 = vmatpush.msra.mxu0 0.0
  %2711 = vmatpush.msra.mxu0 0.0
  %2712 = vmatpush.msra.mxu0 0.0
  %2713 = vmatpush.msra.mxu0 0.0
  %2714 = vmatpush.msra.mxu0 0.0
  %2715 = vmatpush.msra.mxu0 %v100
  %2716 = vmatpush.msra.mxu0 %v75
  %2717 = vmatpush.msra.mxu0 %v50
  %2718 = vmatmul.f32.gmra.mxu0 %v1554
  %v2719 = vpop.f32.mrf.mxu0
  %v2720 = vadd.f32 %v1359, %v2719
  %2721 = vmatmul.f32.gmra.mxu0 %v1557
  %v2722 = vpop.f32.mrf.mxu0
  %v2723 = vadd.f32 %v1362, %v2722
  %2724 = vmatmul.f32.gmra.mxu0 %v1560
  %v2725 = vpop.f32.mrf.mxu0
  %v2726 = vadd.f32 %v1365, %v2725
  %2727 = vmatmul.f32.gmra.mxu0 %v1563
  %v2728 = vpop.f32.mrf.mxu0
  %v2729 = vadd.f32 %v1368, %v2728
  %2730 = vmatmul.f32.gmra.mxu0 %v1566
  %v2731 = vpop.f32.mrf.mxu0
  %v2732 = vadd.f32 %v1371, %v2731
  %2733 = vmatmul.f32.gmra.mxu0 %v1569
  %v2734 = vpop.f32.mrf.mxu0
  %v2735 = vadd.f32 %v1374, %v2734
  %2736 = vmatmul.f32.gmra.mxu0 %v1572
  %v2737 = vpop.f32.mrf.mxu0
  %v2738 = vadd.f32 %v1377, %v2737
  %2739 = vmatmul.f32.gmra.mxu0 %v1575
  %v2740 = vpop.f32.mrf.mxu0
  %v2741 = vadd.f32 %v1380, %v2740
  %2742 = vmatmul.f32.gmra.mxu0 %v1578
  %v2743 = vpop.f32.mrf.mxu0
  %v2744 = vadd.f32 %v1383, %v2743
  %2745 = vmatmul.f32.gmra.mxu0 %v1581
  %v2746 = vpop.f32.mrf.mxu0
  %v2747 = vadd.f32 %v1386, %v2746
  %2748 = vmatmul.f32.gmra.mxu0 %v1584
  %v2749 = vpop.f32.mrf.mxu0
  %v2750 = vadd.f32 %v1389, %v2749
  %2751 = vmatmul.f32.gmra.mxu0 %v1587
  %v2752 = vpop.f32.mrf.mxu0
  %v2753 = vadd.f32 %v1392, %v2752
  %2754 = vdwg.mxu0
  %2755 = vmatpush.msra.mxu0 0.0
  %2756 = vmatpush.msra.mxu0 0.0
  %2757 = vmatpush.msra.mxu0 0.0
  %2758 = vmatpush.msra.mxu0 0.0
  %2759 = vmatpush.msra.mxu0 0.0
  %2760 = vmatpush.msra.mxu0 0.0
  %2761 = vmatpush.msra.mxu0 0.0
  %2762 = vmatpush.msra.mxu0 0.0
  %2763 = vmatpush.msra.mxu0 0.0
  %2764 = vmatpush.msra.mxu0 0.0
  %2765 = vmatpush.msra.mxu0 0.0
  %2766 = vmatpush.msra.mxu0 0.0
  %2767 = vmatpush.msra.mxu0 0.0
  %2768 = vmatpush.msra.mxu0 %v101
  %2769 = vmatpush.msra.mxu0 %v76
  %2770 = vmatpush.msra.mxu0 %v51
  %2771 = vmatmul.f32.gmra.mxu0 %v1554
  %v2772 = vpop.f32.mrf.mxu0
  %v2773 = vadd.f32 %v1412, %v2772
  %2774 = vmatmul.f32.gmra.mxu0 %v1557
  %v2775 = vpop.f32.mrf.mxu0
  %v2776 = vadd.f32 %v1415, %v2775
  %2777 = vmatmul.f32.gmra.mxu0 %v1560
  %v2778 = vpop.f32.mrf.mxu0
  %v2779 = vadd.f32 %v1418, %v2778
  %2780 = vmatmul.f32.gmra.mxu0 %v1563
  %v2781 = vpop.f32.mrf.mxu0
  %v2782 = vadd.f32 %v1421, %v2781
  %2783 = vmatmul.f32.gmra.mxu0 %v1566
  %v2784 = vpop.f32.mrf.mxu0
  %v2785 = vadd.f32 %v1424, %v2784
  %2786 = vmatmul.f32.gmra.mxu0 %v1569
  %v2787 = vpop.f32.mrf.mxu0
  %v2788 = vadd.f32 %v1427, %v2787
  %2789 = vmatmul.f32.gmra.mxu0 %v1572
  %v2790 = vpop.f32.mrf.mxu0
  %v2791 = vadd.f32 %v1430, %v2790
  %2792 = vmatmul.f32.gmra.mxu0 %v1575
  %v2793 = vpop.f32.mrf.mxu0
  %v2794 = vadd.f32 %v1433, %v2793
  %2795 = vmatmul.f32.gmra.mxu0 %v1578
  %v2796 = vpop.f32.mrf.mxu0
  %v2797 = vadd.f32 %v1436, %v2796
  %2798 = vmatmul.f32.gmra.mxu0 %v1581
  %v2799 = vpop.f32.mrf.mxu0
  %v2800 = vadd.f32 %v1439, %v2799
  %2801 = vmatmul.f32.gmra.mxu0 %v1584
  %v2802 = vpop.f32.mrf.mxu0
  %v2803 = vadd.f32 %v1442, %v2802
  %2804 = vmatmul.f32.gmra.mxu0 %v1587
  %v2805 = vpop.f32.mrf.mxu0
  %v2806 = vadd.f32 %v1445, %v2805
  %2807 = vdwg.mxu0
  %2808 = vmatpush.msra.mxu0 0.0
  %2809 = vmatpush.msra.mxu0 0.0
  %2810 = vmatpush.msra.mxu0 0.0
  %2811 = vmatpush.msra.mxu0 0.0
  %2812 = vmatpush.msra.mxu0 0.0
  %2813 = vmatpush.msra.mxu0 0.0
  %2814 = vmatpush.msra.mxu0 0.0
  %2815 = vmatpush.msra.mxu0 0.0
  %2816 = vmatpush.msra.mxu0 0.0
  %2817 = vmatpush.msra.mxu0 0.0
  %2818 = vmatpush.msra.mxu0 0.0
  %2819 = vmatpush.msra.mxu0 0.0
  %2820 = vmatpush.msra.mxu0 0.0
  %2821 = vmatpush.msra.mxu0 %v102
  %2822 = vmatpush.msra.mxu0 %v77
  %2823 = vmatpush.msra.mxu0 %v52
  %2824 = vmatmul.f32.gmra.mxu0 %v1554
  %v2825 = vpop.f32.mrf.mxu0
  %v2826 = vadd.f32 %v1465, %v2825
  %2827 = vmatmul.f32.gmra.mxu0 %v1557
  %v2828 = vpop.f32.mrf.mxu0
  %v2829 = vadd.f32 %v1468, %v2828
  %2830 = vmatmul.f32.gmra.mxu0 %v1560
  %v2831 = vpop.f32.mrf.mxu0
  %v2832 = vadd.f32 %v1471, %v2831
  %2833 = vmatmul.f32.gmra.mxu0 %v1563
  %v2834 = vpop.f32.mrf.mxu0
  %v2835 = vadd.f32 %v1474, %v2834
  %2836 = vmatmul.f32.gmra.mxu0 %v1566
  %v2837 = vpop.f32.mrf.mxu0
  %v2838 = vadd.f32 %v1477, %v2837
  %2839 = vmatmul.f32.gmra.mxu0 %v1569
  %v2840 = vpop.f32.mrf.mxu0
  %v2841 = vadd.f32 %v1480, %v2840
  %2842 = vmatmul.f32.gmra.mxu0 %v1572
  %v2843 = vpop.f32.mrf.mxu0
  %v2844 = vadd.f32 %v1483, %v2843
  %2845 = vmatmul.f32.gmra.mxu0 %v1575
  %v2846 = vpop.f32.mrf.mxu0
  %v2847 = vadd.f32 %v1486, %v2846
  %2848 = vmatmul.f32.gmra.mxu0 %v1578
  %v2849 = vpop.f32.mrf.mxu0
  %v2850 = vadd.f32 %v1489, %v2849
  %2851 = vmatmul.f32.gmra.mxu0 %v1581
  %v2852 = vpop.f32.mrf.mxu0
  %v2853 = vadd.f32 %v1492, %v2852
  %2854 = vmatmul.f32.gmra.mxu0 %v1584
  %v2855 = vpop.f32.mrf.mxu0
  %v2856 = vadd.f32 %v1495, %v2855
  %2857 = vmatmul.f32.gmra.mxu0 %v1587
  %v2858 = vpop.f32.mrf.mxu0
  %v2859 = vadd.f32 %v1498, %v2858
  %2860 = vdwg.mxu0
  %2861 = vmatpush.msra.mxu0 0.0
  %2862 = vmatpush.msra.mxu0 0.0
  %2863 = vmatpush.msra.mxu0 0.0
  %2864 = vmatpush.msra.mxu0 0.0
  %2865 = vmatpush.msra.mxu0 0.0
  %2866 = vmatpush.msra.mxu0 0.0
  %2867 = vmatpush.msra.mxu0 0.0
  %2868 = vmatpush.msra.mxu0 0.0
  %2869 = vmatpush.msra.mxu0 0.0
  %2870 = vmatpush.msra.mxu0 0.0
  %2871 = vmatpush.msra.mxu0 0.0
  %2872 = vmatpush.msra.mxu0 0.0
  %2873 = vmatpush.msra.mxu0 0.0
  %2874 = vmatpush.msra.mxu0 %v103
  %2875 = vmatpush.msra.mxu0 %v78
  %2876 = vmatpush.msra.mxu0 %v53
  %2877 = vmatmul.f32.gmra.mxu0 %v1554
  %v2878 = vpop.f32.mrf.mxu0
  %v2879 = vadd.f32 %v1518, %v2878
  %2880 = vmatmul.f32.gmra.mxu0 %v1557
  %v2881 = vpop.f32.mrf.mxu0
  %v2882 = vadd.f32 %v1521, %v2881
  %2883 = vmatmul.f32.gmra.mxu0 %v1560
  %v2884 = vpop.f32.mrf.mxu0
  %v2885 = vadd.f32 %v1524, %v2884
  %2886 = vmatmul.f32.gmra.mxu0 %v1563
  %v2887 = vpop.f32.mrf.mxu0
  %v2888 = vadd.f32 %v1527, %v2887
  %2889 = vmatmul.f32.gmra.mxu0 %v1566
  %v2890 = vpop.f32.mrf.mxu0
  %v2891 = vadd.f32 %v1530, %v2890
  %2892 = vmatmul.f32.gmra.mxu0 %v1569
  %v2893 = vpop.f32.mrf.mxu0
  %v2894 = vadd.f32 %v1533, %v2893
  %2895 = vmatmul.f32.gmra.mxu0 %v1572
  %v2896 = vpop.f32.mrf.mxu0
  %v2897 = vadd.f32 %v1536, %v2896
  %2898 = vmatmul.f32.gmra.mxu0 %v1575
  %v2899 = vpop.f32.mrf.mxu0
  %v2900 = vadd.f32 %v1539, %v2899
  %2901 = vmatmul.f32.gmra.mxu0 %v1578
  %v2902 = vpop.f32.mrf.mxu0
  %v2903 = vadd.f32 %v1542, %v2902
  %2904 = vmatmul.f32.gmra.mxu0 %v1581
  %v2905 = vpop.f32.mrf.mxu0
  %v2906 = vadd.f32 %v1545, %v2905
  %2907 = vmatmul.f32.gmra.mxu0 %v1584
  %v2908 = vpop.f32.mrf.mxu0
  %v2909 = vadd.f32 %v1548, %v2908
  %2910 = vmatmul.f32.gmra.mxu0 %v1587
  %v2911 = vpop.f32.mrf.mxu0
  %v2912 = vadd.f32 %v1551, %v2911
  %2913 = vdwg.mxu0
  %2914 = vst [vmem:[%s4] sm:$0xff] %v1607
  %2915 = vst [vmem:[%s4 + $0x8] sm:$0xff] %v1660
  %2916 = vst [vmem:[%s4 + $0x10] sm:$0xff] %v1713
  %2917 = vst [vmem:[%s4 + $0x18] sm:$0xff] %v1766
  %2918 = vst [vmem:[%s4 + $0x20] sm:$0xff] %v1819
  %2919 = vst [vmem:[%s4 + $0x28] sm:$0xff] %v1872
  %2920 = vst [vmem:[%s4 + $0x30] sm:$0xff] %v1925
  %2921 = vst [vmem:[%s4 + $0x38] sm:$0xff] %v1978
  %2922 = vst [vmem:[%s4 + $0x40] sm:$0xff] %v2031
  %2923 = vst [vmem:[%s4 + $0x48] sm:$0xff] %v2084
  %2924 = vst [vmem:[%s4 + $0x50] sm:$0xff] %v2137
  %2925 = vst [vmem:[%s4 + $0x58] sm:$0xff] %v2190
  %2926 = vst [vmem:[%s4 + $0x60] sm:$0xff] %v2243
  %2927 = vst [vmem:[%s4 + $0x68] sm:$0xff] %v2296
  %2928 = vst [vmem:[%s4 + $0x70] sm:$0xff] %v2349
  %2929 = vst [vmem:[%s4 + $0x78] sm:$0xff] %v2402
  %2930 = vst [vmem:[%s4 + $0x80] sm:$0xff] %v2455
  %2931 = vst [vmem:[%s4 + $0x88] sm:$0xff] %v2508
  %2932 = vst [vmem:[%s4 + $0x90] sm:$0xff] %v2561
  %2933 = vst [vmem:[%s4 + $0x98] sm:$0xff] %v2614
  %2934 = vst [vmem:[%s4 + $0xa0] sm:$0xff] %v2667
  %2935 = vst [vmem:[%s4 + $0xa8] sm:$0xff] %v2720
  %2936 = vst [vmem:[%s4 + $0xb0] sm:$0xff] %v2773
  %2937 = vst [vmem:[%s4 + $0xb8] sm:$0xff] %v2826
  %vm2938 = vcmask 523264
  %2939 = vst.msk [vmem:[%s4 + $0xc0] sm:$0xff] %vm2938, %v2879
  %2940 = vst [vmem:[%s4 + $0xc8] sm:$0xff] %v1610
  %2941 = vst [vmem:[%s4 + $0xd0] sm:$0xff] %v1663
  %2942 = vst [vmem:[%s4 + $0xd8] sm:$0xff] %v1716
  %2943 = vst [vmem:[%s4 + $0xe0] sm:$0xff] %v1769
  %2944 = vst [vmem:[%s4 + $0xe8] sm:$0xff] %v1822
  %2945 = vst [vmem:[%s4 + $0xf0] sm:$0xff] %v1875
  %2946 = vst [vmem:[%s4 + $0xf8] sm:$0xff] %v1928
  %2947 = vst [vmem:[%s4 + $0x100] sm:$0xff] %v1981
  %2948 = vst [vmem:[%s4 + $0x108] sm:$0xff] %v2034
  %2949 = vst [vmem:[%s4 + $0x110] sm:$0xff] %v2087
  %2950 = vst [vmem:[%s4 + $0x118] sm:$0xff] %v2140
  %2951 = vst [vmem:[%s4 + $0x120] sm:$0xff] %v2193
  %2952 = vst [vmem:[%s4 + $0x128] sm:$0xff] %v2246
  %2953 = vst [vmem:[%s4 + $0x130] sm:$0xff] %v2299
  %2954 = vst [vmem:[%s4 + $0x138] sm:$0xff] %v2352
  %2955 = vst [vmem:[%s4 + $0x140] sm:$0xff] %v2405
  %2956 = vst [vmem:[%s4 + $0x148] sm:$0xff] %v2458
  %2957 = vst [vmem:[%s4 + $0x150] sm:$0xff] %v2511
  %2958 = vst [vmem:[%s4 + $0x158] sm:$0xff] %v2564
  %2959 = vst [vmem:[%s4 + $0x160] sm:$0xff] %v2617
  %2960 = vst [vmem:[%s4 + $0x168] sm:$0xff] %v2670
  %2961 = vst [vmem:[%s4 + $0x170] sm:$0xff] %v2723
  %2962 = vst [vmem:[%s4 + $0x178] sm:$0xff] %v2776
  %2963 = vst [vmem:[%s4 + $0x180] sm:$0xff] %v2829
  %2964 = vst.msk [vmem:[%s4 + $0x188] sm:$0xff] %vm2938, %v2882
  %2965 = vst [vmem:[%s4 + $0x190] sm:$0xff] %v1613
  %2966 = vst [vmem:[%s4 + $0x198] sm:$0xff] %v1666
  %2967 = vst [vmem:[%s4 + $0x1a0] sm:$0xff] %v1719
  %2968 = vst [vmem:[%s4 + $0x1a8] sm:$0xff] %v1772
  %2969 = vst [vmem:[%s4 + $0x1b0] sm:$0xff] %v1825
  %2970 = vst [vmem:[%s4 + $0x1b8] sm:$0xff] %v1878
  %2971 = vst [vmem:[%s4 + $0x1c0] sm:$0xff] %v1931
  %2972 = vst [vmem:[%s4 + $0x1c8] sm:$0xff] %v1984
  %2973 = vst [vmem:[%s4 + $0x1d0] sm:$0xff] %v2037
  %2974 = vst [vmem:[%s4 + $0x1d8] sm:$0xff] %v2090
  %2975 = vst [vmem:[%s4 + $0x1e0] sm:$0xff] %v2143
  %2976 = vst [vmem:[%s4 + $0x1e8] sm:$0xff] %v2196
  %2977 = vst [vmem:[%s4 + $0x1f0] sm:$0xff] %v2249
  %2978 = vst [vmem:[%s4 + $0x1f8] sm:$0xff] %v2302
  %2979 = vst [vmem:[%s4 + $0x200] sm:$0xff] %v2355
  %2980 = vst [vmem:[%s4 + $0x208] sm:$0xff] %v2408
  %2981 = vst [vmem:[%s4 + $0x210] sm:$0xff] %v2461
  %2982 = vst [vmem:[%s4 + $0x218] sm:$0xff] %v2514
  %2983 = vst [vmem:[%s4 + $0x220] sm:$0xff] %v2567
  %2984 = vst [vmem:[%s4 + $0x228] sm:$0xff] %v2620
  %2985 = vst [vmem:[%s4 + $0x230] sm:$0xff] %v2673
  %2986 = vst [vmem:[%s4 + $0x238] sm:$0xff] %v2726
  %2987 = vst [vmem:[%s4 + $0x240] sm:$0xff] %v2779
  %2988 = vst [vmem:[%s4 + $0x248] sm:$0xff] %v2832
  %2989 = vst.msk [vmem:[%s4 + $0x250] sm:$0xff] %vm2938, %v2885
  %2990 = vst [vmem:[%s4 + $0x258] sm:$0xff] %v1616
  %2991 = vst [vmem:[%s4 + $0x260] sm:$0xff] %v1669
  %2992 = vst [vmem:[%s4 + $0x268] sm:$0xff] %v1722
  %2993 = vst [vmem:[%s4 + $0x270] sm:$0xff] %v1775
  %2994 = vst [vmem:[%s4 + $0x278] sm:$0xff] %v1828
  %2995 = vst [vmem:[%s4 + $0x280] sm:$0xff] %v1881
  %2996 = vst [vmem:[%s4 + $0x288] sm:$0xff] %v1934
  %2997 = vst [vmem:[%s4 + $0x290] sm:$0xff] %v1987
  %2998 = vst [vmem:[%s4 + $0x298] sm:$0xff] %v2040
  %2999 = vst [vmem:[%s4 + $0x2a0] sm:$0xff] %v2093
  %3000 = vst [vmem:[%s4 + $0x2a8] sm:$0xff] %v2146
  %3001 = vst [vmem:[%s4 + $0x2b0] sm:$0xff] %v2199
  %3002 = vst [vmem:[%s4 + $0x2b8] sm:$0xff] %v2252
  %3003 = vst [vmem:[%s4 + $0x2c0] sm:$0xff] %v2305
  %3004 = vst [vmem:[%s4 + $0x2c8] sm:$0xff] %v2358
  %3005 = vst [vmem:[%s4 + $0x2d0] sm:$0xff] %v2411
  %3006 = vst [vmem:[%s4 + $0x2d8] sm:$0xff] %v2464
  %3007 = vst [vmem:[%s4 + $0x2e0] sm:$0xff] %v2517
  %3008 = vst [vmem:[%s4 + $0x2e8] sm:$0xff] %v2570
  %3009 = vst [vmem:[%s4 + $0x2f0] sm:$0xff] %v2623
  %3010 = vst [vmem:[%s4 + $0x2f8] sm:$0xff] %v2676
  %3011 = vst [vmem:[%s4 + $0x300] sm:$0xff] %v2729
  %3012 = vst [vmem:[%s4 + $0x308] sm:$0xff] %v2782
  %3013 = vst [vmem:[%s4 + $0x310] sm:$0xff] %v2835
  %3014 = vst.msk [vmem:[%s4 + $0x318] sm:$0xff] %vm2938, %v2888
  %3015 = vst [vmem:[%s4 + $0x320] sm:$0xff] %v1619
  %3016 = vst [vmem:[%s4 + $0x328] sm:$0xff] %v1672
  %3017 = vst [vmem:[%s4 + $0x330] sm:$0xff] %v1725
  %3018 = vst [vmem:[%s4 + $0x338] sm:$0xff] %v1778
  %3019 = vst [vmem:[%s4 + $0x340] sm:$0xff] %v1831
  %3020 = vst [vmem:[%s4 + $0x348] sm:$0xff] %v1884
  %3021 = vst [vmem:[%s4 + $0x350] sm:$0xff] %v1937
  %3022 = vst [vmem:[%s4 + $0x358] sm:$0xff] %v1990
  %3023 = vst [vmem:[%s4 + $0x360] sm:$0xff] %v2043
  %3024 = vst [vmem:[%s4 + $0x368] sm:$0xff] %v2096
  %3025 = vst [vmem:[%s4 + $0x370] sm:$0xff] %v2149
  %3026 = vst [vmem:[%s4 + $0x378] sm:$0xff] %v2202
  %3027 = vst [vmem:[%s4 + $0x380] sm:$0xff] %v2255
  %3028 = vst [vmem:[%s4 + $0x388] sm:$0xff] %v2308
  %3029 = vst [vmem:[%s4 + $0x390] sm:$0xff] %v2361
  %3030 = vst [vmem:[%s4 + $0x398] sm:$0xff] %v2414
  %3031 = vst [vmem:[%s4 + $0x3a0] sm:$0xff] %v2467
  %3032 = vst [vmem:[%s4 + $0x3a8] sm:$0xff] %v2520
  %3033 = vst [vmem:[%s4 + $0x3b0] sm:$0xff] %v2573
  %3034 = vst [vmem:[%s4 + $0x3b8] sm:$0xff] %v2626
  %3035 = vst [vmem:[%s4 + $0x3c0] sm:$0xff] %v2679
  %3036 = vst [vmem:[%s4 + $0x3c8] sm:$0xff] %v2732
  %3037 = vst [vmem:[%s4 + $0x3d0] sm:$0xff] %v2785
  %3038 = vst [vmem:[%s4 + $0x3d8] sm:$0xff] %v2838
  %3039 = vst.msk [vmem:[%s4 + $0x3e0] sm:$0xff] %vm2938, %v2891
  %3040 = vst [vmem:[%s4 + $0x3e8] sm:$0xff] %v1622
  %3041 = vst [vmem:[%s4 + $0x3f0] sm:$0xff] %v1675
  %3042 = vst [vmem:[%s4 + $0x3f8] sm:$0xff] %v1728
  %3043 = vst [vmem:[%s4 + $0x400] sm:$0xff] %v1781
  %3044 = vst [vmem:[%s4 + $0x408] sm:$0xff] %v1834
  %3045 = vst [vmem:[%s4 + $0x410] sm:$0xff] %v1887
  %3046 = vst [vmem:[%s4 + $0x418] sm:$0xff] %v1940
  %3047 = vst [vmem:[%s4 + $0x420] sm:$0xff] %v1993
  %3048 = vst [vmem:[%s4 + $0x428] sm:$0xff] %v2046
  %3049 = vst [vmem:[%s4 + $0x430] sm:$0xff] %v2099
  %3050 = vst [vmem:[%s4 + $0x438] sm:$0xff] %v2152
  %3051 = vst [vmem:[%s4 + $0x440] sm:$0xff] %v2205
  %3052 = vst [vmem:[%s4 + $0x448] sm:$0xff] %v2258
  %3053 = vst [vmem:[%s4 + $0x450] sm:$0xff] %v2311
  %3054 = vst [vmem:[%s4 + $0x458] sm:$0xff] %v2364
  %3055 = vst [vmem:[%s4 + $0x460] sm:$0xff] %v2417
  %3056 = vst [vmem:[%s4 + $0x468] sm:$0xff] %v2470
  %3057 = vst [vmem:[%s4 + $0x470] sm:$0xff] %v2523
  %3058 = vst [vmem:[%s4 + $0x478] sm:$0xff] %v2576
  %3059 = vst [vmem:[%s4 + $0x480] sm:$0xff] %v2629
  %3060 = vst [vmem:[%s4 + $0x488] sm:$0xff] %v2682
  %3061 = vst [vmem:[%s4 + $0x490] sm:$0xff] %v2735
  %3062 = vst [vmem:[%s4 + $0x498] sm:$0xff] %v2788
  %3063 = vst [vmem:[%s4 + $0x4a0] sm:$0xff] %v2841
  %3064 = vst.msk [vmem:[%s4 + $0x4a8] sm:$0xff] %vm2938, %v2894
  %3065 = vst [vmem:[%s4 + $0x4b0] sm:$0xff] %v1625
  %3066 = vst [vmem:[%s4 + $0x4b8] sm:$0xff] %v1678
  %3067 = vst [vmem:[%s4 + $0x4c0] sm:$0xff] %v1731
  %3068 = vst [vmem:[%s4 + $0x4c8] sm:$0xff] %v1784
  %3069 = vst [vmem:[%s4 + $0x4d0] sm:$0xff] %v1837
  %3070 = vst [vmem:[%s4 + $0x4d8] sm:$0xff] %v1890
  %3071 = vst [vmem:[%s4 + $0x4e0] sm:$0xff] %v1943
  %3072 = vst [vmem:[%s4 + $0x4e8] sm:$0xff] %v1996
  %3073 = vst [vmem:[%s4 + $0x4f0] sm:$0xff] %v2049
  %3074 = vst [vmem:[%s4 + $0x4f8] sm:$0xff] %v2102
  %3075 = vst [vmem:[%s4 + $0x500] sm:$0xff] %v2155
  %3076 = vst [vmem:[%s4 + $0x508] sm:$0xff] %v2208
  %3077 = vst [vmem:[%s4 + $0x510] sm:$0xff] %v2261
  %3078 = vst [vmem:[%s4 + $0x518] sm:$0xff] %v2314
  %3079 = vst [vmem:[%s4 + $0x520] sm:$0xff] %v2367
  %3080 = vst [vmem:[%s4 + $0x528] sm:$0xff] %v2420
  %3081 = vst [vmem:[%s4 + $0x530] sm:$0xff] %v2473
  %3082 = vst [vmem:[%s4 + $0x538] sm:$0xff] %v2526
  %3083 = vst [vmem:[%s4 + $0x540] sm:$0xff] %v2579
  %3084 = vst [vmem:[%s4 + $0x548] sm:$0xff] %v2632
  %3085 = vst [vmem:[%s4 + $0x550] sm:$0xff] %v2685
  %3086 = vst [vmem:[%s4 + $0x558] sm:$0xff] %v2738
  %3087 = vst [vmem:[%s4 + $0x560] sm:$0xff] %v2791
  %3088 = vst [vmem:[%s4 + $0x568] sm:$0xff] %v2844
  %3089 = vst.msk [vmem:[%s4 + $0x570] sm:$0xff] %vm2938, %v2897
  %3090 = vst [vmem:[%s4 + $0x578] sm:$0xff] %v1628
  %3091 = vst [vmem:[%s4 + $0x580] sm:$0xff] %v1681
  %3092 = vst [vmem:[%s4 + $0x588] sm:$0xff] %v1734
  %3093 = vst [vmem:[%s4 + $0x590] sm:$0xff] %v1787
  %3094 = vst [vmem:[%s4 + $0x598] sm:$0xff] %v1840
  %3095 = vst [vmem:[%s4 + $0x5a0] sm:$0xff] %v1893
  %3096 = vst [vmem:[%s4 + $0x5a8] sm:$0xff] %v1946
  %3097 = vst [vmem:[%s4 + $0x5b0] sm:$0xff] %v1999
  %3098 = vst [vmem:[%s4 + $0x5b8] sm:$0xff] %v2052
  %3099 = vst [vmem:[%s4 + $0x5c0] sm:$0xff] %v2105
  %3100 = vst [vmem:[%s4 + $0x5c8] sm:$0xff] %v2158
  %3101 = vst [vmem:[%s4 + $0x5d0] sm:$0xff] %v2211
  %3102 = vst [vmem:[%s4 + $0x5d8] sm:$0xff] %v2264
  %3103 = vst [vmem:[%s4 + $0x5e0] sm:$0xff] %v2317
  %3104 = vst [vmem:[%s4 + $0x5e8] sm:$0xff] %v2370
  %3105 = vst [vmem:[%s4 + $0x5f0] sm:$0xff] %v2423
  %3106 = vst [vmem:[%s4 + $0x5f8] sm:$0xff] %v2476
  %3107 = vst [vmem:[%s4 + $0x600] sm:$0xff] %v2529
  %3108 = vst [vmem:[%s4 + $0x608] sm:$0xff] %v2582
  %3109 = vst [vmem:[%s4 + $0x610] sm:$0xff] %v2635
  %3110 = vst [vmem:[%s4 + $0x618] sm:$0xff] %v2688
  %3111 = vst [vmem:[%s4 + $0x620] sm:$0xff] %v2741
  %3112 = vst [vmem:[%s4 + $0x628] sm:$0xff] %v2794
  %3113 = vst [vmem:[%s4 + $0x630] sm:$0xff] %v2847
  %3114 = vst.msk [vmem:[%s4 + $0x638] sm:$0xff] %vm2938, %v2900
  %3115 = vst [vmem:[%s4 + $0x640] sm:$0xff] %v1631
  %3116 = vst [vmem:[%s4 + $0x648] sm:$0xff] %v1684
  %3117 = vst [vmem:[%s4 + $0x650] sm:$0xff] %v1737
  %3118 = vst [vmem:[%s4 + $0x658] sm:$0xff] %v1790
  %3119 = vst [vmem:[%s4 + $0x660] sm:$0xff] %v1843
  %3120 = vst [vmem:[%s4 + $0x668] sm:$0xff] %v1896
  %3121 = vst [vmem:[%s4 + $0x670] sm:$0xff] %v1949
  %3122 = vst [vmem:[%s4 + $0x678] sm:$0xff] %v2002
  %3123 = vst [vmem:[%s4 + $0x680] sm:$0xff] %v2055
  %3124 = vst [vmem:[%s4 + $0x688] sm:$0xff] %v2108
  %3125 = vst [vmem:[%s4 + $0x690] sm:$0xff] %v2161
  %3126 = vst [vmem:[%s4 + $0x698] sm:$0xff] %v2214
  %3127 = vst [vmem:[%s4 + $0x6a0] sm:$0xff] %v2267
  %3128 = vst [vmem:[%s4 + $0x6a8] sm:$0xff] %v2320
  %3129 = vst [vmem:[%s4 + $0x6b0] sm:$0xff] %v2373
  %3130 = vst [vmem:[%s4 + $0x6b8] sm:$0xff] %v2426
  %3131 = vst [vmem:[%s4 + $0x6c0] sm:$0xff] %v2479
  %3132 = vst [vmem:[%s4 + $0x6c8] sm:$0xff] %v2532
  %3133 = vst [vmem:[%s4 + $0x6d0] sm:$0xff] %v2585
  %3134 = vst [vmem:[%s4 + $0x6d8] sm:$0xff] %v2638
  %3135 = vst [vmem:[%s4 + $0x6e0] sm:$0xff] %v2691
  %3136 = vst [vmem:[%s4 + $0x6e8] sm:$0xff] %v2744
  %3137 = vst [vmem:[%s4 + $0x6f0] sm:$0xff] %v2797
  %3138 = vst [vmem:[%s4 + $0x6f8] sm:$0xff] %v2850
  %3139 = vst.msk [vmem:[%s4 + $0x700] sm:$0xff] %vm2938, %v2903
  %3140 = vst [vmem:[%s4 + $0x708] sm:$0xff] %v1634
  %3141 = vst [vmem:[%s4 + $0x710] sm:$0xff] %v1687
  %3142 = vst [vmem:[%s4 + $0x718] sm:$0xff] %v1740
  %3143 = vst [vmem:[%s4 + $0x720] sm:$0xff] %v1793
  %3144 = vst [vmem:[%s4 + $0x728] sm:$0xff] %v1846
  %3145 = vst [vmem:[%s4 + $0x730] sm:$0xff] %v1899
  %3146 = vst [vmem:[%s4 + $0x738] sm:$0xff] %v1952
  %3147 = vst [vmem:[%s4 + $0x740] sm:$0xff] %v2005
  %3148 = vst [vmem:[%s4 + $0x748] sm:$0xff] %v2058
  %3149 = vst [vmem:[%s4 + $0x750] sm:$0xff] %v2111
  %3150 = vst [vmem:[%s4 + $0x758] sm:$0xff] %v2164
  %3151 = vst [vmem:[%s4 + $0x760] sm:$0xff] %v2217
  %3152 = vst [vmem:[%s4 + $0x768] sm:$0xff] %v2270
  %3153 = vst [vmem:[%s4 + $0x770] sm:$0xff] %v2323
  %3154 = vst [vmem:[%s4 + $0x778] sm:$0xff] %v2376
  %3155 = vst [vmem:[%s4 + $0x780] sm:$0xff] %v2429
  %3156 = vst [vmem:[%s4 + $0x788] sm:$0xff] %v2482
  %3157 = vst [vmem:[%s4 + $0x790] sm:$0xff] %v2535
  %3158 = vst [vmem:[%s4 + $0x798] sm:$0xff] %v2588
  %3159 = vst [vmem:[%s4 + $0x7a0] sm:$0xff] %v2641
  %3160 = vst [vmem:[%s4 + $0x7a8] sm:$0xff] %v2694
  %3161 = vst [vmem:[%s4 + $0x7b0] sm:$0xff] %v2747
  %3162 = vst [vmem:[%s4 + $0x7b8] sm:$0xff] %v2800
  %3163 = vst [vmem:[%s4 + $0x7c0] sm:$0xff] %v2853
  %3164 = vst.msk [vmem:[%s4 + $0x7c8] sm:$0xff] %vm2938, %v2906
  %3165 = vst [vmem:[%s4 + $0x7d0] sm:$0xff] %v1637
  %3166 = vst [vmem:[%s4 + $0x7d8] sm:$0xff] %v1690
  %3167 = vst [vmem:[%s4 + $0x7e0] sm:$0xff] %v1743
  %3168 = vst [vmem:[%s4 + $0x7e8] sm:$0xff] %v1796
  %3169 = vst [vmem:[%s4 + $0x7f0] sm:$0xff] %v1849
  %3170 = vst [vmem:[%s4 + $0x7f8] sm:$0xff] %v1902
  %3171 = vst [vmem:[%s4 + $0x800] sm:$0xff] %v1955
  %3172 = vst [vmem:[%s4 + $0x808] sm:$0xff] %v2008
  %3173 = vst [vmem:[%s4 + $0x810] sm:$0xff] %v2061
  %3174 = vst [vmem:[%s4 + $0x818] sm:$0xff] %v2114
  %3175 = vst [vmem:[%s4 + $0x820] sm:$0xff] %v2167
  %3176 = vst [vmem:[%s4 + $0x828] sm:$0xff] %v2220
  %3177 = vst [vmem:[%s4 + $0x830] sm:$0xff] %v2273
  %3178 = vst [vmem:[%s4 + $0x838] sm:$0xff] %v2326
  %3179 = vst [vmem:[%s4 + $0x840] sm:$0xff] %v2379
  %3180 = vst [vmem:[%s4 + $0x848] sm:$0xff] %v2432
  %3181 = vst [vmem:[%s4 + $0x850] sm:$0xff] %v2485
  %3182 = vst [vmem:[%s4 + $0x858] sm:$0xff] %v2538
  %3183 = vst [vmem:[%s4 + $0x860] sm:$0xff] %v2591
  %3184 = vst [vmem:[%s4 + $0x868] sm:$0xff] %v2644
  %3185 = vst [vmem:[%s4 + $0x870] sm:$0xff] %v2697
  %3186 = vst [vmem:[%s4 + $0x878] sm:$0xff] %v2750
  %3187 = vst [vmem:[%s4 + $0x880] sm:$0xff] %v2803
  %3188 = vst [vmem:[%s4 + $0x888] sm:$0xff] %v2856
  %3189 = vst.msk [vmem:[%s4 + $0x890] sm:$0xff] %vm2938, %v2909
  %3190 = vst [vmem:[%s4 + $0x898] sm:$0xff] %v1640
  %3191 = vst [vmem:[%s4 + $0x8a0] sm:$0xff] %v1693
  %3192 = vst [vmem:[%s4 + $0x8a8] sm:$0xff] %v1746
  %3193 = vst [vmem:[%s4 + $0x8b0] sm:$0xff] %v1799
  %3194 = vst [vmem:[%s4 + $0x8b8] sm:$0xff] %v1852
  %3195 = vst [vmem:[%s4 + $0x8c0] sm:$0xff] %v1905
  %3196 = vst [vmem:[%s4 + $0x8c8] sm:$0xff] %v1958
  %3197 = vst [vmem:[%s4 + $0x8d0] sm:$0xff] %v2011
  %3198 = vst [vmem:[%s4 + $0x8d8] sm:$0xff] %v2064
  %3199 = vst [vmem:[%s4 + $0x8e0] sm:$0xff] %v2117
  %3200 = vst [vmem:[%s4 + $0x8e8] sm:$0xff] %v2170
  %3201 = vst [vmem:[%s4 + $0x8f0] sm:$0xff] %v2223
  %3202 = vst [vmem:[%s4 + $0x8f8] sm:$0xff] %v2276
  %3203 = vst [vmem:[%s4 + $0x900] sm:$0xff] %v2329
  %3204 = vst [vmem:[%s4 + $0x908] sm:$0xff] %v2382
  %3205 = vst [vmem:[%s4 + $0x910] sm:$0xff] %v2435
  %3206 = vst [vmem:[%s4 + $0x918] sm:$0xff] %v2488
  %3207 = vst [vmem:[%s4 + $0x920] sm:$0xff] %v2541
  %3208 = vst [vmem:[%s4 + $0x928] sm:$0xff] %v2594
  %3209 = vst [vmem:[%s4 + $0x930] sm:$0xff] %v2647
  %3210 = vst [vmem:[%s4 + $0x938] sm:$0xff] %v2700
  %3211 = vst [vmem:[%s4 + $0x940] sm:$0xff] %v2753
  %3212 = vst [vmem:[%s4 + $0x948] sm:$0xff] %v2806
  %3213 = vst [vmem:[%s4 + $0x950] sm:$0xff] %v2859
  %3214 = vst.msk [vmem:[%s4 + $0x958] sm:$0xff] %vm2938, %v2912
  // Predicated region
  $region18: #{_forward_impl.1} parent=0 // pred_check
    _
  $region19: #{_forward_impl.1} parent=0 // pred_check_branch
    %3216 = sbr.rel (0) target = $region21
  $region20: #{_forward_impl.1} parent=0 // pred_region
    _
  $region21: #{_forward_impl.1} parent=0 // pred_fallthru
    _
  // Predicated region
  $region22: #{_forward_impl.1} parent=0 // pred_check
    _
  $region23: #{_forward_impl.1} parent=0 // pred_check_branch
    %3218 = sbr.rel (0) target = $region25
  $region24: #{_forward_impl.1} parent=0 // pred_region
    _
  $region25: #{_forward_impl.1} parent=0 // pred_fallthru
    _

</llo_original>
